<compile_context>
chip_gen: v6e
topology: v6e:2x2x1
jax: 0.10.0
libtpu: 0.0.40
codegen_flags: <defaults>
</compile_context>

<pallas_src>
import functools

import jax
import jax.numpy as jnp
import numpy as np
from jax.experimental import pallas as pl
from jax.experimental.pallas import tpu as pltpu

EPS = 1e-5
LANE = 128
SUBLANE = 8


def _round_up(x, m):
    return (x + m - 1) // m * m


def _conv_image(xp_ref, w_ref, b_ref, acc_ref, *, k, stride, ho, wo):
    """Conv rows for one image.

    xp_ref : (1, Hp, Wp, CinP)  padded NHWC input tile (VMEM)
    w_ref  : (K*K, CinP, CoutP) conv weight taps
    b_ref  : (1, CoutP)         conv bias
    acc_ref: (Ho*Wo, CoutP) f32 VMEM scratch accumulator (not vregs)
    returns (Ho*Wo, CoutP) f32 conv + bias rows.
    """
    cinp = xp_ref.shape[-1]
    for kh in range(k):
        for kw in range(k):
            if stride == 1:
                sl = xp_ref[0, kh:kh + ho, kw:kw + wo, :]
            else:
                # TODO(synk): strided window slice is untested for stride > 1;
                # route through an explicit im2col copy if it fails to lower.
                sl = xp_ref[0, kh:kh + stride * (ho - 1) + 1:stride,
                            kw:kw + stride * (wo - 1) + 1:stride, :]
            t = jnp.dot(sl.reshape(ho * wo, cinp), w_ref[kh * k + kw],
                        preferred_element_type=jnp.float32)
            if kh == 0 and kw == 0:
                acc_ref[...] = t          # overwrite: scratch persists per core
            else:
                acc_ref[...] += t
    return acc_ref[...] + b_ref[...]


def _conv_stats_kernel(xp_ref, w_ref, b_ref, stats_ref, acc_ref,
                       *, k, stride, ho, wo):
    """Pass 1: conv + bias, emit per-image [sum(y); sum(y*y)] partials only."""
    y = _conv_image(xp_ref, w_ref, b_ref, acc_ref, k=k, stride=stride, ho=ho, wo=wo)
    coutp = y.shape[-1]
    s1 = jnp.sum(y, axis=0, keepdims=True)           # (1, CoutP)
    s2 = jnp.sum(y * y, axis=0, keepdims=True)       # (1, CoutP)
    # Pad to a full 8-sublane block so the store is a single unmasked vst.
    row = jax.lax.broadcasted_iota(jnp.int32, (SUBLANE, coutp), 0)
    stats_ref[0] = jnp.where(row == 0, s1, jnp.where(row == 1, s2, 0.0))


def _conv_bn_relu_kernel(xp_ref, w_ref, b_ref, stats_ref, gamma_ref, beta_ref,
                         o_ref, acc_ref, *, k, stride, ho, wo, m):
    """Pass 2: recompute conv (no HBM intermediate), finalize BN in-kernel,
    apply scale/shift + ReLU, write lane-dense output rows."""
    y = _conv_image(xp_ref, w_ref, b_ref, acc_ref, k=k, stride=stride, ho=ho, wo=wo)

    st = stats_ref[...]                               # (N, 8, CoutP), tiny
    s1 = jnp.sum(st[:, 0:1, :], axis=0)               # (1, CoutP)
    s2 = jnp.sum(st[:, 1:2, :], axis=0)               # (1, CoutP)
    inv_m = 1.0 / float(m)
    mean = s1 * inv_m
    var = jnp.maximum(s2 * inv_m - mean * mean, 0.0)  # biased var (PyTorch BN)
    inv = jax.lax.rsqrt(var + EPS)
    scale = gamma_ref[...] * inv                      # (1, CoutP)
    shift = beta_ref[...] - mean * scale

    o_ref[...] = jnp.maximum(y * scale + shift, 0.0)


@functools.partial(jax.jit, static_argnames=("stride", "padding"))
def conv_module_forward(x, conv_w, conv_b, bn_gamma, bn_beta, *, stride, padding):
    """Equivalent of ConvModule.forward(x) with BN in training mode.

    x: (N, Cin, H, W) float32 (NCHW, like PyTorch)
    conv_w: (Cout, Cin, K, K); conv_b/bn_gamma/bn_beta: (Cout,)
    returns: (N, Cout, Ho, Wo)
    """
    n, cin, h, w = x.shape
    cout, _, k, _ = conv_w.shape
    ho = (h + 2 * padding - k) // stride + 1
    wo = (w + 2 * padding - k) // stride + 1
    m = n * ho * wo

    cinp = _round_up(cin, SUBLANE)    # sublane-friendly contraction dim
    coutp = _round_up(cout, LANE)     # lane-dense output channels

    # ---- layout prep (single transpose/pad passes, NHWC internally) --------
    xp = jnp.transpose(x.astype(jnp.float32), (0, 2, 3, 1))           # NHWC
    xp = jnp.pad(xp, ((0, 0), (padding, padding), (padding, padding),
                      (0, cinp - cin)))
    hp, wp = xp.shape[1], xp.shape[2]

    # (Cout, Cin, K, K) -> (K*K, CinP, CoutP), zero padded.
    w2 = jnp.transpose(conv_w.astype(jnp.float32), (2, 3, 1, 0)).reshape(k * k, cin, cout)
    w2 = jnp.pad(w2, ((0, 0), (0, cinp - cin), (0, coutp - cout)))
    b2 = jnp.pad(conv_b.astype(jnp.float32), (0, coutp - cout)).reshape(1, coutp)
    gamma2 = jnp.pad(bn_gamma.astype(jnp.float32), (0, coutp - cout)).reshape(1, coutp)
    beta2 = jnp.pad(bn_beta.astype(jnp.float32), (0, coutp - cout)).reshape(1, coutp)

    conv_flops = 2 * m * k * k * cinp * coutp
    in_bytes = 4 * (xp.size + w2.size + b2.size)

    # ---- pass 1: conv + bias -> per-image BN-stat partials only ------------
    kern1 = functools.partial(_conv_stats_kernel, k=k, stride=stride, ho=ho, wo=wo)
    stats = pl.pallas_call(
        kern1,
        out_shape=jax.ShapeDtypeStruct((n, SUBLANE, coutp), jnp.float32),
        grid=(n,),
        in_specs=[
            pl.BlockSpec((1, hp, wp, cinp), lambda i: (i, 0, 0, 0)),
            pl.BlockSpec((k * k, cinp, coutp), lambda i: (0, 0, 0)),
            pl.BlockSpec((1, coutp), lambda i: (0, 0)),
        ],
        out_specs=pl.BlockSpec((1, SUBLANE, coutp), lambda i: (i, 0, 0)),
        scratch_shapes=[pltpu.VMEM((ho * wo, coutp), jnp.float32)],
        compiler_params=pltpu.CompilerParams(dimension_semantics=("parallel",)),
        cost_estimate=pl.CostEstimate(
            flops=conv_flops, transcendentals=0,
            bytes_accessed=in_bytes + 4 * n * SUBLANE * coutp),
    )(xp, w2, b2)

    # ---- pass 2: recompute conv, finalize BN in-kernel, ReLU, write out ----
    kern2 = functools.partial(_conv_bn_relu_kernel, k=k, stride=stride,
                              ho=ho, wo=wo, m=m)
    out2d = pl.pallas_call(
        kern2,
        out_shape=jax.ShapeDtypeStruct((m, coutp), jnp.float32),
        grid=(n,),
        in_specs=[
            pl.BlockSpec((1, hp, wp, cinp), lambda i: (i, 0, 0, 0)),
            pl.BlockSpec((k * k, cinp, coutp), lambda i: (0, 0, 0)),
            pl.BlockSpec((1, coutp), lambda i: (0, 0)),
            pl.BlockSpec((n, SUBLANE, coutp), lambda i: (0, 0, 0)),
            pl.BlockSpec((1, coutp), lambda i: (0, 0)),
            pl.BlockSpec((1, coutp), lambda i: (0, 0)),
        ],
        out_specs=pl.BlockSpec((ho * wo, coutp), lambda i: (i, 0)),
        scratch_shapes=[pltpu.VMEM((ho * wo, coutp), jnp.float32)],
        compiler_params=pltpu.CompilerParams(dimension_semantics=("parallel",)),
        cost_estimate=pl.CostEstimate(
            flops=conv_flops + 3 * m * coutp, transcendentals=coutp,
            bytes_accessed=in_bytes + 4 * (n * SUBLANE * coutp + 2 * coutp + m * coutp)),
    )(xp, w2, b2, stats, gamma2, beta2)

    # (M, CoutP) -> (N, Ho, Wo, Cout) -> NCHW (only transpose back at API edge)
    return out2d[:, :cout].reshape(n, ho, wo, cout).transpose(0, 3, 1, 2)


def _reference(x, conv_w, conv_b, bn_gamma, bn_beta, stride, padding):
    """Pure-JAX reference matching PyTorch semantics (BN training mode)."""
    y = jax.lax.conv_general_dilated(
        x, conv_w, window_strides=(stride, stride),
        padding=((padding, padding), (padding, padding)),
        dimension_numbers=("NCHW", "OIHW", "NCHW"))
    y = y + conv_b[None, :, None, None]
    mean = y.mean(axis=(0, 2, 3), keepdims=True)
    var = y.var(axis=(0, 2, 3), keepdims=True)              # biased, like PyTorch BN
    y = (y - mean) / jnp.sqrt(var + EPS)
    y = y * bn_gamma[None, :, None, None] + bn_beta[None, :, None, None]
    return jnp.maximum(y, 0.0)


if __name__ == "__main__":
    # ConvModule(in_features=4, out_features=8, stride=1, kernel_size=3, padding=1)
    N, CIN, H, W = 2, 4, 16, 16
    COUT, K, STRIDE, PAD = 8, 3, 1, 1

    key = jax.random.PRNGKey(0)
    kx, kw, kb, kg, kbe = jax.random.split(key, 5)
    x = jax.random.normal(kx, (N, CIN, H, W), jnp.float32)
    conv_w = 0.1 * jax.random.normal(kw, (COUT, CIN, K, K), jnp.float32)
    conv_b = 0.1 * jax.random.normal(kb, (COUT,), jnp.float32)
    bn_gamma = 1.0 + 0.1 * jax.random.normal(kg, (COUT,), jnp.float32)
    bn_beta = 0.05 * jax.random.normal(kbe, (COUT,), jnp.float32)

    out = conv_module_forward(x, conv_w, conv_b, bn_gamma, bn_beta,
                              stride=STRIDE, padding=PAD)
    out = jax.block_until_ready(out)

    ref = _reference(x, conv_w, conv_b, bn_gamma, bn_beta, STRIDE, PAD)
    np.testing.assert_allclose(np.asarray(out), np.asarray(ref), rtol=1e-4, atol=1e-4)
    assert out.shape == (N, COUT, H, W)

    print("KERNEL_OK")
</pallas_src>

<mosaic_0001>
module attributes {stable_mosaic.version = 11 : i64} {
  func.func @_conv_stats_kernel(%arg0: i32, %arg1: memref<1x18x18x8xf32, #tpu.memory_space<vmem>>, %arg2: memref<9x8x128xf32, #tpu.memory_space<vmem>>, %arg3: memref<1x128xf32, #tpu.memory_space<vmem>>, %arg4: memref<1x8x128xf32, #tpu.memory_space<vmem>>, %arg5: memref<256x128xf32, #tpu.memory_space<vmem>>) attributes {dimension_semantics = [#tpu.dimension_semantics<parallel>], iteration_bounds = array<i64: 2>, scalar_prefetch = 0 : i64, scratch_operands = 1 : i64, tpu.core_type = #tpu.core_type<tc>, window_params = [{transform_indices = @transform_0, window_bounds = array<i64: 1, 18, 18, 8>}, {pipeline_mode = #tpu.pipeline_mode<synchronous>, transform_indices = @transform_1, window_bounds = array<i64: 9, 8, 128>}, {pipeline_mode = #tpu.pipeline_mode<synchronous>, transform_indices = @transform_2, window_bounds = array<i64: 1, 128>}, {transform_indices = @transform_3, window_bounds = array<i64: 1, 8, 128>}]} {
    %c0 = arith.constant 0 : index
    %c0_0 = arith.constant 0 : index
    %c0_1 = arith.constant 0 : index
    %c0_2 = arith.constant 0 : index
    %0 = vector.load %arg1[%c0, %c0_0, %c0_1, %c0_2] : memref<1x18x18x8xf32, #tpu.memory_space<vmem>>, vector<1x16x16x8xf32>
    %1 = vector.shape_cast %0 : vector<1x16x16x8xf32> to vector<16x16x8xf32>
    %2 = vector.shape_cast %1 : vector<16x16x8xf32> to vector<256x8xf32>
    %c0_3 = arith.constant 0 : index
    %c0_4 = arith.constant 0 : index
    %c0_5 = arith.constant 0 : index
    %3 = vector.load %arg2[%c0_3, %c0_4, %c0_5] : memref<9x8x128xf32, #tpu.memory_space<vmem>>, vector<1x8x128xf32>
    %4 = vector.shape_cast %3 : vector<1x8x128xf32> to vector<8x128xf32>
    %cst = arith.constant dense<0.000000e+00> : vector<256x128xf32>
    %5 = tpu.matmul %2, %4, %cst {dimension_numbers = #tpu.dot_dimension_numbers<[1], [0], [0], [1], [0, 0, 1, 1], [], []>} : vector<256x8xf32>, vector<8x128xf32>, vector<256x128xf32> -> vector<256x128xf32>
    %c0_6 = arith.constant 0 : index
    %c0_7 = arith.constant 0 : index
    %6 = vector.load %arg5[%c0_6, %c0_7] : memref<256x128xf32, #tpu.memory_space<vmem>>, vector<256x128xf32>
    tpu.vector_store %arg5[%c0_6, %c0_7], %5 {strides = array<i32>} : memref<256x128xf32, #tpu.memory_space<vmem>>, vector<256x128xf32>,
    %c0_8 = arith.constant 0 : index
    %c0_9 = arith.constant 0 : index
    %c1 = arith.constant 1 : index
    %c0_10 = arith.constant 0 : index
    %7 = vector.load %arg1[%c0_8, %c0_9, %c1, %c0_10] : memref<1x18x18x8xf32, #tpu.memory_space<vmem>>, vector<1x16x16x8xf32>
    %8 = vector.shape_cast %7 : vector<1x16x16x8xf32> to vector<16x16x8xf32>
    %9 = vector.shape_cast %8 : vector<16x16x8xf32> to vector<256x8xf32>
    %c1_11 = arith.constant 1 : index
    %c0_12 = arith.constant 0 : index
    %c0_13 = arith.constant 0 : index
    %10 = vector.load %arg2[%c1_11, %c0_12, %c0_13] : memref<9x8x128xf32, #tpu.memory_space<vmem>>, vector<1x8x128xf32>
    %11 = vector.shape_cast %10 : vector<1x8x128xf32> to vector<8x128xf32>
    %cst_14 = arith.constant dense<0.000000e+00> : vector<256x128xf32>
    %12 = tpu.matmul %9, %11, %cst_14 {dimension_numbers = #tpu.dot_dimension_numbers<[1], [0], [0], [1], [0, 0, 1, 1], [], []>} : vector<256x8xf32>, vector<8x128xf32>, vector<256x128xf32> -> vector<256x128xf32>
    %c0_15 = arith.constant 0 : index
    %c0_16 = arith.constant 0 : index
    %13 = vector.load %arg5[%c0_15, %c0_16] : memref<256x128xf32, #tpu.memory_space<vmem>>, vector<256x128xf32>
    %14 = arith.addf %13, %12 : vector<256x128xf32>
    %c0_17 = arith.constant 0 : index
    %c0_18 = arith.constant 0 : index
    %15 = vector.load %arg5[%c0_17, %c0_18] : memref<256x128xf32, #tpu.memory_space<vmem>>, vector<256x128xf32>
    tpu.vector_store %arg5[%c0_17, %c0_18], %14 {strides = array<i32>} : memref<256x128xf32, #tpu.memory_space<vmem>>, vector<256x128xf32>,
    %c0_19 = arith.constant 0 : index
    %c0_20 = arith.constant 0 : index
    %c2 = arith.constant 2 : index
    %c0_21 = arith.constant 0 : index
    %16 = vector.load %arg1[%c0_19, %c0_20, %c2, %c0_21] : memref<1x18x18x8xf32, #tpu.memory_space<vmem>>, vector<1x16x16x8xf32>
    %17 = vector.shape_cast %16 : vector<1x16x16x8xf32> to vector<16x16x8xf32>
    %18 = vector.shape_cast %17 : vector<16x16x8xf32> to vector<256x8xf32>
    %c2_22 = arith.constant 2 : index
    %c0_23 = arith.constant 0 : index
    %c0_24 = arith.constant 0 : index
    %19 = vector.load %arg2[%c2_22, %c0_23, %c0_24] : memref<9x8x128xf32, #tpu.memory_space<vmem>>, vector<1x8x128xf32>
    %20 = vector.shape_cast %19 : vector<1x8x128xf32> to vector<8x128xf32>
    %cst_25 = arith.constant dense<0.000000e+00> : vector<256x128xf32>
    %21 = tpu.matmul %18, %20, %cst_25 {dimension_numbers = #tpu.dot_dimension_numbers<[1], [0], [0], [1], [0, 0, 1, 1], [], []>} : vector<256x8xf32>, vector<8x128xf32>, vector<256x128xf32> -> vector<256x128xf32>
    %c0_26 = arith.constant 0 : index
    %c0_27 = arith.constant 0 : index
    %22 = vector.load %arg5[%c0_26, %c0_27] : memref<256x128xf32, #tpu.memory_space<vmem>>, vector<256x128xf32>
    %23 = arith.addf %22, %21 : vector<256x128xf32>
    %c0_28 = arith.constant 0 : index
    %c0_29 = arith.constant 0 : index
    %24 = vector.load %arg5[%c0_28, %c0_29] : memref<256x128xf32, #tpu.memory_space<vmem>>, vector<256x128xf32>
    tpu.vector_store %arg5[%c0_28, %c0_29], %23 {strides = array<i32>} : memref<256x128xf32, #tpu.memory_space<vmem>>, vector<256x128xf32>,
    %c0_30 = arith.constant 0 : index
    %c1_31 = arith.constant 1 : index
    %c0_32 = arith.constant 0 : index
    %c0_33 = arith.constant 0 : index
    %25 = vector.load %arg1[%c0_30, %c1_31, %c0_32, %c0_33] : memref<1x18x18x8xf32, #tpu.memory_space<vmem>>, vector<1x16x16x8xf32>
    %26 = vector.shape_cast %25 : vector<1x16x16x8xf32> to vector<16x16x8xf32>
    %27 = vector.shape_cast %26 : vector<16x16x8xf32> to vector<256x8xf32>
    %c3 = arith.constant 3 : index
    %c0_34 = arith.constant 0 : index
    %c0_35 = arith.constant 0 : index
    %28 = vector.load %arg2[%c3, %c0_34, %c0_35] : memref<9x8x128xf32, #tpu.memory_space<vmem>>, vector<1x8x128xf32>
    %29 = vector.shape_cast %28 : vector<1x8x128xf32> to vector<8x128xf32>
    %cst_36 = arith.constant dense<0.000000e+00> : vector<256x128xf32>
    %30 = tpu.matmul %27, %29, %cst_36 {dimension_numbers = #tpu.dot_dimension_numbers<[1], [0], [0], [1], [0, 0, 1, 1], [], []>} : vector<256x8xf32>, vector<8x128xf32>, vector<256x128xf32> -> vector<256x128xf32>
    %c0_37 = arith.constant 0 : index
    %c0_38 = arith.constant 0 : index
    %31 = vector.load %arg5[%c0_37, %c0_38] : memref<256x128xf32, #tpu.memory_space<vmem>>, vector<256x128xf32>
    %32 = arith.addf %31, %30 : vector<256x128xf32>
    %c0_39 = arith.constant 0 : index
    %c0_40 = arith.constant 0 : index
    %33 = vector.load %arg5[%c0_39, %c0_40] : memref<256x128xf32, #tpu.memory_space<vmem>>, vector<256x128xf32>
    tpu.vector_store %arg5[%c0_39, %c0_40], %32 {strides = array<i32>} : memref<256x128xf32, #tpu.memory_space<vmem>>, vector<256x128xf32>,
    %c0_41 = arith.constant 0 : index
    %c1_42 = arith.constant 1 : index
    %c1_43 = arith.constant 1 : index
    %c0_44 = arith.constant 0 : index
    %34 = vector.load %arg1[%c0_41, %c1_42, %c1_43, %c0_44] : memref<1x18x18x8xf32, #tpu.memory_space<vmem>>, vector<1x16x16x8xf32>
    %35 = vector.shape_cast %34 : vector<1x16x16x8xf32> to vector<16x16x8xf32>
    %36 = vector.shape_cast %35 : vector<16x16x8xf32> to vector<256x8xf32>
    %c4 = arith.constant 4 : index
    %c0_45 = arith.constant 0 : index
    %c0_46 = arith.constant 0 : index
    %37 = vector.load %arg2[%c4, %c0_45, %c0_46] : memref<9x8x128xf32, #tpu.memory_space<vmem>>, vector<1x8x128xf32>
    %38 = vector.shape_cast %37 : vector<1x8x128xf32> to vector<8x128xf32>
    %cst_47 = arith.constant dense<0.000000e+00> : vector<256x128xf32>
    %39 = tpu.matmul %36, %38, %cst_47 {dimension_numbers = #tpu.dot_dimension_numbers<[1], [0], [0], [1], [0, 0, 1, 1], [], []>} : vector<256x8xf32>, vector<8x128xf32>, vector<256x128xf32> -> vector<256x128xf32>
    %c0_48 = arith.constant 0 : index
    %c0_49 = arith.constant 0 : index
    %40 = vector.load %arg5[%c0_48, %c0_49] : memref<256x128xf32, #tpu.memory_space<vmem>>, vector<256x128xf32>
    %41 = arith.addf %40, %39 : vector<256x128xf32>
    %c0_50 = arith.constant 0 : index
    %c0_51 = arith.constant 0 : index
    %42 = vector.load %arg5[%c0_50, %c0_51] : memref<256x128xf32, #tpu.memory_space<vmem>>, vector<256x128xf32>
    tpu.vector_store %arg5[%c0_50, %c0_51], %41 {strides = array<i32>} : memref<256x128xf32, #tpu.memory_space<vmem>>, vector<256x128xf32>,
    %c0_52 = arith.constant 0 : index
    %c1_53 = arith.constant 1 : index
    %c2_54 = arith.constant 2 : index
    %c0_55 = arith.constant 0 : index
    %43 = vector.load %arg1[%c0_52, %c1_53, %c2_54, %c0_55] : memref<1x18x18x8xf32, #tpu.memory_space<vmem>>, vector<1x16x16x8xf32>
    %44 = vector.shape_cast %43 : vector<1x16x16x8xf32> to vector<16x16x8xf32>
    %45 = vector.shape_cast %44 : vector<16x16x8xf32> to vector<256x8xf32>
    %c5 = arith.constant 5 : index
    %c0_56 = arith.constant 0 : index
    %c0_57 = arith.constant 0 : index
    %46 = vector.load %arg2[%c5, %c0_56, %c0_57] : memref<9x8x128xf32, #tpu.memory_space<vmem>>, vector<1x8x128xf32>
    %47 = vector.shape_cast %46 : vector<1x8x128xf32> to vector<8x128xf32>
    %cst_58 = arith.constant dense<0.000000e+00> : vector<256x128xf32>
    %48 = tpu.matmul %45, %47, %cst_58 {dimension_numbers = #tpu.dot_dimension_numbers<[1], [0], [0], [1], [0, 0, 1, 1], [], []>} : vector<256x8xf32>, vector<8x128xf32>, vector<256x128xf32> -> vector<256x128xf32>
    %c0_59 = arith.constant 0 : index
    %c0_60 = arith.constant 0 : index
    %49 = vector.load %arg5[%c0_59, %c0_60] : memref<256x128xf32, #tpu.memory_space<vmem>>, vector<256x128xf32>
    %50 = arith.addf %49, %48 : vector<256x128xf32>
    %c0_61 = arith.constant 0 : index
    %c0_62 = arith.constant 0 : index
    %51 = vector.load %arg5[%c0_61, %c0_62] : memref<256x128xf32, #tpu.memory_space<vmem>>, vector<256x128xf32>
    tpu.vector_store %arg5[%c0_61, %c0_62], %50 {strides = array<i32>} : memref<256x128xf32, #tpu.memory_space<vmem>>, vector<256x128xf32>,
    %c0_63 = arith.constant 0 : index
    %c2_64 = arith.constant 2 : index
    %c0_65 = arith.constant 0 : index
    %c0_66 = arith.constant 0 : index
    %52 = vector.load %arg1[%c0_63, %c2_64, %c0_65, %c0_66] : memref<1x18x18x8xf32, #tpu.memory_space<vmem>>, vector<1x16x16x8xf32>
    %53 = vector.shape_cast %52 : vector<1x16x16x8xf32> to vector<16x16x8xf32>
    %54 = vector.shape_cast %53 : vector<16x16x8xf32> to vector<256x8xf32>
    %c6 = arith.constant 6 : index
    %c0_67 = arith.constant 0 : index
    %c0_68 = arith.constant 0 : index
    %55 = vector.load %arg2[%c6, %c0_67, %c0_68] : memref<9x8x128xf32, #tpu.memory_space<vmem>>, vector<1x8x128xf32>
    %56 = vector.shape_cast %55 : vector<1x8x128xf32> to vector<8x128xf32>
    %cst_69 = arith.constant dense<0.000000e+00> : vector<256x128xf32>
    %57 = tpu.matmul %54, %56, %cst_69 {dimension_numbers = #tpu.dot_dimension_numbers<[1], [0], [0], [1], [0, 0, 1, 1], [], []>} : vector<256x8xf32>, vector<8x128xf32>, vector<256x128xf32> -> vector<256x128xf32>
    %c0_70 = arith.constant 0 : index
    %c0_71 = arith.constant 0 : index
    %58 = vector.load %arg5[%c0_70, %c0_71] : memref<256x128xf32, #tpu.memory_space<vmem>>, vector<256x128xf32>
    %59 = arith.addf %58, %57 : vector<256x128xf32>
    %c0_72 = arith.constant 0 : index
    %c0_73 = arith.constant 0 : index
    %60 = vector.load %arg5[%c0_72, %c0_73] : memref<256x128xf32, #tpu.memory_space<vmem>>, vector<256x128xf32>
    tpu.vector_store %arg5[%c0_72, %c0_73], %59 {strides = array<i32>} : memref<256x128xf32, #tpu.memory_space<vmem>>, vector<256x128xf32>,
    %c0_74 = arith.constant 0 : index
    %c2_75 = arith.constant 2 : index
    %c1_76 = arith.constant 1 : index
    %c0_77 = arith.constant 0 : index
    %61 = vector.load %arg1[%c0_74, %c2_75, %c1_76, %c0_77] : memref<1x18x18x8xf32, #tpu.memory_space<vmem>>, vector<1x16x16x8xf32>
    %62 = vector.shape_cast %61 : vector<1x16x16x8xf32> to vector<16x16x8xf32>
    %63 = vector.shape_cast %62 : vector<16x16x8xf32> to vector<256x8xf32>
    %c7 = arith.constant 7 : index
    %c0_78 = arith.constant 0 : index
    %c0_79 = arith.constant 0 : index
    %64 = vector.load %arg2[%c7, %c0_78, %c0_79] : memref<9x8x128xf32, #tpu.memory_space<vmem>>, vector<1x8x128xf32>
    %65 = vector.shape_cast %64 : vector<1x8x128xf32> to vector<8x128xf32>
    %cst_80 = arith.constant dense<0.000000e+00> : vector<256x128xf32>
    %66 = tpu.matmul %63, %65, %cst_80 {dimension_numbers = #tpu.dot_dimension_numbers<[1], [0], [0], [1], [0, 0, 1, 1], [], []>} : vector<256x8xf32>, vector<8x128xf32>, vector<256x128xf32> -> vector<256x128xf32>
    %c0_81 = arith.constant 0 : index
    %c0_82 = arith.constant 0 : index
    %67 = vector.load %arg5[%c0_81, %c0_82] : memref<256x128xf32, #tpu.memory_space<vmem>>, vector<256x128xf32>
    %68 = arith.addf %67, %66 : vector<256x128xf32>
    %c0_83 = arith.constant 0 : index
    %c0_84 = arith.constant 0 : index
    %69 = vector.load %arg5[%c0_83, %c0_84] : memref<256x128xf32, #tpu.memory_space<vmem>>, vector<256x128xf32>
    tpu.vector_store %arg5[%c0_83, %c0_84], %68 {strides = array<i32>} : memref<256x128xf32, #tpu.memory_space<vmem>>, vector<256x128xf32>,
    %c0_85 = arith.constant 0 : index
    %c2_86 = arith.constant 2 : index
    %c2_87 = arith.constant 2 : index
    %c0_88 = arith.constant 0 : index
    %70 = vector.load %arg1[%c0_85, %c2_86, %c2_87, %c0_88] : memref<1x18x18x8xf32, #tpu.memory_space<vmem>>, vector<1x16x16x8xf32>
    %71 = vector.shape_cast %70 : vector<1x16x16x8xf32> to vector<16x16x8xf32>
    %72 = vector.shape_cast %71 : vector<16x16x8xf32> to vector<256x8xf32>
    %c8 = arith.constant 8 : index
    %c0_89 = arith.constant 0 : index
    %c0_90 = arith.constant 0 : index
    %73 = vector.load %arg2[%c8, %c0_89, %c0_90] : memref<9x8x128xf32, #tpu.memory_space<vmem>>, vector<1x8x128xf32>
    %74 = vector.shape_cast %73 : vector<1x8x128xf32> to vector<8x128xf32>
    %cst_91 = arith.constant dense<0.000000e+00> : vector<256x128xf32>
    %75 = tpu.matmul %72, %74, %cst_91 {dimension_numbers = #tpu.dot_dimension_numbers<[1], [0], [0], [1], [0, 0, 1, 1], [], []>} : vector<256x8xf32>, vector<8x128xf32>, vector<256x128xf32> -> vector<256x128xf32>
    %c0_92 = arith.constant 0 : index
    %c0_93 = arith.constant 0 : index
    %76 = vector.load %arg5[%c0_92, %c0_93] : memref<256x128xf32, #tpu.memory_space<vmem>>, vector<256x128xf32>
    %77 = arith.addf %76, %75 : vector<256x128xf32>
    %c0_94 = arith.constant 0 : index
    %c0_95 = arith.constant 0 : index
    %78 = vector.load %arg5[%c0_94, %c0_95] : memref<256x128xf32, #tpu.memory_space<vmem>>, vector<256x128xf32>
    tpu.vector_store %arg5[%c0_94, %c0_95], %77 {strides = array<i32>} : memref<256x128xf32, #tpu.memory_space<vmem>>, vector<256x128xf32>,
    %c0_96 = arith.constant 0 : index
    %c0_97 = arith.constant 0 : index
    %79 = vector.load %arg5[%c0_96, %c0_97] : memref<256x128xf32, #tpu.memory_space<vmem>>, vector<256x128xf32>
    %c0_98 = arith.constant 0 : index
    %c0_99 = arith.constant 0 : index
    %80 = vector.load %arg3[%c0_98, %c0_99] : memref<1x128xf32, #tpu.memory_space<vmem>>, vector<1x128xf32>
    %81 = vector.broadcast %80 : vector<1x128xf32> to vector<256x128xf32>
    %82 = arith.addf %79, %81 : vector<256x128xf32>
    %cst_100 = arith.constant dense<0.000000e+00> : vector<128xf32>
    %83 = vector.multi_reduction <add>, %82, %cst_100 [0] : vector<256x128xf32> to vector<128xf32>
    %84 = vector.shape_cast %83 : vector<128xf32> to vector<1x128xf32>
    %85 = arith.mulf %82, %82 : vector<256x128xf32>
    %cst_101 = arith.constant dense<0.000000e+00> : vector<128xf32>
    %86 = vector.multi_reduction <add>, %85, %cst_101 [0] : vector<256x128xf32> to vector<128xf32>
    %87 = vector.shape_cast %86 : vector<128xf32> to vector<1x128xf32>
    %88 = tpu.iota {dimensions = array<i32: 0>} : vector<8x128xi32>
    %c0_i32 = arith.constant 0 : i32
    %89 = vector.broadcast %c0_i32 : i32 to vector<8x128xi32>
    %90 = arith.cmpi eq, %88, %89 : vector<8x128xi32>
    %c1_i32 = arith.constant 1 : i32
    %91 = vector.broadcast %c1_i32 : i32 to vector<8x128xi32>
    %92 = arith.cmpi eq, %88, %91 : vector<8x128xi32>
    %cst_102 = arith.constant 0.000000e+00 : f32
    %93 = vector.shape_cast %87 : vector<1x128xf32> to vector<1x128xf32>
    %94 = vector.broadcast %93 : vector<1x128xf32> to vector<8x128xf32>
    %95 = vector.broadcast %cst_102 : f32 to vector<8x128xf32>
    %96 = arith.select %92, %94, %95 : vector<8x128xi1>, vector<8x128xf32>
    %97 = vector.shape_cast %84 : vector<1x128xf32> to vector<1x128xf32>
    %98 = vector.broadcast %97 : vector<1x128xf32> to vector<8x128xf32>
    %99 = arith.select %90, %98, %96 : vector<8x128xi1>, vector<8x128xf32>
    %c0_103 = arith.constant 0 : index
    %c0_104 = arith.constant 0 : index
    %c0_105 = arith.constant 0 : index
    %100 = vector.load %arg4[%c0_103, %c0_104, %c0_105] : memref<1x8x128xf32, #tpu.memory_space<vmem>>, vector<1x8x128xf32>
    %101 = vector.shape_cast %100 : vector<1x8x128xf32> to vector<8x128xf32>
    %102 = vector.shape_cast %99 : vector<8x128xf32> to vector<1x8x128xf32>
    tpu.vector_store %arg4[%c0_103, %c0_104, %c0_105], %102 {strides = array<i32>} : memref<1x8x128xf32, #tpu.memory_space<vmem>>, vector<1x8x128xf32>,
    return
  }
  func.func @transform_0(%arg0: i32) -> (i32, i32, i32, i32) {
    %c0_i32 = arith.constant 0 : i32
    %c0_i32_0 = arith.constant 0 : i32
    %c0_i32_1 = arith.constant 0 : i32
    %c0_i32_2 = arith.constant 0 : i32
    return %arg0, %c0_i32, %c0_i32_0, %c0_i32_1 : i32, i32, i32, i32
  }
  func.func @transform_1(%arg0: i32) -> (i32, i32, i32) {
    %c0_i32 = arith.constant 0 : i32
    %c0_i32_0 = arith.constant 0 : i32
    %c0_i32_1 = arith.constant 0 : i32
    %c0_i32_2 = arith.constant 0 : i32
    return %c0_i32, %c0_i32_0, %c0_i32_1 : i32, i32, i32
  }
  func.func @transform_2(%arg0: i32) -> (i32, i32) {
    %c0_i32 = arith.constant 0 : i32
    %c0_i32_0 = arith.constant 0 : i32
    %c0_i32_1 = arith.constant 0 : i32
    return %c0_i32, %c0_i32_0 : i32, i32
  }
  func.func @transform_3(%arg0: i32) -> (i32, i32, i32) {
    %c0_i32 = arith.constant 0 : i32
    %c0_i32_0 = arith.constant 0 : i32
    %c0_i32_1 = arith.constant 0 : i32
    return %arg0, %c0_i32, %c0_i32_0 : i32, i32, i32
  }
}

module attributes {stable_mosaic.version = 11 : i64} {
  func.func @_conv_bn_relu_kernel(%arg0: i32, %arg1: memref<1x18x18x8xf32, #tpu.memory_space<vmem>>, %arg2: memref<9x8x128xf32, #tpu.memory_space<vmem>>, %arg3: memref<1x128xf32, #tpu.memory_space<vmem>>, %arg4: memref<2x8x128xf32, #tpu.memory_space<vmem>>, %arg5: memref<1x128xf32, #tpu.memory_space<vmem>>, %arg6: memref<1x128xf32, #tpu.memory_space<vmem>>, %arg7: memref<256x128xf32, #tpu.memory_space<vmem>>, %arg8: memref<256x128xf32, #tpu.memory_space<vmem>>) attributes {dimension_semantics = [#tpu.dimension_semantics<parallel>], iteration_bounds = array<i64: 2>, scalar_prefetch = 0 : i64, scratch_operands = 1 : i64, tpu.core_type = #tpu.core_type<tc>, window_params = [{transform_indices = @transform_0, window_bounds = array<i64: 1, 18, 18, 8>}, {pipeline_mode = #tpu.pipeline_mode<synchronous>, transform_indices = @transform_1, window_bounds = array<i64: 9, 8, 128>}, {pipeline_mode = #tpu.pipeline_mode<synchronous>, transform_indices = @transform_2, window_bounds = array<i64: 1, 128>}, {pipeline_mode = #tpu.pipeline_mode<synchronous>, transform_indices = @transform_3, window_bounds = array<i64: 2, 8, 128>}, {pipeline_mode = #tpu.pipeline_mode<synchronous>, transform_indices = @transform_4, window_bounds = array<i64: 1, 128>}, {pipeline_mode = #tpu.pipeline_mode<synchronous>, transform_indices = @transform_5, window_bounds = array<i64: 1, 128>}, {transform_indices = @transform_6, window_bounds = array<i64: 256, 128>}]} {
    %c0 = arith.constant 0 : index
    %c0_0 = arith.constant 0 : index
    %c0_1 = arith.constant 0 : index
    %c0_2 = arith.constant 0 : index
    %0 = vector.load %arg1[%c0, %c0_0, %c0_1, %c0_2] : memref<1x18x18x8xf32, #tpu.memory_space<vmem>>, vector<1x16x16x8xf32>
    %1 = vector.shape_cast %0 : vector<1x16x16x8xf32> to vector<16x16x8xf32>
    %2 = vector.shape_cast %1 : vector<16x16x8xf32> to vector<256x8xf32>
    %c0_3 = arith.constant 0 : index
    %c0_4 = arith.constant 0 : index
    %c0_5 = arith.constant 0 : index
    %3 = vector.load %arg2[%c0_3, %c0_4, %c0_5] : memref<9x8x128xf32, #tpu.memory_space<vmem>>, vector<1x8x128xf32>
    %4 = vector.shape_cast %3 : vector<1x8x128xf32> to vector<8x128xf32>
    %cst = arith.constant dense<0.000000e+00> : vector<256x128xf32>
    %5 = tpu.matmul %2, %4, %cst {dimension_numbers = #tpu.dot_dimension_numbers<[1], [0], [0], [1], [0, 0, 1, 1], [], []>} : vector<256x8xf32>, vector<8x128xf32>, vector<256x128xf32> -> vector<256x128xf32>
    %c0_6 = arith.constant 0 : index
    %c0_7 = arith.constant 0 : index
    %6 = vector.load %arg8[%c0_6, %c0_7] : memref<256x128xf32, #tpu.memory_space<vmem>>, vector<256x128xf32>
    tpu.vector_store %arg8[%c0_6, %c0_7], %5 {strides = array<i32>} : memref<256x128xf32, #tpu.memory_space<vmem>>, vector<256x128xf32>,
    %c0_8 = arith.constant 0 : index
    %c0_9 = arith.constant 0 : index
    %c1 = arith.constant 1 : index
    %c0_10 = arith.constant 0 : index
    %7 = vector.load %arg1[%c0_8, %c0_9, %c1, %c0_10] : memref<1x18x18x8xf32, #tpu.memory_space<vmem>>, vector<1x16x16x8xf32>
    %8 = vector.shape_cast %7 : vector<1x16x16x8xf32> to vector<16x16x8xf32>
    %9 = vector.shape_cast %8 : vector<16x16x8xf32> to vector<256x8xf32>
    %c1_11 = arith.constant 1 : index
    %c0_12 = arith.constant 0 : index
    %c0_13 = arith.constant 0 : index
    %10 = vector.load %arg2[%c1_11, %c0_12, %c0_13] : memref<9x8x128xf32, #tpu.memory_space<vmem>>, vector<1x8x128xf32>
    %11 = vector.shape_cast %10 : vector<1x8x128xf32> to vector<8x128xf32>
    %cst_14 = arith.constant dense<0.000000e+00> : vector<256x128xf32>
    %12 = tpu.matmul %9, %11, %cst_14 {dimension_numbers = #tpu.dot_dimension_numbers<[1], [0], [0], [1], [0, 0, 1, 1], [], []>} : vector<256x8xf32>, vector<8x128xf32>, vector<256x128xf32> -> vector<256x128xf32>
    %c0_15 = arith.constant 0 : index
    %c0_16 = arith.constant 0 : index
    %13 = vector.load %arg8[%c0_15, %c0_16] : memref<256x128xf32, #tpu.memory_space<vmem>>, vector<256x128xf32>
    %14 = arith.addf %13, %12 : vector<256x128xf32>
    %c0_17 = arith.constant 0 : index
    %c0_18 = arith.constant 0 : index
    %15 = vector.load %arg8[%c0_17, %c0_18] : memref<256x128xf32, #tpu.memory_space<vmem>>, vector<256x128xf32>
    tpu.vector_store %arg8[%c0_17, %c0_18], %14 {strides = array<i32>} : memref<256x128xf32, #tpu.memory_space<vmem>>, vector<256x128xf32>,
    %c0_19 = arith.constant 0 : index
    %c0_20 = arith.constant 0 : index
    %c2 = arith.constant 2 : index
    %c0_21 = arith.constant 0 : index
    %16 = vector.load %arg1[%c0_19, %c0_20, %c2, %c0_21] : memref<1x18x18x8xf32, #tpu.memory_space<vmem>>, vector<1x16x16x8xf32>
    %17 = vector.shape_cast %16 : vector<1x16x16x8xf32> to vector<16x16x8xf32>
    %18 = vector.shape_cast %17 : vector<16x16x8xf32> to vector<256x8xf32>
    %c2_22 = arith.constant 2 : index
    %c0_23 = arith.constant 0 : index
    %c0_24 = arith.constant 0 : index
    %19 = vector.load %arg2[%c2_22, %c0_23, %c0_24] : memref<9x8x128xf32, #tpu.memory_space<vmem>>, vector<1x8x128xf32>
    %20 = vector.shape_cast %19 : vector<1x8x128xf32> to vector<8x128xf32>
    %cst_25 = arith.constant dense<0.000000e+00> : vector<256x128xf32>
    %21 = tpu.matmul %18, %20, %cst_25 {dimension_numbers = #tpu.dot_dimension_numbers<[1], [0], [0], [1], [0, 0, 1, 1], [], []>} : vector<256x8xf32>, vector<8x128xf32>, vector<256x128xf32> -> vector<256x128xf32>
    %c0_26 = arith.constant 0 : index
    %c0_27 = arith.constant 0 : index
    %22 = vector.load %arg8[%c0_26, %c0_27] : memref<256x128xf32, #tpu.memory_space<vmem>>, vector<256x128xf32>
    %23 = arith.addf %22, %21 : vector<256x128xf32>
    %c0_28 = arith.constant 0 : index
    %c0_29 = arith.constant 0 : index
    %24 = vector.load %arg8[%c0_28, %c0_29] : memref<256x128xf32, #tpu.memory_space<vmem>>, vector<256x128xf32>
    tpu.vector_store %arg8[%c0_28, %c0_29], %23 {strides = array<i32>} : memref<256x128xf32, #tpu.memory_space<vmem>>, vector<256x128xf32>,
    %c0_30 = arith.constant 0 : index
    %c1_31 = arith.constant 1 : index
    %c0_32 = arith.constant 0 : index
    %c0_33 = arith.constant 0 : index
    %25 = vector.load %arg1[%c0_30, %c1_31, %c0_32, %c0_33] : memref<1x18x18x8xf32, #tpu.memory_space<vmem>>, vector<1x16x16x8xf32>
    %26 = vector.shape_cast %25 : vector<1x16x16x8xf32> to vector<16x16x8xf32>
    %27 = vector.shape_cast %26 : vector<16x16x8xf32> to vector<256x8xf32>
    %c3 = arith.constant 3 : index
    %c0_34 = arith.constant 0 : index
    %c0_35 = arith.constant 0 : index
    %28 = vector.load %arg2[%c3, %c0_34, %c0_35] : memref<9x8x128xf32, #tpu.memory_space<vmem>>, vector<1x8x128xf32>
    %29 = vector.shape_cast %28 : vector<1x8x128xf32> to vector<8x128xf32>
    %cst_36 = arith.constant dense<0.000000e+00> : vector<256x128xf32>
    %30 = tpu.matmul %27, %29, %cst_36 {dimension_numbers = #tpu.dot_dimension_numbers<[1], [0], [0], [1], [0, 0, 1, 1], [], []>} : vector<256x8xf32>, vector<8x128xf32>, vector<256x128xf32> -> vector<256x128xf32>
    %c0_37 = arith.constant 0 : index
    %c0_38 = arith.constant 0 : index
    %31 = vector.load %arg8[%c0_37, %c0_38] : memref<256x128xf32, #tpu.memory_space<vmem>>, vector<256x128xf32>
    %32 = arith.addf %31, %30 : vector<256x128xf32>
    %c0_39 = arith.constant 0 : index
    %c0_40 = arith.constant 0 : index
    %33 = vector.load %arg8[%c0_39, %c0_40] : memref<256x128xf32, #tpu.memory_space<vmem>>, vector<256x128xf32>
    tpu.vector_store %arg8[%c0_39, %c0_40], %32 {strides = array<i32>} : memref<256x128xf32, #tpu.memory_space<vmem>>, vector<256x128xf32>,
    %c0_41 = arith.constant 0 : index
    %c1_42 = arith.constant 1 : index
    %c1_43 = arith.constant 1 : index
    %c0_44 = arith.constant 0 : index
    %34 = vector.load %arg1[%c0_41, %c1_42, %c1_43, %c0_44] : memref<1x18x18x8xf32, #tpu.memory_space<vmem>>, vector<1x16x16x8xf32>
    %35 = vector.shape_cast %34 : vector<1x16x16x8xf32> to vector<16x16x8xf32>
    %36 = vector.shape_cast %35 : vector<16x16x8xf32> to vector<256x8xf32>
    %c4 = arith.constant 4 : index
    %c0_45 = arith.constant 0 : index
    %c0_46 = arith.constant 0 : index
    %37 = vector.load %arg2[%c4, %c0_45, %c0_46] : memref<9x8x128xf32, #tpu.memory_space<vmem>>, vector<1x8x128xf32>
    %38 = vector.shape_cast %37 : vector<1x8x128xf32> to vector<8x128xf32>
    %cst_47 = arith.constant dense<0.000000e+00> : vector<256x128xf32>
    %39 = tpu.matmul %36, %38, %cst_47 {dimension_numbers = #tpu.dot_dimension_numbers<[1], [0], [0], [1], [0, 0, 1, 1], [], []>} : vector<256x8xf32>, vector<8x128xf32>, vector<256x128xf32> -> vector<256x128xf32>
    %c0_48 = arith.constant 0 : index
    %c0_49 = arith.constant 0 : index
    %40 = vector.load %arg8[%c0_48, %c0_49] : memref<256x128xf32, #tpu.memory_space<vmem>>, vector<256x128xf32>
    %41 = arith.addf %40, %39 : vector<256x128xf32>
    %c0_50 = arith.constant 0 : index
    %c0_51 = arith.constant 0 : index
    %42 = vector.load %arg8[%c0_50, %c0_51] : memref<256x128xf32, #tpu.memory_space<vmem>>, vector<256x128xf32>
    tpu.vector_store %arg8[%c0_50, %c0_51], %41 {strides = array<i32>} : memref<256x128xf32, #tpu.memory_space<vmem>>, vector<256x128xf32>,
    %c0_52 = arith.constant 0 : index
    %c1_53 = arith.constant 1 : index
    %c2_54 = arith.constant 2 : index
    %c0_55 = arith.constant 0 : index
    %43 = vector.load %arg1[%c0_52, %c1_53, %c2_54, %c0_55] : memref<1x18x18x8xf32, #tpu.memory_space<vmem>>, vector<1x16x16x8xf32>
    %44 = vector.shape_cast %43 : vector<1x16x16x8xf32> to vector<16x16x8xf32>
    %45 = vector.shape_cast %44 : vector<16x16x8xf32> to vector<256x8xf32>
    %c5 = arith.constant 5 : index
    %c0_56 = arith.constant 0 : index
    %c0_57 = arith.constant 0 : index
    %46 = vector.load %arg2[%c5, %c0_56, %c0_57] : memref<9x8x128xf32, #tpu.memory_space<vmem>>, vector<1x8x128xf32>
    %47 = vector.shape_cast %46 : vector<1x8x128xf32> to vector<8x128xf32>
    %cst_58 = arith.constant dense<0.000000e+00> : vector<256x128xf32>
    %48 = tpu.matmul %45, %47, %cst_58 {dimension_numbers = #tpu.dot_dimension_numbers<[1], [0], [0], [1], [0, 0, 1, 1], [], []>} : vector<256x8xf32>, vector<8x128xf32>, vector<256x128xf32> -> vector<256x128xf32>
    %c0_59 = arith.constant 0 : index
    %c0_60 = arith.constant 0 : index
    %49 = vector.load %arg8[%c0_59, %c0_60] : memref<256x128xf32, #tpu.memory_space<vmem>>, vector<256x128xf32>
    %50 = arith.addf %49, %48 : vector<256x128xf32>
    %c0_61 = arith.constant 0 : index
    %c0_62 = arith.constant 0 : index
    %51 = vector.load %arg8[%c0_61, %c0_62] : memref<256x128xf32, #tpu.memory_space<vmem>>, vector<256x128xf32>
    tpu.vector_store %arg8[%c0_61, %c0_62], %50 {strides = array<i32>} : memref<256x128xf32, #tpu.memory_space<vmem>>, vector<256x128xf32>,
    %c0_63 = arith.constant 0 : index
    %c2_64 = arith.constant 2 : index
    %c0_65 = arith.constant 0 : index
    %c0_66 = arith.constant 0 : index
    %52 = vector.load %arg1[%c0_63, %c2_64, %c0_65, %c0_66] : memref<1x18x18x8xf32, #tpu.memory_space<vmem>>, vector<1x16x16x8xf32>
    %53 = vector.shape_cast %52 : vector<1x16x16x8xf32> to vector<16x16x8xf32>
    %54 = vector.shape_cast %53 : vector<16x16x8xf32> to vector<256x8xf32>
    %c6 = arith.constant 6 : index
    %c0_67 = arith.constant 0 : index
    %c0_68 = arith.constant 0 : index
    %55 = vector.load %arg2[%c6, %c0_67, %c0_68] : memref<9x8x128xf32, #tpu.memory_space<vmem>>, vector<1x8x128xf32>
    %56 = vector.shape_cast %55 : vector<1x8x128xf32> to vector<8x128xf32>
    %cst_69 = arith.constant dense<0.000000e+00> : vector<256x128xf32>
    %57 = tpu.matmul %54, %56, %cst_69 {dimension_numbers = #tpu.dot_dimension_numbers<[1], [0], [0], [1], [0, 0, 1, 1], [], []>} : vector<256x8xf32>, vector<8x128xf32>, vector<256x128xf32> -> vector<256x128xf32>
    %c0_70 = arith.constant 0 : index
    %c0_71 = arith.constant 0 : index
    %58 = vector.load %arg8[%c0_70, %c0_71] : memref<256x128xf32, #tpu.memory_space<vmem>>, vector<256x128xf32>
    %59 = arith.addf %58, %57 : vector<256x128xf32>
    %c0_72 = arith.constant 0 : index
    %c0_73 = arith.constant 0 : index
    %60 = vector.load %arg8[%c0_72, %c0_73] : memref<256x128xf32, #tpu.memory_space<vmem>>, vector<256x128xf32>
    tpu.vector_store %arg8[%c0_72, %c0_73], %59 {strides = array<i32>} : memref<256x128xf32, #tpu.memory_space<vmem>>, vector<256x128xf32>,
    %c0_74 = arith.constant 0 : index
    %c2_75 = arith.constant 2 : index
    %c1_76 = arith.constant 1 : index
    %c0_77 = arith.constant 0 : index
    %61 = vector.load %arg1[%c0_74, %c2_75, %c1_76, %c0_77] : memref<1x18x18x8xf32, #tpu.memory_space<vmem>>, vector<1x16x16x8xf32>
    %62 = vector.shape_cast %61 : vector<1x16x16x8xf32> to vector<16x16x8xf32>
    %63 = vector.shape_cast %62 : vector<16x16x8xf32> to vector<256x8xf32>
    %c7 = arith.constant 7 : index
    %c0_78 = arith.constant 0 : index
    %c0_79 = arith.constant 0 : index
    %64 = vector.load %arg2[%c7, %c0_78, %c0_79] : memref<9x8x128xf32, #tpu.memory_space<vmem>>, vector<1x8x128xf32>
    %65 = vector.shape_cast %64 : vector<1x8x128xf32> to vector<8x128xf32>
    %cst_80 = arith.constant dense<0.000000e+00> : vector<256x128xf32>
    %66 = tpu.matmul %63, %65, %cst_80 {dimension_numbers = #tpu.dot_dimension_numbers<[1], [0], [0], [1], [0, 0, 1, 1], [], []>} : vector<256x8xf32>, vector<8x128xf32>, vector<256x128xf32> -> vector<256x128xf32>
    %c0_81 = arith.constant 0 : index
    %c0_82 = arith.constant 0 : index
    %67 = vector.load %arg8[%c0_81, %c0_82] : memref<256x128xf32, #tpu.memory_space<vmem>>, vector<256x128xf32>
    %68 = arith.addf %67, %66 : vector<256x128xf32>
    %c0_83 = arith.constant 0 : index
    %c0_84 = arith.constant 0 : index
    %69 = vector.load %arg8[%c0_83, %c0_84] : memref<256x128xf32, #tpu.memory_space<vmem>>, vector<256x128xf32>
    tpu.vector_store %arg8[%c0_83, %c0_84], %68 {strides = array<i32>} : memref<256x128xf32, #tpu.memory_space<vmem>>, vector<256x128xf32>,
    %c0_85 = arith.constant 0 : index
    %c2_86 = arith.constant 2 : index
    %c2_87 = arith.constant 2 : index
    %c0_88 = arith.constant 0 : index
    %70 = vector.load %arg1[%c0_85, %c2_86, %c2_87, %c0_88] : memref<1x18x18x8xf32, #tpu.memory_space<vmem>>, vector<1x16x16x8xf32>
    %71 = vector.shape_cast %70 : vector<1x16x16x8xf32> to vector<16x16x8xf32>
    %72 = vector.shape_cast %71 : vector<16x16x8xf32> to vector<256x8xf32>
    %c8 = arith.constant 8 : index
    %c0_89 = arith.constant 0 : index
    %c0_90 = arith.constant 0 : index
    %73 = vector.load %arg2[%c8, %c0_89, %c0_90] : memref<9x8x128xf32, #tpu.memory_space<vmem>>, vector<1x8x128xf32>
    %74 = vector.shape_cast %73 : vector<1x8x128xf32> to vector<8x128xf32>
    %cst_91 = arith.constant dense<0.000000e+00> : vector<256x128xf32>
    %75 = tpu.matmul %72, %74, %cst_91 {dimension_numbers = #tpu.dot_dimension_numbers<[1], [0], [0], [1], [0, 0, 1, 1], [], []>} : vector<256x8xf32>, vector<8x128xf32>, vector<256x128xf32> -> vector<256x128xf32>
    %c0_92 = arith.constant 0 : index
    %c0_93 = arith.constant 0 : index
    %76 = vector.load %arg8[%c0_92, %c0_93] : memref<256x128xf32, #tpu.memory_space<vmem>>, vector<256x128xf32>
    %77 = arith.addf %76, %75 : vector<256x128xf32>
    %c0_94 = arith.constant 0 : index
    %c0_95 = arith.constant 0 : index
    %78 = vector.load %arg8[%c0_94, %c0_95] : memref<256x128xf32, #tpu.memory_space<vmem>>, vector<256x128xf32>
    tpu.vector_store %arg8[%c0_94, %c0_95], %77 {strides = array<i32>} : memref<256x128xf32, #tpu.memory_space<vmem>>, vector<256x128xf32>,
    %c0_96 = arith.constant 0 : index
    %c0_97 = arith.constant 0 : index
    %79 = vector.load %arg8[%c0_96, %c0_97] : memref<256x128xf32, #tpu.memory_space<vmem>>, vector<256x128xf32>
    %c0_98 = arith.constant 0 : index
    %c0_99 = arith.constant 0 : index
    %80 = vector.load %arg3[%c0_98, %c0_99] : memref<1x128xf32, #tpu.memory_space<vmem>>, vector<1x128xf32>
    %81 = vector.broadcast %80 : vector<1x128xf32> to vector<256x128xf32>
    %82 = arith.addf %79, %81 : vector<256x128xf32>
    %c0_100 = arith.constant 0 : index
    %c0_101 = arith.constant 0 : index
    %c0_102 = arith.constant 0 : index
    %83 = vector.load %arg4[%c0_100, %c0_101, %c0_102] : memref<2x8x128xf32, #tpu.memory_space<vmem>>, vector<2x8x128xf32>
    %84 = vector.extract_strided_slice %83 {offsets = [0, 0, 0], sizes = [2, 1, 128], strides = [1, 1, 1]} : vector<2x8x128xf32> to vector<2x1x128xf32>
    %cst_103 = arith.constant dense<0.000000e+00> : vector<1x128xf32>
    %85 = vector.multi_reduction <add>, %84, %cst_103 [0] : vector<2x1x128xf32> to vector<1x128xf32>
    %86 = vector.extract_strided_slice %83 {offsets = [0, 1, 0], sizes = [2, 1, 128], strides = [1, 1, 1]} : vector<2x8x128xf32> to vector<2x1x128xf32>
    %cst_104 = arith.constant dense<0.000000e+00> : vector<1x128xf32>
    %87 = vector.multi_reduction <add>, %86, %cst_104 [0] : vector<2x1x128xf32> to vector<1x128xf32>
    %cst_105 = arith.constant 0.001953125 : f32
    %88 = vector.broadcast %cst_105 : f32 to vector<1x128xf32>
    %89 = arith.mulf %85, %88 : vector<1x128xf32>
    %cst_106 = arith.constant 0.001953125 : f32
    %90 = vector.broadcast %cst_106 : f32 to vector<1x128xf32>
    %91 = arith.mulf %87, %90 : vector<1x128xf32>
    %92 = arith.mulf %89, %89 : vector<1x128xf32>
    %93 = arith.subf %91, %92 : vector<1x128xf32>
    %cst_107 = arith.constant 0.000000e+00 : f32
    %94 = vector.broadcast %cst_107 : f32 to vector<1x128xf32>
    %95 = arith.maximumf %93, %94 : vector<1x128xf32>
    %cst_108 = arith.constant 9.99999974E-6 : f32
    %96 = vector.broadcast %cst_108 : f32 to vector<1x128xf32>
    %97 = arith.addf %95, %96 : vector<1x128xf32>
    %98 = math.rsqrt %97 : vector<1x128xf32>
    %c0_109 = arith.constant 0 : index
    %c0_110 = arith.constant 0 : index
    %99 = vector.load %arg5[%c0_109, %c0_110] : memref<1x128xf32, #tpu.memory_space<vmem>>, vector<1x128xf32>
    %100 = arith.mulf %99, %98 : vector<1x128xf32>
    %c0_111 = arith.constant 0 : index
    %c0_112 = arith.constant 0 : index
    %101 = vector.load %arg6[%c0_111, %c0_112] : memref<1x128xf32, #tpu.memory_space<vmem>>, vector<1x128xf32>
    %102 = arith.mulf %89, %100 : vector<1x128xf32>
    %103 = arith.subf %101, %102 : vector<1x128xf32>
    %104 = vector.broadcast %100 : vector<1x128xf32> to vector<256x128xf32>
    %105 = arith.mulf %82, %104 : vector<256x128xf32>
    %106 = vector.broadcast %103 : vector<1x128xf32> to vector<256x128xf32>
    %107 = arith.addf %105, %106 : vector<256x128xf32>
    %cst_113 = arith.constant 0.000000e+00 : f32
    %108 = vector.broadcast %cst_113 : f32 to vector<256x128xf32>
    %109 = arith.maximumf %107, %108 : vector<256x128xf32>
    %c0_114 = arith.constant 0 : index
    %c0_115 = arith.constant 0 : index
    %110 = vector.load %arg7[%c0_114, %c0_115] : memref<256x128xf32, #tpu.memory_space<vmem>>, vector<256x128xf32>
    tpu.vector_store %arg7[%c0_114, %c0_115], %109 {strides = array<i32>} : memref<256x128xf32, #tpu.memory_space<vmem>>, vector<256x128xf32>,
    return
  }
  func.func @transform_0(%arg0: i32) -> (i32, i32, i32, i32) {
    %c0_i32 = arith.constant 0 : i32
    %c0_i32_0 = arith.constant 0 : i32
    %c0_i32_1 = arith.constant 0 : i32
    %c0_i32_2 = arith.constant 0 : i32
    return %arg0, %c0_i32, %c0_i32_0, %c0_i32_1 : i32, i32, i32, i32
  }
  func.func @transform_1(%arg0: i32) -> (i32, i32, i32) {
    %c0_i32 = arith.constant 0 : i32
    %c0_i32_0 = arith.constant 0 : i32
    %c0_i32_1 = arith.constant 0 : i32
    %c0_i32_2 = arith.constant 0 : i32
    return %c0_i32, %c0_i32_0, %c0_i32_1 : i32, i32, i32
  }
  func.func @transform_2(%arg0: i32) -> (i32, i32) {
    %c0_i32 = arith.constant 0 : i32
    %c0_i32_0 = arith.constant 0 : i32
    %c0_i32_1 = arith.constant 0 : i32
    return %c0_i32, %c0_i32_0 : i32, i32
  }
  func.func @transform_3(%arg0: i32) -> (i32, i32, i32) {
    %c0_i32 = arith.constant 0 : i32
    %c0_i32_0 = arith.constant 0 : i32
    %c0_i32_1 = arith.constant 0 : i32
    %c0_i32_2 = arith.constant 0 : i32
    return %c0_i32, %c0_i32_0, %c0_i32_1 : i32, i32, i32
  }
  func.func @transform_4(%arg0: i32) -> (i32, i32) {
    %c0_i32 = arith.constant 0 : i32
    %c0_i32_0 = arith.constant 0 : i32
    %c0_i32_1 = arith.constant 0 : i32
    return %c0_i32, %c0_i32_0 : i32, i32
  }
  func.func @transform_5(%arg0: i32) -> (i32, i32) {
    %c0_i32 = arith.constant 0 : i32
    %c0_i32_0 = arith.constant 0 : i32
    %c0_i32_1 = arith.constant 0 : i32
    return %c0_i32, %c0_i32_0 : i32, i32
  }
  func.func @transform_6(%arg0: i32) -> (i32, i32) {
    %c0_i32 = arith.constant 0 : i32
    %c0_i32_0 = arith.constant 0 : i32
    return %arg0, %c0_i32 : i32, i32
  }
}

</mosaic_0001>

<llo_original>
// kernel: conv_module_forward.3
$region0: #{conv_module_forward.3}
  #allocation0 [shape = 'u32[]', space=smem, size = 0x4, offset = 0x4, fixed_abs, tag = 'smem constant byte address 0x4 - core index']
  #allocation1 [shape = 'u32[144,128]{1,0:T(1,128)}', space=vmem, size = 0x12000, scoped, tag = 'internal scratch']
  #allocation2 [shape = 'f32[256,128]{1,0:T(8,128)}', space=vmem, size = 0x20000, scoped, tag = 'scratch operand']
  %s0 = inlined_call_operand.vmem [shape: f32[2,18,18,8], index: 0, kind: input, shape index: {}]
  %s1 = inlined_call_operand.vmem [shape: f32[9,8,128], index: 1, kind: input, shape index: {}]
  %s2 = inlined_call_operand.vmem [shape: f32[1,128], index: 2, kind: input, shape index: {}]
  %s3 = inlined_call_operand.vmem [shape: f32[2,8,128], index: 3, kind: input, shape index: {}]
  %s4 = inlined_call_operand.vmem [shape: f32[1,128], index: 4, kind: input, shape index: {}]
  %s5 = inlined_call_operand.vmem [shape: f32[1,128], index: 5, kind: input, shape index: {}]
  %s6 = inlined_call_operand.vmem [shape: f32[512,128], index: 6, kind: output, shape index: {}]
  %s7 = sld [smem:[#allocation0]]
  $region57: #{conv_module_forward.3} parent=0
    _
  %s9 = ssub.s32 1, %s7
  %s10 = scalar_select 0, %s9, %s7
  loop: start=0, step=1, limit=4
  $region2: #{conv_module_forward.3} parent=0 // loop_pre_header
    _
  $region3: #{conv_module_forward.3} parent=0 // loop_header
    %s12 = sphi 0, %s16
    %p13 = scmp.ge.s32.totalorder %s12, 4
    %s22 = sphi 0, %s24
    %s25 = sphi 0, %s22
    %s26 = sphi 0, %s25
    %s42 = sphi 0, %s26
    %s46 = sphi 0, %s46
    %s48 = sphi 0, %s46
    %s49 = sphi 0, %s48
    %s63 = sphi 0, %s49
    %s67 = sphi 0, %s67
    %s69 = sphi 0, %s67
    %s70 = sphi 0, %s69
    %s84 = sphi 0, %s70
    %s88 = sphi 0, %s88
    %s90 = sphi 0, %s88
    %s91 = sphi 0, %s90
    %s105 = sphi 0, %s91
    %s109 = sphi 0, %s109
    %s111 = sphi 0, %s109
    %s112 = sphi 0, %s111
    %s126 = sphi 0, %s112
    %s130 = sphi 0, %s130
    %s132 = sphi 0, %s130
    %s133 = sphi 0, %s132
    %s147 = sphi 0, %s133
    %s153 = sphi 0, %s155
    %s156 = sphi 0, %s153
    %s157 = sphi 0, %s156
    %s173 = sphi 0, %s157
  $region4: #{conv_module_forward.3} parent=0 // loop_header_branch
    %15 = sbr.rel (%p13) target = $region8
  $region5: #{conv_module_forward.3} parent=0 // loop_body
    %s17 = ssub.s32 %s12, 1
    %s18 = ssub.s32 %s12, 2
    %s19 = sadd.s32 %s12, 1
    %s20 = ssub.s32 %s12, %s19
    %p21 = scmp.eq.s32.totalorder %s20, 0
    %s23 = sadd.s32 %s22, 1
    %s24 = scalar_select %p21, %s22, %s23
    %p27 = pneg %p21
    %p28 = scmp.eq.s32.totalorder %s12, 1
    %p29 = por %p27, %p28
    %p30 = scmp.ne.s32.totalorder %s22, %s25
    %p31 = scmp.eq.s32.totalorder %s12, 0
    %p32 = por %p30, %p31
    %p33 = scmp.ne.s32.totalorder %s22, %s25
    %p34 = scmp.eq.s32.totalorder %s17, 1
    %p35 = por %p33, %p34
    %p36 = scmp.ne.s32.totalorder %s25, %s26
    %p37 = scmp.eq.s32.totalorder %s17, 0
    %p38 = por %p36, %p37
    %p39 = scmp.ne.s32.totalorder %s25, %s26
    %p40 = scmp.eq.s32.totalorder %s18, 1
    %p41 = por %p39, %p40
    %p43 = scmp.ne.s32.totalorder %s26, %s42
    %p44 = scmp.eq.s32.totalorder %s18, 0
    %p45 = por %p43, %p44
    %s47 = sadd.s32 %s46, 1
    %p50 = scmp.eq.s32.totalorder %s12, 1
    %p51 = scmp.ne.s32.totalorder %s46, %s48
    %p52 = scmp.eq.s32.totalorder %s12, 0
    %p53 = por %p51, %p52
    %p54 = scmp.ne.s32.totalorder %s46, %s48
    %p55 = scmp.eq.s32.totalorder %s17, 1
    %p56 = por %p54, %p55
    %p57 = scmp.ne.s32.totalorder %s48, %s49
    %p58 = scmp.eq.s32.totalorder %s17, 0
    %p59 = por %p57, %p58
    %p60 = scmp.ne.s32.totalorder %s48, %s49
    %p61 = scmp.eq.s32.totalorder %s18, 1
    %p62 = por %p60, %p61
    %p64 = scmp.ne.s32.totalorder %s49, %s63
    %p65 = scmp.eq.s32.totalorder %s18, 0
    %p66 = por %p64, %p65
    %s68 = sadd.s32 %s67, 1
    %p71 = scmp.eq.s32.totalorder %s12, 1
    %p72 = scmp.ne.s32.totalorder %s67, %s69
    %p73 = scmp.eq.s32.totalorder %s12, 0
    %p74 = por %p72, %p73
    %p75 = scmp.ne.s32.totalorder %s67, %s69
    %p76 = scmp.eq.s32.totalorder %s17, 1
    %p77 = por %p75, %p76
    %p78 = scmp.ne.s32.totalorder %s69, %s70
    %p79 = scmp.eq.s32.totalorder %s17, 0
    %p80 = por %p78, %p79
    %p81 = scmp.ne.s32.totalorder %s69, %s70
    %p82 = scmp.eq.s32.totalorder %s18, 1
    %p83 = por %p81, %p82
    %p85 = scmp.ne.s32.totalorder %s70, %s84
    %p86 = scmp.eq.s32.totalorder %s18, 0
    %p87 = por %p85, %p86
    %s89 = sadd.s32 %s88, 1
    %p92 = scmp.eq.s32.totalorder %s12, 1
    %p93 = scmp.ne.s32.totalorder %s88, %s90
    %p94 = scmp.eq.s32.totalorder %s12, 0
    %p95 = por %p93, %p94
    %p96 = scmp.ne.s32.totalorder %s88, %s90
    %p97 = scmp.eq.s32.totalorder %s17, 1
    %p98 = por %p96, %p97
    %p99 = scmp.ne.s32.totalorder %s90, %s91
    %p100 = scmp.eq.s32.totalorder %s17, 0
    %p101 = por %p99, %p100
    %p102 = scmp.ne.s32.totalorder %s90, %s91
    %p103 = scmp.eq.s32.totalorder %s18, 1
    %p104 = por %p102, %p103
    %p106 = scmp.ne.s32.totalorder %s91, %s105
    %p107 = scmp.eq.s32.totalorder %s18, 0
    %p108 = por %p106, %p107
    %s110 = sadd.s32 %s109, 1
    %p113 = scmp.eq.s32.totalorder %s12, 1
    %p114 = scmp.ne.s32.totalorder %s109, %s111
    %p115 = scmp.eq.s32.totalorder %s12, 0
    %p116 = por %p114, %p115
    %p117 = scmp.ne.s32.totalorder %s109, %s111
    %p118 = scmp.eq.s32.totalorder %s17, 1
    %p119 = por %p117, %p118
    %p120 = scmp.ne.s32.totalorder %s111, %s112
    %p121 = scmp.eq.s32.totalorder %s17, 0
    %p122 = por %p120, %p121
    %p123 = scmp.ne.s32.totalorder %s111, %s112
    %p124 = scmp.eq.s32.totalorder %s18, 1
    %p125 = por %p123, %p124
    %p127 = scmp.ne.s32.totalorder %s112, %s126
    %p128 = scmp.eq.s32.totalorder %s18, 0
    %p129 = por %p127, %p128
    %s131 = sadd.s32 %s130, 1
    %p134 = scmp.eq.s32.totalorder %s12, 1
    %p135 = scmp.ne.s32.totalorder %s130, %s132
    %p136 = scmp.eq.s32.totalorder %s12, 0
    %p137 = por %p135, %p136
    %p138 = scmp.ne.s32.totalorder %s130, %s132
    %p139 = scmp.eq.s32.totalorder %s17, 1
    %p140 = por %p138, %p139
    %p141 = scmp.ne.s32.totalorder %s132, %s133
    %p142 = scmp.eq.s32.totalorder %s17, 0
    %p143 = por %p141, %p142
    %p144 = scmp.ne.s32.totalorder %s132, %s133
    %p145 = scmp.eq.s32.totalorder %s18, 1
    %p146 = por %p144, %p145
    %p148 = scmp.ne.s32.totalorder %s133, %s147
    %p149 = scmp.eq.s32.totalorder %s18, 0
    %p150 = por %p148, %p149
    %s151 = ssub.s32 %s12, %s19
    %p152 = scmp.eq.s32.totalorder %s151, 0
    %s154 = sadd.s32 %s153, 1
    %s155 = scalar_select %p152, %s153, %s154
    %p158 = pneg %p152
    %p159 = scmp.eq.s32.totalorder %s12, 1
    %p160 = por %p158, %p159
    %p161 = scmp.ne.s32.totalorder %s153, %s156
    %p162 = scmp.eq.s32.totalorder %s12, 0
    %p163 = por %p161, %p162
    %p164 = scmp.ne.s32.totalorder %s153, %s156
    %p165 = scmp.eq.s32.totalorder %s17, 1
    %p166 = por %p164, %p165
    %p167 = scmp.ne.s32.totalorder %s156, %s157
    %p168 = scmp.eq.s32.totalorder %s17, 0
    %p169 = por %p167, %p168
    %p170 = scmp.ne.s32.totalorder %s156, %s157
    %p171 = scmp.eq.s32.totalorder %s18, 1
    %p172 = por %p170, %p171
    %p174 = scmp.ne.s32.totalorder %s157, %s173
    %p175 = scmp.eq.s32.totalorder %s18, 0
    %p176 = por %p174, %p175
    %p177 = scmp.le.s32.totalorder 1, %s12
    %p178 = scmp.lt.s32.totalorder %s12, 3
    %p179 = pnand %p177, %p178
    %p180 = pneg %p179
    // Predicated region
    $region9: #{conv_module_forward.3} parent=5 // pred_check
      _
    $region10: #{conv_module_forward.3} parent=5 // pred_check_branch
      %182 = sbr.rel (%p179) target = $region12
    $region11: #{conv_module_forward.3} parent=5 // pred_region
      %s183 = ssub.s32 %s12, 1
      // Predicated region
      $region13: #{conv_module_forward.3} parent=11 // pred_check
        %p184 = pneg %p59
      $region14: #{conv_module_forward.3} parent=11 // pred_check_branch
        %186 = sbr.rel (%p184) target = $region16
      $region15: #{conv_module_forward.3} parent=11 // pred_region
        _
      $region16: #{conv_module_forward.3} parent=11 // pred_fallthru
        _
      // Predicated region
      $region17: #{conv_module_forward.3} parent=11 // pred_check
        %p187 = pneg %p80
      $region18: #{conv_module_forward.3} parent=11 // pred_check_branch
        %189 = sbr.rel (%p187) target = $region20
      $region19: #{conv_module_forward.3} parent=11 // pred_region
        _
      $region20: #{conv_module_forward.3} parent=11 // pred_fallthru
        _
      // Predicated region
      $region21: #{conv_module_forward.3} parent=11 // pred_check
        %p190 = pneg %p101
      $region22: #{conv_module_forward.3} parent=11 // pred_check_branch
        %192 = sbr.rel (%p190) target = $region24
      $region23: #{conv_module_forward.3} parent=11 // pred_region
        _
      $region24: #{conv_module_forward.3} parent=11 // pred_fallthru
        _
      // Predicated region
      $region25: #{conv_module_forward.3} parent=11 // pred_check
        %p193 = pneg %p122
      $region26: #{conv_module_forward.3} parent=11 // pred_check_branch
        %195 = sbr.rel (%p193) target = $region28
      $region27: #{conv_module_forward.3} parent=11 // pred_region
        _
      $region28: #{conv_module_forward.3} parent=11 // pred_fallthru
        _
      // Predicated region
      $region29: #{conv_module_forward.3} parent=11 // pred_check
        %p196 = pneg %p143
      $region30: #{conv_module_forward.3} parent=11 // pred_check_branch
        %198 = sbr.rel (%p196) target = $region32
      $region31: #{conv_module_forward.3} parent=11 // pred_region
        _
      $region32: #{conv_module_forward.3} parent=11 // pred_fallthru
        _
    $region12: #{conv_module_forward.3} parent=5 // pred_fallthru
      _
    %p199 = scmp.lt.s32.totalorder %s12, 2
    // Predicated region
    $region33: #{conv_module_forward.3} parent=5 // pred_check
      %p200 = pneg %p199
    $region34: #{conv_module_forward.3} parent=5 // pred_check_branch
      %202 = sbr.rel (%p200) target = $region36
    $region35: #{conv_module_forward.3} parent=5 // pred_region
      // Predicated region
      $region37: #{conv_module_forward.3} parent=35 // pred_check
        %p203 = pneg %p32
      $region38: #{conv_module_forward.3} parent=35 // pred_check_branch
        %205 = sbr.rel (%p203) target = $region40
      $region39: #{conv_module_forward.3} parent=35 // pred_region
        %p206 = scmp.lt.s32.totalorder %s12, 1
        %s207 = scalar_select %p206, %s12, 1
        %s208 = smul.addr %s207, 54
        %s209 = smul.addr %s208, 8
        %s210 = scalar_lea.vmem %s0, %s209
      $region40: #{conv_module_forward.3} parent=35 // pred_fallthru
        _
    $region36: #{conv_module_forward.3} parent=5 // pred_fallthru
      _
    %p211 = scmp.le.s32.totalorder 1, %s12
    %p212 = scmp.lt.s32.totalorder %s12, 3
    %p213 = pnand %p211, %p212
    %p214 = pneg %p213
    // Predicated region
    $region41: #{conv_module_forward.3} parent=5 // pred_check
      _
    $region42: #{conv_module_forward.3} parent=5 // pred_check_branch
      %216 = sbr.rel (%p213) target = $region44
    $region43: #{conv_module_forward.3} parent=5 // pred_region
      %s217 = ssub.s32 %s12, 1
      %p218 = scmp.lt.s32.totalorder %s17, 1
      %s219 = scalar_select %p218, %s17, 1
      %s220 = smul.addr %s219, 54
      %s221 = smul.addr %s220, 8
      %s222 = scalar_lea.vmem %s0, %s221
      %p223 = pneg %p38
      %p224 = pneg %p35
      %p225 = pneg %p59
      %p226 = pneg %p56
      %p227 = pneg %p80
      %p228 = pneg %p77
      %p229 = pneg %p101
      %p230 = pneg %p98
      %p231 = pneg %p122
      %p232 = pneg %p119
      %p233 = pneg %p143
      %p234 = pneg %p140
      %p235 = pneg %p169
      %p236 = pneg %p166
      %s237 = smul.u32 32, %s17
      %p238 = scmp.lt.s32.totalorder %s237, 63
      %s239 = scalar_select %p238, %s237, 63
      %s240 = smul.addr %s239, 8
      %s241 = scalar_lea.vmem %s6, %s240
      %p242 = scmp.lt.s32.totalorder %s17, 1
      %s243 = scalar_select %p242, %s17, 1
      %s244 = smul.addr %s243, 54
      %s245 = smul.addr %s244, 8
      %s246 = scalar_lea.vmem %s0, %s245
      %s247 = smul.u32 32, %s17
      %p248 = scmp.lt.s32.totalorder %s247, 63
      %s249 = scalar_select %p248, %s247, 63
      %s250 = smul.addr %s249, 8
      %s251 = scalar_lea.vmem %s6, %s250
      %s252 = smul.u32 32, %s17
      %v253 = vld [vmem:[%s246] sm:$0xff]
      %v254 = vld [vmem:[%s246 + $0x8] sm:$0xff]
      %v255 = vld [vmem:[%s246 + $0x18] sm:$0xff]
      %v256 = vld [vmem:[%s246 + $0x20] sm:$0xff]
      %v257 = vld [vmem:[%s246 + $0x30] sm:$0xff]
      %v258 = vld [vmem:[%s246 + $0x38] sm:$0xff]
      %v259 = vld [vmem:[%s246 + $0x48] sm:$0xff]
      %v260 = vld [vmem:[%s246 + $0x50] sm:$0xff]
      %v261 = vld [vmem:[%s246 + $0x60] sm:$0xff]
      %v262 = vld [vmem:[%s246 + $0x68] sm:$0xff]
      %v263 = vld [vmem:[%s246 + $0x78] sm:$0xff]
      %v264 = vld [vmem:[%s246 + $0x80] sm:$0xff]
      %v265 = vld [vmem:[%s246 + $0x90] sm:$0xff]
      %v266 = vld [vmem:[%s246 + $0x98] sm:$0xff]
      %v267 = vld [vmem:[%s246 + $0xa8] sm:$0xff]
      %v268 = vld [vmem:[%s246 + $0xb0] sm:$0xff]
      %v269 = vld [vmem:[%s246 + $0xc0] sm:$0xff]
      %v270 = vld [vmem:[%s246 + $0xc8] sm:$0xff]
      %v271 = vld [vmem:[%s246 + $0xd8] sm:$0xff]
      %v272 = vld [vmem:[%s246 + $0xe0] sm:$0xff]
      %v273 = vld [vmem:[%s246 + $0xf0] sm:$0xff]
      %v274 = vld [vmem:[%s246 + $0xf8] sm:$0xff]
      %v275 = vld [vmem:[%s246 + $0x108] sm:$0xff]
      %v276 = vld [vmem:[%s246 + $0x110] sm:$0xff]
      %v277 = vld [vmem:[%s246 + $0x120] sm:$0xff]
      %v278 = vld [vmem:[%s246 + $0x128] sm:$0xff]
      %v279 = vld [vmem:[%s246 + $0x138] sm:$0xff]
      %v280 = vld [vmem:[%s246 + $0x140] sm:$0xff]
      %v281 = vld [vmem:[%s246 + $0x150] sm:$0xff]
      %v282 = vld [vmem:[%s246 + $0x158] sm:$0xff]
      %v283 = vld [vmem:[%s246 + $0x168] sm:$0xff]
      %v284 = vld [vmem:[%s246 + $0x170] sm:$0xff]
      %v285 = vld [vmem:[%s1] sm:$0xff]
      %vm286 = vcmask 64512
      %v288 = vsel %vm286, %v253, 0
      %v291 = vsel %vm286, %v254, 0
      %v294 = vsel %vm286, %v255, 0
      %v297 = vsel %vm286, %v256, 0
      %v300 = vsel %vm286, %v257, 0
      %v303 = vsel %vm286, %v258, 0
      %v306 = vsel %vm286, %v259, 0
      %v309 = vsel %vm286, %v260, 0
      %v312 = vsel %vm286, %v261, 0
      %v315 = vsel %vm286, %v262, 0
      %v318 = vsel %vm286, %v263, 0
      %v321 = vsel %vm286, %v264, 0
      %v324 = vsel %vm286, %v265, 0
      %v327 = vsel %vm286, %v266, 0
      %v330 = vsel %vm286, %v267, 0
      %v333 = vsel %vm286, %v268, 0
      %v336 = vsel %vm286, %v269, 0
      %v339 = vsel %vm286, %v270, 0
      %v342 = vsel %vm286, %v271, 0
      %v345 = vsel %vm286, %v272, 0
      %v348 = vsel %vm286, %v273, 0
      %v351 = vsel %vm286, %v274, 0
      %v354 = vsel %vm286, %v275, 0
      %v357 = vsel %vm286, %v276, 0
      %v360 = vsel %vm286, %v277, 0
      %v363 = vsel %vm286, %v278, 0
      %v366 = vsel %vm286, %v279, 0
      %v369 = vsel %vm286, %v280, 0
      %v372 = vsel %vm286, %v281, 0
      %v375 = vsel %vm286, %v282, 0
      %v378 = vsel %vm286, %v283, 0
      %v381 = vsel %vm286, %v284, 0
      %383 = vmatprep.subr.mxu0 0.0
      %384 = vmatpush1.msra.mxu0 0.0
      %385 = vmatprep.subr.mxu0 0.0
      %386 = vmatpush1.msra.mxu0 0.0
      %387 = vmatprep.subr.mxu0 0.0
      %388 = vmatpush1.msra.mxu0 0.0
      %389 = vmatprep.subr.mxu0 0.0
      %390 = vmatpush1.msra.mxu0 0.0
      %391 = vmatprep.subr.mxu0 0.0
      %392 = vmatpush1.msra.mxu0 0.0
      %393 = vmatprep.subr.mxu0 0.0
      %394 = vmatpush1.msra.mxu0 0.0
      %395 = vmatprep.subr.mxu0 0.0
      %396 = vmatpush1.msra.mxu0 0.0
      %397 = vmatprep.subr.mxu0 0.0
      %398 = vmatpush1.msra.mxu0 0.0
      %399 = vmatprep.subr.mxu0 0.0
      %400 = vmatpush1.msra.mxu0 0.0
      %401 = vmatprep.subr.mxu0 0.0
      %402 = vmatpush1.msra.mxu0 0.0
      %403 = vmatprep.subr.mxu0 0.0
      %404 = vmatpush1.msra.mxu0 0.0
      %405 = vmatprep.subr.mxu0 0.0
      %406 = vmatpush1.msra.mxu0 0.0
      %407 = vmatprep.subr.mxu0 0.0
      %408 = vmatpush1.msra.mxu0 0.0
      %409 = vmatprep.subr.mxu0 0.0
      %410 = vmatpush1.msra.mxu0 0.0
      %411 = vmatprep.subr.mxu0 0.0
      %412 = vmatpush1.msra.mxu0 0.0
      %413 = vmatprep.subr.mxu0 0.0
      %414 = vmatpush1.msra.mxu0 %v285
      %415 = vmatprep.subr.mxu0 0.0
      %416 = vmatpush2.msra.mxu0 0.0
      %417 = vmatprep.subr.mxu0 0.0
      %418 = vmatpush2.msra.mxu0 0.0
      %419 = vmatprep.subr.mxu0 0.0
      %420 = vmatpush2.msra.mxu0 0.0
      %421 = vmatprep.subr.mxu0 0.0
      %422 = vmatpush2.msra.mxu0 0.0
      %423 = vmatprep.subr.mxu0 0.0
      %424 = vmatpush2.msra.mxu0 0.0
      %425 = vmatprep.subr.mxu0 0.0
      %426 = vmatpush2.msra.mxu0 0.0
      %427 = vmatprep.subr.mxu0 0.0
      %428 = vmatpush2.msra.mxu0 0.0
      %429 = vmatprep.subr.mxu0 0.0
      %430 = vmatpush2.msra.mxu0 0.0
      %431 = vmatprep.subr.mxu0 0.0
      %432 = vmatpush2.msra.mxu0 0.0
      %433 = vmatprep.subr.mxu0 0.0
      %434 = vmatpush2.msra.mxu0 0.0
      %435 = vmatprep.subr.mxu0 0.0
      %436 = vmatpush2.msra.mxu0 0.0
      %437 = vmatprep.subr.mxu0 0.0
      %438 = vmatpush2.msra.mxu0 0.0
      %439 = vmatprep.subr.mxu0 0.0
      %440 = vmatpush2.msra.mxu0 0.0
      %441 = vmatprep.subr.mxu0 0.0
      %442 = vmatpush2.msra.mxu0 0.0
      %443 = vmatprep.subr.mxu0 0.0
      %444 = vmatpush2.msra.mxu0 0.0
      %445 = vmatprep.subr.mxu0 0.0
      %446 = vmatpush2.msra.mxu0 0.0
      %447 = vmatprep.mubr.f32.mxu0 0.0
      %448 = vmatmul.mubr.f32.gmra.mxu0 %v288
      %v449 = vpop.f32.mrf.mxu0
      %v450 = vadd.f32 0.0, %v449
      %v451 = vpop.f32.mrf.mxu0
      %452 = vmatprep.mubr.f32.mxu0 0.0
      %453 = vmatmul.mubr.f32.gmra.mxu0 %v291
      %v454 = vpop.f32.mrf.mxu0
      %v455 = vadd.f32 0.0, %v454
      %v456 = vpop.f32.mrf.mxu0
      %457 = vmatprep.mubr.f32.mxu0 0.0
      %458 = vmatmul.mubr.f32.gmra.mxu0 %v294
      %v459 = vpop.f32.mrf.mxu0
      %v460 = vadd.f32 0.0, %v459
      %v461 = vpop.f32.mrf.mxu0
      %462 = vmatprep.mubr.f32.mxu0 0.0
      %463 = vmatmul.mubr.f32.gmra.mxu0 %v297
      %v464 = vpop.f32.mrf.mxu0
      %v465 = vadd.f32 0.0, %v464
      %v466 = vpop.f32.mrf.mxu0
      %467 = vmatprep.mubr.f32.mxu0 0.0
      %468 = vmatmul.mubr.f32.gmra.mxu0 %v300
      %v469 = vpop.f32.mrf.mxu0
      %v470 = vadd.f32 0.0, %v469
      %v471 = vpop.f32.mrf.mxu0
      %472 = vmatprep.mubr.f32.mxu0 0.0
      %473 = vmatmul.mubr.f32.gmra.mxu0 %v303
      %v474 = vpop.f32.mrf.mxu0
      %v475 = vadd.f32 0.0, %v474
      %v476 = vpop.f32.mrf.mxu0
      %477 = vmatprep.mubr.f32.mxu0 0.0
      %478 = vmatmul.mubr.f32.gmra.mxu0 %v306
      %v479 = vpop.f32.mrf.mxu0
      %v480 = vadd.f32 0.0, %v479
      %v481 = vpop.f32.mrf.mxu0
      %482 = vmatprep.mubr.f32.mxu0 0.0
      %483 = vmatmul.mubr.f32.gmra.mxu0 %v309
      %v484 = vpop.f32.mrf.mxu0
      %v485 = vadd.f32 0.0, %v484
      %v486 = vpop.f32.mrf.mxu0
      %487 = vmatprep.mubr.f32.mxu0 0.0
      %488 = vmatmul.mubr.f32.gmra.mxu0 %v312
      %v489 = vpop.f32.mrf.mxu0
      %v490 = vadd.f32 0.0, %v489
      %v491 = vpop.f32.mrf.mxu0
      %492 = vmatprep.mubr.f32.mxu0 0.0
      %493 = vmatmul.mubr.f32.gmra.mxu0 %v315
      %v494 = vpop.f32.mrf.mxu0
      %v495 = vadd.f32 0.0, %v494
      %v496 = vpop.f32.mrf.mxu0
      %497 = vmatprep.mubr.f32.mxu0 0.0
      %498 = vmatmul.mubr.f32.gmra.mxu0 %v318
      %v499 = vpop.f32.mrf.mxu0
      %v500 = vadd.f32 0.0, %v499
      %v501 = vpop.f32.mrf.mxu0
      %502 = vmatprep.mubr.f32.mxu0 0.0
      %503 = vmatmul.mubr.f32.gmra.mxu0 %v321
      %v504 = vpop.f32.mrf.mxu0
      %v505 = vadd.f32 0.0, %v504
      %v506 = vpop.f32.mrf.mxu0
      %507 = vmatprep.mubr.f32.mxu0 0.0
      %508 = vmatmul.mubr.f32.gmra.mxu0 %v324
      %v509 = vpop.f32.mrf.mxu0
      %v510 = vadd.f32 0.0, %v509
      %v511 = vpop.f32.mrf.mxu0
      %512 = vmatprep.mubr.f32.mxu0 0.0
      %513 = vmatmul.mubr.f32.gmra.mxu0 %v327
      %v514 = vpop.f32.mrf.mxu0
      %v515 = vadd.f32 0.0, %v514
      %v516 = vpop.f32.mrf.mxu0
      %517 = vmatprep.mubr.f32.mxu0 0.0
      %518 = vmatmul.mubr.f32.gmra.mxu0 %v330
      %v519 = vpop.f32.mrf.mxu0
      %v520 = vadd.f32 0.0, %v519
      %v521 = vpop.f32.mrf.mxu0
      %522 = vmatprep.mubr.f32.mxu0 0.0
      %523 = vmatmul.mubr.f32.gmra.mxu0 %v333
      %v524 = vpop.f32.mrf.mxu0
      %v525 = vadd.f32 0.0, %v524
      %v526 = vpop.f32.mrf.mxu0
      %527 = vmatprep.mubr.f32.mxu0 0.0
      %528 = vmatmul.mubr.f32.gmra.mxu0 %v336
      %v529 = vpop.f32.mrf.mxu0
      %v530 = vadd.f32 0.0, %v529
      %v531 = vpop.f32.mrf.mxu0
      %532 = vmatprep.mubr.f32.mxu0 0.0
      %533 = vmatmul.mubr.f32.gmra.mxu0 %v339
      %v534 = vpop.f32.mrf.mxu0
      %v535 = vadd.f32 0.0, %v534
      %v536 = vpop.f32.mrf.mxu0
      %537 = vmatprep.mubr.f32.mxu0 0.0
      %538 = vmatmul.mubr.f32.gmra.mxu0 %v342
      %v539 = vpop.f32.mrf.mxu0
      %v540 = vadd.f32 0.0, %v539
      %v541 = vpop.f32.mrf.mxu0
      %542 = vmatprep.mubr.f32.mxu0 0.0
      %543 = vmatmul.mubr.f32.gmra.mxu0 %v345
      %v544 = vpop.f32.mrf.mxu0
      %v545 = vadd.f32 0.0, %v544
      %v546 = vpop.f32.mrf.mxu0
      %547 = vmatprep.mubr.f32.mxu0 0.0
      %548 = vmatmul.mubr.f32.gmra.mxu0 %v348
      %v549 = vpop.f32.mrf.mxu0
      %v550 = vadd.f32 0.0, %v549
      %v551 = vpop.f32.mrf.mxu0
      %552 = vmatprep.mubr.f32.mxu0 0.0
      %553 = vmatmul.mubr.f32.gmra.mxu0 %v351
      %v554 = vpop.f32.mrf.mxu0
      %v555 = vadd.f32 0.0, %v554
      %v556 = vpop.f32.mrf.mxu0
      %557 = vmatprep.mubr.f32.mxu0 0.0
      %558 = vmatmul.mubr.f32.gmra.mxu0 %v354
      %v559 = vpop.f32.mrf.mxu0
      %v560 = vadd.f32 0.0, %v559
      %v561 = vpop.f32.mrf.mxu0
      %562 = vmatprep.mubr.f32.mxu0 0.0
      %563 = vmatmul.mubr.f32.gmra.mxu0 %v357
      %v564 = vpop.f32.mrf.mxu0
      %v565 = vadd.f32 0.0, %v564
      %v566 = vpop.f32.mrf.mxu0
      %567 = vmatprep.mubr.f32.mxu0 0.0
      %568 = vmatmul.mubr.f32.gmra.mxu0 %v360
      %v569 = vpop.f32.mrf.mxu0
      %v570 = vadd.f32 0.0, %v569
      %v571 = vpop.f32.mrf.mxu0
      %572 = vmatprep.mubr.f32.mxu0 0.0
      %573 = vmatmul.mubr.f32.gmra.mxu0 %v363
      %v574 = vpop.f32.mrf.mxu0
      %v575 = vadd.f32 0.0, %v574
      %v576 = vpop.f32.mrf.mxu0
      %577 = vmatprep.mubr.f32.mxu0 0.0
      %578 = vmatmul.mubr.f32.gmra.mxu0 %v366
      %v579 = vpop.f32.mrf.mxu0
      %v580 = vadd.f32 0.0, %v579
      %v581 = vpop.f32.mrf.mxu0
      %582 = vmatprep.mubr.f32.mxu0 0.0
      %583 = vmatmul.mubr.f32.gmra.mxu0 %v369
      %v584 = vpop.f32.mrf.mxu0
      %v585 = vadd.f32 0.0, %v584
      %v586 = vpop.f32.mrf.mxu0
      %587 = vmatprep.mubr.f32.mxu0 0.0
      %588 = vmatmul.mubr.f32.gmra.mxu0 %v372
      %v589 = vpop.f32.mrf.mxu0
      %v590 = vadd.f32 0.0, %v589
      %v591 = vpop.f32.mrf.mxu0
      %592 = vmatprep.mubr.f32.mxu0 0.0
      %593 = vmatmul.mubr.f32.gmra.mxu0 %v375
      %v594 = vpop.f32.mrf.mxu0
      %v595 = vadd.f32 0.0, %v594
      %v596 = vpop.f32.mrf.mxu0
      %597 = vmatprep.mubr.f32.mxu0 0.0
      %598 = vmatmul.mubr.f32.gmra.mxu0 %v378
      %v599 = vpop.f32.mrf.mxu0
      %v600 = vadd.f32 0.0, %v599
      %v601 = vpop.f32.mrf.mxu0
      %602 = vmatprep.mubr.f32.mxu0 0.0
      %603 = vmatmul.mubr.f32.gmra.mxu0 %v381
      %v604 = vpop.f32.mrf.mxu0
      %v605 = vadd.f32 0.0, %v604
      %v606 = vpop.f32.mrf.mxu0
      %607 = vdwg.mxu0
      %608 = vst [vmem:[#allocation2] sm:$0xff] %v450
      %609 = vst [vmem:[#allocation2 + $0x8] sm:$0xff] %v455
      %610 = vst [vmem:[#allocation2 + $0x10] sm:$0xff] %v460
      %611 = vst [vmem:[#allocation2 + $0x18] sm:$0xff] %v465
      %612 = vst [vmem:[#allocation2 + $0x20] sm:$0xff] %v470
      %613 = vst [vmem:[#allocation2 + $0x28] sm:$0xff] %v475
      %614 = vst [vmem:[#allocation2 + $0x30] sm:$0xff] %v480
      %615 = vst [vmem:[#allocation2 + $0x38] sm:$0xff] %v485
      %616 = vst [vmem:[#allocation2 + $0x40] sm:$0xff] %v490
      %617 = vst [vmem:[#allocation2 + $0x48] sm:$0xff] %v495
      %618 = vst [vmem:[#allocation2 + $0x50] sm:$0xff] %v500
      %619 = vst [vmem:[#allocation2 + $0x58] sm:$0xff] %v505
      %620 = vst [vmem:[#allocation2 + $0x60] sm:$0xff] %v510
      %621 = vst [vmem:[#allocation2 + $0x68] sm:$0xff] %v515
      %622 = vst [vmem:[#allocation2 + $0x70] sm:$0xff] %v520
      %623 = vst [vmem:[#allocation2 + $0x78] sm:$0xff] %v525
      %624 = vst [vmem:[#allocation2 + $0x80] sm:$0xff] %v530
      %625 = vst [vmem:[#allocation2 + $0x88] sm:$0xff] %v535
      %626 = vst [vmem:[#allocation2 + $0x90] sm:$0xff] %v540
      %627 = vst [vmem:[#allocation2 + $0x98] sm:$0xff] %v545
      %628 = vst [vmem:[#allocation2 + $0xa0] sm:$0xff] %v550
      %629 = vst [vmem:[#allocation2 + $0xa8] sm:$0xff] %v555
      %630 = vst [vmem:[#allocation2 + $0xb0] sm:$0xff] %v560
      %631 = vst [vmem:[#allocation2 + $0xb8] sm:$0xff] %v565
      %632 = vst [vmem:[#allocation2 + $0xc0] sm:$0xff] %v570
      %633 = vst [vmem:[#allocation2 + $0xc8] sm:$0xff] %v575
      %634 = vst [vmem:[#allocation2 + $0xd0] sm:$0xff] %v580
      %635 = vst [vmem:[#allocation2 + $0xd8] sm:$0xff] %v585
      %636 = vst [vmem:[#allocation2 + $0xe0] sm:$0xff] %v590
      %637 = vst [vmem:[#allocation2 + $0xe8] sm:$0xff] %v595
      %638 = vst [vmem:[#allocation2 + $0xf0] sm:$0xff] %v600
      %639 = vst [vmem:[#allocation2 + $0xf8] sm:$0xff] %v605
      %v640 = vld [vmem:[%s246 + $0x1] sm:$0xff]
      %v641 = vld [vmem:[%s246 + $0x9] sm:$0xff]
      %v642 = vld [vmem:[%s246 + $0x19] sm:$0xff]
      %v643 = vld [vmem:[%s246 + $0x21] sm:$0xff]
      %v644 = vld [vmem:[%s246 + $0x31] sm:$0xff]
      %v645 = vld [vmem:[%s246 + $0x39] sm:$0xff]
      %v646 = vld [vmem:[%s246 + $0x49] sm:$0xff]
      %v647 = vld [vmem:[%s246 + $0x51] sm:$0xff]
      %v648 = vld [vmem:[%s246 + $0x61] sm:$0xff]
      %v649 = vld [vmem:[%s246 + $0x69] sm:$0xff]
      %v650 = vld [vmem:[%s246 + $0x79] sm:$0xff]
      %v651 = vld [vmem:[%s246 + $0x81] sm:$0xff]
      %v652 = vld [vmem:[%s246 + $0x91] sm:$0xff]
      %v653 = vld [vmem:[%s246 + $0x99] sm:$0xff]
      %v654 = vld [vmem:[%s246 + $0xa9] sm:$0xff]
      %v655 = vld [vmem:[%s246 + $0xb1] sm:$0xff]
      %v656 = vld [vmem:[%s246 + $0xc1] sm:$0xff]
      %v657 = vld [vmem:[%s246 + $0xc9] sm:$0xff]
      %v658 = vld [vmem:[%s246 + $0xd9] sm:$0xff]
      %v659 = vld [vmem:[%s246 + $0xe1] sm:$0xff]
      %v660 = vld [vmem:[%s246 + $0xf1] sm:$0xff]
      %v661 = vld [vmem:[%s246 + $0xf9] sm:$0xff]
      %v662 = vld [vmem:[%s246 + $0x109] sm:$0xff]
      %v663 = vld [vmem:[%s246 + $0x111] sm:$0xff]
      %v664 = vld [vmem:[%s246 + $0x121] sm:$0xff]
      %v665 = vld [vmem:[%s246 + $0x129] sm:$0xff]
      %v666 = vld [vmem:[%s246 + $0x139] sm:$0xff]
      %v667 = vld [vmem:[%s246 + $0x141] sm:$0xff]
      %v668 = vld [vmem:[%s246 + $0x151] sm:$0xff]
      %v669 = vld [vmem:[%s246 + $0x159] sm:$0xff]
      %v670 = vld [vmem:[%s246 + $0x169] sm:$0xff]
      %v671 = vld [vmem:[%s246 + $0x171] sm:$0xff]
      %s672 = scalar_lea.vmem %s1, 8
      %v673 = vld [vmem:[%s672] sm:$0xff]
      %v675 = vsel %vm286, %v640, 0
      %v678 = vsel %vm286, %v641, 0
      %v681 = vsel %vm286, %v642, 0
      %v684 = vsel %vm286, %v643, 0
      %v687 = vsel %vm286, %v644, 0
      %v690 = vsel %vm286, %v645, 0
      %v693 = vsel %vm286, %v646, 0
      %v696 = vsel %vm286, %v647, 0
      %v699 = vsel %vm286, %v648, 0
      %v702 = vsel %vm286, %v649, 0
      %v705 = vsel %vm286, %v650, 0
      %v708 = vsel %vm286, %v651, 0
      %v711 = vsel %vm286, %v652, 0
      %v714 = vsel %vm286, %v653, 0
      %v717 = vsel %vm286, %v654, 0
      %v720 = vsel %vm286, %v655, 0
      %v723 = vsel %vm286, %v656, 0
      %v726 = vsel %vm286, %v657, 0
      %v729 = vsel %vm286, %v658, 0
      %v732 = vsel %vm286, %v659, 0
      %v735 = vsel %vm286, %v660, 0
      %v738 = vsel %vm286, %v661, 0
      %v741 = vsel %vm286, %v662, 0
      %v744 = vsel %vm286, %v663, 0
      %v747 = vsel %vm286, %v664, 0
      %v750 = vsel %vm286, %v665, 0
      %v753 = vsel %vm286, %v666, 0
      %v756 = vsel %vm286, %v667, 0
      %v759 = vsel %vm286, %v668, 0
      %v762 = vsel %vm286, %v669, 0
      %v765 = vsel %vm286, %v670, 0
      %v768 = vsel %vm286, %v671, 0
      %770 = vmatprep.subr.mxu0 0.0
      %771 = vmatpush1.msra.mxu0 0.0
      %772 = vmatprep.subr.mxu0 0.0
      %773 = vmatpush1.msra.mxu0 0.0
      %774 = vmatprep.subr.mxu0 0.0
      %775 = vmatpush1.msra.mxu0 0.0
      %776 = vmatprep.subr.mxu0 0.0
      %777 = vmatpush1.msra.mxu0 0.0
      %778 = vmatprep.subr.mxu0 0.0
      %779 = vmatpush1.msra.mxu0 0.0
      %780 = vmatprep.subr.mxu0 0.0
      %781 = vmatpush1.msra.mxu0 0.0
      %782 = vmatprep.subr.mxu0 0.0
      %783 = vmatpush1.msra.mxu0 0.0
      %784 = vmatprep.subr.mxu0 0.0
      %785 = vmatpush1.msra.mxu0 0.0
      %786 = vmatprep.subr.mxu0 0.0
      %787 = vmatpush1.msra.mxu0 0.0
      %788 = vmatprep.subr.mxu0 0.0
      %789 = vmatpush1.msra.mxu0 0.0
      %790 = vmatprep.subr.mxu0 0.0
      %791 = vmatpush1.msra.mxu0 0.0
      %792 = vmatprep.subr.mxu0 0.0
      %793 = vmatpush1.msra.mxu0 0.0
      %794 = vmatprep.subr.mxu0 0.0
      %795 = vmatpush1.msra.mxu0 0.0
      %796 = vmatprep.subr.mxu0 0.0
      %797 = vmatpush1.msra.mxu0 0.0
      %798 = vmatprep.subr.mxu0 0.0
      %799 = vmatpush1.msra.mxu0 0.0
      %800 = vmatprep.subr.mxu0 0.0
      %801 = vmatpush1.msra.mxu0 %v673
      %802 = vmatprep.subr.mxu0 0.0
      %803 = vmatpush2.msra.mxu0 0.0
      %804 = vmatprep.subr.mxu0 0.0
      %805 = vmatpush2.msra.mxu0 0.0
      %806 = vmatprep.subr.mxu0 0.0
      %807 = vmatpush2.msra.mxu0 0.0
      %808 = vmatprep.subr.mxu0 0.0
      %809 = vmatpush2.msra.mxu0 0.0
      %810 = vmatprep.subr.mxu0 0.0
      %811 = vmatpush2.msra.mxu0 0.0
      %812 = vmatprep.subr.mxu0 0.0
      %813 = vmatpush2.msra.mxu0 0.0
      %814 = vmatprep.subr.mxu0 0.0
      %815 = vmatpush2.msra.mxu0 0.0
      %816 = vmatprep.subr.mxu0 0.0
      %817 = vmatpush2.msra.mxu0 0.0
      %818 = vmatprep.subr.mxu0 0.0
      %819 = vmatpush2.msra.mxu0 0.0
      %820 = vmatprep.subr.mxu0 0.0
      %821 = vmatpush2.msra.mxu0 0.0
      %822 = vmatprep.subr.mxu0 0.0
      %823 = vmatpush2.msra.mxu0 0.0
      %824 = vmatprep.subr.mxu0 0.0
      %825 = vmatpush2.msra.mxu0 0.0
      %826 = vmatprep.subr.mxu0 0.0
      %827 = vmatpush2.msra.mxu0 0.0
      %828 = vmatprep.subr.mxu0 0.0
      %829 = vmatpush2.msra.mxu0 0.0
      %830 = vmatprep.subr.mxu0 0.0
      %831 = vmatpush2.msra.mxu0 0.0
      %832 = vmatprep.subr.mxu0 0.0
      %833 = vmatpush2.msra.mxu0 0.0
      %834 = vmatprep.mubr.f32.mxu0 0.0
      %835 = vmatmul.mubr.f32.gmra.mxu0 %v675
      %v836 = vpop.f32.mrf.mxu0
      %v837 = vadd.f32 0.0, %v836
      %v838 = vpop.f32.mrf.mxu0
      %839 = vmatprep.mubr.f32.mxu0 0.0
      %840 = vmatmul.mubr.f32.gmra.mxu0 %v678
      %v841 = vpop.f32.mrf.mxu0
      %v842 = vadd.f32 0.0, %v841
      %v843 = vpop.f32.mrf.mxu0
      %844 = vmatprep.mubr.f32.mxu0 0.0
      %845 = vmatmul.mubr.f32.gmra.mxu0 %v681
      %v846 = vpop.f32.mrf.mxu0
      %v847 = vadd.f32 0.0, %v846
      %v848 = vpop.f32.mrf.mxu0
      %849 = vmatprep.mubr.f32.mxu0 0.0
      %850 = vmatmul.mubr.f32.gmra.mxu0 %v684
      %v851 = vpop.f32.mrf.mxu0
      %v852 = vadd.f32 0.0, %v851
      %v853 = vpop.f32.mrf.mxu0
      %854 = vmatprep.mubr.f32.mxu0 0.0
      %855 = vmatmul.mubr.f32.gmra.mxu0 %v687
      %v856 = vpop.f32.mrf.mxu0
      %v857 = vadd.f32 0.0, %v856
      %v858 = vpop.f32.mrf.mxu0
      %859 = vmatprep.mubr.f32.mxu0 0.0
      %860 = vmatmul.mubr.f32.gmra.mxu0 %v690
      %v861 = vpop.f32.mrf.mxu0
      %v862 = vadd.f32 0.0, %v861
      %v863 = vpop.f32.mrf.mxu0
      %864 = vmatprep.mubr.f32.mxu0 0.0
      %865 = vmatmul.mubr.f32.gmra.mxu0 %v693
      %v866 = vpop.f32.mrf.mxu0
      %v867 = vadd.f32 0.0, %v866
      %v868 = vpop.f32.mrf.mxu0
      %869 = vmatprep.mubr.f32.mxu0 0.0
      %870 = vmatmul.mubr.f32.gmra.mxu0 %v696
      %v871 = vpop.f32.mrf.mxu0
      %v872 = vadd.f32 0.0, %v871
      %v873 = vpop.f32.mrf.mxu0
      %874 = vmatprep.mubr.f32.mxu0 0.0
      %875 = vmatmul.mubr.f32.gmra.mxu0 %v699
      %v876 = vpop.f32.mrf.mxu0
      %v877 = vadd.f32 0.0, %v876
      %v878 = vpop.f32.mrf.mxu0
      %879 = vmatprep.mubr.f32.mxu0 0.0
      %880 = vmatmul.mubr.f32.gmra.mxu0 %v702
      %v881 = vpop.f32.mrf.mxu0
      %v882 = vadd.f32 0.0, %v881
      %v883 = vpop.f32.mrf.mxu0
      %884 = vmatprep.mubr.f32.mxu0 0.0
      %885 = vmatmul.mubr.f32.gmra.mxu0 %v705
      %v886 = vpop.f32.mrf.mxu0
      %v887 = vadd.f32 0.0, %v886
      %v888 = vpop.f32.mrf.mxu0
      %889 = vmatprep.mubr.f32.mxu0 0.0
      %890 = vmatmul.mubr.f32.gmra.mxu0 %v708
      %v891 = vpop.f32.mrf.mxu0
      %v892 = vadd.f32 0.0, %v891
      %v893 = vpop.f32.mrf.mxu0
      %894 = vmatprep.mubr.f32.mxu0 0.0
      %895 = vmatmul.mubr.f32.gmra.mxu0 %v711
      %v896 = vpop.f32.mrf.mxu0
      %v897 = vadd.f32 0.0, %v896
      %v898 = vpop.f32.mrf.mxu0
      %899 = vmatprep.mubr.f32.mxu0 0.0
      %900 = vmatmul.mubr.f32.gmra.mxu0 %v714
      %v901 = vpop.f32.mrf.mxu0
      %v902 = vadd.f32 0.0, %v901
      %v903 = vpop.f32.mrf.mxu0
      %904 = vmatprep.mubr.f32.mxu0 0.0
      %905 = vmatmul.mubr.f32.gmra.mxu0 %v717
      %v906 = vpop.f32.mrf.mxu0
      %v907 = vadd.f32 0.0, %v906
      %v908 = vpop.f32.mrf.mxu0
      %909 = vmatprep.mubr.f32.mxu0 0.0
      %910 = vmatmul.mubr.f32.gmra.mxu0 %v720
      %v911 = vpop.f32.mrf.mxu0
      %v912 = vadd.f32 0.0, %v911
      %v913 = vpop.f32.mrf.mxu0
      %914 = vmatprep.mubr.f32.mxu0 0.0
      %915 = vmatmul.mubr.f32.gmra.mxu0 %v723
      %v916 = vpop.f32.mrf.mxu0
      %v917 = vadd.f32 0.0, %v916
      %v918 = vpop.f32.mrf.mxu0
      %919 = vmatprep.mubr.f32.mxu0 0.0
      %920 = vmatmul.mubr.f32.gmra.mxu0 %v726
      %v921 = vpop.f32.mrf.mxu0
      %v922 = vadd.f32 0.0, %v921
      %v923 = vpop.f32.mrf.mxu0
      %924 = vmatprep.mubr.f32.mxu0 0.0
      %925 = vmatmul.mubr.f32.gmra.mxu0 %v729
      %v926 = vpop.f32.mrf.mxu0
      %v927 = vadd.f32 0.0, %v926
      %v928 = vpop.f32.mrf.mxu0
      %929 = vmatprep.mubr.f32.mxu0 0.0
      %930 = vmatmul.mubr.f32.gmra.mxu0 %v732
      %v931 = vpop.f32.mrf.mxu0
      %v932 = vadd.f32 0.0, %v931
      %v933 = vpop.f32.mrf.mxu0
      %934 = vmatprep.mubr.f32.mxu0 0.0
      %935 = vmatmul.mubr.f32.gmra.mxu0 %v735
      %v936 = vpop.f32.mrf.mxu0
      %v937 = vadd.f32 0.0, %v936
      %v938 = vpop.f32.mrf.mxu0
      %939 = vmatprep.mubr.f32.mxu0 0.0
      %940 = vmatmul.mubr.f32.gmra.mxu0 %v738
      %v941 = vpop.f32.mrf.mxu0
      %v942 = vadd.f32 0.0, %v941
      %v943 = vpop.f32.mrf.mxu0
      %944 = vmatprep.mubr.f32.mxu0 0.0
      %945 = vmatmul.mubr.f32.gmra.mxu0 %v741
      %v946 = vpop.f32.mrf.mxu0
      %v947 = vadd.f32 0.0, %v946
      %v948 = vpop.f32.mrf.mxu0
      %949 = vmatprep.mubr.f32.mxu0 0.0
      %950 = vmatmul.mubr.f32.gmra.mxu0 %v744
      %v951 = vpop.f32.mrf.mxu0
      %v952 = vadd.f32 0.0, %v951
      %v953 = vpop.f32.mrf.mxu0
      %954 = vmatprep.mubr.f32.mxu0 0.0
      %955 = vmatmul.mubr.f32.gmra.mxu0 %v747
      %v956 = vpop.f32.mrf.mxu0
      %v957 = vadd.f32 0.0, %v956
      %v958 = vpop.f32.mrf.mxu0
      %959 = vmatprep.mubr.f32.mxu0 0.0
      %960 = vmatmul.mubr.f32.gmra.mxu0 %v750
      %v961 = vpop.f32.mrf.mxu0
      %v962 = vadd.f32 0.0, %v961
      %v963 = vpop.f32.mrf.mxu0
      %964 = vmatprep.mubr.f32.mxu0 0.0
      %965 = vmatmul.mubr.f32.gmra.mxu0 %v753
      %v966 = vpop.f32.mrf.mxu0
      %v967 = vadd.f32 0.0, %v966
      %v968 = vpop.f32.mrf.mxu0
      %969 = vmatprep.mubr.f32.mxu0 0.0
      %970 = vmatmul.mubr.f32.gmra.mxu0 %v756
      %v971 = vpop.f32.mrf.mxu0
      %v972 = vadd.f32 0.0, %v971
      %v973 = vpop.f32.mrf.mxu0
      %974 = vmatprep.mubr.f32.mxu0 0.0
      %975 = vmatmul.mubr.f32.gmra.mxu0 %v759
      %v976 = vpop.f32.mrf.mxu0
      %v977 = vadd.f32 0.0, %v976
      %v978 = vpop.f32.mrf.mxu0
      %979 = vmatprep.mubr.f32.mxu0 0.0
      %980 = vmatmul.mubr.f32.gmra.mxu0 %v762
      %v981 = vpop.f32.mrf.mxu0
      %v982 = vadd.f32 0.0, %v981
      %v983 = vpop.f32.mrf.mxu0
      %984 = vmatprep.mubr.f32.mxu0 0.0
      %985 = vmatmul.mubr.f32.gmra.mxu0 %v765
      %v986 = vpop.f32.mrf.mxu0
      %v987 = vadd.f32 0.0, %v986
      %v988 = vpop.f32.mrf.mxu0
      %989 = vmatprep.mubr.f32.mxu0 0.0
      %990 = vmatmul.mubr.f32.gmra.mxu0 %v768
      %v991 = vpop.f32.mrf.mxu0
      %v992 = vadd.f32 0.0, %v991
      %v993 = vpop.f32.mrf.mxu0
      %994 = vdwg.mxu0
      %v995 = vld [vmem:[#allocation2] sm:$0xff]
      %v996 = vld [vmem:[#allocation2 + $0x8] sm:$0xff]
      %v997 = vld [vmem:[#allocation2 + $0x10] sm:$0xff]
      %v998 = vld [vmem:[#allocation2 + $0x18] sm:$0xff]
      %v999 = vld [vmem:[#allocation2 + $0x20] sm:$0xff]
      %v1000 = vld [vmem:[#allocation2 + $0x28] sm:$0xff]
      %v1001 = vld [vmem:[#allocation2 + $0x30] sm:$0xff]
      %v1002 = vld [vmem:[#allocation2 + $0x38] sm:$0xff]
      %v1003 = vld [vmem:[#allocation2 + $0x40] sm:$0xff]
      %v1004 = vld [vmem:[#allocation2 + $0x48] sm:$0xff]
      %v1005 = vld [vmem:[#allocation2 + $0x50] sm:$0xff]
      %v1006 = vld [vmem:[#allocation2 + $0x58] sm:$0xff]
      %v1007 = vld [vmem:[#allocation2 + $0x60] sm:$0xff]
      %v1008 = vld [vmem:[#allocation2 + $0x68] sm:$0xff]
      %v1009 = vld [vmem:[#allocation2 + $0x70] sm:$0xff]
      %v1010 = vld [vmem:[#allocation2 + $0x78] sm:$0xff]
      %v1011 = vld [vmem:[#allocation2 + $0x80] sm:$0xff]
      %v1012 = vld [vmem:[#allocation2 + $0x88] sm:$0xff]
      %v1013 = vld [vmem:[#allocation2 + $0x90] sm:$0xff]
      %v1014 = vld [vmem:[#allocation2 + $0x98] sm:$0xff]
      %v1015 = vld [vmem:[#allocation2 + $0xa0] sm:$0xff]
      %v1016 = vld [vmem:[#allocation2 + $0xa8] sm:$0xff]
      %v1017 = vld [vmem:[#allocation2 + $0xb0] sm:$0xff]
      %v1018 = vld [vmem:[#allocation2 + $0xb8] sm:$0xff]
      %v1019 = vld [vmem:[#allocation2 + $0xc0] sm:$0xff]
      %v1020 = vld [vmem:[#allocation2 + $0xc8] sm:$0xff]
      %v1021 = vld [vmem:[#allocation2 + $0xd0] sm:$0xff]
      %v1022 = vld [vmem:[#allocation2 + $0xd8] sm:$0xff]
      %v1023 = vld [vmem:[#allocation2 + $0xe0] sm:$0xff]
      %v1024 = vld [vmem:[#allocation2 + $0xe8] sm:$0xff]
      %v1025 = vld [vmem:[#allocation2 + $0xf0] sm:$0xff]
      %v1026 = vld [vmem:[#allocation2 + $0xf8] sm:$0xff]
      %v1027 = vadd.f32 %v995, %v837
      %v1028 = vadd.f32 %v996, %v842
      %v1029 = vadd.f32 %v997, %v847
      %v1030 = vadd.f32 %v998, %v852
      %v1031 = vadd.f32 %v999, %v857
      %v1032 = vadd.f32 %v1000, %v862
      %v1033 = vadd.f32 %v1001, %v867
      %v1034 = vadd.f32 %v1002, %v872
      %v1035 = vadd.f32 %v1003, %v877
      %v1036 = vadd.f32 %v1004, %v882
      %v1037 = vadd.f32 %v1005, %v887
      %v1038 = vadd.f32 %v1006, %v892
      %v1039 = vadd.f32 %v1007, %v897
      %v1040 = vadd.f32 %v1008, %v902
      %v1041 = vadd.f32 %v1009, %v907
      %v1042 = vadd.f32 %v1010, %v912
      %v1043 = vadd.f32 %v1011, %v917
      %v1044 = vadd.f32 %v1012, %v922
      %v1045 = vadd.f32 %v1013, %v927
      %v1046 = vadd.f32 %v1014, %v932
      %v1047 = vadd.f32 %v1015, %v937
      %v1048 = vadd.f32 %v1016, %v942
      %v1049 = vadd.f32 %v1017, %v947
      %v1050 = vadd.f32 %v1018, %v952
      %v1051 = vadd.f32 %v1019, %v957
      %v1052 = vadd.f32 %v1020, %v962
      %v1053 = vadd.f32 %v1021, %v967
      %v1054 = vadd.f32 %v1022, %v972
      %v1055 = vadd.f32 %v1023, %v977
      %v1056 = vadd.f32 %v1024, %v982
      %v1057 = vadd.f32 %v1025, %v987
      %v1058 = vadd.f32 %v1026, %v992
      %1059 = vst [vmem:[#allocation2] sm:$0xff] %v1027
      %1060 = vst [vmem:[#allocation2 + $0x8] sm:$0xff] %v1028
      %1061 = vst [vmem:[#allocation2 + $0x10] sm:$0xff] %v1029
      %1062 = vst [vmem:[#allocation2 + $0x18] sm:$0xff] %v1030
      %1063 = vst [vmem:[#allocation2 + $0x20] sm:$0xff] %v1031
      %1064 = vst [vmem:[#allocation2 + $0x28] sm:$0xff] %v1032
      %1065 = vst [vmem:[#allocation2 + $0x30] sm:$0xff] %v1033
      %1066 = vst [vmem:[#allocation2 + $0x38] sm:$0xff] %v1034
      %1067 = vst [vmem:[#allocation2 + $0x40] sm:$0xff] %v1035
      %1068 = vst [vmem:[#allocation2 + $0x48] sm:$0xff] %v1036
      %1069 = vst [vmem:[#allocation2 + $0x50] sm:$0xff] %v1037
      %1070 = vst [vmem:[#allocation2 + $0x58] sm:$0xff] %v1038
      %1071 = vst [vmem:[#allocation2 + $0x60] sm:$0xff] %v1039
      %1072 = vst [vmem:[#allocation2 + $0x68] sm:$0xff] %v1040
      %1073 = vst [vmem:[#allocation2 + $0x70] sm:$0xff] %v1041
      %1074 = vst [vmem:[#allocation2 + $0x78] sm:$0xff] %v1042
      %1075 = vst [vmem:[#allocation2 + $0x80] sm:$0xff] %v1043
      %1076 = vst [vmem:[#allocation2 + $0x88] sm:$0xff] %v1044
      %1077 = vst [vmem:[#allocation2 + $0x90] sm:$0xff] %v1045
      %1078 = vst [vmem:[#allocation2 + $0x98] sm:$0xff] %v1046
      %1079 = vst [vmem:[#allocation2 + $0xa0] sm:$0xff] %v1047
      %1080 = vst [vmem:[#allocation2 + $0xa8] sm:$0xff] %v1048
      %1081 = vst [vmem:[#allocation2 + $0xb0] sm:$0xff] %v1049
      %1082 = vst [vmem:[#allocation2 + $0xb8] sm:$0xff] %v1050
      %1083 = vst [vmem:[#allocation2 + $0xc0] sm:$0xff] %v1051
      %1084 = vst [vmem:[#allocation2 + $0xc8] sm:$0xff] %v1052
      %1085 = vst [vmem:[#allocation2 + $0xd0] sm:$0xff] %v1053
      %1086 = vst [vmem:[#allocation2 + $0xd8] sm:$0xff] %v1054
      %1087 = vst [vmem:[#allocation2 + $0xe0] sm:$0xff] %v1055
      %1088 = vst [vmem:[#allocation2 + $0xe8] sm:$0xff] %v1056
      %1089 = vst [vmem:[#allocation2 + $0xf0] sm:$0xff] %v1057
      %1090 = vst [vmem:[#allocation2 + $0xf8] sm:$0xff] %v1058
      %v1091 = vld [vmem:[%s246 + $0x2] sm:$0xff]
      %v1092 = vld [vmem:[%s246 + $0xa] sm:$0xff]
      %v1093 = vld [vmem:[%s246 + $0x1a] sm:$0xff]
      %v1094 = vld [vmem:[%s246 + $0x22] sm:$0xff]
      %v1095 = vld [vmem:[%s246 + $0x32] sm:$0xff]
      %v1096 = vld [vmem:[%s246 + $0x3a] sm:$0xff]
      %v1097 = vld [vmem:[%s246 + $0x4a] sm:$0xff]
      %v1098 = vld [vmem:[%s246 + $0x52] sm:$0xff]
      %v1099 = vld [vmem:[%s246 + $0x62] sm:$0xff]
      %v1100 = vld [vmem:[%s246 + $0x6a] sm:$0xff]
      %v1101 = vld [vmem:[%s246 + $0x7a] sm:$0xff]
      %v1102 = vld [vmem:[%s246 + $0x82] sm:$0xff]
      %v1103 = vld [vmem:[%s246 + $0x92] sm:$0xff]
      %v1104 = vld [vmem:[%s246 + $0x9a] sm:$0xff]
      %v1105 = vld [vmem:[%s246 + $0xaa] sm:$0xff]
      %v1106 = vld [vmem:[%s246 + $0xb2] sm:$0xff]
      %v1107 = vld [vmem:[%s246 + $0xc2] sm:$0xff]
      %v1108 = vld [vmem:[%s246 + $0xca] sm:$0xff]
      %v1109 = vld [vmem:[%s246 + $0xda] sm:$0xff]
      %v1110 = vld [vmem:[%s246 + $0xe2] sm:$0xff]
      %v1111 = vld [vmem:[%s246 + $0xf2] sm:$0xff]
      %v1112 = vld [vmem:[%s246 + $0xfa] sm:$0xff]
      %v1113 = vld [vmem:[%s246 + $0x10a] sm:$0xff]
      %v1114 = vld [vmem:[%s246 + $0x112] sm:$0xff]
      %v1115 = vld [vmem:[%s246 + $0x122] sm:$0xff]
      %v1116 = vld [vmem:[%s246 + $0x12a] sm:$0xff]
      %v1117 = vld [vmem:[%s246 + $0x13a] sm:$0xff]
      %v1118 = vld [vmem:[%s246 + $0x142] sm:$0xff]
      %v1119 = vld [vmem:[%s246 + $0x152] sm:$0xff]
      %v1120 = vld [vmem:[%s246 + $0x15a] sm:$0xff]
      %v1121 = vld [vmem:[%s246 + $0x16a] sm:$0xff]
      %v1122 = vld [vmem:[%s246 + $0x172] sm:$0xff]
      %s1123 = scalar_lea.vmem %s1, 16
      %v1124 = vld [vmem:[%s1123] sm:$0xff]
      %v1126 = vsel %vm286, %v1091, 0
      %v1129 = vsel %vm286, %v1092, 0
      %v1132 = vsel %vm286, %v1093, 0
      %v1135 = vsel %vm286, %v1094, 0
      %v1138 = vsel %vm286, %v1095, 0
      %v1141 = vsel %vm286, %v1096, 0
      %v1144 = vsel %vm286, %v1097, 0
      %v1147 = vsel %vm286, %v1098, 0
      %v1150 = vsel %vm286, %v1099, 0
      %v1153 = vsel %vm286, %v1100, 0
      %v1156 = vsel %vm286, %v1101, 0
      %v1159 = vsel %vm286, %v1102, 0
      %v1162 = vsel %vm286, %v1103, 0
      %v1165 = vsel %vm286, %v1104, 0
      %v1168 = vsel %vm286, %v1105, 0
      %v1171 = vsel %vm286, %v1106, 0
      %v1174 = vsel %vm286, %v1107, 0
      %v1177 = vsel %vm286, %v1108, 0
      %v1180 = vsel %vm286, %v1109, 0
      %v1183 = vsel %vm286, %v1110, 0
      %v1186 = vsel %vm286, %v1111, 0
      %v1189 = vsel %vm286, %v1112, 0
      %v1192 = vsel %vm286, %v1113, 0
      %v1195 = vsel %vm286, %v1114, 0
      %v1198 = vsel %vm286, %v1115, 0
      %v1201 = vsel %vm286, %v1116, 0
      %v1204 = vsel %vm286, %v1117, 0
      %v1207 = vsel %vm286, %v1118, 0
      %v1210 = vsel %vm286, %v1119, 0
      %v1213 = vsel %vm286, %v1120, 0
      %v1216 = vsel %vm286, %v1121, 0
      %v1219 = vsel %vm286, %v1122, 0
      %1221 = vmatprep.subr.mxu0 0.0
      %1222 = vmatpush1.msra.mxu0 0.0
      %1223 = vmatprep.subr.mxu0 0.0
      %1224 = vmatpush1.msra.mxu0 0.0
      %1225 = vmatprep.subr.mxu0 0.0
      %1226 = vmatpush1.msra.mxu0 0.0
      %1227 = vmatprep.subr.mxu0 0.0
      %1228 = vmatpush1.msra.mxu0 0.0
      %1229 = vmatprep.subr.mxu0 0.0
      %1230 = vmatpush1.msra.mxu0 0.0
      %1231 = vmatprep.subr.mxu0 0.0
      %1232 = vmatpush1.msra.mxu0 0.0
      %1233 = vmatprep.subr.mxu0 0.0
      %1234 = vmatpush1.msra.mxu0 0.0
      %1235 = vmatprep.subr.mxu0 0.0
      %1236 = vmatpush1.msra.mxu0 0.0
      %1237 = vmatprep.subr.mxu0 0.0
      %1238 = vmatpush1.msra.mxu0 0.0
      %1239 = vmatprep.subr.mxu0 0.0
      %1240 = vmatpush1.msra.mxu0 0.0
      %1241 = vmatprep.subr.mxu0 0.0
      %1242 = vmatpush1.msra.mxu0 0.0
      %1243 = vmatprep.subr.mxu0 0.0
      %1244 = vmatpush1.msra.mxu0 0.0
      %1245 = vmatprep.subr.mxu0 0.0
      %1246 = vmatpush1.msra.mxu0 0.0
      %1247 = vmatprep.subr.mxu0 0.0
      %1248 = vmatpush1.msra.mxu0 0.0
      %1249 = vmatprep.subr.mxu0 0.0
      %1250 = vmatpush1.msra.mxu0 0.0
      %1251 = vmatprep.subr.mxu0 0.0
      %1252 = vmatpush1.msra.mxu0 %v1124
      %1253 = vmatprep.subr.mxu0 0.0
      %1254 = vmatpush2.msra.mxu0 0.0
      %1255 = vmatprep.subr.mxu0 0.0
      %1256 = vmatpush2.msra.mxu0 0.0
      %1257 = vmatprep.subr.mxu0 0.0
      %1258 = vmatpush2.msra.mxu0 0.0
      %1259 = vmatprep.subr.mxu0 0.0
      %1260 = vmatpush2.msra.mxu0 0.0
      %1261 = vmatprep.subr.mxu0 0.0
      %1262 = vmatpush2.msra.mxu0 0.0
      %1263 = vmatprep.subr.mxu0 0.0
      %1264 = vmatpush2.msra.mxu0 0.0
      %1265 = vmatprep.subr.mxu0 0.0
      %1266 = vmatpush2.msra.mxu0 0.0
      %1267 = vmatprep.subr.mxu0 0.0
      %1268 = vmatpush2.msra.mxu0 0.0
      %1269 = vmatprep.subr.mxu0 0.0
      %1270 = vmatpush2.msra.mxu0 0.0
      %1271 = vmatprep.subr.mxu0 0.0
      %1272 = vmatpush2.msra.mxu0 0.0
      %1273 = vmatprep.subr.mxu0 0.0
      %1274 = vmatpush2.msra.mxu0 0.0
      %1275 = vmatprep.subr.mxu0 0.0
      %1276 = vmatpush2.msra.mxu0 0.0
      %1277 = vmatprep.subr.mxu0 0.0
      %1278 = vmatpush2.msra.mxu0 0.0
      %1279 = vmatprep.subr.mxu0 0.0
      %1280 = vmatpush2.msra.mxu0 0.0
      %1281 = vmatprep.subr.mxu0 0.0
      %1282 = vmatpush2.msra.mxu0 0.0
      %1283 = vmatprep.subr.mxu0 0.0
      %1284 = vmatpush2.msra.mxu0 0.0
      %1285 = vmatprep.mubr.f32.mxu0 0.0
      %1286 = vmatmul.mubr.f32.gmra.mxu0 %v1126
      %v1287 = vpop.f32.mrf.mxu0
      %v1288 = vadd.f32 0.0, %v1287
      %v1289 = vpop.f32.mrf.mxu0
      %1290 = vmatprep.mubr.f32.mxu0 0.0
      %1291 = vmatmul.mubr.f32.gmra.mxu0 %v1129
      %v1292 = vpop.f32.mrf.mxu0
      %v1293 = vadd.f32 0.0, %v1292
      %v1294 = vpop.f32.mrf.mxu0
      %1295 = vmatprep.mubr.f32.mxu0 0.0
      %1296 = vmatmul.mubr.f32.gmra.mxu0 %v1132
      %v1297 = vpop.f32.mrf.mxu0
      %v1298 = vadd.f32 0.0, %v1297
      %v1299 = vpop.f32.mrf.mxu0
      %1300 = vmatprep.mubr.f32.mxu0 0.0
      %1301 = vmatmul.mubr.f32.gmra.mxu0 %v1135
      %v1302 = vpop.f32.mrf.mxu0
      %v1303 = vadd.f32 0.0, %v1302
      %v1304 = vpop.f32.mrf.mxu0
      %1305 = vmatprep.mubr.f32.mxu0 0.0
      %1306 = vmatmul.mubr.f32.gmra.mxu0 %v1138
      %v1307 = vpop.f32.mrf.mxu0
      %v1308 = vadd.f32 0.0, %v1307
      %v1309 = vpop.f32.mrf.mxu0
      %1310 = vmatprep.mubr.f32.mxu0 0.0
      %1311 = vmatmul.mubr.f32.gmra.mxu0 %v1141
      %v1312 = vpop.f32.mrf.mxu0
      %v1313 = vadd.f32 0.0, %v1312
      %v1314 = vpop.f32.mrf.mxu0
      %1315 = vmatprep.mubr.f32.mxu0 0.0
      %1316 = vmatmul.mubr.f32.gmra.mxu0 %v1144
      %v1317 = vpop.f32.mrf.mxu0
      %v1318 = vadd.f32 0.0, %v1317
      %v1319 = vpop.f32.mrf.mxu0
      %1320 = vmatprep.mubr.f32.mxu0 0.0
      %1321 = vmatmul.mubr.f32.gmra.mxu0 %v1147
      %v1322 = vpop.f32.mrf.mxu0
      %v1323 = vadd.f32 0.0, %v1322
      %v1324 = vpop.f32.mrf.mxu0
      %1325 = vmatprep.mubr.f32.mxu0 0.0
      %1326 = vmatmul.mubr.f32.gmra.mxu0 %v1150
      %v1327 = vpop.f32.mrf.mxu0
      %v1328 = vadd.f32 0.0, %v1327
      %v1329 = vpop.f32.mrf.mxu0
      %1330 = vmatprep.mubr.f32.mxu0 0.0
      %1331 = vmatmul.mubr.f32.gmra.mxu0 %v1153
      %v1332 = vpop.f32.mrf.mxu0
      %v1333 = vadd.f32 0.0, %v1332
      %v1334 = vpop.f32.mrf.mxu0
      %1335 = vmatprep.mubr.f32.mxu0 0.0
      %1336 = vmatmul.mubr.f32.gmra.mxu0 %v1156
      %v1337 = vpop.f32.mrf.mxu0
      %v1338 = vadd.f32 0.0, %v1337
      %v1339 = vpop.f32.mrf.mxu0
      %1340 = vmatprep.mubr.f32.mxu0 0.0
      %1341 = vmatmul.mubr.f32.gmra.mxu0 %v1159
      %v1342 = vpop.f32.mrf.mxu0
      %v1343 = vadd.f32 0.0, %v1342
      %v1344 = vpop.f32.mrf.mxu0
      %1345 = vmatprep.mubr.f32.mxu0 0.0
      %1346 = vmatmul.mubr.f32.gmra.mxu0 %v1162
      %v1347 = vpop.f32.mrf.mxu0
      %v1348 = vadd.f32 0.0, %v1347
      %v1349 = vpop.f32.mrf.mxu0
      %1350 = vmatprep.mubr.f32.mxu0 0.0
      %1351 = vmatmul.mubr.f32.gmra.mxu0 %v1165
      %v1352 = vpop.f32.mrf.mxu0
      %v1353 = vadd.f32 0.0, %v1352
      %v1354 = vpop.f32.mrf.mxu0
      %1355 = vmatprep.mubr.f32.mxu0 0.0
      %1356 = vmatmul.mubr.f32.gmra.mxu0 %v1168
      %v1357 = vpop.f32.mrf.mxu0
      %v1358 = vadd.f32 0.0, %v1357
      %v1359 = vpop.f32.mrf.mxu0
      %1360 = vmatprep.mubr.f32.mxu0 0.0
      %1361 = vmatmul.mubr.f32.gmra.mxu0 %v1171
      %v1362 = vpop.f32.mrf.mxu0
      %v1363 = vadd.f32 0.0, %v1362
      %v1364 = vpop.f32.mrf.mxu0
      %1365 = vmatprep.mubr.f32.mxu0 0.0
      %1366 = vmatmul.mubr.f32.gmra.mxu0 %v1174
      %v1367 = vpop.f32.mrf.mxu0
      %v1368 = vadd.f32 0.0, %v1367
      %v1369 = vpop.f32.mrf.mxu0
      %1370 = vmatprep.mubr.f32.mxu0 0.0
      %1371 = vmatmul.mubr.f32.gmra.mxu0 %v1177
      %v1372 = vpop.f32.mrf.mxu0
      %v1373 = vadd.f32 0.0, %v1372
      %v1374 = vpop.f32.mrf.mxu0
      %1375 = vmatprep.mubr.f32.mxu0 0.0
      %1376 = vmatmul.mubr.f32.gmra.mxu0 %v1180
      %v1377 = vpop.f32.mrf.mxu0
      %v1378 = vadd.f32 0.0, %v1377
      %v1379 = vpop.f32.mrf.mxu0
      %1380 = vmatprep.mubr.f32.mxu0 0.0
      %1381 = vmatmul.mubr.f32.gmra.mxu0 %v1183
      %v1382 = vpop.f32.mrf.mxu0
      %v1383 = vadd.f32 0.0, %v1382
      %v1384 = vpop.f32.mrf.mxu0
      %1385 = vmatprep.mubr.f32.mxu0 0.0
      %1386 = vmatmul.mubr.f32.gmra.mxu0 %v1186
      %v1387 = vpop.f32.mrf.mxu0
      %v1388 = vadd.f32 0.0, %v1387
      %v1389 = vpop.f32.mrf.mxu0
      %1390 = vmatprep.mubr.f32.mxu0 0.0
      %1391 = vmatmul.mubr.f32.gmra.mxu0 %v1189
      %v1392 = vpop.f32.mrf.mxu0
      %v1393 = vadd.f32 0.0, %v1392
      %v1394 = vpop.f32.mrf.mxu0
      %1395 = vmatprep.mubr.f32.mxu0 0.0
      %1396 = vmatmul.mubr.f32.gmra.mxu0 %v1192
      %v1397 = vpop.f32.mrf.mxu0
      %v1398 = vadd.f32 0.0, %v1397
      %v1399 = vpop.f32.mrf.mxu0
      %1400 = vmatprep.mubr.f32.mxu0 0.0
      %1401 = vmatmul.mubr.f32.gmra.mxu0 %v1195
      %v1402 = vpop.f32.mrf.mxu0
      %v1403 = vadd.f32 0.0, %v1402
      %v1404 = vpop.f32.mrf.mxu0
      %1405 = vmatprep.mubr.f32.mxu0 0.0
      %1406 = vmatmul.mubr.f32.gmra.mxu0 %v1198
      %v1407 = vpop.f32.mrf.mxu0
      %v1408 = vadd.f32 0.0, %v1407
      %v1409 = vpop.f32.mrf.mxu0
      %1410 = vmatprep.mubr.f32.mxu0 0.0
      %1411 = vmatmul.mubr.f32.gmra.mxu0 %v1201
      %v1412 = vpop.f32.mrf.mxu0
      %v1413 = vadd.f32 0.0, %v1412
      %v1414 = vpop.f32.mrf.mxu0
      %1415 = vmatprep.mubr.f32.mxu0 0.0
      %1416 = vmatmul.mubr.f32.gmra.mxu0 %v1204
      %v1417 = vpop.f32.mrf.mxu0
      %v1418 = vadd.f32 0.0, %v1417
      %v1419 = vpop.f32.mrf.mxu0
      %1420 = vmatprep.mubr.f32.mxu0 0.0
      %1421 = vmatmul.mubr.f32.gmra.mxu0 %v1207
      %v1422 = vpop.f32.mrf.mxu0
      %v1423 = vadd.f32 0.0, %v1422
      %v1424 = vpop.f32.mrf.mxu0
      %1425 = vmatprep.mubr.f32.mxu0 0.0
      %1426 = vmatmul.mubr.f32.gmra.mxu0 %v1210
      %v1427 = vpop.f32.mrf.mxu0
      %v1428 = vadd.f32 0.0, %v1427
      %v1429 = vpop.f32.mrf.mxu0
      %1430 = vmatprep.mubr.f32.mxu0 0.0
      %1431 = vmatmul.mubr.f32.gmra.mxu0 %v1213
      %v1432 = vpop.f32.mrf.mxu0
      %v1433 = vadd.f32 0.0, %v1432
      %v1434 = vpop.f32.mrf.mxu0
      %1435 = vmatprep.mubr.f32.mxu0 0.0
      %1436 = vmatmul.mubr.f32.gmra.mxu0 %v1216
      %v1437 = vpop.f32.mrf.mxu0
      %v1438 = vadd.f32 0.0, %v1437
      %v1439 = vpop.f32.mrf.mxu0
      %1440 = vmatprep.mubr.f32.mxu0 0.0
      %1441 = vmatmul.mubr.f32.gmra.mxu0 %v1219
      %v1442 = vpop.f32.mrf.mxu0
      %v1443 = vadd.f32 0.0, %v1442
      %v1444 = vpop.f32.mrf.mxu0
      %1445 = vdwg.mxu0
      %v1446 = vld [vmem:[#allocation2] sm:$0xff]
      %v1447 = vld [vmem:[#allocation2 + $0x8] sm:$0xff]
      %v1448 = vld [vmem:[#allocation2 + $0x10] sm:$0xff]
      %v1449 = vld [vmem:[#allocation2 + $0x18] sm:$0xff]
      %v1450 = vld [vmem:[#allocation2 + $0x20] sm:$0xff]
      %v1451 = vld [vmem:[#allocation2 + $0x28] sm:$0xff]
      %v1452 = vld [vmem:[#allocation2 + $0x30] sm:$0xff]
      %v1453 = vld [vmem:[#allocation2 + $0x38] sm:$0xff]
      %v1454 = vld [vmem:[#allocation2 + $0x40] sm:$0xff]
      %v1455 = vld [vmem:[#allocation2 + $0x48] sm:$0xff]
      %v1456 = vld [vmem:[#allocation2 + $0x50] sm:$0xff]
      %v1457 = vld [vmem:[#allocation2 + $0x58] sm:$0xff]
      %v1458 = vld [vmem:[#allocation2 + $0x60] sm:$0xff]
      %v1459 = vld [vmem:[#allocation2 + $0x68] sm:$0xff]
      %v1460 = vld [vmem:[#allocation2 + $0x70] sm:$0xff]
      %v1461 = vld [vmem:[#allocation2 + $0x78] sm:$0xff]
      %v1462 = vld [vmem:[#allocation2 + $0x80] sm:$0xff]
      %v1463 = vld [vmem:[#allocation2 + $0x88] sm:$0xff]
      %v1464 = vld [vmem:[#allocation2 + $0x90] sm:$0xff]
      %v1465 = vld [vmem:[#allocation2 + $0x98] sm:$0xff]
      %v1466 = vld [vmem:[#allocation2 + $0xa0] sm:$0xff]
      %v1467 = vld [vmem:[#allocation2 + $0xa8] sm:$0xff]
      %v1468 = vld [vmem:[#allocation2 + $0xb0] sm:$0xff]
      %v1469 = vld [vmem:[#allocation2 + $0xb8] sm:$0xff]
      %v1470 = vld [vmem:[#allocation2 + $0xc0] sm:$0xff]
      %v1471 = vld [vmem:[#allocation2 + $0xc8] sm:$0xff]
      %v1472 = vld [vmem:[#allocation2 + $0xd0] sm:$0xff]
      %v1473 = vld [vmem:[#allocation2 + $0xd8] sm:$0xff]
      %v1474 = vld [vmem:[#allocation2 + $0xe0] sm:$0xff]
      %v1475 = vld [vmem:[#allocation2 + $0xe8] sm:$0xff]
      %v1476 = vld [vmem:[#allocation2 + $0xf0] sm:$0xff]
      %v1477 = vld [vmem:[#allocation2 + $0xf8] sm:$0xff]
      %v1478 = vadd.f32 %v1446, %v1288
      %v1479 = vadd.f32 %v1447, %v1293
      %v1480 = vadd.f32 %v1448, %v1298
      %v1481 = vadd.f32 %v1449, %v1303
      %v1482 = vadd.f32 %v1450, %v1308
      %v1483 = vadd.f32 %v1451, %v1313
      %v1484 = vadd.f32 %v1452, %v1318
      %v1485 = vadd.f32 %v1453, %v1323
      %v1486 = vadd.f32 %v1454, %v1328
      %v1487 = vadd.f32 %v1455, %v1333
      %v1488 = vadd.f32 %v1456, %v1338
      %v1489 = vadd.f32 %v1457, %v1343
      %v1490 = vadd.f32 %v1458, %v1348
      %v1491 = vadd.f32 %v1459, %v1353
      %v1492 = vadd.f32 %v1460, %v1358
      %v1493 = vadd.f32 %v1461, %v1363
      %v1494 = vadd.f32 %v1462, %v1368
      %v1495 = vadd.f32 %v1463, %v1373
      %v1496 = vadd.f32 %v1464, %v1378
      %v1497 = vadd.f32 %v1465, %v1383
      %v1498 = vadd.f32 %v1466, %v1388
      %v1499 = vadd.f32 %v1467, %v1393
      %v1500 = vadd.f32 %v1468, %v1398
      %v1501 = vadd.f32 %v1469, %v1403
      %v1502 = vadd.f32 %v1470, %v1408
      %v1503 = vadd.f32 %v1471, %v1413
      %v1504 = vadd.f32 %v1472, %v1418
      %v1505 = vadd.f32 %v1473, %v1423
      %v1506 = vadd.f32 %v1474, %v1428
      %v1507 = vadd.f32 %v1475, %v1433
      %v1508 = vadd.f32 %v1476, %v1438
      %v1509 = vadd.f32 %v1477, %v1443
      %1510 = vst [vmem:[#allocation2] sm:$0xff] %v1478
      %1511 = vst [vmem:[#allocation2 + $0x8] sm:$0xff] %v1479
      %1512 = vst [vmem:[#allocation2 + $0x10] sm:$0xff] %v1480
      %1513 = vst [vmem:[#allocation2 + $0x18] sm:$0xff] %v1481
      %1514 = vst [vmem:[#allocation2 + $0x20] sm:$0xff] %v1482
      %1515 = vst [vmem:[#allocation2 + $0x28] sm:$0xff] %v1483
      %1516 = vst [vmem:[#allocation2 + $0x30] sm:$0xff] %v1484
      %1517 = vst [vmem:[#allocation2 + $0x38] sm:$0xff] %v1485
      %1518 = vst [vmem:[#allocation2 + $0x40] sm:$0xff] %v1486
      %1519 = vst [vmem:[#allocation2 + $0x48] sm:$0xff] %v1487
      %1520 = vst [vmem:[#allocation2 + $0x50] sm:$0xff] %v1488
      %1521 = vst [vmem:[#allocation2 + $0x58] sm:$0xff] %v1489
      %1522 = vst [vmem:[#allocation2 + $0x60] sm:$0xff] %v1490
      %1523 = vst [vmem:[#allocation2 + $0x68] sm:$0xff] %v1491
      %1524 = vst [vmem:[#allocation2 + $0x70] sm:$0xff] %v1492
      %1525 = vst [vmem:[#allocation2 + $0x78] sm:$0xff] %v1493
      %1526 = vst [vmem:[#allocation2 + $0x80] sm:$0xff] %v1494
      %1527 = vst [vmem:[#allocation2 + $0x88] sm:$0xff] %v1495
      %1528 = vst [vmem:[#allocation2 + $0x90] sm:$0xff] %v1496
      %1529 = vst [vmem:[#allocation2 + $0x98] sm:$0xff] %v1497
      %1530 = vst [vmem:[#allocation2 + $0xa0] sm:$0xff] %v1498
      %1531 = vst [vmem:[#allocation2 + $0xa8] sm:$0xff] %v1499
      %1532 = vst [vmem:[#allocation2 + $0xb0] sm:$0xff] %v1500
      %1533 = vst [vmem:[#allocation2 + $0xb8] sm:$0xff] %v1501
      %1534 = vst [vmem:[#allocation2 + $0xc0] sm:$0xff] %v1502
      %1535 = vst [vmem:[#allocation2 + $0xc8] sm:$0xff] %v1503
      %1536 = vst [vmem:[#allocation2 + $0xd0] sm:$0xff] %v1504
      %1537 = vst [vmem:[#allocation2 + $0xd8] sm:$0xff] %v1505
      %1538 = vst [vmem:[#allocation2 + $0xe0] sm:$0xff] %v1506
      %1539 = vst [vmem:[#allocation2 + $0xe8] sm:$0xff] %v1507
      %1540 = vst [vmem:[#allocation2 + $0xf0] sm:$0xff] %v1508
      %1541 = vst [vmem:[#allocation2 + $0xf8] sm:$0xff] %v1509
      %s1542 = scalar_lea.vmem %s246, 24
      %v1543 = vld [vmem:[%s1542] sm:$0xff]
      %v1544 = vld [vmem:[%s1542 + $0x8] sm:$0xff]
      %v1545 = vld [vmem:[%s1542 + $0x18] sm:$0xff]
      %v1546 = vld [vmem:[%s1542 + $0x20] sm:$0xff]
      %v1547 = vld [vmem:[%s1542 + $0x30] sm:$0xff]
      %v1548 = vld [vmem:[%s1542 + $0x38] sm:$0xff]
      %v1549 = vld [vmem:[%s1542 + $0x48] sm:$0xff]
      %v1550 = vld [vmem:[%s1542 + $0x50] sm:$0xff]
      %v1551 = vld [vmem:[%s1542 + $0x60] sm:$0xff]
      %v1552 = vld [vmem:[%s1542 + $0x68] sm:$0xff]
      %v1553 = vld [vmem:[%s1542 + $0x78] sm:$0xff]
      %v1554 = vld [vmem:[%s1542 + $0x80] sm:$0xff]
      %v1555 = vld [vmem:[%s1542 + $0x90] sm:$0xff]
      %v1556 = vld [vmem:[%s1542 + $0x98] sm:$0xff]
      %v1557 = vld [vmem:[%s1542 + $0xa8] sm:$0xff]
      %v1558 = vld [vmem:[%s1542 + $0xb0] sm:$0xff]
      %v1559 = vld [vmem:[%s1542 + $0xc0] sm:$0xff]
      %v1560 = vld [vmem:[%s1542 + $0xc8] sm:$0xff]
      %v1561 = vld [vmem:[%s1542 + $0xd8] sm:$0xff]
      %v1562 = vld [vmem:[%s1542 + $0xe0] sm:$0xff]
      %v1563 = vld [vmem:[%s1542 + $0xf0] sm:$0xff]
      %v1564 = vld [vmem:[%s1542 + $0xf8] sm:$0xff]
      %v1565 = vld [vmem:[%s1542 + $0x108] sm:$0xff]
      %v1566 = vld [vmem:[%s1542 + $0x110] sm:$0xff]
      %v1567 = vld [vmem:[%s1542 + $0x120] sm:$0xff]
      %v1568 = vld [vmem:[%s1542 + $0x128] sm:$0xff]
      %v1569 = vld [vmem:[%s1542 + $0x138] sm:$0xff]
      %v1570 = vld [vmem:[%s1542 + $0x140] sm:$0xff]
      %v1571 = vld [vmem:[%s1542 + $0x150] sm:$0xff]
      %v1572 = vld [vmem:[%s1542 + $0x158] sm:$0xff]
      %v1573 = vld [vmem:[%s1542 + $0x168] sm:$0xff]
      %v1574 = vld [vmem:[%s1542 + $0x170] sm:$0xff]
      %s1575 = scalar_lea.vmem %s1, 24
      %v1576 = vld [vmem:[%s1575] sm:$0xff]
      %v1578 = vsel %vm286, %v1543, 0
      %v1581 = vsel %vm286, %v1544, 0
      %v1584 = vsel %vm286, %v1545, 0
      %v1587 = vsel %vm286, %v1546, 0
      %v1590 = vsel %vm286, %v1547, 0
      %v1593 = vsel %vm286, %v1548, 0
      %v1596 = vsel %vm286, %v1549, 0
      %v1599 = vsel %vm286, %v1550, 0
      %v1602 = vsel %vm286, %v1551, 0
      %v1605 = vsel %vm286, %v1552, 0
      %v1608 = vsel %vm286, %v1553, 0
      %v1611 = vsel %vm286, %v1554, 0
      %v1614 = vsel %vm286, %v1555, 0
      %v1617 = vsel %vm286, %v1556, 0
      %v1620 = vsel %vm286, %v1557, 0
      %v1623 = vsel %vm286, %v1558, 0
      %v1626 = vsel %vm286, %v1559, 0
      %v1629 = vsel %vm286, %v1560, 0
      %v1632 = vsel %vm286, %v1561, 0
      %v1635 = vsel %vm286, %v1562, 0
      %v1638 = vsel %vm286, %v1563, 0
      %v1641 = vsel %vm286, %v1564, 0
      %v1644 = vsel %vm286, %v1565, 0
      %v1647 = vsel %vm286, %v1566, 0
      %v1650 = vsel %vm286, %v1567, 0
      %v1653 = vsel %vm286, %v1568, 0
      %v1656 = vsel %vm286, %v1569, 0
      %v1659 = vsel %vm286, %v1570, 0
      %v1662 = vsel %vm286, %v1571, 0
      %v1665 = vsel %vm286, %v1572, 0
      %v1668 = vsel %vm286, %v1573, 0
      %v1671 = vsel %vm286, %v1574, 0
      %1673 = vmatprep.subr.mxu0 0.0
      %1674 = vmatpush1.msra.mxu0 0.0
      %1675 = vmatprep.subr.mxu0 0.0
      %1676 = vmatpush1.msra.mxu0 0.0
      %1677 = vmatprep.subr.mxu0 0.0
      %1678 = vmatpush1.msra.mxu0 0.0
      %1679 = vmatprep.subr.mxu0 0.0
      %1680 = vmatpush1.msra.mxu0 0.0
      %1681 = vmatprep.subr.mxu0 0.0
      %1682 = vmatpush1.msra.mxu0 0.0
      %1683 = vmatprep.subr.mxu0 0.0
      %1684 = vmatpush1.msra.mxu0 0.0
      %1685 = vmatprep.subr.mxu0 0.0
      %1686 = vmatpush1.msra.mxu0 0.0
      %1687 = vmatprep.subr.mxu0 0.0
      %1688 = vmatpush1.msra.mxu0 0.0
      %1689 = vmatprep.subr.mxu0 0.0
      %1690 = vmatpush1.msra.mxu0 0.0
      %1691 = vmatprep.subr.mxu0 0.0
      %1692 = vmatpush1.msra.mxu0 0.0
      %1693 = vmatprep.subr.mxu0 0.0
      %1694 = vmatpush1.msra.mxu0 0.0
      %1695 = vmatprep.subr.mxu0 0.0
      %1696 = vmatpush1.msra.mxu0 0.0
      %1697 = vmatprep.subr.mxu0 0.0
      %1698 = vmatpush1.msra.mxu0 0.0
      %1699 = vmatprep.subr.mxu0 0.0
      %1700 = vmatpush1.msra.mxu0 0.0
      %1701 = vmatprep.subr.mxu0 0.0
      %1702 = vmatpush1.msra.mxu0 0.0
      %1703 = vmatprep.subr.mxu0 0.0
      %1704 = vmatpush1.msra.mxu0 %v1576
      %1705 = vmatprep.subr.mxu0 0.0
      %1706 = vmatpush2.msra.mxu0 0.0
      %1707 = vmatprep.subr.mxu0 0.0
      %1708 = vmatpush2.msra.mxu0 0.0
      %1709 = vmatprep.subr.mxu0 0.0
      %1710 = vmatpush2.msra.mxu0 0.0
      %1711 = vmatprep.subr.mxu0 0.0
      %1712 = vmatpush2.msra.mxu0 0.0
      %1713 = vmatprep.subr.mxu0 0.0
      %1714 = vmatpush2.msra.mxu0 0.0
      %1715 = vmatprep.subr.mxu0 0.0
      %1716 = vmatpush2.msra.mxu0 0.0
      %1717 = vmatprep.subr.mxu0 0.0
      %1718 = vmatpush2.msra.mxu0 0.0
      %1719 = vmatprep.subr.mxu0 0.0
      %1720 = vmatpush2.msra.mxu0 0.0
      %1721 = vmatprep.subr.mxu0 0.0
      %1722 = vmatpush2.msra.mxu0 0.0
      %1723 = vmatprep.subr.mxu0 0.0
      %1724 = vmatpush2.msra.mxu0 0.0
      %1725 = vmatprep.subr.mxu0 0.0
      %1726 = vmatpush2.msra.mxu0 0.0
      %1727 = vmatprep.subr.mxu0 0.0
      %1728 = vmatpush2.msra.mxu0 0.0
      %1729 = vmatprep.subr.mxu0 0.0
      %1730 = vmatpush2.msra.mxu0 0.0
      %1731 = vmatprep.subr.mxu0 0.0
      %1732 = vmatpush2.msra.mxu0 0.0
      %1733 = vmatprep.subr.mxu0 0.0
      %1734 = vmatpush2.msra.mxu0 0.0
      %1735 = vmatprep.subr.mxu0 0.0
      %1736 = vmatpush2.msra.mxu0 0.0
      %1737 = vmatprep.mubr.f32.mxu0 0.0
      %1738 = vmatmul.mubr.f32.gmra.mxu0 %v1578
      %v1739 = vpop.f32.mrf.mxu0
      %v1740 = vadd.f32 0.0, %v1739
      %v1741 = vpop.f32.mrf.mxu0
      %1742 = vmatprep.mubr.f32.mxu0 0.0
      %1743 = vmatmul.mubr.f32.gmra.mxu0 %v1581
      %v1744 = vpop.f32.mrf.mxu0
      %v1745 = vadd.f32 0.0, %v1744
      %v1746 = vpop.f32.mrf.mxu0
      %1747 = vmatprep.mubr.f32.mxu0 0.0
      %1748 = vmatmul.mubr.f32.gmra.mxu0 %v1584
      %v1749 = vpop.f32.mrf.mxu0
      %v1750 = vadd.f32 0.0, %v1749
      %v1751 = vpop.f32.mrf.mxu0
      %1752 = vmatprep.mubr.f32.mxu0 0.0
      %1753 = vmatmul.mubr.f32.gmra.mxu0 %v1587
      %v1754 = vpop.f32.mrf.mxu0
      %v1755 = vadd.f32 0.0, %v1754
      %v1756 = vpop.f32.mrf.mxu0
      %1757 = vmatprep.mubr.f32.mxu0 0.0
      %1758 = vmatmul.mubr.f32.gmra.mxu0 %v1590
      %v1759 = vpop.f32.mrf.mxu0
      %v1760 = vadd.f32 0.0, %v1759
      %v1761 = vpop.f32.mrf.mxu0
      %1762 = vmatprep.mubr.f32.mxu0 0.0
      %1763 = vmatmul.mubr.f32.gmra.mxu0 %v1593
      %v1764 = vpop.f32.mrf.mxu0
      %v1765 = vadd.f32 0.0, %v1764
      %v1766 = vpop.f32.mrf.mxu0
      %1767 = vmatprep.mubr.f32.mxu0 0.0
      %1768 = vmatmul.mubr.f32.gmra.mxu0 %v1596
      %v1769 = vpop.f32.mrf.mxu0
      %v1770 = vadd.f32 0.0, %v1769
      %v1771 = vpop.f32.mrf.mxu0
      %1772 = vmatprep.mubr.f32.mxu0 0.0
      %1773 = vmatmul.mubr.f32.gmra.mxu0 %v1599
      %v1774 = vpop.f32.mrf.mxu0
      %v1775 = vadd.f32 0.0, %v1774
      %v1776 = vpop.f32.mrf.mxu0
      %1777 = vmatprep.mubr.f32.mxu0 0.0
      %1778 = vmatmul.mubr.f32.gmra.mxu0 %v1602
      %v1779 = vpop.f32.mrf.mxu0
      %v1780 = vadd.f32 0.0, %v1779
      %v1781 = vpop.f32.mrf.mxu0
      %1782 = vmatprep.mubr.f32.mxu0 0.0
      %1783 = vmatmul.mubr.f32.gmra.mxu0 %v1605
      %v1784 = vpop.f32.mrf.mxu0
      %v1785 = vadd.f32 0.0, %v1784
      %v1786 = vpop.f32.mrf.mxu0
      %1787 = vmatprep.mubr.f32.mxu0 0.0
      %1788 = vmatmul.mubr.f32.gmra.mxu0 %v1608
      %v1789 = vpop.f32.mrf.mxu0
      %v1790 = vadd.f32 0.0, %v1789
      %v1791 = vpop.f32.mrf.mxu0
      %1792 = vmatprep.mubr.f32.mxu0 0.0
      %1793 = vmatmul.mubr.f32.gmra.mxu0 %v1611
      %v1794 = vpop.f32.mrf.mxu0
      %v1795 = vadd.f32 0.0, %v1794
      %v1796 = vpop.f32.mrf.mxu0
      %1797 = vmatprep.mubr.f32.mxu0 0.0
      %1798 = vmatmul.mubr.f32.gmra.mxu0 %v1614
      %v1799 = vpop.f32.mrf.mxu0
      %v1800 = vadd.f32 0.0, %v1799
      %v1801 = vpop.f32.mrf.mxu0
      %1802 = vmatprep.mubr.f32.mxu0 0.0
      %1803 = vmatmul.mubr.f32.gmra.mxu0 %v1617
      %v1804 = vpop.f32.mrf.mxu0
      %v1805 = vadd.f32 0.0, %v1804
      %v1806 = vpop.f32.mrf.mxu0
      %1807 = vmatprep.mubr.f32.mxu0 0.0
      %1808 = vmatmul.mubr.f32.gmra.mxu0 %v1620
      %v1809 = vpop.f32.mrf.mxu0
      %v1810 = vadd.f32 0.0, %v1809
      %v1811 = vpop.f32.mrf.mxu0
      %1812 = vmatprep.mubr.f32.mxu0 0.0
      %1813 = vmatmul.mubr.f32.gmra.mxu0 %v1623
      %v1814 = vpop.f32.mrf.mxu0
      %v1815 = vadd.f32 0.0, %v1814
      %v1816 = vpop.f32.mrf.mxu0
      %1817 = vmatprep.mubr.f32.mxu0 0.0
      %1818 = vmatmul.mubr.f32.gmra.mxu0 %v1626
      %v1819 = vpop.f32.mrf.mxu0
      %v1820 = vadd.f32 0.0, %v1819
      %v1821 = vpop.f32.mrf.mxu0
      %1822 = vmatprep.mubr.f32.mxu0 0.0
      %1823 = vmatmul.mubr.f32.gmra.mxu0 %v1629
      %v1824 = vpop.f32.mrf.mxu0
      %v1825 = vadd.f32 0.0, %v1824
      %v1826 = vpop.f32.mrf.mxu0
      %1827 = vmatprep.mubr.f32.mxu0 0.0
      %1828 = vmatmul.mubr.f32.gmra.mxu0 %v1632
      %v1829 = vpop.f32.mrf.mxu0
      %v1830 = vadd.f32 0.0, %v1829
      %v1831 = vpop.f32.mrf.mxu0
      %1832 = vmatprep.mubr.f32.mxu0 0.0
      %1833 = vmatmul.mubr.f32.gmra.mxu0 %v1635
      %v1834 = vpop.f32.mrf.mxu0
      %v1835 = vadd.f32 0.0, %v1834
      %v1836 = vpop.f32.mrf.mxu0
      %1837 = vmatprep.mubr.f32.mxu0 0.0
      %1838 = vmatmul.mubr.f32.gmra.mxu0 %v1638
      %v1839 = vpop.f32.mrf.mxu0
      %v1840 = vadd.f32 0.0, %v1839
      %v1841 = vpop.f32.mrf.mxu0
      %1842 = vmatprep.mubr.f32.mxu0 0.0
      %1843 = vmatmul.mubr.f32.gmra.mxu0 %v1641
      %v1844 = vpop.f32.mrf.mxu0
      %v1845 = vadd.f32 0.0, %v1844
      %v1846 = vpop.f32.mrf.mxu0
      %1847 = vmatprep.mubr.f32.mxu0 0.0
      %1848 = vmatmul.mubr.f32.gmra.mxu0 %v1644
      %v1849 = vpop.f32.mrf.mxu0
      %v1850 = vadd.f32 0.0, %v1849
      %v1851 = vpop.f32.mrf.mxu0
      %1852 = vmatprep.mubr.f32.mxu0 0.0
      %1853 = vmatmul.mubr.f32.gmra.mxu0 %v1647
      %v1854 = vpop.f32.mrf.mxu0
      %v1855 = vadd.f32 0.0, %v1854
      %v1856 = vpop.f32.mrf.mxu0
      %1857 = vmatprep.mubr.f32.mxu0 0.0
      %1858 = vmatmul.mubr.f32.gmra.mxu0 %v1650
      %v1859 = vpop.f32.mrf.mxu0
      %v1860 = vadd.f32 0.0, %v1859
      %v1861 = vpop.f32.mrf.mxu0
      %1862 = vmatprep.mubr.f32.mxu0 0.0
      %1863 = vmatmul.mubr.f32.gmra.mxu0 %v1653
      %v1864 = vpop.f32.mrf.mxu0
      %v1865 = vadd.f32 0.0, %v1864
      %v1866 = vpop.f32.mrf.mxu0
      %1867 = vmatprep.mubr.f32.mxu0 0.0
      %1868 = vmatmul.mubr.f32.gmra.mxu0 %v1656
      %v1869 = vpop.f32.mrf.mxu0
      %v1870 = vadd.f32 0.0, %v1869
      %v1871 = vpop.f32.mrf.mxu0
      %1872 = vmatprep.mubr.f32.mxu0 0.0
      %1873 = vmatmul.mubr.f32.gmra.mxu0 %v1659
      %v1874 = vpop.f32.mrf.mxu0
      %v1875 = vadd.f32 0.0, %v1874
      %v1876 = vpop.f32.mrf.mxu0
      %1877 = vmatprep.mubr.f32.mxu0 0.0
      %1878 = vmatmul.mubr.f32.gmra.mxu0 %v1662
      %v1879 = vpop.f32.mrf.mxu0
      %v1880 = vadd.f32 0.0, %v1879
      %v1881 = vpop.f32.mrf.mxu0
      %1882 = vmatprep.mubr.f32.mxu0 0.0
      %1883 = vmatmul.mubr.f32.gmra.mxu0 %v1665
      %v1884 = vpop.f32.mrf.mxu0
      %v1885 = vadd.f32 0.0, %v1884
      %v1886 = vpop.f32.mrf.mxu0
      %1887 = vmatprep.mubr.f32.mxu0 0.0
      %1888 = vmatmul.mubr.f32.gmra.mxu0 %v1668
      %v1889 = vpop.f32.mrf.mxu0
      %v1890 = vadd.f32 0.0, %v1889
      %v1891 = vpop.f32.mrf.mxu0
      %1892 = vmatprep.mubr.f32.mxu0 0.0
      %1893 = vmatmul.mubr.f32.gmra.mxu0 %v1671
      %v1894 = vpop.f32.mrf.mxu0
      %v1895 = vadd.f32 0.0, %v1894
      %v1896 = vpop.f32.mrf.mxu0
      %1897 = vdwg.mxu0
      %v1898 = vld [vmem:[#allocation2] sm:$0xff]
      %v1899 = vld [vmem:[#allocation2 + $0x8] sm:$0xff]
      %v1900 = vld [vmem:[#allocation2 + $0x10] sm:$0xff]
      %v1901 = vld [vmem:[#allocation2 + $0x18] sm:$0xff]
      %v1902 = vld [vmem:[#allocation2 + $0x20] sm:$0xff]
      %v1903 = vld [vmem:[#allocation2 + $0x28] sm:$0xff]
      %v1904 = vld [vmem:[#allocation2 + $0x30] sm:$0xff]
      %v1905 = vld [vmem:[#allocation2 + $0x38] sm:$0xff]
      %v1906 = vld [vmem:[#allocation2 + $0x40] sm:$0xff]
      %v1907 = vld [vmem:[#allocation2 + $0x48] sm:$0xff]
      %v1908 = vld [vmem:[#allocation2 + $0x50] sm:$0xff]
      %v1909 = vld [vmem:[#allocation2 + $0x58] sm:$0xff]
      %v1910 = vld [vmem:[#allocation2 + $0x60] sm:$0xff]
      %v1911 = vld [vmem:[#allocation2 + $0x68] sm:$0xff]
      %v1912 = vld [vmem:[#allocation2 + $0x70] sm:$0xff]
      %v1913 = vld [vmem:[#allocation2 + $0x78] sm:$0xff]
      %v1914 = vld [vmem:[#allocation2 + $0x80] sm:$0xff]
      %v1915 = vld [vmem:[#allocation2 + $0x88] sm:$0xff]
      %v1916 = vld [vmem:[#allocation2 + $0x90] sm:$0xff]
      %v1917 = vld [vmem:[#allocation2 + $0x98] sm:$0xff]
      %v1918 = vld [vmem:[#allocation2 + $0xa0] sm:$0xff]
      %v1919 = vld [vmem:[#allocation2 + $0xa8] sm:$0xff]
      %v1920 = vld [vmem:[#allocation2 + $0xb0] sm:$0xff]
      %v1921 = vld [vmem:[#allocation2 + $0xb8] sm:$0xff]
      %v1922 = vld [vmem:[#allocation2 + $0xc0] sm:$0xff]
      %v1923 = vld [vmem:[#allocation2 + $0xc8] sm:$0xff]
      %v1924 = vld [vmem:[#allocation2 + $0xd0] sm:$0xff]
      %v1925 = vld [vmem:[#allocation2 + $0xd8] sm:$0xff]
      %v1926 = vld [vmem:[#allocation2 + $0xe0] sm:$0xff]
      %v1927 = vld [vmem:[#allocation2 + $0xe8] sm:$0xff]
      %v1928 = vld [vmem:[#allocation2 + $0xf0] sm:$0xff]
      %v1929 = vld [vmem:[#allocation2 + $0xf8] sm:$0xff]
      %v1930 = vadd.f32 %v1898, %v1740
      %v1931 = vadd.f32 %v1899, %v1745
      %v1932 = vadd.f32 %v1900, %v1750
      %v1933 = vadd.f32 %v1901, %v1755
      %v1934 = vadd.f32 %v1902, %v1760
      %v1935 = vadd.f32 %v1903, %v1765
      %v1936 = vadd.f32 %v1904, %v1770
      %v1937 = vadd.f32 %v1905, %v1775
      %v1938 = vadd.f32 %v1906, %v1780
      %v1939 = vadd.f32 %v1907, %v1785
      %v1940 = vadd.f32 %v1908, %v1790
      %v1941 = vadd.f32 %v1909, %v1795
      %v1942 = vadd.f32 %v1910, %v1800
      %v1943 = vadd.f32 %v1911, %v1805
      %v1944 = vadd.f32 %v1912, %v1810
      %v1945 = vadd.f32 %v1913, %v1815
      %v1946 = vadd.f32 %v1914, %v1820
      %v1947 = vadd.f32 %v1915, %v1825
      %v1948 = vadd.f32 %v1916, %v1830
      %v1949 = vadd.f32 %v1917, %v1835
      %v1950 = vadd.f32 %v1918, %v1840
      %v1951 = vadd.f32 %v1919, %v1845
      %v1952 = vadd.f32 %v1920, %v1850
      %v1953 = vadd.f32 %v1921, %v1855
      %v1954 = vadd.f32 %v1922, %v1860
      %v1955 = vadd.f32 %v1923, %v1865
      %v1956 = vadd.f32 %v1924, %v1870
      %v1957 = vadd.f32 %v1925, %v1875
      %v1958 = vadd.f32 %v1926, %v1880
      %v1959 = vadd.f32 %v1927, %v1885
      %v1960 = vadd.f32 %v1928, %v1890
      %v1961 = vadd.f32 %v1929, %v1895
      %1962 = vst [vmem:[#allocation2] sm:$0xff] %v1930
      %1963 = vst [vmem:[#allocation2 + $0x8] sm:$0xff] %v1931
      %1964 = vst [vmem:[#allocation2 + $0x10] sm:$0xff] %v1932
      %1965 = vst [vmem:[#allocation2 + $0x18] sm:$0xff] %v1933
      %1966 = vst [vmem:[#allocation2 + $0x20] sm:$0xff] %v1934
      %1967 = vst [vmem:[#allocation2 + $0x28] sm:$0xff] %v1935
      %1968 = vst [vmem:[#allocation2 + $0x30] sm:$0xff] %v1936
      %1969 = vst [vmem:[#allocation2 + $0x38] sm:$0xff] %v1937
      %1970 = vst [vmem:[#allocation2 + $0x40] sm:$0xff] %v1938
      %1971 = vst [vmem:[#allocation2 + $0x48] sm:$0xff] %v1939
      %1972 = vst [vmem:[#allocation2 + $0x50] sm:$0xff] %v1940
      %1973 = vst [vmem:[#allocation2 + $0x58] sm:$0xff] %v1941
      %1974 = vst [vmem:[#allocation2 + $0x60] sm:$0xff] %v1942
      %1975 = vst [vmem:[#allocation2 + $0x68] sm:$0xff] %v1943
      %1976 = vst [vmem:[#allocation2 + $0x70] sm:$0xff] %v1944
      %1977 = vst [vmem:[#allocation2 + $0x78] sm:$0xff] %v1945
      %1978 = vst [vmem:[#allocation2 + $0x80] sm:$0xff] %v1946
      %1979 = vst [vmem:[#allocation2 + $0x88] sm:$0xff] %v1947
      %1980 = vst [vmem:[#allocation2 + $0x90] sm:$0xff] %v1948
      %1981 = vst [vmem:[#allocation2 + $0x98] sm:$0xff] %v1949
      %1982 = vst [vmem:[#allocation2 + $0xa0] sm:$0xff] %v1950
      %1983 = vst [vmem:[#allocation2 + $0xa8] sm:$0xff] %v1951
      %1984 = vst [vmem:[#allocation2 + $0xb0] sm:$0xff] %v1952
      %1985 = vst [vmem:[#allocation2 + $0xb8] sm:$0xff] %v1953
      %1986 = vst [vmem:[#allocation2 + $0xc0] sm:$0xff] %v1954
      %1987 = vst [vmem:[#allocation2 + $0xc8] sm:$0xff] %v1955
      %1988 = vst [vmem:[#allocation2 + $0xd0] sm:$0xff] %v1956
      %1989 = vst [vmem:[#allocation2 + $0xd8] sm:$0xff] %v1957
      %1990 = vst [vmem:[#allocation2 + $0xe0] sm:$0xff] %v1958
      %1991 = vst [vmem:[#allocation2 + $0xe8] sm:$0xff] %v1959
      %1992 = vst [vmem:[#allocation2 + $0xf0] sm:$0xff] %v1960
      %1993 = vst [vmem:[#allocation2 + $0xf8] sm:$0xff] %v1961
      %v1994 = vld [vmem:[%s1542 + $0x1] sm:$0xff]
      %v1995 = vld [vmem:[%s1542 + $0x9] sm:$0xff]
      %v1996 = vld [vmem:[%s1542 + $0x19] sm:$0xff]
      %v1997 = vld [vmem:[%s1542 + $0x21] sm:$0xff]
      %v1998 = vld [vmem:[%s1542 + $0x31] sm:$0xff]
      %v1999 = vld [vmem:[%s1542 + $0x39] sm:$0xff]
      %v2000 = vld [vmem:[%s1542 + $0x49] sm:$0xff]
      %v2001 = vld [vmem:[%s1542 + $0x51] sm:$0xff]
      %v2002 = vld [vmem:[%s1542 + $0x61] sm:$0xff]
      %v2003 = vld [vmem:[%s1542 + $0x69] sm:$0xff]
      %v2004 = vld [vmem:[%s1542 + $0x79] sm:$0xff]
      %v2005 = vld [vmem:[%s1542 + $0x81] sm:$0xff]
      %v2006 = vld [vmem:[%s1542 + $0x91] sm:$0xff]
      %v2007 = vld [vmem:[%s1542 + $0x99] sm:$0xff]
      %v2008 = vld [vmem:[%s1542 + $0xa9] sm:$0xff]
      %v2009 = vld [vmem:[%s1542 + $0xb1] sm:$0xff]
      %v2010 = vld [vmem:[%s1542 + $0xc1] sm:$0xff]
      %v2011 = vld [vmem:[%s1542 + $0xc9] sm:$0xff]
      %v2012 = vld [vmem:[%s1542 + $0xd9] sm:$0xff]
      %v2013 = vld [vmem:[%s1542 + $0xe1] sm:$0xff]
      %v2014 = vld [vmem:[%s1542 + $0xf1] sm:$0xff]
      %v2015 = vld [vmem:[%s1542 + $0xf9] sm:$0xff]
      %v2016 = vld [vmem:[%s1542 + $0x109] sm:$0xff]
      %v2017 = vld [vmem:[%s1542 + $0x111] sm:$0xff]
      %v2018 = vld [vmem:[%s1542 + $0x121] sm:$0xff]
      %v2019 = vld [vmem:[%s1542 + $0x129] sm:$0xff]
      %v2020 = vld [vmem:[%s1542 + $0x139] sm:$0xff]
      %v2021 = vld [vmem:[%s1542 + $0x141] sm:$0xff]
      %v2022 = vld [vmem:[%s1542 + $0x151] sm:$0xff]
      %v2023 = vld [vmem:[%s1542 + $0x159] sm:$0xff]
      %v2024 = vld [vmem:[%s1542 + $0x169] sm:$0xff]
      %v2025 = vld [vmem:[%s1542 + $0x171] sm:$0xff]
      %s2026 = scalar_lea.vmem %s1, 32
      %v2027 = vld [vmem:[%s2026] sm:$0xff]
      %v2029 = vsel %vm286, %v1994, 0
      %v2032 = vsel %vm286, %v1995, 0
      %v2035 = vsel %vm286, %v1996, 0
      %v2038 = vsel %vm286, %v1997, 0
      %v2041 = vsel %vm286, %v1998, 0
      %v2044 = vsel %vm286, %v1999, 0
      %v2047 = vsel %vm286, %v2000, 0
      %v2050 = vsel %vm286, %v2001, 0
      %v2053 = vsel %vm286, %v2002, 0
      %v2056 = vsel %vm286, %v2003, 0
      %v2059 = vsel %vm286, %v2004, 0
      %v2062 = vsel %vm286, %v2005, 0
      %v2065 = vsel %vm286, %v2006, 0
      %v2068 = vsel %vm286, %v2007, 0
      %v2071 = vsel %vm286, %v2008, 0
      %v2074 = vsel %vm286, %v2009, 0
      %v2077 = vsel %vm286, %v2010, 0
      %v2080 = vsel %vm286, %v2011, 0
      %v2083 = vsel %vm286, %v2012, 0
      %v2086 = vsel %vm286, %v2013, 0
      %v2089 = vsel %vm286, %v2014, 0
      %v2092 = vsel %vm286, %v2015, 0
      %v2095 = vsel %vm286, %v2016, 0
      %v2098 = vsel %vm286, %v2017, 0
      %v2101 = vsel %vm286, %v2018, 0
      %v2104 = vsel %vm286, %v2019, 0
      %v2107 = vsel %vm286, %v2020, 0
      %v2110 = vsel %vm286, %v2021, 0
      %v2113 = vsel %vm286, %v2022, 0
      %v2116 = vsel %vm286, %v2023, 0
      %v2119 = vsel %vm286, %v2024, 0
      %v2122 = vsel %vm286, %v2025, 0
      %2124 = vmatprep.subr.mxu0 0.0
      %2125 = vmatpush1.msra.mxu0 0.0
      %2126 = vmatprep.subr.mxu0 0.0
      %2127 = vmatpush1.msra.mxu0 0.0
      %2128 = vmatprep.subr.mxu0 0.0
      %2129 = vmatpush1.msra.mxu0 0.0
      %2130 = vmatprep.subr.mxu0 0.0
      %2131 = vmatpush1.msra.mxu0 0.0
      %2132 = vmatprep.subr.mxu0 0.0
      %2133 = vmatpush1.msra.mxu0 0.0
      %2134 = vmatprep.subr.mxu0 0.0
      %2135 = vmatpush1.msra.mxu0 0.0
      %2136 = vmatprep.subr.mxu0 0.0
      %2137 = vmatpush1.msra.mxu0 0.0
      %2138 = vmatprep.subr.mxu0 0.0
      %2139 = vmatpush1.msra.mxu0 0.0
      %2140 = vmatprep.subr.mxu0 0.0
      %2141 = vmatpush1.msra.mxu0 0.0
      %2142 = vmatprep.subr.mxu0 0.0
      %2143 = vmatpush1.msra.mxu0 0.0
      %2144 = vmatprep.subr.mxu0 0.0
      %2145 = vmatpush1.msra.mxu0 0.0
      %2146 = vmatprep.subr.mxu0 0.0
      %2147 = vmatpush1.msra.mxu0 0.0
      %2148 = vmatprep.subr.mxu0 0.0
      %2149 = vmatpush1.msra.mxu0 0.0
      %2150 = vmatprep.subr.mxu0 0.0
      %2151 = vmatpush1.msra.mxu0 0.0
      %2152 = vmatprep.subr.mxu0 0.0
      %2153 = vmatpush1.msra.mxu0 0.0
      %2154 = vmatprep.subr.mxu0 0.0
      %2155 = vmatpush1.msra.mxu0 %v2027
      %2156 = vmatprep.subr.mxu0 0.0
      %2157 = vmatpush2.msra.mxu0 0.0
      %2158 = vmatprep.subr.mxu0 0.0
      %2159 = vmatpush2.msra.mxu0 0.0
      %2160 = vmatprep.subr.mxu0 0.0
      %2161 = vmatpush2.msra.mxu0 0.0
      %2162 = vmatprep.subr.mxu0 0.0
      %2163 = vmatpush2.msra.mxu0 0.0
      %2164 = vmatprep.subr.mxu0 0.0
      %2165 = vmatpush2.msra.mxu0 0.0
      %2166 = vmatprep.subr.mxu0 0.0
      %2167 = vmatpush2.msra.mxu0 0.0
      %2168 = vmatprep.subr.mxu0 0.0
      %2169 = vmatpush2.msra.mxu0 0.0
      %2170 = vmatprep.subr.mxu0 0.0
      %2171 = vmatpush2.msra.mxu0 0.0
      %2172 = vmatprep.subr.mxu0 0.0
      %2173 = vmatpush2.msra.mxu0 0.0
      %2174 = vmatprep.subr.mxu0 0.0
      %2175 = vmatpush2.msra.mxu0 0.0
      %2176 = vmatprep.subr.mxu0 0.0
      %2177 = vmatpush2.msra.mxu0 0.0
      %2178 = vmatprep.subr.mxu0 0.0
      %2179 = vmatpush2.msra.mxu0 0.0
      %2180 = vmatprep.subr.mxu0 0.0
      %2181 = vmatpush2.msra.mxu0 0.0
      %2182 = vmatprep.subr.mxu0 0.0
      %2183 = vmatpush2.msra.mxu0 0.0
      %2184 = vmatprep.subr.mxu0 0.0
      %2185 = vmatpush2.msra.mxu0 0.0
      %2186 = vmatprep.subr.mxu0 0.0
      %2187 = vmatpush2.msra.mxu0 0.0
      %2188 = vmatprep.mubr.f32.mxu0 0.0
      %2189 = vmatmul.mubr.f32.gmra.mxu0 %v2029
      %v2190 = vpop.f32.mrf.mxu0
      %v2191 = vadd.f32 0.0, %v2190
      %v2192 = vpop.f32.mrf.mxu0
      %2193 = vmatprep.mubr.f32.mxu0 0.0
      %2194 = vmatmul.mubr.f32.gmra.mxu0 %v2032
      %v2195 = vpop.f32.mrf.mxu0
      %v2196 = vadd.f32 0.0, %v2195
      %v2197 = vpop.f32.mrf.mxu0
      %2198 = vmatprep.mubr.f32.mxu0 0.0
      %2199 = vmatmul.mubr.f32.gmra.mxu0 %v2035
      %v2200 = vpop.f32.mrf.mxu0
      %v2201 = vadd.f32 0.0, %v2200
      %v2202 = vpop.f32.mrf.mxu0
      %2203 = vmatprep.mubr.f32.mxu0 0.0
      %2204 = vmatmul.mubr.f32.gmra.mxu0 %v2038
      %v2205 = vpop.f32.mrf.mxu0
      %v2206 = vadd.f32 0.0, %v2205
      %v2207 = vpop.f32.mrf.mxu0
      %2208 = vmatprep.mubr.f32.mxu0 0.0
      %2209 = vmatmul.mubr.f32.gmra.mxu0 %v2041
      %v2210 = vpop.f32.mrf.mxu0
      %v2211 = vadd.f32 0.0, %v2210
      %v2212 = vpop.f32.mrf.mxu0
      %2213 = vmatprep.mubr.f32.mxu0 0.0
      %2214 = vmatmul.mubr.f32.gmra.mxu0 %v2044
      %v2215 = vpop.f32.mrf.mxu0
      %v2216 = vadd.f32 0.0, %v2215
      %v2217 = vpop.f32.mrf.mxu0
      %2218 = vmatprep.mubr.f32.mxu0 0.0
      %2219 = vmatmul.mubr.f32.gmra.mxu0 %v2047
      %v2220 = vpop.f32.mrf.mxu0
      %v2221 = vadd.f32 0.0, %v2220
      %v2222 = vpop.f32.mrf.mxu0
      %2223 = vmatprep.mubr.f32.mxu0 0.0
      %2224 = vmatmul.mubr.f32.gmra.mxu0 %v2050
      %v2225 = vpop.f32.mrf.mxu0
      %v2226 = vadd.f32 0.0, %v2225
      %v2227 = vpop.f32.mrf.mxu0
      %2228 = vmatprep.mubr.f32.mxu0 0.0
      %2229 = vmatmul.mubr.f32.gmra.mxu0 %v2053
      %v2230 = vpop.f32.mrf.mxu0
      %v2231 = vadd.f32 0.0, %v2230
      %v2232 = vpop.f32.mrf.mxu0
      %2233 = vmatprep.mubr.f32.mxu0 0.0
      %2234 = vmatmul.mubr.f32.gmra.mxu0 %v2056
      %v2235 = vpop.f32.mrf.mxu0
      %v2236 = vadd.f32 0.0, %v2235
      %v2237 = vpop.f32.mrf.mxu0
      %2238 = vmatprep.mubr.f32.mxu0 0.0
      %2239 = vmatmul.mubr.f32.gmra.mxu0 %v2059
      %v2240 = vpop.f32.mrf.mxu0
      %v2241 = vadd.f32 0.0, %v2240
      %v2242 = vpop.f32.mrf.mxu0
      %2243 = vmatprep.mubr.f32.mxu0 0.0
      %2244 = vmatmul.mubr.f32.gmra.mxu0 %v2062
      %v2245 = vpop.f32.mrf.mxu0
      %v2246 = vadd.f32 0.0, %v2245
      %v2247 = vpop.f32.mrf.mxu0
      %2248 = vmatprep.mubr.f32.mxu0 0.0
      %2249 = vmatmul.mubr.f32.gmra.mxu0 %v2065
      %v2250 = vpop.f32.mrf.mxu0
      %v2251 = vadd.f32 0.0, %v2250
      %v2252 = vpop.f32.mrf.mxu0
      %2253 = vmatprep.mubr.f32.mxu0 0.0
      %2254 = vmatmul.mubr.f32.gmra.mxu0 %v2068
      %v2255 = vpop.f32.mrf.mxu0
      %v2256 = vadd.f32 0.0, %v2255
      %v2257 = vpop.f32.mrf.mxu0
      %2258 = vmatprep.mubr.f32.mxu0 0.0
      %2259 = vmatmul.mubr.f32.gmra.mxu0 %v2071
      %v2260 = vpop.f32.mrf.mxu0
      %v2261 = vadd.f32 0.0, %v2260
      %v2262 = vpop.f32.mrf.mxu0
      %2263 = vmatprep.mubr.f32.mxu0 0.0
      %2264 = vmatmul.mubr.f32.gmra.mxu0 %v2074
      %v2265 = vpop.f32.mrf.mxu0
      %v2266 = vadd.f32 0.0, %v2265
      %v2267 = vpop.f32.mrf.mxu0
      %2268 = vmatprep.mubr.f32.mxu0 0.0
      %2269 = vmatmul.mubr.f32.gmra.mxu0 %v2077
      %v2270 = vpop.f32.mrf.mxu0
      %v2271 = vadd.f32 0.0, %v2270
      %v2272 = vpop.f32.mrf.mxu0
      %2273 = vmatprep.mubr.f32.mxu0 0.0
      %2274 = vmatmul.mubr.f32.gmra.mxu0 %v2080
      %v2275 = vpop.f32.mrf.mxu0
      %v2276 = vadd.f32 0.0, %v2275
      %v2277 = vpop.f32.mrf.mxu0
      %2278 = vmatprep.mubr.f32.mxu0 0.0
      %2279 = vmatmul.mubr.f32.gmra.mxu0 %v2083
      %v2280 = vpop.f32.mrf.mxu0
      %v2281 = vadd.f32 0.0, %v2280
      %v2282 = vpop.f32.mrf.mxu0
      %2283 = vmatprep.mubr.f32.mxu0 0.0
      %2284 = vmatmul.mubr.f32.gmra.mxu0 %v2086
      %v2285 = vpop.f32.mrf.mxu0
      %v2286 = vadd.f32 0.0, %v2285
      %v2287 = vpop.f32.mrf.mxu0
      %2288 = vmatprep.mubr.f32.mxu0 0.0
      %2289 = vmatmul.mubr.f32.gmra.mxu0 %v2089
      %v2290 = vpop.f32.mrf.mxu0
      %v2291 = vadd.f32 0.0, %v2290
      %v2292 = vpop.f32.mrf.mxu0
      %2293 = vmatprep.mubr.f32.mxu0 0.0
      %2294 = vmatmul.mubr.f32.gmra.mxu0 %v2092
      %v2295 = vpop.f32.mrf.mxu0
      %v2296 = vadd.f32 0.0, %v2295
      %v2297 = vpop.f32.mrf.mxu0
      %2298 = vmatprep.mubr.f32.mxu0 0.0
      %2299 = vmatmul.mubr.f32.gmra.mxu0 %v2095
      %v2300 = vpop.f32.mrf.mxu0
      %v2301 = vadd.f32 0.0, %v2300
      %v2302 = vpop.f32.mrf.mxu0
      %2303 = vmatprep.mubr.f32.mxu0 0.0
      %2304 = vmatmul.mubr.f32.gmra.mxu0 %v2098
      %v2305 = vpop.f32.mrf.mxu0
      %v2306 = vadd.f32 0.0, %v2305
      %v2307 = vpop.f32.mrf.mxu0
      %2308 = vmatprep.mubr.f32.mxu0 0.0
      %2309 = vmatmul.mubr.f32.gmra.mxu0 %v2101
      %v2310 = vpop.f32.mrf.mxu0
      %v2311 = vadd.f32 0.0, %v2310
      %v2312 = vpop.f32.mrf.mxu0
      %2313 = vmatprep.mubr.f32.mxu0 0.0
      %2314 = vmatmul.mubr.f32.gmra.mxu0 %v2104
      %v2315 = vpop.f32.mrf.mxu0
      %v2316 = vadd.f32 0.0, %v2315
      %v2317 = vpop.f32.mrf.mxu0
      %2318 = vmatprep.mubr.f32.mxu0 0.0
      %2319 = vmatmul.mubr.f32.gmra.mxu0 %v2107
      %v2320 = vpop.f32.mrf.mxu0
      %v2321 = vadd.f32 0.0, %v2320
      %v2322 = vpop.f32.mrf.mxu0
      %2323 = vmatprep.mubr.f32.mxu0 0.0
      %2324 = vmatmul.mubr.f32.gmra.mxu0 %v2110
      %v2325 = vpop.f32.mrf.mxu0
      %v2326 = vadd.f32 0.0, %v2325
      %v2327 = vpop.f32.mrf.mxu0
      %2328 = vmatprep.mubr.f32.mxu0 0.0
      %2329 = vmatmul.mubr.f32.gmra.mxu0 %v2113
      %v2330 = vpop.f32.mrf.mxu0
      %v2331 = vadd.f32 0.0, %v2330
      %v2332 = vpop.f32.mrf.mxu0
      %2333 = vmatprep.mubr.f32.mxu0 0.0
      %2334 = vmatmul.mubr.f32.gmra.mxu0 %v2116
      %v2335 = vpop.f32.mrf.mxu0
      %v2336 = vadd.f32 0.0, %v2335
      %v2337 = vpop.f32.mrf.mxu0
      %2338 = vmatprep.mubr.f32.mxu0 0.0
      %2339 = vmatmul.mubr.f32.gmra.mxu0 %v2119
      %v2340 = vpop.f32.mrf.mxu0
      %v2341 = vadd.f32 0.0, %v2340
      %v2342 = vpop.f32.mrf.mxu0
      %2343 = vmatprep.mubr.f32.mxu0 0.0
      %2344 = vmatmul.mubr.f32.gmra.mxu0 %v2122
      %v2345 = vpop.f32.mrf.mxu0
      %v2346 = vadd.f32 0.0, %v2345
      %v2347 = vpop.f32.mrf.mxu0
      %2348 = vdwg.mxu0
      %v2349 = vld [vmem:[#allocation2] sm:$0xff]
      %v2350 = vld [vmem:[#allocation2 + $0x8] sm:$0xff]
      %v2351 = vld [vmem:[#allocation2 + $0x10] sm:$0xff]
      %v2352 = vld [vmem:[#allocation2 + $0x18] sm:$0xff]
      %v2353 = vld [vmem:[#allocation2 + $0x20] sm:$0xff]
      %v2354 = vld [vmem:[#allocation2 + $0x28] sm:$0xff]
      %v2355 = vld [vmem:[#allocation2 + $0x30] sm:$0xff]
      %v2356 = vld [vmem:[#allocation2 + $0x38] sm:$0xff]
      %v2357 = vld [vmem:[#allocation2 + $0x40] sm:$0xff]
      %v2358 = vld [vmem:[#allocation2 + $0x48] sm:$0xff]
      %v2359 = vld [vmem:[#allocation2 + $0x50] sm:$0xff]
      %v2360 = vld [vmem:[#allocation2 + $0x58] sm:$0xff]
      %v2361 = vld [vmem:[#allocation2 + $0x60] sm:$0xff]
      %v2362 = vld [vmem:[#allocation2 + $0x68] sm:$0xff]
      %v2363 = vld [vmem:[#allocation2 + $0x70] sm:$0xff]
      %v2364 = vld [vmem:[#allocation2 + $0x78] sm:$0xff]
      %v2365 = vld [vmem:[#allocation2 + $0x80] sm:$0xff]
      %v2366 = vld [vmem:[#allocation2 + $0x88] sm:$0xff]
      %v2367 = vld [vmem:[#allocation2 + $0x90] sm:$0xff]
      %v2368 = vld [vmem:[#allocation2 + $0x98] sm:$0xff]
      %v2369 = vld [vmem:[#allocation2 + $0xa0] sm:$0xff]
      %v2370 = vld [vmem:[#allocation2 + $0xa8] sm:$0xff]
      %v2371 = vld [vmem:[#allocation2 + $0xb0] sm:$0xff]
      %v2372 = vld [vmem:[#allocation2 + $0xb8] sm:$0xff]
      %v2373 = vld [vmem:[#allocation2 + $0xc0] sm:$0xff]
      %v2374 = vld [vmem:[#allocation2 + $0xc8] sm:$0xff]
      %v2375 = vld [vmem:[#allocation2 + $0xd0] sm:$0xff]
      %v2376 = vld [vmem:[#allocation2 + $0xd8] sm:$0xff]
      %v2377 = vld [vmem:[#allocation2 + $0xe0] sm:$0xff]
      %v2378 = vld [vmem:[#allocation2 + $0xe8] sm:$0xff]
      %v2379 = vld [vmem:[#allocation2 + $0xf0] sm:$0xff]
      %v2380 = vld [vmem:[#allocation2 + $0xf8] sm:$0xff]
      %v2381 = vadd.f32 %v2349, %v2191
      %v2382 = vadd.f32 %v2350, %v2196
      %v2383 = vadd.f32 %v2351, %v2201
      %v2384 = vadd.f32 %v2352, %v2206
      %v2385 = vadd.f32 %v2353, %v2211
      %v2386 = vadd.f32 %v2354, %v2216
      %v2387 = vadd.f32 %v2355, %v2221
      %v2388 = vadd.f32 %v2356, %v2226
      %v2389 = vadd.f32 %v2357, %v2231
      %v2390 = vadd.f32 %v2358, %v2236
      %v2391 = vadd.f32 %v2359, %v2241
      %v2392 = vadd.f32 %v2360, %v2246
      %v2393 = vadd.f32 %v2361, %v2251
      %v2394 = vadd.f32 %v2362, %v2256
      %v2395 = vadd.f32 %v2363, %v2261
      %v2396 = vadd.f32 %v2364, %v2266
      %v2397 = vadd.f32 %v2365, %v2271
      %v2398 = vadd.f32 %v2366, %v2276
      %v2399 = vadd.f32 %v2367, %v2281
      %v2400 = vadd.f32 %v2368, %v2286
      %v2401 = vadd.f32 %v2369, %v2291
      %v2402 = vadd.f32 %v2370, %v2296
      %v2403 = vadd.f32 %v2371, %v2301
      %v2404 = vadd.f32 %v2372, %v2306
      %v2405 = vadd.f32 %v2373, %v2311
      %v2406 = vadd.f32 %v2374, %v2316
      %v2407 = vadd.f32 %v2375, %v2321
      %v2408 = vadd.f32 %v2376, %v2326
      %v2409 = vadd.f32 %v2377, %v2331
      %v2410 = vadd.f32 %v2378, %v2336
      %v2411 = vadd.f32 %v2379, %v2341
      %v2412 = vadd.f32 %v2380, %v2346
      %2413 = vst [vmem:[#allocation2] sm:$0xff] %v2381
      %2414 = vst [vmem:[#allocation2 + $0x8] sm:$0xff] %v2382
      %2415 = vst [vmem:[#allocation2 + $0x10] sm:$0xff] %v2383
      %2416 = vst [vmem:[#allocation2 + $0x18] sm:$0xff] %v2384
      %2417 = vst [vmem:[#allocation2 + $0x20] sm:$0xff] %v2385
      %2418 = vst [vmem:[#allocation2 + $0x28] sm:$0xff] %v2386
      %2419 = vst [vmem:[#allocation2 + $0x30] sm:$0xff] %v2387
      %2420 = vst [vmem:[#allocation2 + $0x38] sm:$0xff] %v2388
      %2421 = vst [vmem:[#allocation2 + $0x40] sm:$0xff] %v2389
      %2422 = vst [vmem:[#allocation2 + $0x48] sm:$0xff] %v2390
      %2423 = vst [vmem:[#allocation2 + $0x50] sm:$0xff] %v2391
      %2424 = vst [vmem:[#allocation2 + $0x58] sm:$0xff] %v2392
      %2425 = vst [vmem:[#allocation2 + $0x60] sm:$0xff] %v2393
      %2426 = vst [vmem:[#allocation2 + $0x68] sm:$0xff] %v2394
      %2427 = vst [vmem:[#allocation2 + $0x70] sm:$0xff] %v2395
      %2428 = vst [vmem:[#allocation2 + $0x78] sm:$0xff] %v2396
      %2429 = vst [vmem:[#allocation2 + $0x80] sm:$0xff] %v2397
      %2430 = vst [vmem:[#allocation2 + $0x88] sm:$0xff] %v2398
      %2431 = vst [vmem:[#allocation2 + $0x90] sm:$0xff] %v2399
      %2432 = vst [vmem:[#allocation2 + $0x98] sm:$0xff] %v2400
      %2433 = vst [vmem:[#allocation2 + $0xa0] sm:$0xff] %v2401
      %2434 = vst [vmem:[#allocation2 + $0xa8] sm:$0xff] %v2402
      %2435 = vst [vmem:[#allocation2 + $0xb0] sm:$0xff] %v2403
      %2436 = vst [vmem:[#allocation2 + $0xb8] sm:$0xff] %v2404
      %2437 = vst [vmem:[#allocation2 + $0xc0] sm:$0xff] %v2405
      %2438 = vst [vmem:[#allocation2 + $0xc8] sm:$0xff] %v2406
      %2439 = vst [vmem:[#allocation2 + $0xd0] sm:$0xff] %v2407
      %2440 = vst [vmem:[#allocation2 + $0xd8] sm:$0xff] %v2408
      %2441 = vst [vmem:[#allocation2 + $0xe0] sm:$0xff] %v2409
      %2442 = vst [vmem:[#allocation2 + $0xe8] sm:$0xff] %v2410
      %2443 = vst [vmem:[#allocation2 + $0xf0] sm:$0xff] %v2411
      %2444 = vst [vmem:[#allocation2 + $0xf8] sm:$0xff] %v2412
      %v2445 = vld [vmem:[%s1542 + $0x2] sm:$0xff]
      %v2446 = vld [vmem:[%s1542 + $0xa] sm:$0xff]
      %v2447 = vld [vmem:[%s1542 + $0x1a] sm:$0xff]
      %v2448 = vld [vmem:[%s1542 + $0x22] sm:$0xff]
      %v2449 = vld [vmem:[%s1542 + $0x32] sm:$0xff]
      %v2450 = vld [vmem:[%s1542 + $0x3a] sm:$0xff]
      %v2451 = vld [vmem:[%s1542 + $0x4a] sm:$0xff]
      %v2452 = vld [vmem:[%s1542 + $0x52] sm:$0xff]
      %v2453 = vld [vmem:[%s1542 + $0x62] sm:$0xff]
      %v2454 = vld [vmem:[%s1542 + $0x6a] sm:$0xff]
      %v2455 = vld [vmem:[%s1542 + $0x7a] sm:$0xff]
      %v2456 = vld [vmem:[%s1542 + $0x82] sm:$0xff]
      %v2457 = vld [vmem:[%s1542 + $0x92] sm:$0xff]
      %v2458 = vld [vmem:[%s1542 + $0x9a] sm:$0xff]
      %v2459 = vld [vmem:[%s1542 + $0xaa] sm:$0xff]
      %v2460 = vld [vmem:[%s1542 + $0xb2] sm:$0xff]
      %v2461 = vld [vmem:[%s1542 + $0xc2] sm:$0xff]
      %v2462 = vld [vmem:[%s1542 + $0xca] sm:$0xff]
      %v2463 = vld [vmem:[%s1542 + $0xda] sm:$0xff]
      %v2464 = vld [vmem:[%s1542 + $0xe2] sm:$0xff]
      %v2465 = vld [vmem:[%s1542 + $0xf2] sm:$0xff]
      %v2466 = vld [vmem:[%s1542 + $0xfa] sm:$0xff]
      %v2467 = vld [vmem:[%s1542 + $0x10a] sm:$0xff]
      %v2468 = vld [vmem:[%s1542 + $0x112] sm:$0xff]
      %v2469 = vld [vmem:[%s1542 + $0x122] sm:$0xff]
      %v2470 = vld [vmem:[%s1542 + $0x12a] sm:$0xff]
      %v2471 = vld [vmem:[%s1542 + $0x13a] sm:$0xff]
      %v2472 = vld [vmem:[%s1542 + $0x142] sm:$0xff]
      %v2473 = vld [vmem:[%s1542 + $0x152] sm:$0xff]
      %v2474 = vld [vmem:[%s1542 + $0x15a] sm:$0xff]
      %v2475 = vld [vmem:[%s1542 + $0x16a] sm:$0xff]
      %v2476 = vld [vmem:[%s1542 + $0x172] sm:$0xff]
      %s2477 = scalar_lea.vmem %s1, 40
      %v2478 = vld [vmem:[%s2477] sm:$0xff]
      %v2480 = vsel %vm286, %v2445, 0
      %v2483 = vsel %vm286, %v2446, 0
      %v2486 = vsel %vm286, %v2447, 0
      %v2489 = vsel %vm286, %v2448, 0
      %v2492 = vsel %vm286, %v2449, 0
      %v2495 = vsel %vm286, %v2450, 0
      %v2498 = vsel %vm286, %v2451, 0
      %v2501 = vsel %vm286, %v2452, 0
      %v2504 = vsel %vm286, %v2453, 0
      %v2507 = vsel %vm286, %v2454, 0
      %v2510 = vsel %vm286, %v2455, 0
      %v2513 = vsel %vm286, %v2456, 0
      %v2516 = vsel %vm286, %v2457, 0
      %v2519 = vsel %vm286, %v2458, 0
      %v2522 = vsel %vm286, %v2459, 0
      %v2525 = vsel %vm286, %v2460, 0
      %v2528 = vsel %vm286, %v2461, 0
      %v2531 = vsel %vm286, %v2462, 0
      %v2534 = vsel %vm286, %v2463, 0
      %v2537 = vsel %vm286, %v2464, 0
      %v2540 = vsel %vm286, %v2465, 0
      %v2543 = vsel %vm286, %v2466, 0
      %v2546 = vsel %vm286, %v2467, 0
      %v2549 = vsel %vm286, %v2468, 0
      %v2552 = vsel %vm286, %v2469, 0
      %v2555 = vsel %vm286, %v2470, 0
      %v2558 = vsel %vm286, %v2471, 0
      %v2561 = vsel %vm286, %v2472, 0
      %v2564 = vsel %vm286, %v2473, 0
      %v2567 = vsel %vm286, %v2474, 0
      %v2570 = vsel %vm286, %v2475, 0
      %v2573 = vsel %vm286, %v2476, 0
      %2575 = vmatprep.subr.mxu0 0.0
      %2576 = vmatpush1.msra.mxu0 0.0
      %2577 = vmatprep.subr.mxu0 0.0
      %2578 = vmatpush1.msra.mxu0 0.0
      %2579 = vmatprep.subr.mxu0 0.0
      %2580 = vmatpush1.msra.mxu0 0.0
      %2581 = vmatprep.subr.mxu0 0.0
      %2582 = vmatpush1.msra.mxu0 0.0
      %2583 = vmatprep.subr.mxu0 0.0
      %2584 = vmatpush1.msra.mxu0 0.0
      %2585 = vmatprep.subr.mxu0 0.0
      %2586 = vmatpush1.msra.mxu0 0.0
      %2587 = vmatprep.subr.mxu0 0.0
      %2588 = vmatpush1.msra.mxu0 0.0
      %2589 = vmatprep.subr.mxu0 0.0
      %2590 = vmatpush1.msra.mxu0 0.0
      %2591 = vmatprep.subr.mxu0 0.0
      %2592 = vmatpush1.msra.mxu0 0.0
      %2593 = vmatprep.subr.mxu0 0.0
      %2594 = vmatpush1.msra.mxu0 0.0
      %2595 = vmatprep.subr.mxu0 0.0
      %2596 = vmatpush1.msra.mxu0 0.0
      %2597 = vmatprep.subr.mxu0 0.0
      %2598 = vmatpush1.msra.mxu0 0.0
      %2599 = vmatprep.subr.mxu0 0.0
      %2600 = vmatpush1.msra.mxu0 0.0
      %2601 = vmatprep.subr.mxu0 0.0
      %2602 = vmatpush1.msra.mxu0 0.0
      %2603 = vmatprep.subr.mxu0 0.0
      %2604 = vmatpush1.msra.mxu0 0.0
      %2605 = vmatprep.subr.mxu0 0.0
      %2606 = vmatpush1.msra.mxu0 %v2478
      %2607 = vmatprep.subr.mxu0 0.0
      %2608 = vmatpush2.msra.mxu0 0.0
      %2609 = vmatprep.subr.mxu0 0.0
      %2610 = vmatpush2.msra.mxu0 0.0
      %2611 = vmatprep.subr.mxu0 0.0
      %2612 = vmatpush2.msra.mxu0 0.0
      %2613 = vmatprep.subr.mxu0 0.0
      %2614 = vmatpush2.msra.mxu0 0.0
      %2615 = vmatprep.subr.mxu0 0.0
      %2616 = vmatpush2.msra.mxu0 0.0
      %2617 = vmatprep.subr.mxu0 0.0
      %2618 = vmatpush2.msra.mxu0 0.0
      %2619 = vmatprep.subr.mxu0 0.0
      %2620 = vmatpush2.msra.mxu0 0.0
      %2621 = vmatprep.subr.mxu0 0.0
      %2622 = vmatpush2.msra.mxu0 0.0
      %2623 = vmatprep.subr.mxu0 0.0
      %2624 = vmatpush2.msra.mxu0 0.0
      %2625 = vmatprep.subr.mxu0 0.0
      %2626 = vmatpush2.msra.mxu0 0.0
      %2627 = vmatprep.subr.mxu0 0.0
      %2628 = vmatpush2.msra.mxu0 0.0
      %2629 = vmatprep.subr.mxu0 0.0
      %2630 = vmatpush2.msra.mxu0 0.0
      %2631 = vmatprep.subr.mxu0 0.0
      %2632 = vmatpush2.msra.mxu0 0.0
      %2633 = vmatprep.subr.mxu0 0.0
      %2634 = vmatpush2.msra.mxu0 0.0
      %2635 = vmatprep.subr.mxu0 0.0
      %2636 = vmatpush2.msra.mxu0 0.0
      %2637 = vmatprep.subr.mxu0 0.0
      %2638 = vmatpush2.msra.mxu0 0.0
      %2639 = vmatprep.mubr.f32.mxu0 0.0
      %2640 = vmatmul.mubr.f32.gmra.mxu0 %v2480
      %v2641 = vpop.f32.mrf.mxu0
      %v2642 = vadd.f32 0.0, %v2641
      %v2643 = vpop.f32.mrf.mxu0
      %2644 = vmatprep.mubr.f32.mxu0 0.0
      %2645 = vmatmul.mubr.f32.gmra.mxu0 %v2483
      %v2646 = vpop.f32.mrf.mxu0
      %v2647 = vadd.f32 0.0, %v2646
      %v2648 = vpop.f32.mrf.mxu0
      %2649 = vmatprep.mubr.f32.mxu0 0.0
      %2650 = vmatmul.mubr.f32.gmra.mxu0 %v2486
      %v2651 = vpop.f32.mrf.mxu0
      %v2652 = vadd.f32 0.0, %v2651
      %v2653 = vpop.f32.mrf.mxu0
      %2654 = vmatprep.mubr.f32.mxu0 0.0
      %2655 = vmatmul.mubr.f32.gmra.mxu0 %v2489
      %v2656 = vpop.f32.mrf.mxu0
      %v2657 = vadd.f32 0.0, %v2656
      %v2658 = vpop.f32.mrf.mxu0
      %2659 = vmatprep.mubr.f32.mxu0 0.0
      %2660 = vmatmul.mubr.f32.gmra.mxu0 %v2492
      %v2661 = vpop.f32.mrf.mxu0
      %v2662 = vadd.f32 0.0, %v2661
      %v2663 = vpop.f32.mrf.mxu0
      %2664 = vmatprep.mubr.f32.mxu0 0.0
      %2665 = vmatmul.mubr.f32.gmra.mxu0 %v2495
      %v2666 = vpop.f32.mrf.mxu0
      %v2667 = vadd.f32 0.0, %v2666
      %v2668 = vpop.f32.mrf.mxu0
      %2669 = vmatprep.mubr.f32.mxu0 0.0
      %2670 = vmatmul.mubr.f32.gmra.mxu0 %v2498
      %v2671 = vpop.f32.mrf.mxu0
      %v2672 = vadd.f32 0.0, %v2671
      %v2673 = vpop.f32.mrf.mxu0
      %2674 = vmatprep.mubr.f32.mxu0 0.0
      %2675 = vmatmul.mubr.f32.gmra.mxu0 %v2501
      %v2676 = vpop.f32.mrf.mxu0
      %v2677 = vadd.f32 0.0, %v2676
      %v2678 = vpop.f32.mrf.mxu0
      %2679 = vmatprep.mubr.f32.mxu0 0.0
      %2680 = vmatmul.mubr.f32.gmra.mxu0 %v2504
      %v2681 = vpop.f32.mrf.mxu0
      %v2682 = vadd.f32 0.0, %v2681
      %v2683 = vpop.f32.mrf.mxu0
      %2684 = vmatprep.mubr.f32.mxu0 0.0
      %2685 = vmatmul.mubr.f32.gmra.mxu0 %v2507
      %v2686 = vpop.f32.mrf.mxu0
      %v2687 = vadd.f32 0.0, %v2686
      %v2688 = vpop.f32.mrf.mxu0
      %2689 = vmatprep.mubr.f32.mxu0 0.0
      %2690 = vmatmul.mubr.f32.gmra.mxu0 %v2510
      %v2691 = vpop.f32.mrf.mxu0
      %v2692 = vadd.f32 0.0, %v2691
      %v2693 = vpop.f32.mrf.mxu0
      %2694 = vmatprep.mubr.f32.mxu0 0.0
      %2695 = vmatmul.mubr.f32.gmra.mxu0 %v2513
      %v2696 = vpop.f32.mrf.mxu0
      %v2697 = vadd.f32 0.0, %v2696
      %v2698 = vpop.f32.mrf.mxu0
      %2699 = vmatprep.mubr.f32.mxu0 0.0
      %2700 = vmatmul.mubr.f32.gmra.mxu0 %v2516
      %v2701 = vpop.f32.mrf.mxu0
      %v2702 = vadd.f32 0.0, %v2701
      %v2703 = vpop.f32.mrf.mxu0
      %2704 = vmatprep.mubr.f32.mxu0 0.0
      %2705 = vmatmul.mubr.f32.gmra.mxu0 %v2519
      %v2706 = vpop.f32.mrf.mxu0
      %v2707 = vadd.f32 0.0, %v2706
      %v2708 = vpop.f32.mrf.mxu0
      %2709 = vmatprep.mubr.f32.mxu0 0.0
      %2710 = vmatmul.mubr.f32.gmra.mxu0 %v2522
      %v2711 = vpop.f32.mrf.mxu0
      %v2712 = vadd.f32 0.0, %v2711
      %v2713 = vpop.f32.mrf.mxu0
      %2714 = vmatprep.mubr.f32.mxu0 0.0
      %2715 = vmatmul.mubr.f32.gmra.mxu0 %v2525
      %v2716 = vpop.f32.mrf.mxu0
      %v2717 = vadd.f32 0.0, %v2716
      %v2718 = vpop.f32.mrf.mxu0
      %2719 = vmatprep.mubr.f32.mxu0 0.0
      %2720 = vmatmul.mubr.f32.gmra.mxu0 %v2528
      %v2721 = vpop.f32.mrf.mxu0
      %v2722 = vadd.f32 0.0, %v2721
      %v2723 = vpop.f32.mrf.mxu0
      %2724 = vmatprep.mubr.f32.mxu0 0.0
      %2725 = vmatmul.mubr.f32.gmra.mxu0 %v2531
      %v2726 = vpop.f32.mrf.mxu0
      %v2727 = vadd.f32 0.0, %v2726
      %v2728 = vpop.f32.mrf.mxu0
      %2729 = vmatprep.mubr.f32.mxu0 0.0
      %2730 = vmatmul.mubr.f32.gmra.mxu0 %v2534
      %v2731 = vpop.f32.mrf.mxu0
      %v2732 = vadd.f32 0.0, %v2731
      %v2733 = vpop.f32.mrf.mxu0
      %2734 = vmatprep.mubr.f32.mxu0 0.0
      %2735 = vmatmul.mubr.f32.gmra.mxu0 %v2537
      %v2736 = vpop.f32.mrf.mxu0
      %v2737 = vadd.f32 0.0, %v2736
      %v2738 = vpop.f32.mrf.mxu0
      %2739 = vmatprep.mubr.f32.mxu0 0.0
      %2740 = vmatmul.mubr.f32.gmra.mxu0 %v2540
      %v2741 = vpop.f32.mrf.mxu0
      %v2742 = vadd.f32 0.0, %v2741
      %v2743 = vpop.f32.mrf.mxu0
      %2744 = vmatprep.mubr.f32.mxu0 0.0
      %2745 = vmatmul.mubr.f32.gmra.mxu0 %v2543
      %v2746 = vpop.f32.mrf.mxu0
      %v2747 = vadd.f32 0.0, %v2746
      %v2748 = vpop.f32.mrf.mxu0
      %2749 = vmatprep.mubr.f32.mxu0 0.0
      %2750 = vmatmul.mubr.f32.gmra.mxu0 %v2546
      %v2751 = vpop.f32.mrf.mxu0
      %v2752 = vadd.f32 0.0, %v2751
      %v2753 = vpop.f32.mrf.mxu0
      %2754 = vmatprep.mubr.f32.mxu0 0.0
      %2755 = vmatmul.mubr.f32.gmra.mxu0 %v2549
      %v2756 = vpop.f32.mrf.mxu0
      %v2757 = vadd.f32 0.0, %v2756
      %v2758 = vpop.f32.mrf.mxu0
      %2759 = vmatprep.mubr.f32.mxu0 0.0
      %2760 = vmatmul.mubr.f32.gmra.mxu0 %v2552
      %v2761 = vpop.f32.mrf.mxu0
      %v2762 = vadd.f32 0.0, %v2761
      %v2763 = vpop.f32.mrf.mxu0
      %2764 = vmatprep.mubr.f32.mxu0 0.0
      %2765 = vmatmul.mubr.f32.gmra.mxu0 %v2555
      %v2766 = vpop.f32.mrf.mxu0
      %v2767 = vadd.f32 0.0, %v2766
      %v2768 = vpop.f32.mrf.mxu0
      %2769 = vmatprep.mubr.f32.mxu0 0.0
      %2770 = vmatmul.mubr.f32.gmra.mxu0 %v2558
      %v2771 = vpop.f32.mrf.mxu0
      %v2772 = vadd.f32 0.0, %v2771
      %v2773 = vpop.f32.mrf.mxu0
      %2774 = vmatprep.mubr.f32.mxu0 0.0
      %2775 = vmatmul.mubr.f32.gmra.mxu0 %v2561
      %v2776 = vpop.f32.mrf.mxu0
      %v2777 = vadd.f32 0.0, %v2776
      %v2778 = vpop.f32.mrf.mxu0
      %2779 = vmatprep.mubr.f32.mxu0 0.0
      %2780 = vmatmul.mubr.f32.gmra.mxu0 %v2564
      %v2781 = vpop.f32.mrf.mxu0
      %v2782 = vadd.f32 0.0, %v2781
      %v2783 = vpop.f32.mrf.mxu0
      %2784 = vmatprep.mubr.f32.mxu0 0.0
      %2785 = vmatmul.mubr.f32.gmra.mxu0 %v2567
      %v2786 = vpop.f32.mrf.mxu0
      %v2787 = vadd.f32 0.0, %v2786
      %v2788 = vpop.f32.mrf.mxu0
      %2789 = vmatprep.mubr.f32.mxu0 0.0
      %2790 = vmatmul.mubr.f32.gmra.mxu0 %v2570
      %v2791 = vpop.f32.mrf.mxu0
      %v2792 = vadd.f32 0.0, %v2791
      %v2793 = vpop.f32.mrf.mxu0
      %2794 = vmatprep.mubr.f32.mxu0 0.0
      %2795 = vmatmul.mubr.f32.gmra.mxu0 %v2573
      %v2796 = vpop.f32.mrf.mxu0
      %v2797 = vadd.f32 0.0, %v2796
      %v2798 = vpop.f32.mrf.mxu0
      %2799 = vdwg.mxu0
      %v2800 = vld [vmem:[#allocation2] sm:$0xff]
      %v2801 = vld [vmem:[#allocation2 + $0x8] sm:$0xff]
      %v2802 = vld [vmem:[#allocation2 + $0x10] sm:$0xff]
      %v2803 = vld [vmem:[#allocation2 + $0x18] sm:$0xff]
      %v2804 = vld [vmem:[#allocation2 + $0x20] sm:$0xff]
      %v2805 = vld [vmem:[#allocation2 + $0x28] sm:$0xff]
      %v2806 = vld [vmem:[#allocation2 + $0x30] sm:$0xff]
      %v2807 = vld [vmem:[#allocation2 + $0x38] sm:$0xff]
      %v2808 = vld [vmem:[#allocation2 + $0x40] sm:$0xff]
      %v2809 = vld [vmem:[#allocation2 + $0x48] sm:$0xff]
      %v2810 = vld [vmem:[#allocation2 + $0x50] sm:$0xff]
      %v2811 = vld [vmem:[#allocation2 + $0x58] sm:$0xff]
      %v2812 = vld [vmem:[#allocation2 + $0x60] sm:$0xff]
      %v2813 = vld [vmem:[#allocation2 + $0x68] sm:$0xff]
      %v2814 = vld [vmem:[#allocation2 + $0x70] sm:$0xff]
      %v2815 = vld [vmem:[#allocation2 + $0x78] sm:$0xff]
      %v2816 = vld [vmem:[#allocation2 + $0x80] sm:$0xff]
      %v2817 = vld [vmem:[#allocation2 + $0x88] sm:$0xff]
      %v2818 = vld [vmem:[#allocation2 + $0x90] sm:$0xff]
      %v2819 = vld [vmem:[#allocation2 + $0x98] sm:$0xff]
      %v2820 = vld [vmem:[#allocation2 + $0xa0] sm:$0xff]
      %v2821 = vld [vmem:[#allocation2 + $0xa8] sm:$0xff]
      %v2822 = vld [vmem:[#allocation2 + $0xb0] sm:$0xff]
      %v2823 = vld [vmem:[#allocation2 + $0xb8] sm:$0xff]
      %v2824 = vld [vmem:[#allocation2 + $0xc0] sm:$0xff]
      %v2825 = vld [vmem:[#allocation2 + $0xc8] sm:$0xff]
      %v2826 = vld [vmem:[#allocation2 + $0xd0] sm:$0xff]
      %v2827 = vld [vmem:[#allocation2 + $0xd8] sm:$0xff]
      %v2828 = vld [vmem:[#allocation2 + $0xe0] sm:$0xff]
      %v2829 = vld [vmem:[#allocation2 + $0xe8] sm:$0xff]
      %v2830 = vld [vmem:[#allocation2 + $0xf0] sm:$0xff]
      %v2831 = vld [vmem:[#allocation2 + $0xf8] sm:$0xff]
      %v2832 = vadd.f32 %v2800, %v2642
      %v2833 = vadd.f32 %v2801, %v2647
      %v2834 = vadd.f32 %v2802, %v2652
      %v2835 = vadd.f32 %v2803, %v2657
      %v2836 = vadd.f32 %v2804, %v2662
      %v2837 = vadd.f32 %v2805, %v2667
      %v2838 = vadd.f32 %v2806, %v2672
      %v2839 = vadd.f32 %v2807, %v2677
      %v2840 = vadd.f32 %v2808, %v2682
      %v2841 = vadd.f32 %v2809, %v2687
      %v2842 = vadd.f32 %v2810, %v2692
      %v2843 = vadd.f32 %v2811, %v2697
      %v2844 = vadd.f32 %v2812, %v2702
      %v2845 = vadd.f32 %v2813, %v2707
      %v2846 = vadd.f32 %v2814, %v2712
      %v2847 = vadd.f32 %v2815, %v2717
      %v2848 = vadd.f32 %v2816, %v2722
      %v2849 = vadd.f32 %v2817, %v2727
      %v2850 = vadd.f32 %v2818, %v2732
      %v2851 = vadd.f32 %v2819, %v2737
      %v2852 = vadd.f32 %v2820, %v2742
      %v2853 = vadd.f32 %v2821, %v2747
      %v2854 = vadd.f32 %v2822, %v2752
      %v2855 = vadd.f32 %v2823, %v2757
      %v2856 = vadd.f32 %v2824, %v2762
      %v2857 = vadd.f32 %v2825, %v2767
      %v2858 = vadd.f32 %v2826, %v2772
      %v2859 = vadd.f32 %v2827, %v2777
      %v2860 = vadd.f32 %v2828, %v2782
      %v2861 = vadd.f32 %v2829, %v2787
      %v2862 = vadd.f32 %v2830, %v2792
      %v2863 = vadd.f32 %v2831, %v2797
      %2864 = vst [vmem:[#allocation2] sm:$0xff] %v2832
      %2865 = vst [vmem:[#allocation2 + $0x8] sm:$0xff] %v2833
      %2866 = vst [vmem:[#allocation2 + $0x10] sm:$0xff] %v2834
      %2867 = vst [vmem:[#allocation2 + $0x18] sm:$0xff] %v2835
      %2868 = vst [vmem:[#allocation2 + $0x20] sm:$0xff] %v2836
      %2869 = vst [vmem:[#allocation2 + $0x28] sm:$0xff] %v2837
      %2870 = vst [vmem:[#allocation2 + $0x30] sm:$0xff] %v2838
      %2871 = vst [vmem:[#allocation2 + $0x38] sm:$0xff] %v2839
      %2872 = vst [vmem:[#allocation2 + $0x40] sm:$0xff] %v2840
      %2873 = vst [vmem:[#allocation2 + $0x48] sm:$0xff] %v2841
      %2874 = vst [vmem:[#allocation2 + $0x50] sm:$0xff] %v2842
      %2875 = vst [vmem:[#allocation2 + $0x58] sm:$0xff] %v2843
      %2876 = vst [vmem:[#allocation2 + $0x60] sm:$0xff] %v2844
      %2877 = vst [vmem:[#allocation2 + $0x68] sm:$0xff] %v2845
      %2878 = vst [vmem:[#allocation2 + $0x70] sm:$0xff] %v2846
      %2879 = vst [vmem:[#allocation2 + $0x78] sm:$0xff] %v2847
      %2880 = vst [vmem:[#allocation2 + $0x80] sm:$0xff] %v2848
      %2881 = vst [vmem:[#allocation2 + $0x88] sm:$0xff] %v2849
      %2882 = vst [vmem:[#allocation2 + $0x90] sm:$0xff] %v2850
      %2883 = vst [vmem:[#allocation2 + $0x98] sm:$0xff] %v2851
      %2884 = vst [vmem:[#allocation2 + $0xa0] sm:$0xff] %v2852
      %2885 = vst [vmem:[#allocation2 + $0xa8] sm:$0xff] %v2853
      %2886 = vst [vmem:[#allocation2 + $0xb0] sm:$0xff] %v2854
      %2887 = vst [vmem:[#allocation2 + $0xb8] sm:$0xff] %v2855
      %2888 = vst [vmem:[#allocation2 + $0xc0] sm:$0xff] %v2856
      %2889 = vst [vmem:[#allocation2 + $0xc8] sm:$0xff] %v2857
      %2890 = vst [vmem:[#allocation2 + $0xd0] sm:$0xff] %v2858
      %2891 = vst [vmem:[#allocation2 + $0xd8] sm:$0xff] %v2859
      %2892 = vst [vmem:[#allocation2 + $0xe0] sm:$0xff] %v2860
      %2893 = vst [vmem:[#allocation2 + $0xe8] sm:$0xff] %v2861
      %2894 = vst [vmem:[#allocation2 + $0xf0] sm:$0xff] %v2862
      %2895 = vst [vmem:[#allocation2 + $0xf8] sm:$0xff] %v2863
      %s2896 = scalar_lea.vmem %s246, 48
      %v2897 = vld [vmem:[%s2896] sm:$0xff]
      %v2898 = vld [vmem:[%s2896 + $0x8] sm:$0xff]
      %v2899 = vld [vmem:[%s2896 + $0x18] sm:$0xff]
      %v2900 = vld [vmem:[%s2896 + $0x20] sm:$0xff]
      %v2901 = vld [vmem:[%s2896 + $0x30] sm:$0xff]
      %v2902 = vld [vmem:[%s2896 + $0x38] sm:$0xff]
      %v2903 = vld [vmem:[%s2896 + $0x48] sm:$0xff]
      %v2904 = vld [vmem:[%s2896 + $0x50] sm:$0xff]
      %v2905 = vld [vmem:[%s2896 + $0x60] sm:$0xff]
      %v2906 = vld [vmem:[%s2896 + $0x68] sm:$0xff]
      %v2907 = vld [vmem:[%s2896 + $0x78] sm:$0xff]
      %v2908 = vld [vmem:[%s2896 + $0x80] sm:$0xff]
      %v2909 = vld [vmem:[%s2896 + $0x90] sm:$0xff]
      %v2910 = vld [vmem:[%s2896 + $0x98] sm:$0xff]
      %v2911 = vld [vmem:[%s2896 + $0xa8] sm:$0xff]
      %v2912 = vld [vmem:[%s2896 + $0xb0] sm:$0xff]
      %v2913 = vld [vmem:[%s2896 + $0xc0] sm:$0xff]
      %v2914 = vld [vmem:[%s2896 + $0xc8] sm:$0xff]
      %v2915 = vld [vmem:[%s2896 + $0xd8] sm:$0xff]
      %v2916 = vld [vmem:[%s2896 + $0xe0] sm:$0xff]
      %v2917 = vld [vmem:[%s2896 + $0xf0] sm:$0xff]
      %v2918 = vld [vmem:[%s2896 + $0xf8] sm:$0xff]
      %v2919 = vld [vmem:[%s2896 + $0x108] sm:$0xff]
      %v2920 = vld [vmem:[%s2896 + $0x110] sm:$0xff]
      %v2921 = vld [vmem:[%s2896 + $0x120] sm:$0xff]
      %v2922 = vld [vmem:[%s2896 + $0x128] sm:$0xff]
      %v2923 = vld [vmem:[%s2896 + $0x138] sm:$0xff]
      %v2924 = vld [vmem:[%s2896 + $0x140] sm:$0xff]
      %v2925 = vld [vmem:[%s2896 + $0x150] sm:$0xff]
      %v2926 = vld [vmem:[%s2896 + $0x158] sm:$0xff]
      %v2927 = vld [vmem:[%s2896 + $0x168] sm:$0xff]
      %v2928 = vld [vmem:[%s2896 + $0x170] sm:$0xff]
      %s2929 = scalar_lea.vmem %s1, 48
      %v2930 = vld [vmem:[%s2929] sm:$0xff]
      %v2932 = vsel %vm286, %v2897, 0
      %v2935 = vsel %vm286, %v2898, 0
      %v2938 = vsel %vm286, %v2899, 0
      %v2941 = vsel %vm286, %v2900, 0
      %v2944 = vsel %vm286, %v2901, 0
      %v2947 = vsel %vm286, %v2902, 0
      %v2950 = vsel %vm286, %v2903, 0
      %v2953 = vsel %vm286, %v2904, 0
      %v2956 = vsel %vm286, %v2905, 0
      %v2959 = vsel %vm286, %v2906, 0
      %v2962 = vsel %vm286, %v2907, 0
      %v2965 = vsel %vm286, %v2908, 0
      %v2968 = vsel %vm286, %v2909, 0
      %v2971 = vsel %vm286, %v2910, 0
      %v2974 = vsel %vm286, %v2911, 0
      %v2977 = vsel %vm286, %v2912, 0
      %v2980 = vsel %vm286, %v2913, 0
      %v2983 = vsel %vm286, %v2914, 0
      %v2986 = vsel %vm286, %v2915, 0
      %v2989 = vsel %vm286, %v2916, 0
      %v2992 = vsel %vm286, %v2917, 0
      %v2995 = vsel %vm286, %v2918, 0
      %v2998 = vsel %vm286, %v2919, 0
      %v3001 = vsel %vm286, %v2920, 0
      %v3004 = vsel %vm286, %v2921, 0
      %v3007 = vsel %vm286, %v2922, 0
      %v3010 = vsel %vm286, %v2923, 0
      %v3013 = vsel %vm286, %v2924, 0
      %v3016 = vsel %vm286, %v2925, 0
      %v3019 = vsel %vm286, %v2926, 0
      %v3022 = vsel %vm286, %v2927, 0
      %v3025 = vsel %vm286, %v2928, 0
      %3027 = vmatprep.subr.mxu0 0.0
      %3028 = vmatpush1.msra.mxu0 0.0
      %3029 = vmatprep.subr.mxu0 0.0
      %3030 = vmatpush1.msra.mxu0 0.0
      %3031 = vmatprep.subr.mxu0 0.0
      %3032 = vmatpush1.msra.mxu0 0.0
      %3033 = vmatprep.subr.mxu0 0.0
      %3034 = vmatpush1.msra.mxu0 0.0
      %3035 = vmatprep.subr.mxu0 0.0
      %3036 = vmatpush1.msra.mxu0 0.0
      %3037 = vmatprep.subr.mxu0 0.0
      %3038 = vmatpush1.msra.mxu0 0.0
      %3039 = vmatprep.subr.mxu0 0.0
      %3040 = vmatpush1.msra.mxu0 0.0
      %3041 = vmatprep.subr.mxu0 0.0
      %3042 = vmatpush1.msra.mxu0 0.0
      %3043 = vmatprep.subr.mxu0 0.0
      %3044 = vmatpush1.msra.mxu0 0.0
      %3045 = vmatprep.subr.mxu0 0.0
      %3046 = vmatpush1.msra.mxu0 0.0
      %3047 = vmatprep.subr.mxu0 0.0
      %3048 = vmatpush1.msra.mxu0 0.0
      %3049 = vmatprep.subr.mxu0 0.0
      %3050 = vmatpush1.msra.mxu0 0.0
      %3051 = vmatprep.subr.mxu0 0.0
      %3052 = vmatpush1.msra.mxu0 0.0
      %3053 = vmatprep.subr.mxu0 0.0
      %3054 = vmatpush1.msra.mxu0 0.0
      %3055 = vmatprep.subr.mxu0 0.0
      %3056 = vmatpush1.msra.mxu0 0.0
      %3057 = vmatprep.subr.mxu0 0.0
      %3058 = vmatpush1.msra.mxu0 %v2930
      %3059 = vmatprep.subr.mxu0 0.0
      %3060 = vmatpush2.msra.mxu0 0.0
      %3061 = vmatprep.subr.mxu0 0.0
      %3062 = vmatpush2.msra.mxu0 0.0
      %3063 = vmatprep.subr.mxu0 0.0
      %3064 = vmatpush2.msra.mxu0 0.0
      %3065 = vmatprep.subr.mxu0 0.0
      %3066 = vmatpush2.msra.mxu0 0.0
      %3067 = vmatprep.subr.mxu0 0.0
      %3068 = vmatpush2.msra.mxu0 0.0
      %3069 = vmatprep.subr.mxu0 0.0
      %3070 = vmatpush2.msra.mxu0 0.0
      %3071 = vmatprep.subr.mxu0 0.0
      %3072 = vmatpush2.msra.mxu0 0.0
      %3073 = vmatprep.subr.mxu0 0.0
      %3074 = vmatpush2.msra.mxu0 0.0
      %3075 = vmatprep.subr.mxu0 0.0
      %3076 = vmatpush2.msra.mxu0 0.0
      %3077 = vmatprep.subr.mxu0 0.0
      %3078 = vmatpush2.msra.mxu0 0.0
      %3079 = vmatprep.subr.mxu0 0.0
      %3080 = vmatpush2.msra.mxu0 0.0
      %3081 = vmatprep.subr.mxu0 0.0
      %3082 = vmatpush2.msra.mxu0 0.0
      %3083 = vmatprep.subr.mxu0 0.0
      %3084 = vmatpush2.msra.mxu0 0.0
      %3085 = vmatprep.subr.mxu0 0.0
      %3086 = vmatpush2.msra.mxu0 0.0
      %3087 = vmatprep.subr.mxu0 0.0
      %3088 = vmatpush2.msra.mxu0 0.0
      %3089 = vmatprep.subr.mxu0 0.0
      %3090 = vmatpush2.msra.mxu0 0.0
      %3091 = vmatprep.mubr.f32.mxu0 0.0
      %3092 = vmatmul.mubr.f32.gmra.mxu0 %v2932
      %v3093 = vpop.f32.mrf.mxu0
      %v3094 = vadd.f32 0.0, %v3093
      %v3095 = vpop.f32.mrf.mxu0
      %3096 = vmatprep.mubr.f32.mxu0 0.0
      %3097 = vmatmul.mubr.f32.gmra.mxu0 %v2935
      %v3098 = vpop.f32.mrf.mxu0
      %v3099 = vadd.f32 0.0, %v3098
      %v3100 = vpop.f32.mrf.mxu0
      %3101 = vmatprep.mubr.f32.mxu0 0.0
      %3102 = vmatmul.mubr.f32.gmra.mxu0 %v2938
      %v3103 = vpop.f32.mrf.mxu0
      %v3104 = vadd.f32 0.0, %v3103
      %v3105 = vpop.f32.mrf.mxu0
      %3106 = vmatprep.mubr.f32.mxu0 0.0
      %3107 = vmatmul.mubr.f32.gmra.mxu0 %v2941
      %v3108 = vpop.f32.mrf.mxu0
      %v3109 = vadd.f32 0.0, %v3108
      %v3110 = vpop.f32.mrf.mxu0
      %3111 = vmatprep.mubr.f32.mxu0 0.0
      %3112 = vmatmul.mubr.f32.gmra.mxu0 %v2944
      %v3113 = vpop.f32.mrf.mxu0
      %v3114 = vadd.f32 0.0, %v3113
      %v3115 = vpop.f32.mrf.mxu0
      %3116 = vmatprep.mubr.f32.mxu0 0.0
      %3117 = vmatmul.mubr.f32.gmra.mxu0 %v2947
      %v3118 = vpop.f32.mrf.mxu0
      %v3119 = vadd.f32 0.0, %v3118
      %v3120 = vpop.f32.mrf.mxu0
      %3121 = vmatprep.mubr.f32.mxu0 0.0
      %3122 = vmatmul.mubr.f32.gmra.mxu0 %v2950
      %v3123 = vpop.f32.mrf.mxu0
      %v3124 = vadd.f32 0.0, %v3123
      %v3125 = vpop.f32.mrf.mxu0
      %3126 = vmatprep.mubr.f32.mxu0 0.0
      %3127 = vmatmul.mubr.f32.gmra.mxu0 %v2953
      %v3128 = vpop.f32.mrf.mxu0
      %v3129 = vadd.f32 0.0, %v3128
      %v3130 = vpop.f32.mrf.mxu0
      %3131 = vmatprep.mubr.f32.mxu0 0.0
      %3132 = vmatmul.mubr.f32.gmra.mxu0 %v2956
      %v3133 = vpop.f32.mrf.mxu0
      %v3134 = vadd.f32 0.0, %v3133
      %v3135 = vpop.f32.mrf.mxu0
      %3136 = vmatprep.mubr.f32.mxu0 0.0
      %3137 = vmatmul.mubr.f32.gmra.mxu0 %v2959
      %v3138 = vpop.f32.mrf.mxu0
      %v3139 = vadd.f32 0.0, %v3138
      %v3140 = vpop.f32.mrf.mxu0
      %3141 = vmatprep.mubr.f32.mxu0 0.0
      %3142 = vmatmul.mubr.f32.gmra.mxu0 %v2962
      %v3143 = vpop.f32.mrf.mxu0
      %v3144 = vadd.f32 0.0, %v3143
      %v3145 = vpop.f32.mrf.mxu0
      %3146 = vmatprep.mubr.f32.mxu0 0.0
      %3147 = vmatmul.mubr.f32.gmra.mxu0 %v2965
      %v3148 = vpop.f32.mrf.mxu0
      %v3149 = vadd.f32 0.0, %v3148
      %v3150 = vpop.f32.mrf.mxu0
      %3151 = vmatprep.mubr.f32.mxu0 0.0
      %3152 = vmatmul.mubr.f32.gmra.mxu0 %v2968
      %v3153 = vpop.f32.mrf.mxu0
      %v3154 = vadd.f32 0.0, %v3153
      %v3155 = vpop.f32.mrf.mxu0
      %3156 = vmatprep.mubr.f32.mxu0 0.0
      %3157 = vmatmul.mubr.f32.gmra.mxu0 %v2971
      %v3158 = vpop.f32.mrf.mxu0
      %v3159 = vadd.f32 0.0, %v3158
      %v3160 = vpop.f32.mrf.mxu0
      %3161 = vmatprep.mubr.f32.mxu0 0.0
      %3162 = vmatmul.mubr.f32.gmra.mxu0 %v2974
      %v3163 = vpop.f32.mrf.mxu0
      %v3164 = vadd.f32 0.0, %v3163
      %v3165 = vpop.f32.mrf.mxu0
      %3166 = vmatprep.mubr.f32.mxu0 0.0
      %3167 = vmatmul.mubr.f32.gmra.mxu0 %v2977
      %v3168 = vpop.f32.mrf.mxu0
      %v3169 = vadd.f32 0.0, %v3168
      %v3170 = vpop.f32.mrf.mxu0
      %3171 = vmatprep.mubr.f32.mxu0 0.0
      %3172 = vmatmul.mubr.f32.gmra.mxu0 %v2980
      %v3173 = vpop.f32.mrf.mxu0
      %v3174 = vadd.f32 0.0, %v3173
      %v3175 = vpop.f32.mrf.mxu0
      %3176 = vmatprep.mubr.f32.mxu0 0.0
      %3177 = vmatmul.mubr.f32.gmra.mxu0 %v2983
      %v3178 = vpop.f32.mrf.mxu0
      %v3179 = vadd.f32 0.0, %v3178
      %v3180 = vpop.f32.mrf.mxu0
      %3181 = vmatprep.mubr.f32.mxu0 0.0
      %3182 = vmatmul.mubr.f32.gmra.mxu0 %v2986
      %v3183 = vpop.f32.mrf.mxu0
      %v3184 = vadd.f32 0.0, %v3183
      %v3185 = vpop.f32.mrf.mxu0
      %3186 = vmatprep.mubr.f32.mxu0 0.0
      %3187 = vmatmul.mubr.f32.gmra.mxu0 %v2989
      %v3188 = vpop.f32.mrf.mxu0
      %v3189 = vadd.f32 0.0, %v3188
      %v3190 = vpop.f32.mrf.mxu0
      %3191 = vmatprep.mubr.f32.mxu0 0.0
      %3192 = vmatmul.mubr.f32.gmra.mxu0 %v2992
      %v3193 = vpop.f32.mrf.mxu0
      %v3194 = vadd.f32 0.0, %v3193
      %v3195 = vpop.f32.mrf.mxu0
      %3196 = vmatprep.mubr.f32.mxu0 0.0
      %3197 = vmatmul.mubr.f32.gmra.mxu0 %v2995
      %v3198 = vpop.f32.mrf.mxu0
      %v3199 = vadd.f32 0.0, %v3198
      %v3200 = vpop.f32.mrf.mxu0
      %3201 = vmatprep.mubr.f32.mxu0 0.0
      %3202 = vmatmul.mubr.f32.gmra.mxu0 %v2998
      %v3203 = vpop.f32.mrf.mxu0
      %v3204 = vadd.f32 0.0, %v3203
      %v3205 = vpop.f32.mrf.mxu0
      %3206 = vmatprep.mubr.f32.mxu0 0.0
      %3207 = vmatmul.mubr.f32.gmra.mxu0 %v3001
      %v3208 = vpop.f32.mrf.mxu0
      %v3209 = vadd.f32 0.0, %v3208
      %v3210 = vpop.f32.mrf.mxu0
      %3211 = vmatprep.mubr.f32.mxu0 0.0
      %3212 = vmatmul.mubr.f32.gmra.mxu0 %v3004
      %v3213 = vpop.f32.mrf.mxu0
      %v3214 = vadd.f32 0.0, %v3213
      %v3215 = vpop.f32.mrf.mxu0
      %3216 = vmatprep.mubr.f32.mxu0 0.0
      %3217 = vmatmul.mubr.f32.gmra.mxu0 %v3007
      %v3218 = vpop.f32.mrf.mxu0
      %v3219 = vadd.f32 0.0, %v3218
      %v3220 = vpop.f32.mrf.mxu0
      %3221 = vmatprep.mubr.f32.mxu0 0.0
      %3222 = vmatmul.mubr.f32.gmra.mxu0 %v3010
      %v3223 = vpop.f32.mrf.mxu0
      %v3224 = vadd.f32 0.0, %v3223
      %v3225 = vpop.f32.mrf.mxu0
      %3226 = vmatprep.mubr.f32.mxu0 0.0
      %3227 = vmatmul.mubr.f32.gmra.mxu0 %v3013
      %v3228 = vpop.f32.mrf.mxu0
      %v3229 = vadd.f32 0.0, %v3228
      %v3230 = vpop.f32.mrf.mxu0
      %3231 = vmatprep.mubr.f32.mxu0 0.0
      %3232 = vmatmul.mubr.f32.gmra.mxu0 %v3016
      %v3233 = vpop.f32.mrf.mxu0
      %v3234 = vadd.f32 0.0, %v3233
      %v3235 = vpop.f32.mrf.mxu0
      %3236 = vmatprep.mubr.f32.mxu0 0.0
      %3237 = vmatmul.mubr.f32.gmra.mxu0 %v3019
      %v3238 = vpop.f32.mrf.mxu0
      %v3239 = vadd.f32 0.0, %v3238
      %v3240 = vpop.f32.mrf.mxu0
      %3241 = vmatprep.mubr.f32.mxu0 0.0
      %3242 = vmatmul.mubr.f32.gmra.mxu0 %v3022
      %v3243 = vpop.f32.mrf.mxu0
      %v3244 = vadd.f32 0.0, %v3243
      %v3245 = vpop.f32.mrf.mxu0
      %3246 = vmatprep.mubr.f32.mxu0 0.0
      %3247 = vmatmul.mubr.f32.gmra.mxu0 %v3025
      %v3248 = vpop.f32.mrf.mxu0
      %v3249 = vadd.f32 0.0, %v3248
      %v3250 = vpop.f32.mrf.mxu0
      %3251 = vdwg.mxu0
      %v3252 = vld [vmem:[#allocation2] sm:$0xff]
      %v3253 = vld [vmem:[#allocation2 + $0x8] sm:$0xff]
      %v3254 = vld [vmem:[#allocation2 + $0x10] sm:$0xff]
      %v3255 = vld [vmem:[#allocation2 + $0x18] sm:$0xff]
      %v3256 = vld [vmem:[#allocation2 + $0x20] sm:$0xff]
      %v3257 = vld [vmem:[#allocation2 + $0x28] sm:$0xff]
      %v3258 = vld [vmem:[#allocation2 + $0x30] sm:$0xff]
      %v3259 = vld [vmem:[#allocation2 + $0x38] sm:$0xff]
      %v3260 = vld [vmem:[#allocation2 + $0x40] sm:$0xff]
      %v3261 = vld [vmem:[#allocation2 + $0x48] sm:$0xff]
      %v3262 = vld [vmem:[#allocation2 + $0x50] sm:$0xff]
      %v3263 = vld [vmem:[#allocation2 + $0x58] sm:$0xff]
      %v3264 = vld [vmem:[#allocation2 + $0x60] sm:$0xff]
      %v3265 = vld [vmem:[#allocation2 + $0x68] sm:$0xff]
      %v3266 = vld [vmem:[#allocation2 + $0x70] sm:$0xff]
      %v3267 = vld [vmem:[#allocation2 + $0x78] sm:$0xff]
      %v3268 = vld [vmem:[#allocation2 + $0x80] sm:$0xff]
      %v3269 = vld [vmem:[#allocation2 + $0x88] sm:$0xff]
      %v3270 = vld [vmem:[#allocation2 + $0x90] sm:$0xff]
      %v3271 = vld [vmem:[#allocation2 + $0x98] sm:$0xff]
      %v3272 = vld [vmem:[#allocation2 + $0xa0] sm:$0xff]
      %v3273 = vld [vmem:[#allocation2 + $0xa8] sm:$0xff]
      %v3274 = vld [vmem:[#allocation2 + $0xb0] sm:$0xff]
      %v3275 = vld [vmem:[#allocation2 + $0xb8] sm:$0xff]
      %v3276 = vld [vmem:[#allocation2 + $0xc0] sm:$0xff]
      %v3277 = vld [vmem:[#allocation2 + $0xc8] sm:$0xff]
      %v3278 = vld [vmem:[#allocation2 + $0xd0] sm:$0xff]
      %v3279 = vld [vmem:[#allocation2 + $0xd8] sm:$0xff]
      %v3280 = vld [vmem:[#allocation2 + $0xe0] sm:$0xff]
      %v3281 = vld [vmem:[#allocation2 + $0xe8] sm:$0xff]
      %v3282 = vld [vmem:[#allocation2 + $0xf0] sm:$0xff]
      %v3283 = vld [vmem:[#allocation2 + $0xf8] sm:$0xff]
      %v3284 = vadd.f32 %v3252, %v3094
      %v3285 = vadd.f32 %v3253, %v3099
      %v3286 = vadd.f32 %v3254, %v3104
      %v3287 = vadd.f32 %v3255, %v3109
      %v3288 = vadd.f32 %v3256, %v3114
      %v3289 = vadd.f32 %v3257, %v3119
      %v3290 = vadd.f32 %v3258, %v3124
      %v3291 = vadd.f32 %v3259, %v3129
      %v3292 = vadd.f32 %v3260, %v3134
      %v3293 = vadd.f32 %v3261, %v3139
      %v3294 = vadd.f32 %v3262, %v3144
      %v3295 = vadd.f32 %v3263, %v3149
      %v3296 = vadd.f32 %v3264, %v3154
      %v3297 = vadd.f32 %v3265, %v3159
      %v3298 = vadd.f32 %v3266, %v3164
      %v3299 = vadd.f32 %v3267, %v3169
      %v3300 = vadd.f32 %v3268, %v3174
      %v3301 = vadd.f32 %v3269, %v3179
      %v3302 = vadd.f32 %v3270, %v3184
      %v3303 = vadd.f32 %v3271, %v3189
      %v3304 = vadd.f32 %v3272, %v3194
      %v3305 = vadd.f32 %v3273, %v3199
      %v3306 = vadd.f32 %v3274, %v3204
      %v3307 = vadd.f32 %v3275, %v3209
      %v3308 = vadd.f32 %v3276, %v3214
      %v3309 = vadd.f32 %v3277, %v3219
      %v3310 = vadd.f32 %v3278, %v3224
      %v3311 = vadd.f32 %v3279, %v3229
      %v3312 = vadd.f32 %v3280, %v3234
      %v3313 = vadd.f32 %v3281, %v3239
      %v3314 = vadd.f32 %v3282, %v3244
      %v3315 = vadd.f32 %v3283, %v3249
      %3316 = vst [vmem:[#allocation2] sm:$0xff] %v3284
      %3317 = vst [vmem:[#allocation2 + $0x8] sm:$0xff] %v3285
      %3318 = vst [vmem:[#allocation2 + $0x10] sm:$0xff] %v3286
      %3319 = vst [vmem:[#allocation2 + $0x18] sm:$0xff] %v3287
      %3320 = vst [vmem:[#allocation2 + $0x20] sm:$0xff] %v3288
      %3321 = vst [vmem:[#allocation2 + $0x28] sm:$0xff] %v3289
      %3322 = vst [vmem:[#allocation2 + $0x30] sm:$0xff] %v3290
      %3323 = vst [vmem:[#allocation2 + $0x38] sm:$0xff] %v3291
      %3324 = vst [vmem:[#allocation2 + $0x40] sm:$0xff] %v3292
      %3325 = vst [vmem:[#allocation2 + $0x48] sm:$0xff] %v3293
      %3326 = vst [vmem:[#allocation2 + $0x50] sm:$0xff] %v3294
      %3327 = vst [vmem:[#allocation2 + $0x58] sm:$0xff] %v3295
      %3328 = vst [vmem:[#allocation2 + $0x60] sm:$0xff] %v3296
      %3329 = vst [vmem:[#allocation2 + $0x68] sm:$0xff] %v3297
      %3330 = vst [vmem:[#allocation2 + $0x70] sm:$0xff] %v3298
      %3331 = vst [vmem:[#allocation2 + $0x78] sm:$0xff] %v3299
      %3332 = vst [vmem:[#allocation2 + $0x80] sm:$0xff] %v3300
      %3333 = vst [vmem:[#allocation2 + $0x88] sm:$0xff] %v3301
      %3334 = vst [vmem:[#allocation2 + $0x90] sm:$0xff] %v3302
      %3335 = vst [vmem:[#allocation2 + $0x98] sm:$0xff] %v3303
      %3336 = vst [vmem:[#allocation2 + $0xa0] sm:$0xff] %v3304
      %3337 = vst [vmem:[#allocation2 + $0xa8] sm:$0xff] %v3305
      %3338 = vst [vmem:[#allocation2 + $0xb0] sm:$0xff] %v3306
      %3339 = vst [vmem:[#allocation2 + $0xb8] sm:$0xff] %v3307
      %3340 = vst [vmem:[#allocation2 + $0xc0] sm:$0xff] %v3308
      %3341 = vst [vmem:[#allocation2 + $0xc8] sm:$0xff] %v3309
      %3342 = vst [vmem:[#allocation2 + $0xd0] sm:$0xff] %v3310
      %3343 = vst [vmem:[#allocation2 + $0xd8] sm:$0xff] %v3311
      %3344 = vst [vmem:[#allocation2 + $0xe0] sm:$0xff] %v3312
      %3345 = vst [vmem:[#allocation2 + $0xe8] sm:$0xff] %v3313
      %3346 = vst [vmem:[#allocation2 + $0xf0] sm:$0xff] %v3314
      %3347 = vst [vmem:[#allocation2 + $0xf8] sm:$0xff] %v3315
      %v3348 = vld [vmem:[%s2896 + $0x1] sm:$0xff]
      %v3349 = vld [vmem:[%s2896 + $0x9] sm:$0xff]
      %v3350 = vld [vmem:[%s2896 + $0x19] sm:$0xff]
      %v3351 = vld [vmem:[%s2896 + $0x21] sm:$0xff]
      %v3352 = vld [vmem:[%s2896 + $0x31] sm:$0xff]
      %v3353 = vld [vmem:[%s2896 + $0x39] sm:$0xff]
      %v3354 = vld [vmem:[%s2896 + $0x49] sm:$0xff]
      %v3355 = vld [vmem:[%s2896 + $0x51] sm:$0xff]
      %v3356 = vld [vmem:[%s2896 + $0x61] sm:$0xff]
      %v3357 = vld [vmem:[%s2896 + $0x69] sm:$0xff]
      %v3358 = vld [vmem:[%s2896 + $0x79] sm:$0xff]
      %v3359 = vld [vmem:[%s2896 + $0x81] sm:$0xff]
      %v3360 = vld [vmem:[%s2896 + $0x91] sm:$0xff]
      %v3361 = vld [vmem:[%s2896 + $0x99] sm:$0xff]
      %v3362 = vld [vmem:[%s2896 + $0xa9] sm:$0xff]
      %v3363 = vld [vmem:[%s2896 + $0xb1] sm:$0xff]
      %v3364 = vld [vmem:[%s2896 + $0xc1] sm:$0xff]
      %v3365 = vld [vmem:[%s2896 + $0xc9] sm:$0xff]
      %v3366 = vld [vmem:[%s2896 + $0xd9] sm:$0xff]
      %v3367 = vld [vmem:[%s2896 + $0xe1] sm:$0xff]
      %v3368 = vld [vmem:[%s2896 + $0xf1] sm:$0xff]
      %v3369 = vld [vmem:[%s2896 + $0xf9] sm:$0xff]
      %v3370 = vld [vmem:[%s2896 + $0x109] sm:$0xff]
      %v3371 = vld [vmem:[%s2896 + $0x111] sm:$0xff]
      %v3372 = vld [vmem:[%s2896 + $0x121] sm:$0xff]
      %v3373 = vld [vmem:[%s2896 + $0x129] sm:$0xff]
      %v3374 = vld [vmem:[%s2896 + $0x139] sm:$0xff]
      %v3375 = vld [vmem:[%s2896 + $0x141] sm:$0xff]
      %v3376 = vld [vmem:[%s2896 + $0x151] sm:$0xff]
      %v3377 = vld [vmem:[%s2896 + $0x159] sm:$0xff]
      %v3378 = vld [vmem:[%s2896 + $0x169] sm:$0xff]
      %v3379 = vld [vmem:[%s2896 + $0x171] sm:$0xff]
      %s3380 = scalar_lea.vmem %s1, 56
      %v3381 = vld [vmem:[%s3380] sm:$0xff]
      %v3383 = vsel %vm286, %v3348, 0
      %v3386 = vsel %vm286, %v3349, 0
      %v3389 = vsel %vm286, %v3350, 0
      %v3392 = vsel %vm286, %v3351, 0
      %v3395 = vsel %vm286, %v3352, 0
      %v3398 = vsel %vm286, %v3353, 0
      %v3401 = vsel %vm286, %v3354, 0
      %v3404 = vsel %vm286, %v3355, 0
      %v3407 = vsel %vm286, %v3356, 0
      %v3410 = vsel %vm286, %v3357, 0
      %v3413 = vsel %vm286, %v3358, 0
      %v3416 = vsel %vm286, %v3359, 0
      %v3419 = vsel %vm286, %v3360, 0
      %v3422 = vsel %vm286, %v3361, 0
      %v3425 = vsel %vm286, %v3362, 0
      %v3428 = vsel %vm286, %v3363, 0
      %v3431 = vsel %vm286, %v3364, 0
      %v3434 = vsel %vm286, %v3365, 0
      %v3437 = vsel %vm286, %v3366, 0
      %v3440 = vsel %vm286, %v3367, 0
      %v3443 = vsel %vm286, %v3368, 0
      %v3446 = vsel %vm286, %v3369, 0
      %v3449 = vsel %vm286, %v3370, 0
      %v3452 = vsel %vm286, %v3371, 0
      %v3455 = vsel %vm286, %v3372, 0
      %v3458 = vsel %vm286, %v3373, 0
      %v3461 = vsel %vm286, %v3374, 0
      %v3464 = vsel %vm286, %v3375, 0
      %v3467 = vsel %vm286, %v3376, 0
      %v3470 = vsel %vm286, %v3377, 0
      %v3473 = vsel %vm286, %v3378, 0
      %v3476 = vsel %vm286, %v3379, 0
      %3478 = vmatprep.subr.mxu0 0.0
      %3479 = vmatpush1.msra.mxu0 0.0
      %3480 = vmatprep.subr.mxu0 0.0
      %3481 = vmatpush1.msra.mxu0 0.0
      %3482 = vmatprep.subr.mxu0 0.0
      %3483 = vmatpush1.msra.mxu0 0.0
      %3484 = vmatprep.subr.mxu0 0.0
      %3485 = vmatpush1.msra.mxu0 0.0
      %3486 = vmatprep.subr.mxu0 0.0
      %3487 = vmatpush1.msra.mxu0 0.0
      %3488 = vmatprep.subr.mxu0 0.0
      %3489 = vmatpush1.msra.mxu0 0.0
      %3490 = vmatprep.subr.mxu0 0.0
      %3491 = vmatpush1.msra.mxu0 0.0
      %3492 = vmatprep.subr.mxu0 0.0
      %3493 = vmatpush1.msra.mxu0 0.0
      %3494 = vmatprep.subr.mxu0 0.0
      %3495 = vmatpush1.msra.mxu0 0.0
      %3496 = vmatprep.subr.mxu0 0.0
      %3497 = vmatpush1.msra.mxu0 0.0
      %3498 = vmatprep.subr.mxu0 0.0
      %3499 = vmatpush1.msra.mxu0 0.0
      %3500 = vmatprep.subr.mxu0 0.0
      %3501 = vmatpush1.msra.mxu0 0.0
      %3502 = vmatprep.subr.mxu0 0.0
      %3503 = vmatpush1.msra.mxu0 0.0
      %3504 = vmatprep.subr.mxu0 0.0
      %3505 = vmatpush1.msra.mxu0 0.0
      %3506 = vmatprep.subr.mxu0 0.0
      %3507 = vmatpush1.msra.mxu0 0.0
      %3508 = vmatprep.subr.mxu0 0.0
      %3509 = vmatpush1.msra.mxu0 %v3381
      %3510 = vmatprep.subr.mxu0 0.0
      %3511 = vmatpush2.msra.mxu0 0.0
      %3512 = vmatprep.subr.mxu0 0.0
      %3513 = vmatpush2.msra.mxu0 0.0
      %3514 = vmatprep.subr.mxu0 0.0
      %3515 = vmatpush2.msra.mxu0 0.0
      %3516 = vmatprep.subr.mxu0 0.0
      %3517 = vmatpush2.msra.mxu0 0.0
      %3518 = vmatprep.subr.mxu0 0.0
      %3519 = vmatpush2.msra.mxu0 0.0
      %3520 = vmatprep.subr.mxu0 0.0
      %3521 = vmatpush2.msra.mxu0 0.0
      %3522 = vmatprep.subr.mxu0 0.0
      %3523 = vmatpush2.msra.mxu0 0.0
      %3524 = vmatprep.subr.mxu0 0.0
      %3525 = vmatpush2.msra.mxu0 0.0
      %3526 = vmatprep.subr.mxu0 0.0
      %3527 = vmatpush2.msra.mxu0 0.0
      %3528 = vmatprep.subr.mxu0 0.0
      %3529 = vmatpush2.msra.mxu0 0.0
      %3530 = vmatprep.subr.mxu0 0.0
      %3531 = vmatpush2.msra.mxu0 0.0
      %3532 = vmatprep.subr.mxu0 0.0
      %3533 = vmatpush2.msra.mxu0 0.0
      %3534 = vmatprep.subr.mxu0 0.0
      %3535 = vmatpush2.msra.mxu0 0.0
      %3536 = vmatprep.subr.mxu0 0.0
      %3537 = vmatpush2.msra.mxu0 0.0
      %3538 = vmatprep.subr.mxu0 0.0
      %3539 = vmatpush2.msra.mxu0 0.0
      %3540 = vmatprep.subr.mxu0 0.0
      %3541 = vmatpush2.msra.mxu0 0.0
      %3542 = vmatprep.mubr.f32.mxu0 0.0
      %3543 = vmatmul.mubr.f32.gmra.mxu0 %v3383
      %v3544 = vpop.f32.mrf.mxu0
      %v3545 = vadd.f32 0.0, %v3544
      %v3546 = vpop.f32.mrf.mxu0
      %3547 = vmatprep.mubr.f32.mxu0 0.0
      %3548 = vmatmul.mubr.f32.gmra.mxu0 %v3386
      %v3549 = vpop.f32.mrf.mxu0
      %v3550 = vadd.f32 0.0, %v3549
      %v3551 = vpop.f32.mrf.mxu0
      %3552 = vmatprep.mubr.f32.mxu0 0.0
      %3553 = vmatmul.mubr.f32.gmra.mxu0 %v3389
      %v3554 = vpop.f32.mrf.mxu0
      %v3555 = vadd.f32 0.0, %v3554
      %v3556 = vpop.f32.mrf.mxu0
      %3557 = vmatprep.mubr.f32.mxu0 0.0
      %3558 = vmatmul.mubr.f32.gmra.mxu0 %v3392
      %v3559 = vpop.f32.mrf.mxu0
      %v3560 = vadd.f32 0.0, %v3559
      %v3561 = vpop.f32.mrf.mxu0
      %3562 = vmatprep.mubr.f32.mxu0 0.0
      %3563 = vmatmul.mubr.f32.gmra.mxu0 %v3395
      %v3564 = vpop.f32.mrf.mxu0
      %v3565 = vadd.f32 0.0, %v3564
      %v3566 = vpop.f32.mrf.mxu0
      %3567 = vmatprep.mubr.f32.mxu0 0.0
      %3568 = vmatmul.mubr.f32.gmra.mxu0 %v3398
      %v3569 = vpop.f32.mrf.mxu0
      %v3570 = vadd.f32 0.0, %v3569
      %v3571 = vpop.f32.mrf.mxu0
      %3572 = vmatprep.mubr.f32.mxu0 0.0
      %3573 = vmatmul.mubr.f32.gmra.mxu0 %v3401
      %v3574 = vpop.f32.mrf.mxu0
      %v3575 = vadd.f32 0.0, %v3574
      %v3576 = vpop.f32.mrf.mxu0
      %3577 = vmatprep.mubr.f32.mxu0 0.0
      %3578 = vmatmul.mubr.f32.gmra.mxu0 %v3404
      %v3579 = vpop.f32.mrf.mxu0
      %v3580 = vadd.f32 0.0, %v3579
      %v3581 = vpop.f32.mrf.mxu0
      %3582 = vmatprep.mubr.f32.mxu0 0.0
      %3583 = vmatmul.mubr.f32.gmra.mxu0 %v3407
      %v3584 = vpop.f32.mrf.mxu0
      %v3585 = vadd.f32 0.0, %v3584
      %v3586 = vpop.f32.mrf.mxu0
      %3587 = vmatprep.mubr.f32.mxu0 0.0
      %3588 = vmatmul.mubr.f32.gmra.mxu0 %v3410
      %v3589 = vpop.f32.mrf.mxu0
      %v3590 = vadd.f32 0.0, %v3589
      %v3591 = vpop.f32.mrf.mxu0
      %3592 = vmatprep.mubr.f32.mxu0 0.0
      %3593 = vmatmul.mubr.f32.gmra.mxu0 %v3413
      %v3594 = vpop.f32.mrf.mxu0
      %v3595 = vadd.f32 0.0, %v3594
      %v3596 = vpop.f32.mrf.mxu0
      %3597 = vmatprep.mubr.f32.mxu0 0.0
      %3598 = vmatmul.mubr.f32.gmra.mxu0 %v3416
      %v3599 = vpop.f32.mrf.mxu0
      %v3600 = vadd.f32 0.0, %v3599
      %v3601 = vpop.f32.mrf.mxu0
      %3602 = vmatprep.mubr.f32.mxu0 0.0
      %3603 = vmatmul.mubr.f32.gmra.mxu0 %v3419
      %v3604 = vpop.f32.mrf.mxu0
      %v3605 = vadd.f32 0.0, %v3604
      %v3606 = vpop.f32.mrf.mxu0
      %3607 = vmatprep.mubr.f32.mxu0 0.0
      %3608 = vmatmul.mubr.f32.gmra.mxu0 %v3422
      %v3609 = vpop.f32.mrf.mxu0
      %v3610 = vadd.f32 0.0, %v3609
      %v3611 = vpop.f32.mrf.mxu0
      %3612 = vmatprep.mubr.f32.mxu0 0.0
      %3613 = vmatmul.mubr.f32.gmra.mxu0 %v3425
      %v3614 = vpop.f32.mrf.mxu0
      %v3615 = vadd.f32 0.0, %v3614
      %v3616 = vpop.f32.mrf.mxu0
      %3617 = vmatprep.mubr.f32.mxu0 0.0
      %3618 = vmatmul.mubr.f32.gmra.mxu0 %v3428
      %v3619 = vpop.f32.mrf.mxu0
      %v3620 = vadd.f32 0.0, %v3619
      %v3621 = vpop.f32.mrf.mxu0
      %3622 = vmatprep.mubr.f32.mxu0 0.0
      %3623 = vmatmul.mubr.f32.gmra.mxu0 %v3431
      %v3624 = vpop.f32.mrf.mxu0
      %v3625 = vadd.f32 0.0, %v3624
      %v3626 = vpop.f32.mrf.mxu0
      %3627 = vmatprep.mubr.f32.mxu0 0.0
      %3628 = vmatmul.mubr.f32.gmra.mxu0 %v3434
      %v3629 = vpop.f32.mrf.mxu0
      %v3630 = vadd.f32 0.0, %v3629
      %v3631 = vpop.f32.mrf.mxu0
      %3632 = vmatprep.mubr.f32.mxu0 0.0
      %3633 = vmatmul.mubr.f32.gmra.mxu0 %v3437
      %v3634 = vpop.f32.mrf.mxu0
      %v3635 = vadd.f32 0.0, %v3634
      %v3636 = vpop.f32.mrf.mxu0
      %3637 = vmatprep.mubr.f32.mxu0 0.0
      %3638 = vmatmul.mubr.f32.gmra.mxu0 %v3440
      %v3639 = vpop.f32.mrf.mxu0
      %v3640 = vadd.f32 0.0, %v3639
      %v3641 = vpop.f32.mrf.mxu0
      %3642 = vmatprep.mubr.f32.mxu0 0.0
      %3643 = vmatmul.mubr.f32.gmra.mxu0 %v3443
      %v3644 = vpop.f32.mrf.mxu0
      %v3645 = vadd.f32 0.0, %v3644
      %v3646 = vpop.f32.mrf.mxu0
      %3647 = vmatprep.mubr.f32.mxu0 0.0
      %3648 = vmatmul.mubr.f32.gmra.mxu0 %v3446
      %v3649 = vpop.f32.mrf.mxu0
      %v3650 = vadd.f32 0.0, %v3649
      %v3651 = vpop.f32.mrf.mxu0
      %3652 = vmatprep.mubr.f32.mxu0 0.0
      %3653 = vmatmul.mubr.f32.gmra.mxu0 %v3449
      %v3654 = vpop.f32.mrf.mxu0
      %v3655 = vadd.f32 0.0, %v3654
      %v3656 = vpop.f32.mrf.mxu0
      %3657 = vmatprep.mubr.f32.mxu0 0.0
      %3658 = vmatmul.mubr.f32.gmra.mxu0 %v3452
      %v3659 = vpop.f32.mrf.mxu0
      %v3660 = vadd.f32 0.0, %v3659
      %v3661 = vpop.f32.mrf.mxu0
      %3662 = vmatprep.mubr.f32.mxu0 0.0
      %3663 = vmatmul.mubr.f32.gmra.mxu0 %v3455
      %v3664 = vpop.f32.mrf.mxu0
      %v3665 = vadd.f32 0.0, %v3664
      %v3666 = vpop.f32.mrf.mxu0
      %3667 = vmatprep.mubr.f32.mxu0 0.0
      %3668 = vmatmul.mubr.f32.gmra.mxu0 %v3458
      %v3669 = vpop.f32.mrf.mxu0
      %v3670 = vadd.f32 0.0, %v3669
      %v3671 = vpop.f32.mrf.mxu0
      %3672 = vmatprep.mubr.f32.mxu0 0.0
      %3673 = vmatmul.mubr.f32.gmra.mxu0 %v3461
      %v3674 = vpop.f32.mrf.mxu0
      %v3675 = vadd.f32 0.0, %v3674
      %v3676 = vpop.f32.mrf.mxu0
      %3677 = vmatprep.mubr.f32.mxu0 0.0
      %3678 = vmatmul.mubr.f32.gmra.mxu0 %v3464
      %v3679 = vpop.f32.mrf.mxu0
      %v3680 = vadd.f32 0.0, %v3679
      %v3681 = vpop.f32.mrf.mxu0
      %3682 = vmatprep.mubr.f32.mxu0 0.0
      %3683 = vmatmul.mubr.f32.gmra.mxu0 %v3467
      %v3684 = vpop.f32.mrf.mxu0
      %v3685 = vadd.f32 0.0, %v3684
      %v3686 = vpop.f32.mrf.mxu0
      %3687 = vmatprep.mubr.f32.mxu0 0.0
      %3688 = vmatmul.mubr.f32.gmra.mxu0 %v3470
      %v3689 = vpop.f32.mrf.mxu0
      %v3690 = vadd.f32 0.0, %v3689
      %v3691 = vpop.f32.mrf.mxu0
      %3692 = vmatprep.mubr.f32.mxu0 0.0
      %3693 = vmatmul.mubr.f32.gmra.mxu0 %v3473
      %v3694 = vpop.f32.mrf.mxu0
      %v3695 = vadd.f32 0.0, %v3694
      %v3696 = vpop.f32.mrf.mxu0
      %3697 = vmatprep.mubr.f32.mxu0 0.0
      %3698 = vmatmul.mubr.f32.gmra.mxu0 %v3476
      %v3699 = vpop.f32.mrf.mxu0
      %v3700 = vadd.f32 0.0, %v3699
      %v3701 = vpop.f32.mrf.mxu0
      %3702 = vdwg.mxu0
      %v3703 = vld [vmem:[#allocation2] sm:$0xff]
      %v3704 = vld [vmem:[#allocation2 + $0x8] sm:$0xff]
      %v3705 = vld [vmem:[#allocation2 + $0x10] sm:$0xff]
      %v3706 = vld [vmem:[#allocation2 + $0x18] sm:$0xff]
      %v3707 = vld [vmem:[#allocation2 + $0x20] sm:$0xff]
      %v3708 = vld [vmem:[#allocation2 + $0x28] sm:$0xff]
      %v3709 = vld [vmem:[#allocation2 + $0x30] sm:$0xff]
      %v3710 = vld [vmem:[#allocation2 + $0x38] sm:$0xff]
      %v3711 = vld [vmem:[#allocation2 + $0x40] sm:$0xff]
      %v3712 = vld [vmem:[#allocation2 + $0x48] sm:$0xff]
      %v3713 = vld [vmem:[#allocation2 + $0x50] sm:$0xff]
      %v3714 = vld [vmem:[#allocation2 + $0x58] sm:$0xff]
      %v3715 = vld [vmem:[#allocation2 + $0x60] sm:$0xff]
      %v3716 = vld [vmem:[#allocation2 + $0x68] sm:$0xff]
      %v3717 = vld [vmem:[#allocation2 + $0x70] sm:$0xff]
      %v3718 = vld [vmem:[#allocation2 + $0x78] sm:$0xff]
      %v3719 = vld [vmem:[#allocation2 + $0x80] sm:$0xff]
      %v3720 = vld [vmem:[#allocation2 + $0x88] sm:$0xff]
      %v3721 = vld [vmem:[#allocation2 + $0x90] sm:$0xff]
      %v3722 = vld [vmem:[#allocation2 + $0x98] sm:$0xff]
      %v3723 = vld [vmem:[#allocation2 + $0xa0] sm:$0xff]
      %v3724 = vld [vmem:[#allocation2 + $0xa8] sm:$0xff]
      %v3725 = vld [vmem:[#allocation2 + $0xb0] sm:$0xff]
      %v3726 = vld [vmem:[#allocation2 + $0xb8] sm:$0xff]
      %v3727 = vld [vmem:[#allocation2 + $0xc0] sm:$0xff]
      %v3728 = vld [vmem:[#allocation2 + $0xc8] sm:$0xff]
      %v3729 = vld [vmem:[#allocation2 + $0xd0] sm:$0xff]
      %v3730 = vld [vmem:[#allocation2 + $0xd8] sm:$0xff]
      %v3731 = vld [vmem:[#allocation2 + $0xe0] sm:$0xff]
      %v3732 = vld [vmem:[#allocation2 + $0xe8] sm:$0xff]
      %v3733 = vld [vmem:[#allocation2 + $0xf0] sm:$0xff]
      %v3734 = vld [vmem:[#allocation2 + $0xf8] sm:$0xff]
      %v3735 = vadd.f32 %v3703, %v3545
      %v3736 = vadd.f32 %v3704, %v3550
      %v3737 = vadd.f32 %v3705, %v3555
      %v3738 = vadd.f32 %v3706, %v3560
      %v3739 = vadd.f32 %v3707, %v3565
      %v3740 = vadd.f32 %v3708, %v3570
      %v3741 = vadd.f32 %v3709, %v3575
      %v3742 = vadd.f32 %v3710, %v3580
      %v3743 = vadd.f32 %v3711, %v3585
      %v3744 = vadd.f32 %v3712, %v3590
      %v3745 = vadd.f32 %v3713, %v3595
      %v3746 = vadd.f32 %v3714, %v3600
      %v3747 = vadd.f32 %v3715, %v3605
      %v3748 = vadd.f32 %v3716, %v3610
      %v3749 = vadd.f32 %v3717, %v3615
      %v3750 = vadd.f32 %v3718, %v3620
      %v3751 = vadd.f32 %v3719, %v3625
      %v3752 = vadd.f32 %v3720, %v3630
      %v3753 = vadd.f32 %v3721, %v3635
      %v3754 = vadd.f32 %v3722, %v3640
      %v3755 = vadd.f32 %v3723, %v3645
      %v3756 = vadd.f32 %v3724, %v3650
      %v3757 = vadd.f32 %v3725, %v3655
      %v3758 = vadd.f32 %v3726, %v3660
      %v3759 = vadd.f32 %v3727, %v3665
      %v3760 = vadd.f32 %v3728, %v3670
      %v3761 = vadd.f32 %v3729, %v3675
      %v3762 = vadd.f32 %v3730, %v3680
      %v3763 = vadd.f32 %v3731, %v3685
      %v3764 = vadd.f32 %v3732, %v3690
      %v3765 = vadd.f32 %v3733, %v3695
      %v3766 = vadd.f32 %v3734, %v3700
      %3767 = vst [vmem:[#allocation2] sm:$0xff] %v3735
      %3768 = vst [vmem:[#allocation2 + $0x8] sm:$0xff] %v3736
      %3769 = vst [vmem:[#allocation2 + $0x10] sm:$0xff] %v3737
      %3770 = vst [vmem:[#allocation2 + $0x18] sm:$0xff] %v3738
      %3771 = vst [vmem:[#allocation2 + $0x20] sm:$0xff] %v3739
      %3772 = vst [vmem:[#allocation2 + $0x28] sm:$0xff] %v3740
      %3773 = vst [vmem:[#allocation2 + $0x30] sm:$0xff] %v3741
      %3774 = vst [vmem:[#allocation2 + $0x38] sm:$0xff] %v3742
      %3775 = vst [vmem:[#allocation2 + $0x40] sm:$0xff] %v3743
      %3776 = vst [vmem:[#allocation2 + $0x48] sm:$0xff] %v3744
      %3777 = vst [vmem:[#allocation2 + $0x50] sm:$0xff] %v3745
      %3778 = vst [vmem:[#allocation2 + $0x58] sm:$0xff] %v3746
      %3779 = vst [vmem:[#allocation2 + $0x60] sm:$0xff] %v3747
      %3780 = vst [vmem:[#allocation2 + $0x68] sm:$0xff] %v3748
      %3781 = vst [vmem:[#allocation2 + $0x70] sm:$0xff] %v3749
      %3782 = vst [vmem:[#allocation2 + $0x78] sm:$0xff] %v3750
      %3783 = vst [vmem:[#allocation2 + $0x80] sm:$0xff] %v3751
      %3784 = vst [vmem:[#allocation2 + $0x88] sm:$0xff] %v3752
      %3785 = vst [vmem:[#allocation2 + $0x90] sm:$0xff] %v3753
      %3786 = vst [vmem:[#allocation2 + $0x98] sm:$0xff] %v3754
      %3787 = vst [vmem:[#allocation2 + $0xa0] sm:$0xff] %v3755
      %3788 = vst [vmem:[#allocation2 + $0xa8] sm:$0xff] %v3756
      %3789 = vst [vmem:[#allocation2 + $0xb0] sm:$0xff] %v3757
      %3790 = vst [vmem:[#allocation2 + $0xb8] sm:$0xff] %v3758
      %3791 = vst [vmem:[#allocation2 + $0xc0] sm:$0xff] %v3759
      %3792 = vst [vmem:[#allocation2 + $0xc8] sm:$0xff] %v3760
      %3793 = vst [vmem:[#allocation2 + $0xd0] sm:$0xff] %v3761
      %3794 = vst [vmem:[#allocation2 + $0xd8] sm:$0xff] %v3762
      %3795 = vst [vmem:[#allocation2 + $0xe0] sm:$0xff] %v3763
      %3796 = vst [vmem:[#allocation2 + $0xe8] sm:$0xff] %v3764
      %3797 = vst [vmem:[#allocation2 + $0xf0] sm:$0xff] %v3765
      %3798 = vst [vmem:[#allocation2 + $0xf8] sm:$0xff] %v3766
      %v3799 = vld [vmem:[%s2896 + $0x2] sm:$0xff]
      %v3800 = vld [vmem:[%s2896 + $0xa] sm:$0xff]
      %v3801 = vld [vmem:[%s2896 + $0x1a] sm:$0xff]
      %v3802 = vld [vmem:[%s2896 + $0x22] sm:$0xff]
      %v3803 = vld [vmem:[%s2896 + $0x32] sm:$0xff]
      %v3804 = vld [vmem:[%s2896 + $0x3a] sm:$0xff]
      %v3805 = vld [vmem:[%s2896 + $0x4a] sm:$0xff]
      %v3806 = vld [vmem:[%s2896 + $0x52] sm:$0xff]
      %v3807 = vld [vmem:[%s2896 + $0x62] sm:$0xff]
      %v3808 = vld [vmem:[%s2896 + $0x6a] sm:$0xff]
      %v3809 = vld [vmem:[%s2896 + $0x7a] sm:$0xff]
      %v3810 = vld [vmem:[%s2896 + $0x82] sm:$0xff]
      %v3811 = vld [vmem:[%s2896 + $0x92] sm:$0xff]
      %v3812 = vld [vmem:[%s2896 + $0x9a] sm:$0xff]
      %v3813 = vld [vmem:[%s2896 + $0xaa] sm:$0xff]
      %v3814 = vld [vmem:[%s2896 + $0xb2] sm:$0xff]
      %v3815 = vld [vmem:[%s2896 + $0xc2] sm:$0xff]
      %v3816 = vld [vmem:[%s2896 + $0xca] sm:$0xff]
      %v3817 = vld [vmem:[%s2896 + $0xda] sm:$0xff]
      %v3818 = vld [vmem:[%s2896 + $0xe2] sm:$0xff]
      %v3819 = vld [vmem:[%s2896 + $0xf2] sm:$0xff]
      %v3820 = vld [vmem:[%s2896 + $0xfa] sm:$0xff]
      %v3821 = vld [vmem:[%s2896 + $0x10a] sm:$0xff]
      %v3822 = vld [vmem:[%s2896 + $0x112] sm:$0xff]
      %v3823 = vld [vmem:[%s2896 + $0x122] sm:$0xff]
      %v3824 = vld [vmem:[%s2896 + $0x12a] sm:$0xff]
      %v3825 = vld [vmem:[%s2896 + $0x13a] sm:$0xff]
      %v3826 = vld [vmem:[%s2896 + $0x142] sm:$0xff]
      %v3827 = vld [vmem:[%s2896 + $0x152] sm:$0xff]
      %v3828 = vld [vmem:[%s2896 + $0x15a] sm:$0xff]
      %v3829 = vld [vmem:[%s2896 + $0x16a] sm:$0xff]
      %v3830 = vld [vmem:[%s2896 + $0x172] sm:$0xff]
      %s3831 = scalar_lea.vmem %s1, 64
      %v3832 = vld [vmem:[%s3831] sm:$0xff]
      %v3834 = vsel %vm286, %v3799, 0
      %v3837 = vsel %vm286, %v3800, 0
      %v3840 = vsel %vm286, %v3801, 0
      %v3843 = vsel %vm286, %v3802, 0
      %v3846 = vsel %vm286, %v3803, 0
      %v3849 = vsel %vm286, %v3804, 0
      %v3852 = vsel %vm286, %v3805, 0
      %v3855 = vsel %vm286, %v3806, 0
      %v3858 = vsel %vm286, %v3807, 0
      %v3861 = vsel %vm286, %v3808, 0
      %v3864 = vsel %vm286, %v3809, 0
      %v3867 = vsel %vm286, %v3810, 0
      %v3870 = vsel %vm286, %v3811, 0
      %v3873 = vsel %vm286, %v3812, 0
      %v3876 = vsel %vm286, %v3813, 0
      %v3879 = vsel %vm286, %v3814, 0
      %v3882 = vsel %vm286, %v3815, 0
      %v3885 = vsel %vm286, %v3816, 0
      %v3888 = vsel %vm286, %v3817, 0
      %v3891 = vsel %vm286, %v3818, 0
      %v3894 = vsel %vm286, %v3819, 0
      %v3897 = vsel %vm286, %v3820, 0
      %v3900 = vsel %vm286, %v3821, 0
      %v3903 = vsel %vm286, %v3822, 0
      %v3906 = vsel %vm286, %v3823, 0
      %v3909 = vsel %vm286, %v3824, 0
      %v3912 = vsel %vm286, %v3825, 0
      %v3915 = vsel %vm286, %v3826, 0
      %v3918 = vsel %vm286, %v3827, 0
      %v3921 = vsel %vm286, %v3828, 0
      %v3924 = vsel %vm286, %v3829, 0
      %v3927 = vsel %vm286, %v3830, 0
      %3929 = vmatprep.subr.mxu0 0.0
      %3930 = vmatpush1.msra.mxu0 0.0
      %3931 = vmatprep.subr.mxu0 0.0
      %3932 = vmatpush1.msra.mxu0 0.0
      %3933 = vmatprep.subr.mxu0 0.0
      %3934 = vmatpush1.msra.mxu0 0.0
      %3935 = vmatprep.subr.mxu0 0.0
      %3936 = vmatpush1.msra.mxu0 0.0
      %3937 = vmatprep.subr.mxu0 0.0
      %3938 = vmatpush1.msra.mxu0 0.0
      %3939 = vmatprep.subr.mxu0 0.0
      %3940 = vmatpush1.msra.mxu0 0.0
      %3941 = vmatprep.subr.mxu0 0.0
      %3942 = vmatpush1.msra.mxu0 0.0
      %3943 = vmatprep.subr.mxu0 0.0
      %3944 = vmatpush1.msra.mxu0 0.0
      %3945 = vmatprep.subr.mxu0 0.0
      %3946 = vmatpush1.msra.mxu0 0.0
      %3947 = vmatprep.subr.mxu0 0.0
      %3948 = vmatpush1.msra.mxu0 0.0
      %3949 = vmatprep.subr.mxu0 0.0
      %3950 = vmatpush1.msra.mxu0 0.0
      %3951 = vmatprep.subr.mxu0 0.0
      %3952 = vmatpush1.msra.mxu0 0.0
      %3953 = vmatprep.subr.mxu0 0.0
      %3954 = vmatpush1.msra.mxu0 0.0
      %3955 = vmatprep.subr.mxu0 0.0
      %3956 = vmatpush1.msra.mxu0 0.0
      %3957 = vmatprep.subr.mxu0 0.0
      %3958 = vmatpush1.msra.mxu0 0.0
      %3959 = vmatprep.subr.mxu0 0.0
      %3960 = vmatpush1.msra.mxu0 %v3832
      %3961 = vmatprep.subr.mxu0 0.0
      %3962 = vmatpush2.msra.mxu0 0.0
      %3963 = vmatprep.subr.mxu0 0.0
      %3964 = vmatpush2.msra.mxu0 0.0
      %3965 = vmatprep.subr.mxu0 0.0
      %3966 = vmatpush2.msra.mxu0 0.0
      %3967 = vmatprep.subr.mxu0 0.0
      %3968 = vmatpush2.msra.mxu0 0.0
      %3969 = vmatprep.subr.mxu0 0.0
      %3970 = vmatpush2.msra.mxu0 0.0
      %3971 = vmatprep.subr.mxu0 0.0
      %3972 = vmatpush2.msra.mxu0 0.0
      %3973 = vmatprep.subr.mxu0 0.0
      %3974 = vmatpush2.msra.mxu0 0.0
      %3975 = vmatprep.subr.mxu0 0.0
      %3976 = vmatpush2.msra.mxu0 0.0
      %3977 = vmatprep.subr.mxu0 0.0
      %3978 = vmatpush2.msra.mxu0 0.0
      %3979 = vmatprep.subr.mxu0 0.0
      %3980 = vmatpush2.msra.mxu0 0.0
      %3981 = vmatprep.subr.mxu0 0.0
      %3982 = vmatpush2.msra.mxu0 0.0
      %3983 = vmatprep.subr.mxu0 0.0
      %3984 = vmatpush2.msra.mxu0 0.0
      %3985 = vmatprep.subr.mxu0 0.0
      %3986 = vmatpush2.msra.mxu0 0.0
      %3987 = vmatprep.subr.mxu0 0.0
      %3988 = vmatpush2.msra.mxu0 0.0
      %3989 = vmatprep.subr.mxu0 0.0
      %3990 = vmatpush2.msra.mxu0 0.0
      %3991 = vmatprep.subr.mxu0 0.0
      %3992 = vmatpush2.msra.mxu0 0.0
      %3993 = vmatprep.mubr.f32.mxu0 0.0
      %3994 = vmatmul.mubr.f32.gmra.mxu0 %v3834
      %v3995 = vpop.f32.mrf.mxu0
      %v3996 = vadd.f32 0.0, %v3995
      %v3997 = vpop.f32.mrf.mxu0
      %3998 = vmatprep.mubr.f32.mxu0 0.0
      %3999 = vmatmul.mubr.f32.gmra.mxu0 %v3837
      %v4000 = vpop.f32.mrf.mxu0
      %v4001 = vadd.f32 0.0, %v4000
      %v4002 = vpop.f32.mrf.mxu0
      %4003 = vmatprep.mubr.f32.mxu0 0.0
      %4004 = vmatmul.mubr.f32.gmra.mxu0 %v3840
      %v4005 = vpop.f32.mrf.mxu0
      %v4006 = vadd.f32 0.0, %v4005
      %v4007 = vpop.f32.mrf.mxu0
      %4008 = vmatprep.mubr.f32.mxu0 0.0
      %4009 = vmatmul.mubr.f32.gmra.mxu0 %v3843
      %v4010 = vpop.f32.mrf.mxu0
      %v4011 = vadd.f32 0.0, %v4010
      %v4012 = vpop.f32.mrf.mxu0
      %4013 = vmatprep.mubr.f32.mxu0 0.0
      %4014 = vmatmul.mubr.f32.gmra.mxu0 %v3846
      %v4015 = vpop.f32.mrf.mxu0
      %v4016 = vadd.f32 0.0, %v4015
      %v4017 = vpop.f32.mrf.mxu0
      %4018 = vmatprep.mubr.f32.mxu0 0.0
      %4019 = vmatmul.mubr.f32.gmra.mxu0 %v3849
      %v4020 = vpop.f32.mrf.mxu0
      %v4021 = vadd.f32 0.0, %v4020
      %v4022 = vpop.f32.mrf.mxu0
      %4023 = vmatprep.mubr.f32.mxu0 0.0
      %4024 = vmatmul.mubr.f32.gmra.mxu0 %v3852
      %v4025 = vpop.f32.mrf.mxu0
      %v4026 = vadd.f32 0.0, %v4025
      %v4027 = vpop.f32.mrf.mxu0
      %4028 = vmatprep.mubr.f32.mxu0 0.0
      %4029 = vmatmul.mubr.f32.gmra.mxu0 %v3855
      %v4030 = vpop.f32.mrf.mxu0
      %v4031 = vadd.f32 0.0, %v4030
      %v4032 = vpop.f32.mrf.mxu0
      %4033 = vmatprep.mubr.f32.mxu0 0.0
      %4034 = vmatmul.mubr.f32.gmra.mxu0 %v3858
      %v4035 = vpop.f32.mrf.mxu0
      %v4036 = vadd.f32 0.0, %v4035
      %v4037 = vpop.f32.mrf.mxu0
      %4038 = vmatprep.mubr.f32.mxu0 0.0
      %4039 = vmatmul.mubr.f32.gmra.mxu0 %v3861
      %v4040 = vpop.f32.mrf.mxu0
      %v4041 = vadd.f32 0.0, %v4040
      %v4042 = vpop.f32.mrf.mxu0
      %4043 = vmatprep.mubr.f32.mxu0 0.0
      %4044 = vmatmul.mubr.f32.gmra.mxu0 %v3864
      %v4045 = vpop.f32.mrf.mxu0
      %v4046 = vadd.f32 0.0, %v4045
      %v4047 = vpop.f32.mrf.mxu0
      %4048 = vmatprep.mubr.f32.mxu0 0.0
      %4049 = vmatmul.mubr.f32.gmra.mxu0 %v3867
      %v4050 = vpop.f32.mrf.mxu0
      %v4051 = vadd.f32 0.0, %v4050
      %v4052 = vpop.f32.mrf.mxu0
      %4053 = vmatprep.mubr.f32.mxu0 0.0
      %4054 = vmatmul.mubr.f32.gmra.mxu0 %v3870
      %v4055 = vpop.f32.mrf.mxu0
      %v4056 = vadd.f32 0.0, %v4055
      %v4057 = vpop.f32.mrf.mxu0
      %4058 = vmatprep.mubr.f32.mxu0 0.0
      %4059 = vmatmul.mubr.f32.gmra.mxu0 %v3873
      %v4060 = vpop.f32.mrf.mxu0
      %v4061 = vadd.f32 0.0, %v4060
      %v4062 = vpop.f32.mrf.mxu0
      %4063 = vmatprep.mubr.f32.mxu0 0.0
      %4064 = vmatmul.mubr.f32.gmra.mxu0 %v3876
      %v4065 = vpop.f32.mrf.mxu0
      %v4066 = vadd.f32 0.0, %v4065
      %v4067 = vpop.f32.mrf.mxu0
      %4068 = vmatprep.mubr.f32.mxu0 0.0
      %4069 = vmatmul.mubr.f32.gmra.mxu0 %v3879
      %v4070 = vpop.f32.mrf.mxu0
      %v4071 = vadd.f32 0.0, %v4070
      %v4072 = vpop.f32.mrf.mxu0
      %4073 = vmatprep.mubr.f32.mxu0 0.0
      %4074 = vmatmul.mubr.f32.gmra.mxu0 %v3882
      %v4075 = vpop.f32.mrf.mxu0
      %v4076 = vadd.f32 0.0, %v4075
      %v4077 = vpop.f32.mrf.mxu0
      %4078 = vmatprep.mubr.f32.mxu0 0.0
      %4079 = vmatmul.mubr.f32.gmra.mxu0 %v3885
      %v4080 = vpop.f32.mrf.mxu0
      %v4081 = vadd.f32 0.0, %v4080
      %v4082 = vpop.f32.mrf.mxu0
      %4083 = vmatprep.mubr.f32.mxu0 0.0
      %4084 = vmatmul.mubr.f32.gmra.mxu0 %v3888
      %v4085 = vpop.f32.mrf.mxu0
      %v4086 = vadd.f32 0.0, %v4085
      %v4087 = vpop.f32.mrf.mxu0
      %4088 = vmatprep.mubr.f32.mxu0 0.0
      %4089 = vmatmul.mubr.f32.gmra.mxu0 %v3891
      %v4090 = vpop.f32.mrf.mxu0
      %v4091 = vadd.f32 0.0, %v4090
      %v4092 = vpop.f32.mrf.mxu0
      %4093 = vmatprep.mubr.f32.mxu0 0.0
      %4094 = vmatmul.mubr.f32.gmra.mxu0 %v3894
      %v4095 = vpop.f32.mrf.mxu0
      %v4096 = vadd.f32 0.0, %v4095
      %v4097 = vpop.f32.mrf.mxu0
      %4098 = vmatprep.mubr.f32.mxu0 0.0
      %4099 = vmatmul.mubr.f32.gmra.mxu0 %v3897
      %v4100 = vpop.f32.mrf.mxu0
      %v4101 = vadd.f32 0.0, %v4100
      %v4102 = vpop.f32.mrf.mxu0
      %4103 = vmatprep.mubr.f32.mxu0 0.0
      %4104 = vmatmul.mubr.f32.gmra.mxu0 %v3900
      %v4105 = vpop.f32.mrf.mxu0
      %v4106 = vadd.f32 0.0, %v4105
      %v4107 = vpop.f32.mrf.mxu0
      %4108 = vmatprep.mubr.f32.mxu0 0.0
      %4109 = vmatmul.mubr.f32.gmra.mxu0 %v3903
      %v4110 = vpop.f32.mrf.mxu0
      %v4111 = vadd.f32 0.0, %v4110
      %v4112 = vpop.f32.mrf.mxu0
      %4113 = vmatprep.mubr.f32.mxu0 0.0
      %4114 = vmatmul.mubr.f32.gmra.mxu0 %v3906
      %v4115 = vpop.f32.mrf.mxu0
      %v4116 = vadd.f32 0.0, %v4115
      %v4117 = vpop.f32.mrf.mxu0
      %4118 = vmatprep.mubr.f32.mxu0 0.0
      %4119 = vmatmul.mubr.f32.gmra.mxu0 %v3909
      %v4120 = vpop.f32.mrf.mxu0
      %v4121 = vadd.f32 0.0, %v4120
      %v4122 = vpop.f32.mrf.mxu0
      %4123 = vmatprep.mubr.f32.mxu0 0.0
      %4124 = vmatmul.mubr.f32.gmra.mxu0 %v3912
      %v4125 = vpop.f32.mrf.mxu0
      %v4126 = vadd.f32 0.0, %v4125
      %v4127 = vpop.f32.mrf.mxu0
      %4128 = vmatprep.mubr.f32.mxu0 0.0
      %4129 = vmatmul.mubr.f32.gmra.mxu0 %v3915
      %v4130 = vpop.f32.mrf.mxu0
      %v4131 = vadd.f32 0.0, %v4130
      %v4132 = vpop.f32.mrf.mxu0
      %4133 = vmatprep.mubr.f32.mxu0 0.0
      %4134 = vmatmul.mubr.f32.gmra.mxu0 %v3918
      %v4135 = vpop.f32.mrf.mxu0
      %v4136 = vadd.f32 0.0, %v4135
      %v4137 = vpop.f32.mrf.mxu0
      %4138 = vmatprep.mubr.f32.mxu0 0.0
      %4139 = vmatmul.mubr.f32.gmra.mxu0 %v3921
      %v4140 = vpop.f32.mrf.mxu0
      %v4141 = vadd.f32 0.0, %v4140
      %v4142 = vpop.f32.mrf.mxu0
      %4143 = vmatprep.mubr.f32.mxu0 0.0
      %4144 = vmatmul.mubr.f32.gmra.mxu0 %v3924
      %v4145 = vpop.f32.mrf.mxu0
      %v4146 = vadd.f32 0.0, %v4145
      %v4147 = vpop.f32.mrf.mxu0
      %4148 = vmatprep.mubr.f32.mxu0 0.0
      %4149 = vmatmul.mubr.f32.gmra.mxu0 %v3927
      %v4150 = vpop.f32.mrf.mxu0
      %v4151 = vadd.f32 0.0, %v4150
      %v4152 = vpop.f32.mrf.mxu0
      %4153 = vdwg.mxu0
      %v4154 = vld [vmem:[#allocation2] sm:$0xff]
      %v4155 = vld [vmem:[#allocation2 + $0x8] sm:$0xff]
      %v4156 = vld [vmem:[#allocation2 + $0x10] sm:$0xff]
      %v4157 = vld [vmem:[#allocation2 + $0x18] sm:$0xff]
      %v4158 = vld [vmem:[#allocation2 + $0x20] sm:$0xff]
      %v4159 = vld [vmem:[#allocation2 + $0x28] sm:$0xff]
      %v4160 = vld [vmem:[#allocation2 + $0x30] sm:$0xff]
      %v4161 = vld [vmem:[#allocation2 + $0x38] sm:$0xff]
      %v4162 = vld [vmem:[#allocation2 + $0x40] sm:$0xff]
      %v4163 = vld [vmem:[#allocation2 + $0x48] sm:$0xff]
      %v4164 = vld [vmem:[#allocation2 + $0x50] sm:$0xff]
      %v4165 = vld [vmem:[#allocation2 + $0x58] sm:$0xff]
      %v4166 = vld [vmem:[#allocation2 + $0x60] sm:$0xff]
      %v4167 = vld [vmem:[#allocation2 + $0x68] sm:$0xff]
      %v4168 = vld [vmem:[#allocation2 + $0x70] sm:$0xff]
      %v4169 = vld [vmem:[#allocation2 + $0x78] sm:$0xff]
      %v4170 = vld [vmem:[#allocation2 + $0x80] sm:$0xff]
      %v4171 = vld [vmem:[#allocation2 + $0x88] sm:$0xff]
      %v4172 = vld [vmem:[#allocation2 + $0x90] sm:$0xff]
      %v4173 = vld [vmem:[#allocation2 + $0x98] sm:$0xff]
      %v4174 = vld [vmem:[#allocation2 + $0xa0] sm:$0xff]
      %v4175 = vld [vmem:[#allocation2 + $0xa8] sm:$0xff]
      %v4176 = vld [vmem:[#allocation2 + $0xb0] sm:$0xff]
      %v4177 = vld [vmem:[#allocation2 + $0xb8] sm:$0xff]
      %v4178 = vld [vmem:[#allocation2 + $0xc0] sm:$0xff]
      %v4179 = vld [vmem:[#allocation2 + $0xc8] sm:$0xff]
      %v4180 = vld [vmem:[#allocation2 + $0xd0] sm:$0xff]
      %v4181 = vld [vmem:[#allocation2 + $0xd8] sm:$0xff]
      %v4182 = vld [vmem:[#allocation2 + $0xe0] sm:$0xff]
      %v4183 = vld [vmem:[#allocation2 + $0xe8] sm:$0xff]
      %v4184 = vld [vmem:[#allocation2 + $0xf0] sm:$0xff]
      %v4185 = vld [vmem:[#allocation2 + $0xf8] sm:$0xff]
      %v4186 = vadd.f32 %v4154, %v3996
      %v4187 = vadd.f32 %v4155, %v4001
      %v4188 = vadd.f32 %v4156, %v4006
      %v4189 = vadd.f32 %v4157, %v4011
      %v4190 = vadd.f32 %v4158, %v4016
      %v4191 = vadd.f32 %v4159, %v4021
      %v4192 = vadd.f32 %v4160, %v4026
      %v4193 = vadd.f32 %v4161, %v4031
      %v4194 = vadd.f32 %v4162, %v4036
      %v4195 = vadd.f32 %v4163, %v4041
      %v4196 = vadd.f32 %v4164, %v4046
      %v4197 = vadd.f32 %v4165, %v4051
      %v4198 = vadd.f32 %v4166, %v4056
      %v4199 = vadd.f32 %v4167, %v4061
      %v4200 = vadd.f32 %v4168, %v4066
      %v4201 = vadd.f32 %v4169, %v4071
      %v4202 = vadd.f32 %v4170, %v4076
      %v4203 = vadd.f32 %v4171, %v4081
      %v4204 = vadd.f32 %v4172, %v4086
      %v4205 = vadd.f32 %v4173, %v4091
      %v4206 = vadd.f32 %v4174, %v4096
      %v4207 = vadd.f32 %v4175, %v4101
      %v4208 = vadd.f32 %v4176, %v4106
      %v4209 = vadd.f32 %v4177, %v4111
      %v4210 = vadd.f32 %v4178, %v4116
      %v4211 = vadd.f32 %v4179, %v4121
      %v4212 = vadd.f32 %v4180, %v4126
      %v4213 = vadd.f32 %v4181, %v4131
      %v4214 = vadd.f32 %v4182, %v4136
      %v4215 = vadd.f32 %v4183, %v4141
      %v4216 = vadd.f32 %v4184, %v4146
      %v4217 = vadd.f32 %v4185, %v4151
      %4218 = vst [vmem:[#allocation2] sm:$0xff] %v4186
      %4219 = vst [vmem:[#allocation2 + $0x8] sm:$0xff] %v4187
      %4220 = vst [vmem:[#allocation2 + $0x10] sm:$0xff] %v4188
      %4221 = vst [vmem:[#allocation2 + $0x18] sm:$0xff] %v4189
      %4222 = vst [vmem:[#allocation2 + $0x20] sm:$0xff] %v4190
      %4223 = vst [vmem:[#allocation2 + $0x28] sm:$0xff] %v4191
      %4224 = vst [vmem:[#allocation2 + $0x30] sm:$0xff] %v4192
      %4225 = vst [vmem:[#allocation2 + $0x38] sm:$0xff] %v4193
      %4226 = vst [vmem:[#allocation2 + $0x40] sm:$0xff] %v4194
      %4227 = vst [vmem:[#allocation2 + $0x48] sm:$0xff] %v4195
      %4228 = vst [vmem:[#allocation2 + $0x50] sm:$0xff] %v4196
      %4229 = vst [vmem:[#allocation2 + $0x58] sm:$0xff] %v4197
      %4230 = vst [vmem:[#allocation2 + $0x60] sm:$0xff] %v4198
      %4231 = vst [vmem:[#allocation2 + $0x68] sm:$0xff] %v4199
      %4232 = vst [vmem:[#allocation2 + $0x70] sm:$0xff] %v4200
      %4233 = vst [vmem:[#allocation2 + $0x78] sm:$0xff] %v4201
      %4234 = vst [vmem:[#allocation2 + $0x80] sm:$0xff] %v4202
      %4235 = vst [vmem:[#allocation2 + $0x88] sm:$0xff] %v4203
      %4236 = vst [vmem:[#allocation2 + $0x90] sm:$0xff] %v4204
      %4237 = vst [vmem:[#allocation2 + $0x98] sm:$0xff] %v4205
      %4238 = vst [vmem:[#allocation2 + $0xa0] sm:$0xff] %v4206
      %4239 = vst [vmem:[#allocation2 + $0xa8] sm:$0xff] %v4207
      %4240 = vst [vmem:[#allocation2 + $0xb0] sm:$0xff] %v4208
      %4241 = vst [vmem:[#allocation2 + $0xb8] sm:$0xff] %v4209
      %4242 = vst [vmem:[#allocation2 + $0xc0] sm:$0xff] %v4210
      %4243 = vst [vmem:[#allocation2 + $0xc8] sm:$0xff] %v4211
      %4244 = vst [vmem:[#allocation2 + $0xd0] sm:$0xff] %v4212
      %4245 = vst [vmem:[#allocation2 + $0xd8] sm:$0xff] %v4213
      %4246 = vst [vmem:[#allocation2 + $0xe0] sm:$0xff] %v4214
      %4247 = vst [vmem:[#allocation2 + $0xe8] sm:$0xff] %v4215
      %4248 = vst [vmem:[#allocation2 + $0xf0] sm:$0xff] %v4216
      %4249 = vst [vmem:[#allocation2 + $0xf8] sm:$0xff] %v4217
      %v4250 = vld [vmem:[#allocation2] sm:$0xff]
      %v4251 = vld [vmem:[#allocation2 + $0x8] sm:$0xff]
      %v4252 = vld [vmem:[#allocation2 + $0x10] sm:$0xff]
      %v4253 = vld [vmem:[#allocation2 + $0x18] sm:$0xff]
      %v4254 = vld [vmem:[#allocation2 + $0x20] sm:$0xff]
      %v4255 = vld [vmem:[#allocation2 + $0x28] sm:$0xff]
      %v4256 = vld [vmem:[#allocation2 + $0x30] sm:$0xff]
      %v4257 = vld [vmem:[#allocation2 + $0x38] sm:$0xff]
      %v4258 = vld [vmem:[#allocation2 + $0x40] sm:$0xff]
      %v4259 = vld [vmem:[#allocation2 + $0x48] sm:$0xff]
      %v4260 = vld [vmem:[#allocation2 + $0x50] sm:$0xff]
      %v4261 = vld [vmem:[#allocation2 + $0x58] sm:$0xff]
      %v4262 = vld [vmem:[#allocation2 + $0x60] sm:$0xff]
      %v4263 = vld [vmem:[#allocation2 + $0x68] sm:$0xff]
      %v4264 = vld [vmem:[#allocation2 + $0x70] sm:$0xff]
      %v4265 = vld [vmem:[#allocation2 + $0x78] sm:$0xff]
      %v4266 = vld [vmem:[#allocation2 + $0x80] sm:$0xff]
      %v4267 = vld [vmem:[#allocation2 + $0x88] sm:$0xff]
      %v4268 = vld [vmem:[#allocation2 + $0x90] sm:$0xff]
      %v4269 = vld [vmem:[#allocation2 + $0x98] sm:$0xff]
      %v4270 = vld [vmem:[#allocation2 + $0xa0] sm:$0xff]
      %v4271 = vld [vmem:[#allocation2 + $0xa8] sm:$0xff]
      %v4272 = vld [vmem:[#allocation2 + $0xb0] sm:$0xff]
      %v4273 = vld [vmem:[#allocation2 + $0xb8] sm:$0xff]
      %v4274 = vld [vmem:[#allocation2 + $0xc0] sm:$0xff]
      %v4275 = vld [vmem:[#allocation2 + $0xc8] sm:$0xff]
      %v4276 = vld [vmem:[#allocation2 + $0xd0] sm:$0xff]
      %v4277 = vld [vmem:[#allocation2 + $0xd8] sm:$0xff]
      %v4278 = vld [vmem:[#allocation2 + $0xe0] sm:$0xff]
      %v4279 = vld [vmem:[#allocation2 + $0xe8] sm:$0xff]
      %v4280 = vld [vmem:[#allocation2 + $0xf0] sm:$0xff]
      %v4281 = vld [vmem:[#allocation2 + $0xf8] sm:$0xff]
      %v4282 = vld [vmem:[%s2] sm:$0x1]
      %v4284 = vlaneseq
      %v4285 = vshrl.u32 %v4284, 7
      %v4286 = vsub.s32 0, %v4285
      %v4287 = vrot.slane %v4282, %v4286
      %v4289 = vadd.f32 %v4250, %v4287
      %v4290 = vadd.f32 %v4251, %v4287
      %v4291 = vadd.f32 %v4252, %v4287
      %v4292 = vadd.f32 %v4253, %v4287
      %v4293 = vadd.f32 %v4254, %v4287
      %v4294 = vadd.f32 %v4255, %v4287
      %v4295 = vadd.f32 %v4256, %v4287
      %v4296 = vadd.f32 %v4257, %v4287
      %v4297 = vadd.f32 %v4258, %v4287
      %v4298 = vadd.f32 %v4259, %v4287
      %v4299 = vadd.f32 %v4260, %v4287
      %v4300 = vadd.f32 %v4261, %v4287
      %v4301 = vadd.f32 %v4262, %v4287
      %v4302 = vadd.f32 %v4263, %v4287
      %v4303 = vadd.f32 %v4264, %v4287
      %v4304 = vadd.f32 %v4265, %v4287
      %v4305 = vadd.f32 %v4266, %v4287
      %v4306 = vadd.f32 %v4267, %v4287
      %v4307 = vadd.f32 %v4268, %v4287
      %v4308 = vadd.f32 %v4269, %v4287
      %v4309 = vadd.f32 %v4270, %v4287
      %v4310 = vadd.f32 %v4271, %v4287
      %v4311 = vadd.f32 %v4272, %v4287
      %v4312 = vadd.f32 %v4273, %v4287
      %v4313 = vadd.f32 %v4274, %v4287
      %v4314 = vadd.f32 %v4275, %v4287
      %v4315 = vadd.f32 %v4276, %v4287
      %v4316 = vadd.f32 %v4277, %v4287
      %v4317 = vadd.f32 %v4278, %v4287
      %v4318 = vadd.f32 %v4279, %v4287
      %v4319 = vadd.f32 %v4280, %v4287
      %v4320 = vadd.f32 %v4281, %v4287
      %v4321 = vld [vmem:[%s3] sm:$0xff]
      %v4322 = vld [vmem:[%s3 + $0x8] sm:$0xff]
      %vm4323 = vcmask 1040384
      %v4324 = vsel %vm4323, %v4321, 0.0
      %v4325 = vsel %vm4323, %v4322, 0.0
      %v4326 = vadd.f32 %v4324, %v4325
      %vm4327 = vcmask 1041409
      %v4328 = vsel %vm4327, %v4321, 0.0
      %v4329 = vsel %vm4327, %v4322, 0.0
      %v4330 = vadd.f32 %v4328, %v4329
      %v4331 = vmul.f32 %v4326, 0.001953125
      %v4332 = vmul.f32 %v4330, 0.001953125
      %v4333 = vmul.f32 %v4331, %v4331
      %v4335 = vrot.slane %v4333, 7
      %v4337 = vsub.f32 %v4332, %v4335
      %v4338 = vmax.f32 %v4337, 0.0
      %v4339 = vadd.f32 %v4338, 1e-05
      %v4340 = vrsqrt.pop %v4339
      %v4341 = vld [vmem:[%s4] sm:$0x1]
      %v4344 = vunpack.c.l.s4 1966171168
      %v4345 = vunpack.c.0.s8 %v4344
      %v4346 = vlaneseq
      %v4347 = vshrl.u32 %v4346, 7
      %v4348 = vsub.s32 %v4345, %v4347
      %v4349 = vrot.slane %v4340, %v4348
      %v4350 = vcombine.high %v4349, %v4349
      %v4352 = vunpack.c.l.s4 1966171168
      %v4353 = vunpack.c.0.s8 %v4352
      %v4354 = vlaneseq
      %v4355 = vshrl.u32 %v4354, 7
      %v4356 = vsub.s32 %v4353, %v4355
      %v4357 = vrot.slane %v4350, %v4356
      %v4359 = vmul.f32 %v4341, %v4357
      %v4360 = vld [vmem:[%s5] sm:$0x1]
      %v4361 = vmul.f32 %v4331, %v4359
      %v4362 = vsub.f32 %v4360, %v4361
      %v4364 = vlaneseq
      %v4365 = vshrl.u32 %v4364, 7
      %v4366 = vsub.s32 0, %v4365
      %v4367 = vrot.slane %v4359, %v4366
      %v4369 = vmul.f32 %v4289, %v4367
      %v4370 = vmul.f32 %v4290, %v4367
      %v4371 = vmul.f32 %v4291, %v4367
      %v4372 = vmul.f32 %v4292, %v4367
      %v4373 = vmul.f32 %v4293, %v4367
      %v4374 = vmul.f32 %v4294, %v4367
      %v4375 = vmul.f32 %v4295, %v4367
      %v4376 = vmul.f32 %v4296, %v4367
      %v4377 = vmul.f32 %v4297, %v4367
      %v4378 = vmul.f32 %v4298, %v4367
      %v4379 = vmul.f32 %v4299, %v4367
      %v4380 = vmul.f32 %v4300, %v4367
      %v4381 = vmul.f32 %v4301, %v4367
      %v4382 = vmul.f32 %v4302, %v4367
      %v4383 = vmul.f32 %v4303, %v4367
      %v4384 = vmul.f32 %v4304, %v4367
      %v4385 = vmul.f32 %v4305, %v4367
      %v4386 = vmul.f32 %v4306, %v4367
      %v4387 = vmul.f32 %v4307, %v4367
      %v4388 = vmul.f32 %v4308, %v4367
      %v4389 = vmul.f32 %v4309, %v4367
      %v4390 = vmul.f32 %v4310, %v4367
      %v4391 = vmul.f32 %v4311, %v4367
      %v4392 = vmul.f32 %v4312, %v4367
      %v4393 = vmul.f32 %v4313, %v4367
      %v4394 = vmul.f32 %v4314, %v4367
      %v4395 = vmul.f32 %v4315, %v4367
      %v4396 = vmul.f32 %v4316, %v4367
      %v4397 = vmul.f32 %v4317, %v4367
      %v4398 = vmul.f32 %v4318, %v4367
      %v4399 = vmul.f32 %v4319, %v4367
      %v4400 = vmul.f32 %v4320, %v4367
      %v4402 = vlaneseq
      %v4403 = vshrl.u32 %v4402, 7
      %v4404 = vsub.s32 0, %v4403
      %v4405 = vrot.slane %v4362, %v4404
      %v4407 = vadd.f32 %v4369, %v4405
      %v4408 = vadd.f32 %v4370, %v4405
      %v4409 = vadd.f32 %v4371, %v4405
      %v4410 = vadd.f32 %v4372, %v4405
      %v4411 = vadd.f32 %v4373, %v4405
      %v4412 = vadd.f32 %v4374, %v4405
      %v4413 = vadd.f32 %v4375, %v4405
      %v4414 = vadd.f32 %v4376, %v4405
      %v4415 = vadd.f32 %v4377, %v4405
      %v4416 = vadd.f32 %v4378, %v4405
      %v4417 = vadd.f32 %v4379, %v4405
      %v4418 = vadd.f32 %v4380, %v4405
      %v4419 = vadd.f32 %v4381, %v4405
      %v4420 = vadd.f32 %v4382, %v4405
      %v4421 = vadd.f32 %v4383, %v4405
      %v4422 = vadd.f32 %v4384, %v4405
      %v4423 = vadd.f32 %v4385, %v4405
      %v4424 = vadd.f32 %v4386, %v4405
      %v4425 = vadd.f32 %v4387, %v4405
      %v4426 = vadd.f32 %v4388, %v4405
      %v4427 = vadd.f32 %v4389, %v4405
      %v4428 = vadd.f32 %v4390, %v4405
      %v4429 = vadd.f32 %v4391, %v4405
      %v4430 = vadd.f32 %v4392, %v4405
      %v4431 = vadd.f32 %v4393, %v4405
      %v4432 = vadd.f32 %v4394, %v4405
      %v4433 = vadd.f32 %v4395, %v4405
      %v4434 = vadd.f32 %v4396, %v4405
      %v4435 = vadd.f32 %v4397, %v4405
      %v4436 = vadd.f32 %v4398, %v4405
      %v4437 = vadd.f32 %v4399, %v4405
      %v4438 = vadd.f32 %v4400, %v4405
      %v4439 = vmax.f32 %v4407, 0.0
      %v4440 = vmax.f32 %v4408, 0.0
      %v4441 = vmax.f32 %v4409, 0.0
      %v4442 = vmax.f32 %v4410, 0.0
      %v4443 = vmax.f32 %v4411, 0.0
      %v4444 = vmax.f32 %v4412, 0.0
      %v4445 = vmax.f32 %v4413, 0.0
      %v4446 = vmax.f32 %v4414, 0.0
      %v4447 = vmax.f32 %v4415, 0.0
      %v4448 = vmax.f32 %v4416, 0.0
      %v4449 = vmax.f32 %v4417, 0.0
      %v4450 = vmax.f32 %v4418, 0.0
      %v4451 = vmax.f32 %v4419, 0.0
      %v4452 = vmax.f32 %v4420, 0.0
      %v4453 = vmax.f32 %v4421, 0.0
      %v4454 = vmax.f32 %v4422, 0.0
      %v4455 = vmax.f32 %v4423, 0.0
      %v4456 = vmax.f32 %v4424, 0.0
      %v4457 = vmax.f32 %v4425, 0.0
      %v4458 = vmax.f32 %v4426, 0.0
      %v4459 = vmax.f32 %v4427, 0.0
      %v4460 = vmax.f32 %v4428, 0.0
      %v4461 = vmax.f32 %v4429, 0.0
      %v4462 = vmax.f32 %v4430, 0.0
      %v4463 = vmax.f32 %v4431, 0.0
      %v4464 = vmax.f32 %v4432, 0.0
      %v4465 = vmax.f32 %v4433, 0.0
      %v4466 = vmax.f32 %v4434, 0.0
      %v4467 = vmax.f32 %v4435, 0.0
      %v4468 = vmax.f32 %v4436, 0.0
      %v4469 = vmax.f32 %v4437, 0.0
      %v4470 = vmax.f32 %v4438, 0.0
      %4471 = vst [vmem:[%s251] sm:$0xff] %v4439
      %4472 = vst [vmem:[%s251 + $0x8] sm:$0xff] %v4440
      %4473 = vst [vmem:[%s251 + $0x10] sm:$0xff] %v4441
      %4474 = vst [vmem:[%s251 + $0x18] sm:$0xff] %v4442
      %4475 = vst [vmem:[%s251 + $0x20] sm:$0xff] %v4443
      %4476 = vst [vmem:[%s251 + $0x28] sm:$0xff] %v4444
      %4477 = vst [vmem:[%s251 + $0x30] sm:$0xff] %v4445
      %4478 = vst [vmem:[%s251 + $0x38] sm:$0xff] %v4446
      %4479 = vst [vmem:[%s251 + $0x40] sm:$0xff] %v4447
      %4480 = vst [vmem:[%s251 + $0x48] sm:$0xff] %v4448
      %4481 = vst [vmem:[%s251 + $0x50] sm:$0xff] %v4449
      %4482 = vst [vmem:[%s251 + $0x58] sm:$0xff] %v4450
      %4483 = vst [vmem:[%s251 + $0x60] sm:$0xff] %v4451
      %4484 = vst [vmem:[%s251 + $0x68] sm:$0xff] %v4452
      %4485 = vst [vmem:[%s251 + $0x70] sm:$0xff] %v4453
      %4486 = vst [vmem:[%s251 + $0x78] sm:$0xff] %v4454
      %4487 = vst [vmem:[%s251 + $0x80] sm:$0xff] %v4455
      %4488 = vst [vmem:[%s251 + $0x88] sm:$0xff] %v4456
      %4489 = vst [vmem:[%s251 + $0x90] sm:$0xff] %v4457
      %4490 = vst [vmem:[%s251 + $0x98] sm:$0xff] %v4458
      %4491 = vst [vmem:[%s251 + $0xa0] sm:$0xff] %v4459
      %4492 = vst [vmem:[%s251 + $0xa8] sm:$0xff] %v4460
      %4493 = vst [vmem:[%s251 + $0xb0] sm:$0xff] %v4461
      %4494 = vst [vmem:[%s251 + $0xb8] sm:$0xff] %v4462
      %4495 = vst [vmem:[%s251 + $0xc0] sm:$0xff] %v4463
      %4496 = vst [vmem:[%s251 + $0xc8] sm:$0xff] %v4464
      %4497 = vst [vmem:[%s251 + $0xd0] sm:$0xff] %v4465
      %4498 = vst [vmem:[%s251 + $0xd8] sm:$0xff] %v4466
      %4499 = vst [vmem:[%s251 + $0xe0] sm:$0xff] %v4467
      %4500 = vst [vmem:[%s251 + $0xe8] sm:$0xff] %v4468
      %4501 = vst [vmem:[%s251 + $0xf0] sm:$0xff] %v4469
      %4502 = vst [vmem:[%s251 + $0xf8] sm:$0xff] %v4470
      %s4503 = smul.u32 32, %s17
      %p4504 = scmp.lt.s32.totalorder %s4503, 63
      %s4505 = scalar_select %p4504, %s4503, 63
      %s4506 = smul.addr %s4505, 8
      %s4507 = scalar_lea.vmem %s6, %s4506
      // Predicated region
      $region45: #{conv_module_forward.3} parent=43 // pred_check
        %p4508 = pneg %p166
      $region46: #{conv_module_forward.3} parent=43 // pred_check_branch
        %4510 = sbr.rel (%p4508) target = $region48
      $region47: #{conv_module_forward.3} parent=43 // pred_region
        %s4511 = smul.u32 32, %s17
      $region48: #{conv_module_forward.3} parent=43 // pred_fallthru
        _
    $region44: #{conv_module_forward.3} parent=5 // pred_fallthru
      _
    %p4512 = scmp.le.s32.totalorder 2, %s12
    // Predicated region
    $region49: #{conv_module_forward.3} parent=5 // pred_check
      %p4513 = pneg %p4512
    $region50: #{conv_module_forward.3} parent=5 // pred_check_branch
      %4515 = sbr.rel (%p4513) target = $region52
    $region51: #{conv_module_forward.3} parent=5 // pred_region
      %s4516 = ssub.s32 %s12, 2
      // Predicated region
      $region53: #{conv_module_forward.3} parent=51 // pred_check
        %p4517 = pneg %p172
      $region54: #{conv_module_forward.3} parent=51 // pred_check_branch
        %4519 = sbr.rel (%p4517) target = $region56
      $region55: #{conv_module_forward.3} parent=51 // pred_region
        %s4520 = smul.u32 32, %s18
        %p4521 = scmp.lt.s32.totalorder %s4520, 63
        %s4522 = scalar_select %p4521, %s4520, 63
        %s4523 = smul.addr %s4522, 8
        %s4524 = scalar_lea.vmem %s6, %s4523
      $region56: #{conv_module_forward.3} parent=51 // pred_fallthru
        _
    $region52: #{conv_module_forward.3} parent=5 // pred_fallthru
      _
  $region6: #{conv_module_forward.3} parent=0 // loop_footer
    %s16 = sadd.s32 1, %s12
  $region7: #{conv_module_forward.3} parent=0 // loop_footer_branch
    %11 = sbr.rel target = $region3
  $region8: #{conv_module_forward.3} parent=0 // loop_exit
    _

// kernel: conv_module_forward.2
$region0: #{conv_module_forward.2}
  #allocation0 [shape = 'u32[]', space=smem, size = 0x4, offset = 0x4, fixed_abs, tag = 'smem constant byte address 0x4 - core index']
  #allocation1 [shape = 'u32[144,128]{1,0:T(1,128)}', space=vmem, size = 0x12000, scoped, tag = 'internal scratch']
  #allocation2 [shape = 'f32[256,128]{1,0:T(8,128)}', space=vmem, size = 0x20000, scoped, tag = 'scratch operand']
  %s0 = inlined_call_operand.vmem [shape: f32[2,18,18,8], index: 0, kind: input, shape index: {}]
  %s1 = inlined_call_operand.vmem [shape: f32[9,8,128], index: 1, kind: input, shape index: {}]
  %s2 = inlined_call_operand.vmem [shape: f32[1,128], index: 2, kind: input, shape index: {}]
  %s3 = inlined_call_operand.vmem [shape: f32[2,8,128], index: 3, kind: output, shape index: {}]
  %s4 = sld [smem:[#allocation0]]
  $region45: #{conv_module_forward.2} parent=0
    _
  %s6 = ssub.s32 1, %s4
  %s7 = scalar_select 0, %s6, %s4
  loop: start=0, step=1, limit=4
  $region2: #{conv_module_forward.2} parent=0 // loop_pre_header
    _
  $region3: #{conv_module_forward.2} parent=0 // loop_header
    %s9 = sphi 0, %s13
    %p10 = scmp.ge.s32.totalorder %s9, 4
    %s19 = sphi 0, %s21
    %s22 = sphi 0, %s19
    %s23 = sphi 0, %s22
    %s39 = sphi 0, %s23
    %s43 = sphi 0, %s43
    %s45 = sphi 0, %s43
    %s46 = sphi 0, %s45
    %s60 = sphi 0, %s46
    %s64 = sphi 0, %s64
    %s66 = sphi 0, %s64
    %s67 = sphi 0, %s66
    %s81 = sphi 0, %s67
    %s87 = sphi 0, %s89
    %s90 = sphi 0, %s87
    %s91 = sphi 0, %s90
    %s107 = sphi 0, %s91
  $region4: #{conv_module_forward.2} parent=0 // loop_header_branch
    %12 = sbr.rel (%p10) target = $region8
  $region5: #{conv_module_forward.2} parent=0 // loop_body
    %s14 = ssub.s32 %s9, 1
    %s15 = ssub.s32 %s9, 2
    %s16 = sadd.s32 %s9, 1
    %s17 = ssub.s32 %s9, %s16
    %p18 = scmp.eq.s32.totalorder %s17, 0
    %s20 = sadd.s32 %s19, 1
    %s21 = scalar_select %p18, %s19, %s20
    %p24 = pneg %p18
    %p25 = scmp.eq.s32.totalorder %s9, 1
    %p26 = por %p24, %p25
    %p27 = scmp.ne.s32.totalorder %s19, %s22
    %p28 = scmp.eq.s32.totalorder %s9, 0
    %p29 = por %p27, %p28
    %p30 = scmp.ne.s32.totalorder %s19, %s22
    %p31 = scmp.eq.s32.totalorder %s14, 1
    %p32 = por %p30, %p31
    %p33 = scmp.ne.s32.totalorder %s22, %s23
    %p34 = scmp.eq.s32.totalorder %s14, 0
    %p35 = por %p33, %p34
    %p36 = scmp.ne.s32.totalorder %s22, %s23
    %p37 = scmp.eq.s32.totalorder %s15, 1
    %p38 = por %p36, %p37
    %p40 = scmp.ne.s32.totalorder %s23, %s39
    %p41 = scmp.eq.s32.totalorder %s15, 0
    %p42 = por %p40, %p41
    %s44 = sadd.s32 %s43, 1
    %p47 = scmp.eq.s32.totalorder %s9, 1
    %p48 = scmp.ne.s32.totalorder %s43, %s45
    %p49 = scmp.eq.s32.totalorder %s9, 0
    %p50 = por %p48, %p49
    %p51 = scmp.ne.s32.totalorder %s43, %s45
    %p52 = scmp.eq.s32.totalorder %s14, 1
    %p53 = por %p51, %p52
    %p54 = scmp.ne.s32.totalorder %s45, %s46
    %p55 = scmp.eq.s32.totalorder %s14, 0
    %p56 = por %p54, %p55
    %p57 = scmp.ne.s32.totalorder %s45, %s46
    %p58 = scmp.eq.s32.totalorder %s15, 1
    %p59 = por %p57, %p58
    %p61 = scmp.ne.s32.totalorder %s46, %s60
    %p62 = scmp.eq.s32.totalorder %s15, 0
    %p63 = por %p61, %p62
    %s65 = sadd.s32 %s64, 1
    %p68 = scmp.eq.s32.totalorder %s9, 1
    %p69 = scmp.ne.s32.totalorder %s64, %s66
    %p70 = scmp.eq.s32.totalorder %s9, 0
    %p71 = por %p69, %p70
    %p72 = scmp.ne.s32.totalorder %s64, %s66
    %p73 = scmp.eq.s32.totalorder %s14, 1
    %p74 = por %p72, %p73
    %p75 = scmp.ne.s32.totalorder %s66, %s67
    %p76 = scmp.eq.s32.totalorder %s14, 0
    %p77 = por %p75, %p76
    %p78 = scmp.ne.s32.totalorder %s66, %s67
    %p79 = scmp.eq.s32.totalorder %s15, 1
    %p80 = por %p78, %p79
    %p82 = scmp.ne.s32.totalorder %s67, %s81
    %p83 = scmp.eq.s32.totalorder %s15, 0
    %p84 = por %p82, %p83
    %s85 = ssub.s32 %s9, %s16
    %p86 = scmp.eq.s32.totalorder %s85, 0
    %s88 = sadd.s32 %s87, 1
    %s89 = scalar_select %p86, %s87, %s88
    %p92 = pneg %p86
    %p93 = scmp.eq.s32.totalorder %s9, 1
    %p94 = por %p92, %p93
    %p95 = scmp.ne.s32.totalorder %s87, %s90
    %p96 = scmp.eq.s32.totalorder %s9, 0
    %p97 = por %p95, %p96
    %p98 = scmp.ne.s32.totalorder %s87, %s90
    %p99 = scmp.eq.s32.totalorder %s14, 1
    %p100 = por %p98, %p99
    %p101 = scmp.ne.s32.totalorder %s90, %s91
    %p102 = scmp.eq.s32.totalorder %s14, 0
    %p103 = por %p101, %p102
    %p104 = scmp.ne.s32.totalorder %s90, %s91
    %p105 = scmp.eq.s32.totalorder %s15, 1
    %p106 = por %p104, %p105
    %p108 = scmp.ne.s32.totalorder %s91, %s107
    %p109 = scmp.eq.s32.totalorder %s15, 0
    %p110 = por %p108, %p109
    %p111 = scmp.le.s32.totalorder 1, %s9
    %p112 = scmp.lt.s32.totalorder %s9, 3
    %p113 = pnand %p111, %p112
    %p114 = pneg %p113
    // Predicated region
    $region9: #{conv_module_forward.2} parent=5 // pred_check
      _
    $region10: #{conv_module_forward.2} parent=5 // pred_check_branch
      %116 = sbr.rel (%p113) target = $region12
    $region11: #{conv_module_forward.2} parent=5 // pred_region
      %s117 = ssub.s32 %s9, 1
      // Predicated region
      $region13: #{conv_module_forward.2} parent=11 // pred_check
        %p118 = pneg %p56
      $region14: #{conv_module_forward.2} parent=11 // pred_check_branch
        %120 = sbr.rel (%p118) target = $region16
      $region15: #{conv_module_forward.2} parent=11 // pred_region
        _
      $region16: #{conv_module_forward.2} parent=11 // pred_fallthru
        _
      // Predicated region
      $region17: #{conv_module_forward.2} parent=11 // pred_check
        %p121 = pneg %p77
      $region18: #{conv_module_forward.2} parent=11 // pred_check_branch
        %123 = sbr.rel (%p121) target = $region20
      $region19: #{conv_module_forward.2} parent=11 // pred_region
        _
      $region20: #{conv_module_forward.2} parent=11 // pred_fallthru
        _
    $region12: #{conv_module_forward.2} parent=5 // pred_fallthru
      _
    %p124 = scmp.lt.s32.totalorder %s9, 2
    // Predicated region
    $region21: #{conv_module_forward.2} parent=5 // pred_check
      %p125 = pneg %p124
    $region22: #{conv_module_forward.2} parent=5 // pred_check_branch
      %127 = sbr.rel (%p125) target = $region24
    $region23: #{conv_module_forward.2} parent=5 // pred_region
      // Predicated region
      $region25: #{conv_module_forward.2} parent=23 // pred_check
        %p128 = pneg %p29
      $region26: #{conv_module_forward.2} parent=23 // pred_check_branch
        %130 = sbr.rel (%p128) target = $region28
      $region27: #{conv_module_forward.2} parent=23 // pred_region
        %p131 = scmp.lt.s32.totalorder %s9, 1
        %s132 = scalar_select %p131, %s9, 1
        %s133 = smul.addr %s132, 54
        %s134 = smul.addr %s133, 8
        %s135 = scalar_lea.vmem %s0, %s134
      $region28: #{conv_module_forward.2} parent=23 // pred_fallthru
        _
    $region24: #{conv_module_forward.2} parent=5 // pred_fallthru
      _
    %p136 = scmp.le.s32.totalorder 1, %s9
    %p137 = scmp.lt.s32.totalorder %s9, 3
    %p138 = pnand %p136, %p137
    %p139 = pneg %p138
    // Predicated region
    $region29: #{conv_module_forward.2} parent=5 // pred_check
      _
    $region30: #{conv_module_forward.2} parent=5 // pred_check_branch
      %141 = sbr.rel (%p138) target = $region32
    $region31: #{conv_module_forward.2} parent=5 // pred_region
      %s142 = ssub.s32 %s9, 1
      %p143 = scmp.lt.s32.totalorder %s14, 1
      %s144 = scalar_select %p143, %s14, 1
      %s145 = smul.addr %s144, 54
      %s146 = smul.addr %s145, 8
      %s147 = scalar_lea.vmem %s0, %s146
      %p148 = pneg %p35
      %p149 = pneg %p32
      %p150 = pneg %p56
      %p151 = pneg %p53
      %p152 = pneg %p77
      %p153 = pneg %p74
      %p154 = pneg %p103
      %p155 = pneg %p100
      %p156 = scmp.lt.s32.totalorder %s14, 1
      %s157 = scalar_select %p156, %s14, 1
      %s158 = smul.addr %s157, 8
      %s159 = scalar_lea.vmem %s3, %s158
      %p160 = scmp.lt.s32.totalorder %s14, 1
      %s161 = scalar_select %p160, %s14, 1
      %s162 = smul.addr %s161, 54
      %s163 = smul.addr %s162, 8
      %s164 = scalar_lea.vmem %s0, %s163
      %p165 = scmp.lt.s32.totalorder %s14, 1
      %s166 = scalar_select %p165, %s14, 1
      %s167 = smul.addr %s166, 8
      %s168 = scalar_lea.vmem %s3, %s167
      %v169 = vld [vmem:[%s164] sm:$0xff]
      %v170 = vld [vmem:[%s164 + $0x8] sm:$0xff]
      %v171 = vld [vmem:[%s164 + $0x18] sm:$0xff]
      %v172 = vld [vmem:[%s164 + $0x20] sm:$0xff]
      %v173 = vld [vmem:[%s164 + $0x30] sm:$0xff]
      %v174 = vld [vmem:[%s164 + $0x38] sm:$0xff]
      %v175 = vld [vmem:[%s164 + $0x48] sm:$0xff]
      %v176 = vld [vmem:[%s164 + $0x50] sm:$0xff]
      %v177 = vld [vmem:[%s164 + $0x60] sm:$0xff]
      %v178 = vld [vmem:[%s164 + $0x68] sm:$0xff]
      %v179 = vld [vmem:[%s164 + $0x78] sm:$0xff]
      %v180 = vld [vmem:[%s164 + $0x80] sm:$0xff]
      %v181 = vld [vmem:[%s164 + $0x90] sm:$0xff]
      %v182 = vld [vmem:[%s164 + $0x98] sm:$0xff]
      %v183 = vld [vmem:[%s164 + $0xa8] sm:$0xff]
      %v184 = vld [vmem:[%s164 + $0xb0] sm:$0xff]
      %v185 = vld [vmem:[%s164 + $0xc0] sm:$0xff]
      %v186 = vld [vmem:[%s164 + $0xc8] sm:$0xff]
      %v187 = vld [vmem:[%s164 + $0xd8] sm:$0xff]
      %v188 = vld [vmem:[%s164 + $0xe0] sm:$0xff]
      %v189 = vld [vmem:[%s164 + $0xf0] sm:$0xff]
      %v190 = vld [vmem:[%s164 + $0xf8] sm:$0xff]
      %v191 = vld [vmem:[%s164 + $0x108] sm:$0xff]
      %v192 = vld [vmem:[%s164 + $0x110] sm:$0xff]
      %v193 = vld [vmem:[%s164 + $0x120] sm:$0xff]
      %v194 = vld [vmem:[%s164 + $0x128] sm:$0xff]
      %v195 = vld [vmem:[%s164 + $0x138] sm:$0xff]
      %v196 = vld [vmem:[%s164 + $0x140] sm:$0xff]
      %v197 = vld [vmem:[%s164 + $0x150] sm:$0xff]
      %v198 = vld [vmem:[%s164 + $0x158] sm:$0xff]
      %v199 = vld [vmem:[%s164 + $0x168] sm:$0xff]
      %v200 = vld [vmem:[%s164 + $0x170] sm:$0xff]
      %v201 = vld [vmem:[%s1] sm:$0xff]
      %vm202 = vcmask 64512
      %v204 = vsel %vm202, %v169, 0
      %v207 = vsel %vm202, %v170, 0
      %v210 = vsel %vm202, %v171, 0
      %v213 = vsel %vm202, %v172, 0
      %v216 = vsel %vm202, %v173, 0
      %v219 = vsel %vm202, %v174, 0
      %v222 = vsel %vm202, %v175, 0
      %v225 = vsel %vm202, %v176, 0
      %v228 = vsel %vm202, %v177, 0
      %v231 = vsel %vm202, %v178, 0
      %v234 = vsel %vm202, %v179, 0
      %v237 = vsel %vm202, %v180, 0
      %v240 = vsel %vm202, %v181, 0
      %v243 = vsel %vm202, %v182, 0
      %v246 = vsel %vm202, %v183, 0
      %v249 = vsel %vm202, %v184, 0
      %v252 = vsel %vm202, %v185, 0
      %v255 = vsel %vm202, %v186, 0
      %v258 = vsel %vm202, %v187, 0
      %v261 = vsel %vm202, %v188, 0
      %v264 = vsel %vm202, %v189, 0
      %v267 = vsel %vm202, %v190, 0
      %v270 = vsel %vm202, %v191, 0
      %v273 = vsel %vm202, %v192, 0
      %v276 = vsel %vm202, %v193, 0
      %v279 = vsel %vm202, %v194, 0
      %v282 = vsel %vm202, %v195, 0
      %v285 = vsel %vm202, %v196, 0
      %v288 = vsel %vm202, %v197, 0
      %v291 = vsel %vm202, %v198, 0
      %v294 = vsel %vm202, %v199, 0
      %v297 = vsel %vm202, %v200, 0
      %299 = vmatprep.subr.mxu0 0.0
      %300 = vmatpush1.msra.mxu0 0.0
      %301 = vmatprep.subr.mxu0 0.0
      %302 = vmatpush1.msra.mxu0 0.0
      %303 = vmatprep.subr.mxu0 0.0
      %304 = vmatpush1.msra.mxu0 0.0
      %305 = vmatprep.subr.mxu0 0.0
      %306 = vmatpush1.msra.mxu0 0.0
      %307 = vmatprep.subr.mxu0 0.0
      %308 = vmatpush1.msra.mxu0 0.0
      %309 = vmatprep.subr.mxu0 0.0
      %310 = vmatpush1.msra.mxu0 0.0
      %311 = vmatprep.subr.mxu0 0.0
      %312 = vmatpush1.msra.mxu0 0.0
      %313 = vmatprep.subr.mxu0 0.0
      %314 = vmatpush1.msra.mxu0 0.0
      %315 = vmatprep.subr.mxu0 0.0
      %316 = vmatpush1.msra.mxu0 0.0
      %317 = vmatprep.subr.mxu0 0.0
      %318 = vmatpush1.msra.mxu0 0.0
      %319 = vmatprep.subr.mxu0 0.0
      %320 = vmatpush1.msra.mxu0 0.0
      %321 = vmatprep.subr.mxu0 0.0
      %322 = vmatpush1.msra.mxu0 0.0
      %323 = vmatprep.subr.mxu0 0.0
      %324 = vmatpush1.msra.mxu0 0.0
      %325 = vmatprep.subr.mxu0 0.0
      %326 = vmatpush1.msra.mxu0 0.0
      %327 = vmatprep.subr.mxu0 0.0
      %328 = vmatpush1.msra.mxu0 0.0
      %329 = vmatprep.subr.mxu0 0.0
      %330 = vmatpush1.msra.mxu0 %v201
      %331 = vmatprep.subr.mxu0 0.0
      %332 = vmatpush2.msra.mxu0 0.0
      %333 = vmatprep.subr.mxu0 0.0
      %334 = vmatpush2.msra.mxu0 0.0
      %335 = vmatprep.subr.mxu0 0.0
      %336 = vmatpush2.msra.mxu0 0.0
      %337 = vmatprep.subr.mxu0 0.0
      %338 = vmatpush2.msra.mxu0 0.0
      %339 = vmatprep.subr.mxu0 0.0
      %340 = vmatpush2.msra.mxu0 0.0
      %341 = vmatprep.subr.mxu0 0.0
      %342 = vmatpush2.msra.mxu0 0.0
      %343 = vmatprep.subr.mxu0 0.0
      %344 = vmatpush2.msra.mxu0 0.0
      %345 = vmatprep.subr.mxu0 0.0
      %346 = vmatpush2.msra.mxu0 0.0
      %347 = vmatprep.subr.mxu0 0.0
      %348 = vmatpush2.msra.mxu0 0.0
      %349 = vmatprep.subr.mxu0 0.0
      %350 = vmatpush2.msra.mxu0 0.0
      %351 = vmatprep.subr.mxu0 0.0
      %352 = vmatpush2.msra.mxu0 0.0
      %353 = vmatprep.subr.mxu0 0.0
      %354 = vmatpush2.msra.mxu0 0.0
      %355 = vmatprep.subr.mxu0 0.0
      %356 = vmatpush2.msra.mxu0 0.0
      %357 = vmatprep.subr.mxu0 0.0
      %358 = vmatpush2.msra.mxu0 0.0
      %359 = vmatprep.subr.mxu0 0.0
      %360 = vmatpush2.msra.mxu0 0.0
      %361 = vmatprep.subr.mxu0 0.0
      %362 = vmatpush2.msra.mxu0 0.0
      %363 = vmatprep.mubr.f32.mxu0 0.0
      %364 = vmatmul.mubr.f32.gmra.mxu0 %v204
      %v365 = vpop.f32.mrf.mxu0
      %v366 = vadd.f32 0.0, %v365
      %v367 = vpop.f32.mrf.mxu0
      %368 = vmatprep.mubr.f32.mxu0 0.0
      %369 = vmatmul.mubr.f32.gmra.mxu0 %v207
      %v370 = vpop.f32.mrf.mxu0
      %v371 = vadd.f32 0.0, %v370
      %v372 = vpop.f32.mrf.mxu0
      %373 = vmatprep.mubr.f32.mxu0 0.0
      %374 = vmatmul.mubr.f32.gmra.mxu0 %v210
      %v375 = vpop.f32.mrf.mxu0
      %v376 = vadd.f32 0.0, %v375
      %v377 = vpop.f32.mrf.mxu0
      %378 = vmatprep.mubr.f32.mxu0 0.0
      %379 = vmatmul.mubr.f32.gmra.mxu0 %v213
      %v380 = vpop.f32.mrf.mxu0
      %v381 = vadd.f32 0.0, %v380
      %v382 = vpop.f32.mrf.mxu0
      %383 = vmatprep.mubr.f32.mxu0 0.0
      %384 = vmatmul.mubr.f32.gmra.mxu0 %v216
      %v385 = vpop.f32.mrf.mxu0
      %v386 = vadd.f32 0.0, %v385
      %v387 = vpop.f32.mrf.mxu0
      %388 = vmatprep.mubr.f32.mxu0 0.0
      %389 = vmatmul.mubr.f32.gmra.mxu0 %v219
      %v390 = vpop.f32.mrf.mxu0
      %v391 = vadd.f32 0.0, %v390
      %v392 = vpop.f32.mrf.mxu0
      %393 = vmatprep.mubr.f32.mxu0 0.0
      %394 = vmatmul.mubr.f32.gmra.mxu0 %v222
      %v395 = vpop.f32.mrf.mxu0
      %v396 = vadd.f32 0.0, %v395
      %v397 = vpop.f32.mrf.mxu0
      %398 = vmatprep.mubr.f32.mxu0 0.0
      %399 = vmatmul.mubr.f32.gmra.mxu0 %v225
      %v400 = vpop.f32.mrf.mxu0
      %v401 = vadd.f32 0.0, %v400
      %v402 = vpop.f32.mrf.mxu0
      %403 = vmatprep.mubr.f32.mxu0 0.0
      %404 = vmatmul.mubr.f32.gmra.mxu0 %v228
      %v405 = vpop.f32.mrf.mxu0
      %v406 = vadd.f32 0.0, %v405
      %v407 = vpop.f32.mrf.mxu0
      %408 = vmatprep.mubr.f32.mxu0 0.0
      %409 = vmatmul.mubr.f32.gmra.mxu0 %v231
      %v410 = vpop.f32.mrf.mxu0
      %v411 = vadd.f32 0.0, %v410
      %v412 = vpop.f32.mrf.mxu0
      %413 = vmatprep.mubr.f32.mxu0 0.0
      %414 = vmatmul.mubr.f32.gmra.mxu0 %v234
      %v415 = vpop.f32.mrf.mxu0
      %v416 = vadd.f32 0.0, %v415
      %v417 = vpop.f32.mrf.mxu0
      %418 = vmatprep.mubr.f32.mxu0 0.0
      %419 = vmatmul.mubr.f32.gmra.mxu0 %v237
      %v420 = vpop.f32.mrf.mxu0
      %v421 = vadd.f32 0.0, %v420
      %v422 = vpop.f32.mrf.mxu0
      %423 = vmatprep.mubr.f32.mxu0 0.0
      %424 = vmatmul.mubr.f32.gmra.mxu0 %v240
      %v425 = vpop.f32.mrf.mxu0
      %v426 = vadd.f32 0.0, %v425
      %v427 = vpop.f32.mrf.mxu0
      %428 = vmatprep.mubr.f32.mxu0 0.0
      %429 = vmatmul.mubr.f32.gmra.mxu0 %v243
      %v430 = vpop.f32.mrf.mxu0
      %v431 = vadd.f32 0.0, %v430
      %v432 = vpop.f32.mrf.mxu0
      %433 = vmatprep.mubr.f32.mxu0 0.0
      %434 = vmatmul.mubr.f32.gmra.mxu0 %v246
      %v435 = vpop.f32.mrf.mxu0
      %v436 = vadd.f32 0.0, %v435
      %v437 = vpop.f32.mrf.mxu0
      %438 = vmatprep.mubr.f32.mxu0 0.0
      %439 = vmatmul.mubr.f32.gmra.mxu0 %v249
      %v440 = vpop.f32.mrf.mxu0
      %v441 = vadd.f32 0.0, %v440
      %v442 = vpop.f32.mrf.mxu0
      %443 = vmatprep.mubr.f32.mxu0 0.0
      %444 = vmatmul.mubr.f32.gmra.mxu0 %v252
      %v445 = vpop.f32.mrf.mxu0
      %v446 = vadd.f32 0.0, %v445
      %v447 = vpop.f32.mrf.mxu0
      %448 = vmatprep.mubr.f32.mxu0 0.0
      %449 = vmatmul.mubr.f32.gmra.mxu0 %v255
      %v450 = vpop.f32.mrf.mxu0
      %v451 = vadd.f32 0.0, %v450
      %v452 = vpop.f32.mrf.mxu0
      %453 = vmatprep.mubr.f32.mxu0 0.0
      %454 = vmatmul.mubr.f32.gmra.mxu0 %v258
      %v455 = vpop.f32.mrf.mxu0
      %v456 = vadd.f32 0.0, %v455
      %v457 = vpop.f32.mrf.mxu0
      %458 = vmatprep.mubr.f32.mxu0 0.0
      %459 = vmatmul.mubr.f32.gmra.mxu0 %v261
      %v460 = vpop.f32.mrf.mxu0
      %v461 = vadd.f32 0.0, %v460
      %v462 = vpop.f32.mrf.mxu0
      %463 = vmatprep.mubr.f32.mxu0 0.0
      %464 = vmatmul.mubr.f32.gmra.mxu0 %v264
      %v465 = vpop.f32.mrf.mxu0
      %v466 = vadd.f32 0.0, %v465
      %v467 = vpop.f32.mrf.mxu0
      %468 = vmatprep.mubr.f32.mxu0 0.0
      %469 = vmatmul.mubr.f32.gmra.mxu0 %v267
      %v470 = vpop.f32.mrf.mxu0
      %v471 = vadd.f32 0.0, %v470
      %v472 = vpop.f32.mrf.mxu0
      %473 = vmatprep.mubr.f32.mxu0 0.0
      %474 = vmatmul.mubr.f32.gmra.mxu0 %v270
      %v475 = vpop.f32.mrf.mxu0
      %v476 = vadd.f32 0.0, %v475
      %v477 = vpop.f32.mrf.mxu0
      %478 = vmatprep.mubr.f32.mxu0 0.0
      %479 = vmatmul.mubr.f32.gmra.mxu0 %v273
      %v480 = vpop.f32.mrf.mxu0
      %v481 = vadd.f32 0.0, %v480
      %v482 = vpop.f32.mrf.mxu0
      %483 = vmatprep.mubr.f32.mxu0 0.0
      %484 = vmatmul.mubr.f32.gmra.mxu0 %v276
      %v485 = vpop.f32.mrf.mxu0
      %v486 = vadd.f32 0.0, %v485
      %v487 = vpop.f32.mrf.mxu0
      %488 = vmatprep.mubr.f32.mxu0 0.0
      %489 = vmatmul.mubr.f32.gmra.mxu0 %v279
      %v490 = vpop.f32.mrf.mxu0
      %v491 = vadd.f32 0.0, %v490
      %v492 = vpop.f32.mrf.mxu0
      %493 = vmatprep.mubr.f32.mxu0 0.0
      %494 = vmatmul.mubr.f32.gmra.mxu0 %v282
      %v495 = vpop.f32.mrf.mxu0
      %v496 = vadd.f32 0.0, %v495
      %v497 = vpop.f32.mrf.mxu0
      %498 = vmatprep.mubr.f32.mxu0 0.0
      %499 = vmatmul.mubr.f32.gmra.mxu0 %v285
      %v500 = vpop.f32.mrf.mxu0
      %v501 = vadd.f32 0.0, %v500
      %v502 = vpop.f32.mrf.mxu0
      %503 = vmatprep.mubr.f32.mxu0 0.0
      %504 = vmatmul.mubr.f32.gmra.mxu0 %v288
      %v505 = vpop.f32.mrf.mxu0
      %v506 = vadd.f32 0.0, %v505
      %v507 = vpop.f32.mrf.mxu0
      %508 = vmatprep.mubr.f32.mxu0 0.0
      %509 = vmatmul.mubr.f32.gmra.mxu0 %v291
      %v510 = vpop.f32.mrf.mxu0
      %v511 = vadd.f32 0.0, %v510
      %v512 = vpop.f32.mrf.mxu0
      %513 = vmatprep.mubr.f32.mxu0 0.0
      %514 = vmatmul.mubr.f32.gmra.mxu0 %v294
      %v515 = vpop.f32.mrf.mxu0
      %v516 = vadd.f32 0.0, %v515
      %v517 = vpop.f32.mrf.mxu0
      %518 = vmatprep.mubr.f32.mxu0 0.0
      %519 = vmatmul.mubr.f32.gmra.mxu0 %v297
      %v520 = vpop.f32.mrf.mxu0
      %v521 = vadd.f32 0.0, %v520
      %v522 = vpop.f32.mrf.mxu0
      %523 = vdwg.mxu0
      %524 = vst [vmem:[#allocation2] sm:$0xff] %v366
      %525 = vst [vmem:[#allocation2 + $0x8] sm:$0xff] %v371
      %526 = vst [vmem:[#allocation2 + $0x10] sm:$0xff] %v376
      %527 = vst [vmem:[#allocation2 + $0x18] sm:$0xff] %v381
      %528 = vst [vmem:[#allocation2 + $0x20] sm:$0xff] %v386
      %529 = vst [vmem:[#allocation2 + $0x28] sm:$0xff] %v391
      %530 = vst [vmem:[#allocation2 + $0x30] sm:$0xff] %v396
      %531 = vst [vmem:[#allocation2 + $0x38] sm:$0xff] %v401
      %532 = vst [vmem:[#allocation2 + $0x40] sm:$0xff] %v406
      %533 = vst [vmem:[#allocation2 + $0x48] sm:$0xff] %v411
      %534 = vst [vmem:[#allocation2 + $0x50] sm:$0xff] %v416
      %535 = vst [vmem:[#allocation2 + $0x58] sm:$0xff] %v421
      %536 = vst [vmem:[#allocation2 + $0x60] sm:$0xff] %v426
      %537 = vst [vmem:[#allocation2 + $0x68] sm:$0xff] %v431
      %538 = vst [vmem:[#allocation2 + $0x70] sm:$0xff] %v436
      %539 = vst [vmem:[#allocation2 + $0x78] sm:$0xff] %v441
      %540 = vst [vmem:[#allocation2 + $0x80] sm:$0xff] %v446
      %541 = vst [vmem:[#allocation2 + $0x88] sm:$0xff] %v451
      %542 = vst [vmem:[#allocation2 + $0x90] sm:$0xff] %v456
      %543 = vst [vmem:[#allocation2 + $0x98] sm:$0xff] %v461
      %544 = vst [vmem:[#allocation2 + $0xa0] sm:$0xff] %v466
      %545 = vst [vmem:[#allocation2 + $0xa8] sm:$0xff] %v471
      %546 = vst [vmem:[#allocation2 + $0xb0] sm:$0xff] %v476
      %547 = vst [vmem:[#allocation2 + $0xb8] sm:$0xff] %v481
      %548 = vst [vmem:[#allocation2 + $0xc0] sm:$0xff] %v486
      %549 = vst [vmem:[#allocation2 + $0xc8] sm:$0xff] %v491
      %550 = vst [vmem:[#allocation2 + $0xd0] sm:$0xff] %v496
      %551 = vst [vmem:[#allocation2 + $0xd8] sm:$0xff] %v501
      %552 = vst [vmem:[#allocation2 + $0xe0] sm:$0xff] %v506
      %553 = vst [vmem:[#allocation2 + $0xe8] sm:$0xff] %v511
      %554 = vst [vmem:[#allocation2 + $0xf0] sm:$0xff] %v516
      %555 = vst [vmem:[#allocation2 + $0xf8] sm:$0xff] %v521
      %v556 = vld [vmem:[%s164 + $0x1] sm:$0xff]
      %v557 = vld [vmem:[%s164 + $0x9] sm:$0xff]
      %v558 = vld [vmem:[%s164 + $0x19] sm:$0xff]
      %v559 = vld [vmem:[%s164 + $0x21] sm:$0xff]
      %v560 = vld [vmem:[%s164 + $0x31] sm:$0xff]
      %v561 = vld [vmem:[%s164 + $0x39] sm:$0xff]
      %v562 = vld [vmem:[%s164 + $0x49] sm:$0xff]
      %v563 = vld [vmem:[%s164 + $0x51] sm:$0xff]
      %v564 = vld [vmem:[%s164 + $0x61] sm:$0xff]
      %v565 = vld [vmem:[%s164 + $0x69] sm:$0xff]
      %v566 = vld [vmem:[%s164 + $0x79] sm:$0xff]
      %v567 = vld [vmem:[%s164 + $0x81] sm:$0xff]
      %v568 = vld [vmem:[%s164 + $0x91] sm:$0xff]
      %v569 = vld [vmem:[%s164 + $0x99] sm:$0xff]
      %v570 = vld [vmem:[%s164 + $0xa9] sm:$0xff]
      %v571 = vld [vmem:[%s164 + $0xb1] sm:$0xff]
      %v572 = vld [vmem:[%s164 + $0xc1] sm:$0xff]
      %v573 = vld [vmem:[%s164 + $0xc9] sm:$0xff]
      %v574 = vld [vmem:[%s164 + $0xd9] sm:$0xff]
      %v575 = vld [vmem:[%s164 + $0xe1] sm:$0xff]
      %v576 = vld [vmem:[%s164 + $0xf1] sm:$0xff]
      %v577 = vld [vmem:[%s164 + $0xf9] sm:$0xff]
      %v578 = vld [vmem:[%s164 + $0x109] sm:$0xff]
      %v579 = vld [vmem:[%s164 + $0x111] sm:$0xff]
      %v580 = vld [vmem:[%s164 + $0x121] sm:$0xff]
      %v581 = vld [vmem:[%s164 + $0x129] sm:$0xff]
      %v582 = vld [vmem:[%s164 + $0x139] sm:$0xff]
      %v583 = vld [vmem:[%s164 + $0x141] sm:$0xff]
      %v584 = vld [vmem:[%s164 + $0x151] sm:$0xff]
      %v585 = vld [vmem:[%s164 + $0x159] sm:$0xff]
      %v586 = vld [vmem:[%s164 + $0x169] sm:$0xff]
      %v587 = vld [vmem:[%s164 + $0x171] sm:$0xff]
      %s588 = scalar_lea.vmem %s1, 8
      %v589 = vld [vmem:[%s588] sm:$0xff]
      %v591 = vsel %vm202, %v556, 0
      %v594 = vsel %vm202, %v557, 0
      %v597 = vsel %vm202, %v558, 0
      %v600 = vsel %vm202, %v559, 0
      %v603 = vsel %vm202, %v560, 0
      %v606 = vsel %vm202, %v561, 0
      %v609 = vsel %vm202, %v562, 0
      %v612 = vsel %vm202, %v563, 0
      %v615 = vsel %vm202, %v564, 0
      %v618 = vsel %vm202, %v565, 0
      %v621 = vsel %vm202, %v566, 0
      %v624 = vsel %vm202, %v567, 0
      %v627 = vsel %vm202, %v568, 0
      %v630 = vsel %vm202, %v569, 0
      %v633 = vsel %vm202, %v570, 0
      %v636 = vsel %vm202, %v571, 0
      %v639 = vsel %vm202, %v572, 0
      %v642 = vsel %vm202, %v573, 0
      %v645 = vsel %vm202, %v574, 0
      %v648 = vsel %vm202, %v575, 0
      %v651 = vsel %vm202, %v576, 0
      %v654 = vsel %vm202, %v577, 0
      %v657 = vsel %vm202, %v578, 0
      %v660 = vsel %vm202, %v579, 0
      %v663 = vsel %vm202, %v580, 0
      %v666 = vsel %vm202, %v581, 0
      %v669 = vsel %vm202, %v582, 0
      %v672 = vsel %vm202, %v583, 0
      %v675 = vsel %vm202, %v584, 0
      %v678 = vsel %vm202, %v585, 0
      %v681 = vsel %vm202, %v586, 0
      %v684 = vsel %vm202, %v587, 0
      %686 = vmatprep.subr.mxu0 0.0
      %687 = vmatpush1.msra.mxu0 0.0
      %688 = vmatprep.subr.mxu0 0.0
      %689 = vmatpush1.msra.mxu0 0.0
      %690 = vmatprep.subr.mxu0 0.0
      %691 = vmatpush1.msra.mxu0 0.0
      %692 = vmatprep.subr.mxu0 0.0
      %693 = vmatpush1.msra.mxu0 0.0
      %694 = vmatprep.subr.mxu0 0.0
      %695 = vmatpush1.msra.mxu0 0.0
      %696 = vmatprep.subr.mxu0 0.0
      %697 = vmatpush1.msra.mxu0 0.0
      %698 = vmatprep.subr.mxu0 0.0
      %699 = vmatpush1.msra.mxu0 0.0
      %700 = vmatprep.subr.mxu0 0.0
      %701 = vmatpush1.msra.mxu0 0.0
      %702 = vmatprep.subr.mxu0 0.0
      %703 = vmatpush1.msra.mxu0 0.0
      %704 = vmatprep.subr.mxu0 0.0
      %705 = vmatpush1.msra.mxu0 0.0
      %706 = vmatprep.subr.mxu0 0.0
      %707 = vmatpush1.msra.mxu0 0.0
      %708 = vmatprep.subr.mxu0 0.0
      %709 = vmatpush1.msra.mxu0 0.0
      %710 = vmatprep.subr.mxu0 0.0
      %711 = vmatpush1.msra.mxu0 0.0
      %712 = vmatprep.subr.mxu0 0.0
      %713 = vmatpush1.msra.mxu0 0.0
      %714 = vmatprep.subr.mxu0 0.0
      %715 = vmatpush1.msra.mxu0 0.0
      %716 = vmatprep.subr.mxu0 0.0
      %717 = vmatpush1.msra.mxu0 %v589
      %718 = vmatprep.subr.mxu0 0.0
      %719 = vmatpush2.msra.mxu0 0.0
      %720 = vmatprep.subr.mxu0 0.0
      %721 = vmatpush2.msra.mxu0 0.0
      %722 = vmatprep.subr.mxu0 0.0
      %723 = vmatpush2.msra.mxu0 0.0
      %724 = vmatprep.subr.mxu0 0.0
      %725 = vmatpush2.msra.mxu0 0.0
      %726 = vmatprep.subr.mxu0 0.0
      %727 = vmatpush2.msra.mxu0 0.0
      %728 = vmatprep.subr.mxu0 0.0
      %729 = vmatpush2.msra.mxu0 0.0
      %730 = vmatprep.subr.mxu0 0.0
      %731 = vmatpush2.msra.mxu0 0.0
      %732 = vmatprep.subr.mxu0 0.0
      %733 = vmatpush2.msra.mxu0 0.0
      %734 = vmatprep.subr.mxu0 0.0
      %735 = vmatpush2.msra.mxu0 0.0
      %736 = vmatprep.subr.mxu0 0.0
      %737 = vmatpush2.msra.mxu0 0.0
      %738 = vmatprep.subr.mxu0 0.0
      %739 = vmatpush2.msra.mxu0 0.0
      %740 = vmatprep.subr.mxu0 0.0
      %741 = vmatpush2.msra.mxu0 0.0
      %742 = vmatprep.subr.mxu0 0.0
      %743 = vmatpush2.msra.mxu0 0.0
      %744 = vmatprep.subr.mxu0 0.0
      %745 = vmatpush2.msra.mxu0 0.0
      %746 = vmatprep.subr.mxu0 0.0
      %747 = vmatpush2.msra.mxu0 0.0
      %748 = vmatprep.subr.mxu0 0.0
      %749 = vmatpush2.msra.mxu0 0.0
      %750 = vmatprep.mubr.f32.mxu0 0.0
      %751 = vmatmul.mubr.f32.gmra.mxu0 %v591
      %v752 = vpop.f32.mrf.mxu0
      %v753 = vadd.f32 0.0, %v752
      %v754 = vpop.f32.mrf.mxu0
      %755 = vmatprep.mubr.f32.mxu0 0.0
      %756 = vmatmul.mubr.f32.gmra.mxu0 %v594
      %v757 = vpop.f32.mrf.mxu0
      %v758 = vadd.f32 0.0, %v757
      %v759 = vpop.f32.mrf.mxu0
      %760 = vmatprep.mubr.f32.mxu0 0.0
      %761 = vmatmul.mubr.f32.gmra.mxu0 %v597
      %v762 = vpop.f32.mrf.mxu0
      %v763 = vadd.f32 0.0, %v762
      %v764 = vpop.f32.mrf.mxu0
      %765 = vmatprep.mubr.f32.mxu0 0.0
      %766 = vmatmul.mubr.f32.gmra.mxu0 %v600
      %v767 = vpop.f32.mrf.mxu0
      %v768 = vadd.f32 0.0, %v767
      %v769 = vpop.f32.mrf.mxu0
      %770 = vmatprep.mubr.f32.mxu0 0.0
      %771 = vmatmul.mubr.f32.gmra.mxu0 %v603
      %v772 = vpop.f32.mrf.mxu0
      %v773 = vadd.f32 0.0, %v772
      %v774 = vpop.f32.mrf.mxu0
      %775 = vmatprep.mubr.f32.mxu0 0.0
      %776 = vmatmul.mubr.f32.gmra.mxu0 %v606
      %v777 = vpop.f32.mrf.mxu0
      %v778 = vadd.f32 0.0, %v777
      %v779 = vpop.f32.mrf.mxu0
      %780 = vmatprep.mubr.f32.mxu0 0.0
      %781 = vmatmul.mubr.f32.gmra.mxu0 %v609
      %v782 = vpop.f32.mrf.mxu0
      %v783 = vadd.f32 0.0, %v782
      %v784 = vpop.f32.mrf.mxu0
      %785 = vmatprep.mubr.f32.mxu0 0.0
      %786 = vmatmul.mubr.f32.gmra.mxu0 %v612
      %v787 = vpop.f32.mrf.mxu0
      %v788 = vadd.f32 0.0, %v787
      %v789 = vpop.f32.mrf.mxu0
      %790 = vmatprep.mubr.f32.mxu0 0.0
      %791 = vmatmul.mubr.f32.gmra.mxu0 %v615
      %v792 = vpop.f32.mrf.mxu0
      %v793 = vadd.f32 0.0, %v792
      %v794 = vpop.f32.mrf.mxu0
      %795 = vmatprep.mubr.f32.mxu0 0.0
      %796 = vmatmul.mubr.f32.gmra.mxu0 %v618
      %v797 = vpop.f32.mrf.mxu0
      %v798 = vadd.f32 0.0, %v797
      %v799 = vpop.f32.mrf.mxu0
      %800 = vmatprep.mubr.f32.mxu0 0.0
      %801 = vmatmul.mubr.f32.gmra.mxu0 %v621
      %v802 = vpop.f32.mrf.mxu0
      %v803 = vadd.f32 0.0, %v802
      %v804 = vpop.f32.mrf.mxu0
      %805 = vmatprep.mubr.f32.mxu0 0.0
      %806 = vmatmul.mubr.f32.gmra.mxu0 %v624
      %v807 = vpop.f32.mrf.mxu0
      %v808 = vadd.f32 0.0, %v807
      %v809 = vpop.f32.mrf.mxu0
      %810 = vmatprep.mubr.f32.mxu0 0.0
      %811 = vmatmul.mubr.f32.gmra.mxu0 %v627
      %v812 = vpop.f32.mrf.mxu0
      %v813 = vadd.f32 0.0, %v812
      %v814 = vpop.f32.mrf.mxu0
      %815 = vmatprep.mubr.f32.mxu0 0.0
      %816 = vmatmul.mubr.f32.gmra.mxu0 %v630
      %v817 = vpop.f32.mrf.mxu0
      %v818 = vadd.f32 0.0, %v817
      %v819 = vpop.f32.mrf.mxu0
      %820 = vmatprep.mubr.f32.mxu0 0.0
      %821 = vmatmul.mubr.f32.gmra.mxu0 %v633
      %v822 = vpop.f32.mrf.mxu0
      %v823 = vadd.f32 0.0, %v822
      %v824 = vpop.f32.mrf.mxu0
      %825 = vmatprep.mubr.f32.mxu0 0.0
      %826 = vmatmul.mubr.f32.gmra.mxu0 %v636
      %v827 = vpop.f32.mrf.mxu0
      %v828 = vadd.f32 0.0, %v827
      %v829 = vpop.f32.mrf.mxu0
      %830 = vmatprep.mubr.f32.mxu0 0.0
      %831 = vmatmul.mubr.f32.gmra.mxu0 %v639
      %v832 = vpop.f32.mrf.mxu0
      %v833 = vadd.f32 0.0, %v832
      %v834 = vpop.f32.mrf.mxu0
      %835 = vmatprep.mubr.f32.mxu0 0.0
      %836 = vmatmul.mubr.f32.gmra.mxu0 %v642
      %v837 = vpop.f32.mrf.mxu0
      %v838 = vadd.f32 0.0, %v837
      %v839 = vpop.f32.mrf.mxu0
      %840 = vmatprep.mubr.f32.mxu0 0.0
      %841 = vmatmul.mubr.f32.gmra.mxu0 %v645
      %v842 = vpop.f32.mrf.mxu0
      %v843 = vadd.f32 0.0, %v842
      %v844 = vpop.f32.mrf.mxu0
      %845 = vmatprep.mubr.f32.mxu0 0.0
      %846 = vmatmul.mubr.f32.gmra.mxu0 %v648
      %v847 = vpop.f32.mrf.mxu0
      %v848 = vadd.f32 0.0, %v847
      %v849 = vpop.f32.mrf.mxu0
      %850 = vmatprep.mubr.f32.mxu0 0.0
      %851 = vmatmul.mubr.f32.gmra.mxu0 %v651
      %v852 = vpop.f32.mrf.mxu0
      %v853 = vadd.f32 0.0, %v852
      %v854 = vpop.f32.mrf.mxu0
      %855 = vmatprep.mubr.f32.mxu0 0.0
      %856 = vmatmul.mubr.f32.gmra.mxu0 %v654
      %v857 = vpop.f32.mrf.mxu0
      %v858 = vadd.f32 0.0, %v857
      %v859 = vpop.f32.mrf.mxu0
      %860 = vmatprep.mubr.f32.mxu0 0.0
      %861 = vmatmul.mubr.f32.gmra.mxu0 %v657
      %v862 = vpop.f32.mrf.mxu0
      %v863 = vadd.f32 0.0, %v862
      %v864 = vpop.f32.mrf.mxu0
      %865 = vmatprep.mubr.f32.mxu0 0.0
      %866 = vmatmul.mubr.f32.gmra.mxu0 %v660
      %v867 = vpop.f32.mrf.mxu0
      %v868 = vadd.f32 0.0, %v867
      %v869 = vpop.f32.mrf.mxu0
      %870 = vmatprep.mubr.f32.mxu0 0.0
      %871 = vmatmul.mubr.f32.gmra.mxu0 %v663
      %v872 = vpop.f32.mrf.mxu0
      %v873 = vadd.f32 0.0, %v872
      %v874 = vpop.f32.mrf.mxu0
      %875 = vmatprep.mubr.f32.mxu0 0.0
      %876 = vmatmul.mubr.f32.gmra.mxu0 %v666
      %v877 = vpop.f32.mrf.mxu0
      %v878 = vadd.f32 0.0, %v877
      %v879 = vpop.f32.mrf.mxu0
      %880 = vmatprep.mubr.f32.mxu0 0.0
      %881 = vmatmul.mubr.f32.gmra.mxu0 %v669
      %v882 = vpop.f32.mrf.mxu0
      %v883 = vadd.f32 0.0, %v882
      %v884 = vpop.f32.mrf.mxu0
      %885 = vmatprep.mubr.f32.mxu0 0.0
      %886 = vmatmul.mubr.f32.gmra.mxu0 %v672
      %v887 = vpop.f32.mrf.mxu0
      %v888 = vadd.f32 0.0, %v887
      %v889 = vpop.f32.mrf.mxu0
      %890 = vmatprep.mubr.f32.mxu0 0.0
      %891 = vmatmul.mubr.f32.gmra.mxu0 %v675
      %v892 = vpop.f32.mrf.mxu0
      %v893 = vadd.f32 0.0, %v892
      %v894 = vpop.f32.mrf.mxu0
      %895 = vmatprep.mubr.f32.mxu0 0.0
      %896 = vmatmul.mubr.f32.gmra.mxu0 %v678
      %v897 = vpop.f32.mrf.mxu0
      %v898 = vadd.f32 0.0, %v897
      %v899 = vpop.f32.mrf.mxu0
      %900 = vmatprep.mubr.f32.mxu0 0.0
      %901 = vmatmul.mubr.f32.gmra.mxu0 %v681
      %v902 = vpop.f32.mrf.mxu0
      %v903 = vadd.f32 0.0, %v902
      %v904 = vpop.f32.mrf.mxu0
      %905 = vmatprep.mubr.f32.mxu0 0.0
      %906 = vmatmul.mubr.f32.gmra.mxu0 %v684
      %v907 = vpop.f32.mrf.mxu0
      %v908 = vadd.f32 0.0, %v907
      %v909 = vpop.f32.mrf.mxu0
      %910 = vdwg.mxu0
      %v911 = vld [vmem:[#allocation2] sm:$0xff]
      %v912 = vld [vmem:[#allocation2 + $0x8] sm:$0xff]
      %v913 = vld [vmem:[#allocation2 + $0x10] sm:$0xff]
      %v914 = vld [vmem:[#allocation2 + $0x18] sm:$0xff]
      %v915 = vld [vmem:[#allocation2 + $0x20] sm:$0xff]
      %v916 = vld [vmem:[#allocation2 + $0x28] sm:$0xff]
      %v917 = vld [vmem:[#allocation2 + $0x30] sm:$0xff]
      %v918 = vld [vmem:[#allocation2 + $0x38] sm:$0xff]
      %v919 = vld [vmem:[#allocation2 + $0x40] sm:$0xff]
      %v920 = vld [vmem:[#allocation2 + $0x48] sm:$0xff]
      %v921 = vld [vmem:[#allocation2 + $0x50] sm:$0xff]
      %v922 = vld [vmem:[#allocation2 + $0x58] sm:$0xff]
      %v923 = vld [vmem:[#allocation2 + $0x60] sm:$0xff]
      %v924 = vld [vmem:[#allocation2 + $0x68] sm:$0xff]
      %v925 = vld [vmem:[#allocation2 + $0x70] sm:$0xff]
      %v926 = vld [vmem:[#allocation2 + $0x78] sm:$0xff]
      %v927 = vld [vmem:[#allocation2 + $0x80] sm:$0xff]
      %v928 = vld [vmem:[#allocation2 + $0x88] sm:$0xff]
      %v929 = vld [vmem:[#allocation2 + $0x90] sm:$0xff]
      %v930 = vld [vmem:[#allocation2 + $0x98] sm:$0xff]
      %v931 = vld [vmem:[#allocation2 + $0xa0] sm:$0xff]
      %v932 = vld [vmem:[#allocation2 + $0xa8] sm:$0xff]
      %v933 = vld [vmem:[#allocation2 + $0xb0] sm:$0xff]
      %v934 = vld [vmem:[#allocation2 + $0xb8] sm:$0xff]
      %v935 = vld [vmem:[#allocation2 + $0xc0] sm:$0xff]
      %v936 = vld [vmem:[#allocation2 + $0xc8] sm:$0xff]
      %v937 = vld [vmem:[#allocation2 + $0xd0] sm:$0xff]
      %v938 = vld [vmem:[#allocation2 + $0xd8] sm:$0xff]
      %v939 = vld [vmem:[#allocation2 + $0xe0] sm:$0xff]
      %v940 = vld [vmem:[#allocation2 + $0xe8] sm:$0xff]
      %v941 = vld [vmem:[#allocation2 + $0xf0] sm:$0xff]
      %v942 = vld [vmem:[#allocation2 + $0xf8] sm:$0xff]
      %v943 = vadd.f32 %v911, %v753
      %v944 = vadd.f32 %v912, %v758
      %v945 = vadd.f32 %v913, %v763
      %v946 = vadd.f32 %v914, %v768
      %v947 = vadd.f32 %v915, %v773
      %v948 = vadd.f32 %v916, %v778
      %v949 = vadd.f32 %v917, %v783
      %v950 = vadd.f32 %v918, %v788
      %v951 = vadd.f32 %v919, %v793
      %v952 = vadd.f32 %v920, %v798
      %v953 = vadd.f32 %v921, %v803
      %v954 = vadd.f32 %v922, %v808
      %v955 = vadd.f32 %v923, %v813
      %v956 = vadd.f32 %v924, %v818
      %v957 = vadd.f32 %v925, %v823
      %v958 = vadd.f32 %v926, %v828
      %v959 = vadd.f32 %v927, %v833
      %v960 = vadd.f32 %v928, %v838
      %v961 = vadd.f32 %v929, %v843
      %v962 = vadd.f32 %v930, %v848
      %v963 = vadd.f32 %v931, %v853
      %v964 = vadd.f32 %v932, %v858
      %v965 = vadd.f32 %v933, %v863
      %v966 = vadd.f32 %v934, %v868
      %v967 = vadd.f32 %v935, %v873
      %v968 = vadd.f32 %v936, %v878
      %v969 = vadd.f32 %v937, %v883
      %v970 = vadd.f32 %v938, %v888
      %v971 = vadd.f32 %v939, %v893
      %v972 = vadd.f32 %v940, %v898
      %v973 = vadd.f32 %v941, %v903
      %v974 = vadd.f32 %v942, %v908
      %975 = vst [vmem:[#allocation2] sm:$0xff] %v943
      %976 = vst [vmem:[#allocation2 + $0x8] sm:$0xff] %v944
      %977 = vst [vmem:[#allocation2 + $0x10] sm:$0xff] %v945
      %978 = vst [vmem:[#allocation2 + $0x18] sm:$0xff] %v946
      %979 = vst [vmem:[#allocation2 + $0x20] sm:$0xff] %v947
      %980 = vst [vmem:[#allocation2 + $0x28] sm:$0xff] %v948
      %981 = vst [vmem:[#allocation2 + $0x30] sm:$0xff] %v949
      %982 = vst [vmem:[#allocation2 + $0x38] sm:$0xff] %v950
      %983 = vst [vmem:[#allocation2 + $0x40] sm:$0xff] %v951
      %984 = vst [vmem:[#allocation2 + $0x48] sm:$0xff] %v952
      %985 = vst [vmem:[#allocation2 + $0x50] sm:$0xff] %v953
      %986 = vst [vmem:[#allocation2 + $0x58] sm:$0xff] %v954
      %987 = vst [vmem:[#allocation2 + $0x60] sm:$0xff] %v955
      %988 = vst [vmem:[#allocation2 + $0x68] sm:$0xff] %v956
      %989 = vst [vmem:[#allocation2 + $0x70] sm:$0xff] %v957
      %990 = vst [vmem:[#allocation2 + $0x78] sm:$0xff] %v958
      %991 = vst [vmem:[#allocation2 + $0x80] sm:$0xff] %v959
      %992 = vst [vmem:[#allocation2 + $0x88] sm:$0xff] %v960
      %993 = vst [vmem:[#allocation2 + $0x90] sm:$0xff] %v961
      %994 = vst [vmem:[#allocation2 + $0x98] sm:$0xff] %v962
      %995 = vst [vmem:[#allocation2 + $0xa0] sm:$0xff] %v963
      %996 = vst [vmem:[#allocation2 + $0xa8] sm:$0xff] %v964
      %997 = vst [vmem:[#allocation2 + $0xb0] sm:$0xff] %v965
      %998 = vst [vmem:[#allocation2 + $0xb8] sm:$0xff] %v966
      %999 = vst [vmem:[#allocation2 + $0xc0] sm:$0xff] %v967
      %1000 = vst [vmem:[#allocation2 + $0xc8] sm:$0xff] %v968
      %1001 = vst [vmem:[#allocation2 + $0xd0] sm:$0xff] %v969
      %1002 = vst [vmem:[#allocation2 + $0xd8] sm:$0xff] %v970
      %1003 = vst [vmem:[#allocation2 + $0xe0] sm:$0xff] %v971
      %1004 = vst [vmem:[#allocation2 + $0xe8] sm:$0xff] %v972
      %1005 = vst [vmem:[#allocation2 + $0xf0] sm:$0xff] %v973
      %1006 = vst [vmem:[#allocation2 + $0xf8] sm:$0xff] %v974
      %v1007 = vld [vmem:[%s164 + $0x2] sm:$0xff]
      %v1008 = vld [vmem:[%s164 + $0xa] sm:$0xff]
      %v1009 = vld [vmem:[%s164 + $0x1a] sm:$0xff]
      %v1010 = vld [vmem:[%s164 + $0x22] sm:$0xff]
      %v1011 = vld [vmem:[%s164 + $0x32] sm:$0xff]
      %v1012 = vld [vmem:[%s164 + $0x3a] sm:$0xff]
      %v1013 = vld [vmem:[%s164 + $0x4a] sm:$0xff]
      %v1014 = vld [vmem:[%s164 + $0x52] sm:$0xff]
      %v1015 = vld [vmem:[%s164 + $0x62] sm:$0xff]
      %v1016 = vld [vmem:[%s164 + $0x6a] sm:$0xff]
      %v1017 = vld [vmem:[%s164 + $0x7a] sm:$0xff]
      %v1018 = vld [vmem:[%s164 + $0x82] sm:$0xff]
      %v1019 = vld [vmem:[%s164 + $0x92] sm:$0xff]
      %v1020 = vld [vmem:[%s164 + $0x9a] sm:$0xff]
      %v1021 = vld [vmem:[%s164 + $0xaa] sm:$0xff]
      %v1022 = vld [vmem:[%s164 + $0xb2] sm:$0xff]
      %v1023 = vld [vmem:[%s164 + $0xc2] sm:$0xff]
      %v1024 = vld [vmem:[%s164 + $0xca] sm:$0xff]
      %v1025 = vld [vmem:[%s164 + $0xda] sm:$0xff]
      %v1026 = vld [vmem:[%s164 + $0xe2] sm:$0xff]
      %v1027 = vld [vmem:[%s164 + $0xf2] sm:$0xff]
      %v1028 = vld [vmem:[%s164 + $0xfa] sm:$0xff]
      %v1029 = vld [vmem:[%s164 + $0x10a] sm:$0xff]
      %v1030 = vld [vmem:[%s164 + $0x112] sm:$0xff]
      %v1031 = vld [vmem:[%s164 + $0x122] sm:$0xff]
      %v1032 = vld [vmem:[%s164 + $0x12a] sm:$0xff]
      %v1033 = vld [vmem:[%s164 + $0x13a] sm:$0xff]
      %v1034 = vld [vmem:[%s164 + $0x142] sm:$0xff]
      %v1035 = vld [vmem:[%s164 + $0x152] sm:$0xff]
      %v1036 = vld [vmem:[%s164 + $0x15a] sm:$0xff]
      %v1037 = vld [vmem:[%s164 + $0x16a] sm:$0xff]
      %v1038 = vld [vmem:[%s164 + $0x172] sm:$0xff]
      %s1039 = scalar_lea.vmem %s1, 16
      %v1040 = vld [vmem:[%s1039] sm:$0xff]
      %v1042 = vsel %vm202, %v1007, 0
      %v1045 = vsel %vm202, %v1008, 0
      %v1048 = vsel %vm202, %v1009, 0
      %v1051 = vsel %vm202, %v1010, 0
      %v1054 = vsel %vm202, %v1011, 0
      %v1057 = vsel %vm202, %v1012, 0
      %v1060 = vsel %vm202, %v1013, 0
      %v1063 = vsel %vm202, %v1014, 0
      %v1066 = vsel %vm202, %v1015, 0
      %v1069 = vsel %vm202, %v1016, 0
      %v1072 = vsel %vm202, %v1017, 0
      %v1075 = vsel %vm202, %v1018, 0
      %v1078 = vsel %vm202, %v1019, 0
      %v1081 = vsel %vm202, %v1020, 0
      %v1084 = vsel %vm202, %v1021, 0
      %v1087 = vsel %vm202, %v1022, 0
      %v1090 = vsel %vm202, %v1023, 0
      %v1093 = vsel %vm202, %v1024, 0
      %v1096 = vsel %vm202, %v1025, 0
      %v1099 = vsel %vm202, %v1026, 0
      %v1102 = vsel %vm202, %v1027, 0
      %v1105 = vsel %vm202, %v1028, 0
      %v1108 = vsel %vm202, %v1029, 0
      %v1111 = vsel %vm202, %v1030, 0
      %v1114 = vsel %vm202, %v1031, 0
      %v1117 = vsel %vm202, %v1032, 0
      %v1120 = vsel %vm202, %v1033, 0
      %v1123 = vsel %vm202, %v1034, 0
      %v1126 = vsel %vm202, %v1035, 0
      %v1129 = vsel %vm202, %v1036, 0
      %v1132 = vsel %vm202, %v1037, 0
      %v1135 = vsel %vm202, %v1038, 0
      %1137 = vmatprep.subr.mxu0 0.0
      %1138 = vmatpush1.msra.mxu0 0.0
      %1139 = vmatprep.subr.mxu0 0.0
      %1140 = vmatpush1.msra.mxu0 0.0
      %1141 = vmatprep.subr.mxu0 0.0
      %1142 = vmatpush1.msra.mxu0 0.0
      %1143 = vmatprep.subr.mxu0 0.0
      %1144 = vmatpush1.msra.mxu0 0.0
      %1145 = vmatprep.subr.mxu0 0.0
      %1146 = vmatpush1.msra.mxu0 0.0
      %1147 = vmatprep.subr.mxu0 0.0
      %1148 = vmatpush1.msra.mxu0 0.0
      %1149 = vmatprep.subr.mxu0 0.0
      %1150 = vmatpush1.msra.mxu0 0.0
      %1151 = vmatprep.subr.mxu0 0.0
      %1152 = vmatpush1.msra.mxu0 0.0
      %1153 = vmatprep.subr.mxu0 0.0
      %1154 = vmatpush1.msra.mxu0 0.0
      %1155 = vmatprep.subr.mxu0 0.0
      %1156 = vmatpush1.msra.mxu0 0.0
      %1157 = vmatprep.subr.mxu0 0.0
      %1158 = vmatpush1.msra.mxu0 0.0
      %1159 = vmatprep.subr.mxu0 0.0
      %1160 = vmatpush1.msra.mxu0 0.0
      %1161 = vmatprep.subr.mxu0 0.0
      %1162 = vmatpush1.msra.mxu0 0.0
      %1163 = vmatprep.subr.mxu0 0.0
      %1164 = vmatpush1.msra.mxu0 0.0
      %1165 = vmatprep.subr.mxu0 0.0
      %1166 = vmatpush1.msra.mxu0 0.0
      %1167 = vmatprep.subr.mxu0 0.0
      %1168 = vmatpush1.msra.mxu0 %v1040
      %1169 = vmatprep.subr.mxu0 0.0
      %1170 = vmatpush2.msra.mxu0 0.0
      %1171 = vmatprep.subr.mxu0 0.0
      %1172 = vmatpush2.msra.mxu0 0.0
      %1173 = vmatprep.subr.mxu0 0.0
      %1174 = vmatpush2.msra.mxu0 0.0
      %1175 = vmatprep.subr.mxu0 0.0
      %1176 = vmatpush2.msra.mxu0 0.0
      %1177 = vmatprep.subr.mxu0 0.0
      %1178 = vmatpush2.msra.mxu0 0.0
      %1179 = vmatprep.subr.mxu0 0.0
      %1180 = vmatpush2.msra.mxu0 0.0
      %1181 = vmatprep.subr.mxu0 0.0
      %1182 = vmatpush2.msra.mxu0 0.0
      %1183 = vmatprep.subr.mxu0 0.0
      %1184 = vmatpush2.msra.mxu0 0.0
      %1185 = vmatprep.subr.mxu0 0.0
      %1186 = vmatpush2.msra.mxu0 0.0
      %1187 = vmatprep.subr.mxu0 0.0
      %1188 = vmatpush2.msra.mxu0 0.0
      %1189 = vmatprep.subr.mxu0 0.0
      %1190 = vmatpush2.msra.mxu0 0.0
      %1191 = vmatprep.subr.mxu0 0.0
      %1192 = vmatpush2.msra.mxu0 0.0
      %1193 = vmatprep.subr.mxu0 0.0
      %1194 = vmatpush2.msra.mxu0 0.0
      %1195 = vmatprep.subr.mxu0 0.0
      %1196 = vmatpush2.msra.mxu0 0.0
      %1197 = vmatprep.subr.mxu0 0.0
      %1198 = vmatpush2.msra.mxu0 0.0
      %1199 = vmatprep.subr.mxu0 0.0
      %1200 = vmatpush2.msra.mxu0 0.0
      %1201 = vmatprep.mubr.f32.mxu0 0.0
      %1202 = vmatmul.mubr.f32.gmra.mxu0 %v1042
      %v1203 = vpop.f32.mrf.mxu0
      %v1204 = vadd.f32 0.0, %v1203
      %v1205 = vpop.f32.mrf.mxu0
      %1206 = vmatprep.mubr.f32.mxu0 0.0
      %1207 = vmatmul.mubr.f32.gmra.mxu0 %v1045
      %v1208 = vpop.f32.mrf.mxu0
      %v1209 = vadd.f32 0.0, %v1208
      %v1210 = vpop.f32.mrf.mxu0
      %1211 = vmatprep.mubr.f32.mxu0 0.0
      %1212 = vmatmul.mubr.f32.gmra.mxu0 %v1048
      %v1213 = vpop.f32.mrf.mxu0
      %v1214 = vadd.f32 0.0, %v1213
      %v1215 = vpop.f32.mrf.mxu0
      %1216 = vmatprep.mubr.f32.mxu0 0.0
      %1217 = vmatmul.mubr.f32.gmra.mxu0 %v1051
      %v1218 = vpop.f32.mrf.mxu0
      %v1219 = vadd.f32 0.0, %v1218
      %v1220 = vpop.f32.mrf.mxu0
      %1221 = vmatprep.mubr.f32.mxu0 0.0
      %1222 = vmatmul.mubr.f32.gmra.mxu0 %v1054
      %v1223 = vpop.f32.mrf.mxu0
      %v1224 = vadd.f32 0.0, %v1223
      %v1225 = vpop.f32.mrf.mxu0
      %1226 = vmatprep.mubr.f32.mxu0 0.0
      %1227 = vmatmul.mubr.f32.gmra.mxu0 %v1057
      %v1228 = vpop.f32.mrf.mxu0
      %v1229 = vadd.f32 0.0, %v1228
      %v1230 = vpop.f32.mrf.mxu0
      %1231 = vmatprep.mubr.f32.mxu0 0.0
      %1232 = vmatmul.mubr.f32.gmra.mxu0 %v1060
      %v1233 = vpop.f32.mrf.mxu0
      %v1234 = vadd.f32 0.0, %v1233
      %v1235 = vpop.f32.mrf.mxu0
      %1236 = vmatprep.mubr.f32.mxu0 0.0
      %1237 = vmatmul.mubr.f32.gmra.mxu0 %v1063
      %v1238 = vpop.f32.mrf.mxu0
      %v1239 = vadd.f32 0.0, %v1238
      %v1240 = vpop.f32.mrf.mxu0
      %1241 = vmatprep.mubr.f32.mxu0 0.0
      %1242 = vmatmul.mubr.f32.gmra.mxu0 %v1066
      %v1243 = vpop.f32.mrf.mxu0
      %v1244 = vadd.f32 0.0, %v1243
      %v1245 = vpop.f32.mrf.mxu0
      %1246 = vmatprep.mubr.f32.mxu0 0.0
      %1247 = vmatmul.mubr.f32.gmra.mxu0 %v1069
      %v1248 = vpop.f32.mrf.mxu0
      %v1249 = vadd.f32 0.0, %v1248
      %v1250 = vpop.f32.mrf.mxu0
      %1251 = vmatprep.mubr.f32.mxu0 0.0
      %1252 = vmatmul.mubr.f32.gmra.mxu0 %v1072
      %v1253 = vpop.f32.mrf.mxu0
      %v1254 = vadd.f32 0.0, %v1253
      %v1255 = vpop.f32.mrf.mxu0
      %1256 = vmatprep.mubr.f32.mxu0 0.0
      %1257 = vmatmul.mubr.f32.gmra.mxu0 %v1075
      %v1258 = vpop.f32.mrf.mxu0
      %v1259 = vadd.f32 0.0, %v1258
      %v1260 = vpop.f32.mrf.mxu0
      %1261 = vmatprep.mubr.f32.mxu0 0.0
      %1262 = vmatmul.mubr.f32.gmra.mxu0 %v1078
      %v1263 = vpop.f32.mrf.mxu0
      %v1264 = vadd.f32 0.0, %v1263
      %v1265 = vpop.f32.mrf.mxu0
      %1266 = vmatprep.mubr.f32.mxu0 0.0
      %1267 = vmatmul.mubr.f32.gmra.mxu0 %v1081
      %v1268 = vpop.f32.mrf.mxu0
      %v1269 = vadd.f32 0.0, %v1268
      %v1270 = vpop.f32.mrf.mxu0
      %1271 = vmatprep.mubr.f32.mxu0 0.0
      %1272 = vmatmul.mubr.f32.gmra.mxu0 %v1084
      %v1273 = vpop.f32.mrf.mxu0
      %v1274 = vadd.f32 0.0, %v1273
      %v1275 = vpop.f32.mrf.mxu0
      %1276 = vmatprep.mubr.f32.mxu0 0.0
      %1277 = vmatmul.mubr.f32.gmra.mxu0 %v1087
      %v1278 = vpop.f32.mrf.mxu0
      %v1279 = vadd.f32 0.0, %v1278
      %v1280 = vpop.f32.mrf.mxu0
      %1281 = vmatprep.mubr.f32.mxu0 0.0
      %1282 = vmatmul.mubr.f32.gmra.mxu0 %v1090
      %v1283 = vpop.f32.mrf.mxu0
      %v1284 = vadd.f32 0.0, %v1283
      %v1285 = vpop.f32.mrf.mxu0
      %1286 = vmatprep.mubr.f32.mxu0 0.0
      %1287 = vmatmul.mubr.f32.gmra.mxu0 %v1093
      %v1288 = vpop.f32.mrf.mxu0
      %v1289 = vadd.f32 0.0, %v1288
      %v1290 = vpop.f32.mrf.mxu0
      %1291 = vmatprep.mubr.f32.mxu0 0.0
      %1292 = vmatmul.mubr.f32.gmra.mxu0 %v1096
      %v1293 = vpop.f32.mrf.mxu0
      %v1294 = vadd.f32 0.0, %v1293
      %v1295 = vpop.f32.mrf.mxu0
      %1296 = vmatprep.mubr.f32.mxu0 0.0
      %1297 = vmatmul.mubr.f32.gmra.mxu0 %v1099
      %v1298 = vpop.f32.mrf.mxu0
      %v1299 = vadd.f32 0.0, %v1298
      %v1300 = vpop.f32.mrf.mxu0
      %1301 = vmatprep.mubr.f32.mxu0 0.0
      %1302 = vmatmul.mubr.f32.gmra.mxu0 %v1102
      %v1303 = vpop.f32.mrf.mxu0
      %v1304 = vadd.f32 0.0, %v1303
      %v1305 = vpop.f32.mrf.mxu0
      %1306 = vmatprep.mubr.f32.mxu0 0.0
      %1307 = vmatmul.mubr.f32.gmra.mxu0 %v1105
      %v1308 = vpop.f32.mrf.mxu0
      %v1309 = vadd.f32 0.0, %v1308
      %v1310 = vpop.f32.mrf.mxu0
      %1311 = vmatprep.mubr.f32.mxu0 0.0
      %1312 = vmatmul.mubr.f32.gmra.mxu0 %v1108
      %v1313 = vpop.f32.mrf.mxu0
      %v1314 = vadd.f32 0.0, %v1313
      %v1315 = vpop.f32.mrf.mxu0
      %1316 = vmatprep.mubr.f32.mxu0 0.0
      %1317 = vmatmul.mubr.f32.gmra.mxu0 %v1111
      %v1318 = vpop.f32.mrf.mxu0
      %v1319 = vadd.f32 0.0, %v1318
      %v1320 = vpop.f32.mrf.mxu0
      %1321 = vmatprep.mubr.f32.mxu0 0.0
      %1322 = vmatmul.mubr.f32.gmra.mxu0 %v1114
      %v1323 = vpop.f32.mrf.mxu0
      %v1324 = vadd.f32 0.0, %v1323
      %v1325 = vpop.f32.mrf.mxu0
      %1326 = vmatprep.mubr.f32.mxu0 0.0
      %1327 = vmatmul.mubr.f32.gmra.mxu0 %v1117
      %v1328 = vpop.f32.mrf.mxu0
      %v1329 = vadd.f32 0.0, %v1328
      %v1330 = vpop.f32.mrf.mxu0
      %1331 = vmatprep.mubr.f32.mxu0 0.0
      %1332 = vmatmul.mubr.f32.gmra.mxu0 %v1120
      %v1333 = vpop.f32.mrf.mxu0
      %v1334 = vadd.f32 0.0, %v1333
      %v1335 = vpop.f32.mrf.mxu0
      %1336 = vmatprep.mubr.f32.mxu0 0.0
      %1337 = vmatmul.mubr.f32.gmra.mxu0 %v1123
      %v1338 = vpop.f32.mrf.mxu0
      %v1339 = vadd.f32 0.0, %v1338
      %v1340 = vpop.f32.mrf.mxu0
      %1341 = vmatprep.mubr.f32.mxu0 0.0
      %1342 = vmatmul.mubr.f32.gmra.mxu0 %v1126
      %v1343 = vpop.f32.mrf.mxu0
      %v1344 = vadd.f32 0.0, %v1343
      %v1345 = vpop.f32.mrf.mxu0
      %1346 = vmatprep.mubr.f32.mxu0 0.0
      %1347 = vmatmul.mubr.f32.gmra.mxu0 %v1129
      %v1348 = vpop.f32.mrf.mxu0
      %v1349 = vadd.f32 0.0, %v1348
      %v1350 = vpop.f32.mrf.mxu0
      %1351 = vmatprep.mubr.f32.mxu0 0.0
      %1352 = vmatmul.mubr.f32.gmra.mxu0 %v1132
      %v1353 = vpop.f32.mrf.mxu0
      %v1354 = vadd.f32 0.0, %v1353
      %v1355 = vpop.f32.mrf.mxu0
      %1356 = vmatprep.mubr.f32.mxu0 0.0
      %1357 = vmatmul.mubr.f32.gmra.mxu0 %v1135
      %v1358 = vpop.f32.mrf.mxu0
      %v1359 = vadd.f32 0.0, %v1358
      %v1360 = vpop.f32.mrf.mxu0
      %1361 = vdwg.mxu0
      %v1362 = vld [vmem:[#allocation2] sm:$0xff]
      %v1363 = vld [vmem:[#allocation2 + $0x8] sm:$0xff]
      %v1364 = vld [vmem:[#allocation2 + $0x10] sm:$0xff]
      %v1365 = vld [vmem:[#allocation2 + $0x18] sm:$0xff]
      %v1366 = vld [vmem:[#allocation2 + $0x20] sm:$0xff]
      %v1367 = vld [vmem:[#allocation2 + $0x28] sm:$0xff]
      %v1368 = vld [vmem:[#allocation2 + $0x30] sm:$0xff]
      %v1369 = vld [vmem:[#allocation2 + $0x38] sm:$0xff]
      %v1370 = vld [vmem:[#allocation2 + $0x40] sm:$0xff]
      %v1371 = vld [vmem:[#allocation2 + $0x48] sm:$0xff]
      %v1372 = vld [vmem:[#allocation2 + $0x50] sm:$0xff]
      %v1373 = vld [vmem:[#allocation2 + $0x58] sm:$0xff]
      %v1374 = vld [vmem:[#allocation2 + $0x60] sm:$0xff]
      %v1375 = vld [vmem:[#allocation2 + $0x68] sm:$0xff]
      %v1376 = vld [vmem:[#allocation2 + $0x70] sm:$0xff]
      %v1377 = vld [vmem:[#allocation2 + $0x78] sm:$0xff]
      %v1378 = vld [vmem:[#allocation2 + $0x80] sm:$0xff]
      %v1379 = vld [vmem:[#allocation2 + $0x88] sm:$0xff]
      %v1380 = vld [vmem:[#allocation2 + $0x90] sm:$0xff]
      %v1381 = vld [vmem:[#allocation2 + $0x98] sm:$0xff]
      %v1382 = vld [vmem:[#allocation2 + $0xa0] sm:$0xff]
      %v1383 = vld [vmem:[#allocation2 + $0xa8] sm:$0xff]
      %v1384 = vld [vmem:[#allocation2 + $0xb0] sm:$0xff]
      %v1385 = vld [vmem:[#allocation2 + $0xb8] sm:$0xff]
      %v1386 = vld [vmem:[#allocation2 + $0xc0] sm:$0xff]
      %v1387 = vld [vmem:[#allocation2 + $0xc8] sm:$0xff]
      %v1388 = vld [vmem:[#allocation2 + $0xd0] sm:$0xff]
      %v1389 = vld [vmem:[#allocation2 + $0xd8] sm:$0xff]
      %v1390 = vld [vmem:[#allocation2 + $0xe0] sm:$0xff]
      %v1391 = vld [vmem:[#allocation2 + $0xe8] sm:$0xff]
      %v1392 = vld [vmem:[#allocation2 + $0xf0] sm:$0xff]
      %v1393 = vld [vmem:[#allocation2 + $0xf8] sm:$0xff]
      %v1394 = vadd.f32 %v1362, %v1204
      %v1395 = vadd.f32 %v1363, %v1209
      %v1396 = vadd.f32 %v1364, %v1214
      %v1397 = vadd.f32 %v1365, %v1219
      %v1398 = vadd.f32 %v1366, %v1224
      %v1399 = vadd.f32 %v1367, %v1229
      %v1400 = vadd.f32 %v1368, %v1234
      %v1401 = vadd.f32 %v1369, %v1239
      %v1402 = vadd.f32 %v1370, %v1244
      %v1403 = vadd.f32 %v1371, %v1249
      %v1404 = vadd.f32 %v1372, %v1254
      %v1405 = vadd.f32 %v1373, %v1259
      %v1406 = vadd.f32 %v1374, %v1264
      %v1407 = vadd.f32 %v1375, %v1269
      %v1408 = vadd.f32 %v1376, %v1274
      %v1409 = vadd.f32 %v1377, %v1279
      %v1410 = vadd.f32 %v1378, %v1284
      %v1411 = vadd.f32 %v1379, %v1289
      %v1412 = vadd.f32 %v1380, %v1294
      %v1413 = vadd.f32 %v1381, %v1299
      %v1414 = vadd.f32 %v1382, %v1304
      %v1415 = vadd.f32 %v1383, %v1309
      %v1416 = vadd.f32 %v1384, %v1314
      %v1417 = vadd.f32 %v1385, %v1319
      %v1418 = vadd.f32 %v1386, %v1324
      %v1419 = vadd.f32 %v1387, %v1329
      %v1420 = vadd.f32 %v1388, %v1334
      %v1421 = vadd.f32 %v1389, %v1339
      %v1422 = vadd.f32 %v1390, %v1344
      %v1423 = vadd.f32 %v1391, %v1349
      %v1424 = vadd.f32 %v1392, %v1354
      %v1425 = vadd.f32 %v1393, %v1359
      %1426 = vst [vmem:[#allocation2] sm:$0xff] %v1394
      %1427 = vst [vmem:[#allocation2 + $0x8] sm:$0xff] %v1395
      %1428 = vst [vmem:[#allocation2 + $0x10] sm:$0xff] %v1396
      %1429 = vst [vmem:[#allocation2 + $0x18] sm:$0xff] %v1397
      %1430 = vst [vmem:[#allocation2 + $0x20] sm:$0xff] %v1398
      %1431 = vst [vmem:[#allocation2 + $0x28] sm:$0xff] %v1399
      %1432 = vst [vmem:[#allocation2 + $0x30] sm:$0xff] %v1400
      %1433 = vst [vmem:[#allocation2 + $0x38] sm:$0xff] %v1401
      %1434 = vst [vmem:[#allocation2 + $0x40] sm:$0xff] %v1402
      %1435 = vst [vmem:[#allocation2 + $0x48] sm:$0xff] %v1403
      %1436 = vst [vmem:[#allocation2 + $0x50] sm:$0xff] %v1404
      %1437 = vst [vmem:[#allocation2 + $0x58] sm:$0xff] %v1405
      %1438 = vst [vmem:[#allocation2 + $0x60] sm:$0xff] %v1406
      %1439 = vst [vmem:[#allocation2 + $0x68] sm:$0xff] %v1407
      %1440 = vst [vmem:[#allocation2 + $0x70] sm:$0xff] %v1408
      %1441 = vst [vmem:[#allocation2 + $0x78] sm:$0xff] %v1409
      %1442 = vst [vmem:[#allocation2 + $0x80] sm:$0xff] %v1410
      %1443 = vst [vmem:[#allocation2 + $0x88] sm:$0xff] %v1411
      %1444 = vst [vmem:[#allocation2 + $0x90] sm:$0xff] %v1412
      %1445 = vst [vmem:[#allocation2 + $0x98] sm:$0xff] %v1413
      %1446 = vst [vmem:[#allocation2 + $0xa0] sm:$0xff] %v1414
      %1447 = vst [vmem:[#allocation2 + $0xa8] sm:$0xff] %v1415
      %1448 = vst [vmem:[#allocation2 + $0xb0] sm:$0xff] %v1416
      %1449 = vst [vmem:[#allocation2 + $0xb8] sm:$0xff] %v1417
      %1450 = vst [vmem:[#allocation2 + $0xc0] sm:$0xff] %v1418
      %1451 = vst [vmem:[#allocation2 + $0xc8] sm:$0xff] %v1419
      %1452 = vst [vmem:[#allocation2 + $0xd0] sm:$0xff] %v1420
      %1453 = vst [vmem:[#allocation2 + $0xd8] sm:$0xff] %v1421
      %1454 = vst [vmem:[#allocation2 + $0xe0] sm:$0xff] %v1422
      %1455 = vst [vmem:[#allocation2 + $0xe8] sm:$0xff] %v1423
      %1456 = vst [vmem:[#allocation2 + $0xf0] sm:$0xff] %v1424
      %1457 = vst [vmem:[#allocation2 + $0xf8] sm:$0xff] %v1425
      %s1458 = scalar_lea.vmem %s164, 24
      %v1459 = vld [vmem:[%s1458] sm:$0xff]
      %v1460 = vld [vmem:[%s1458 + $0x8] sm:$0xff]
      %v1461 = vld [vmem:[%s1458 + $0x18] sm:$0xff]
      %v1462 = vld [vmem:[%s1458 + $0x20] sm:$0xff]
      %v1463 = vld [vmem:[%s1458 + $0x30] sm:$0xff]
      %v1464 = vld [vmem:[%s1458 + $0x38] sm:$0xff]
      %v1465 = vld [vmem:[%s1458 + $0x48] sm:$0xff]
      %v1466 = vld [vmem:[%s1458 + $0x50] sm:$0xff]
      %v1467 = vld [vmem:[%s1458 + $0x60] sm:$0xff]
      %v1468 = vld [vmem:[%s1458 + $0x68] sm:$0xff]
      %v1469 = vld [vmem:[%s1458 + $0x78] sm:$0xff]
      %v1470 = vld [vmem:[%s1458 + $0x80] sm:$0xff]
      %v1471 = vld [vmem:[%s1458 + $0x90] sm:$0xff]
      %v1472 = vld [vmem:[%s1458 + $0x98] sm:$0xff]
      %v1473 = vld [vmem:[%s1458 + $0xa8] sm:$0xff]
      %v1474 = vld [vmem:[%s1458 + $0xb0] sm:$0xff]
      %v1475 = vld [vmem:[%s1458 + $0xc0] sm:$0xff]
      %v1476 = vld [vmem:[%s1458 + $0xc8] sm:$0xff]
      %v1477 = vld [vmem:[%s1458 + $0xd8] sm:$0xff]
      %v1478 = vld [vmem:[%s1458 + $0xe0] sm:$0xff]
      %v1479 = vld [vmem:[%s1458 + $0xf0] sm:$0xff]
      %v1480 = vld [vmem:[%s1458 + $0xf8] sm:$0xff]
      %v1481 = vld [vmem:[%s1458 + $0x108] sm:$0xff]
      %v1482 = vld [vmem:[%s1458 + $0x110] sm:$0xff]
      %v1483 = vld [vmem:[%s1458 + $0x120] sm:$0xff]
      %v1484 = vld [vmem:[%s1458 + $0x128] sm:$0xff]
      %v1485 = vld [vmem:[%s1458 + $0x138] sm:$0xff]
      %v1486 = vld [vmem:[%s1458 + $0x140] sm:$0xff]
      %v1487 = vld [vmem:[%s1458 + $0x150] sm:$0xff]
      %v1488 = vld [vmem:[%s1458 + $0x158] sm:$0xff]
      %v1489 = vld [vmem:[%s1458 + $0x168] sm:$0xff]
      %v1490 = vld [vmem:[%s1458 + $0x170] sm:$0xff]
      %s1491 = scalar_lea.vmem %s1, 24
      %v1492 = vld [vmem:[%s1491] sm:$0xff]
      %v1494 = vsel %vm202, %v1459, 0
      %v1497 = vsel %vm202, %v1460, 0
      %v1500 = vsel %vm202, %v1461, 0
      %v1503 = vsel %vm202, %v1462, 0
      %v1506 = vsel %vm202, %v1463, 0
      %v1509 = vsel %vm202, %v1464, 0
      %v1512 = vsel %vm202, %v1465, 0
      %v1515 = vsel %vm202, %v1466, 0
      %v1518 = vsel %vm202, %v1467, 0
      %v1521 = vsel %vm202, %v1468, 0
      %v1524 = vsel %vm202, %v1469, 0
      %v1527 = vsel %vm202, %v1470, 0
      %v1530 = vsel %vm202, %v1471, 0
      %v1533 = vsel %vm202, %v1472, 0
      %v1536 = vsel %vm202, %v1473, 0
      %v1539 = vsel %vm202, %v1474, 0
      %v1542 = vsel %vm202, %v1475, 0
      %v1545 = vsel %vm202, %v1476, 0
      %v1548 = vsel %vm202, %v1477, 0
      %v1551 = vsel %vm202, %v1478, 0
      %v1554 = vsel %vm202, %v1479, 0
      %v1557 = vsel %vm202, %v1480, 0
      %v1560 = vsel %vm202, %v1481, 0
      %v1563 = vsel %vm202, %v1482, 0
      %v1566 = vsel %vm202, %v1483, 0
      %v1569 = vsel %vm202, %v1484, 0
      %v1572 = vsel %vm202, %v1485, 0
      %v1575 = vsel %vm202, %v1486, 0
      %v1578 = vsel %vm202, %v1487, 0
      %v1581 = vsel %vm202, %v1488, 0
      %v1584 = vsel %vm202, %v1489, 0
      %v1587 = vsel %vm202, %v1490, 0
      %1589 = vmatprep.subr.mxu0 0.0
      %1590 = vmatpush1.msra.mxu0 0.0
      %1591 = vmatprep.subr.mxu0 0.0
      %1592 = vmatpush1.msra.mxu0 0.0
      %1593 = vmatprep.subr.mxu0 0.0
      %1594 = vmatpush1.msra.mxu0 0.0
      %1595 = vmatprep.subr.mxu0 0.0
      %1596 = vmatpush1.msra.mxu0 0.0
      %1597 = vmatprep.subr.mxu0 0.0
      %1598 = vmatpush1.msra.mxu0 0.0
      %1599 = vmatprep.subr.mxu0 0.0
      %1600 = vmatpush1.msra.mxu0 0.0
      %1601 = vmatprep.subr.mxu0 0.0
      %1602 = vmatpush1.msra.mxu0 0.0
      %1603 = vmatprep.subr.mxu0 0.0
      %1604 = vmatpush1.msra.mxu0 0.0
      %1605 = vmatprep.subr.mxu0 0.0
      %1606 = vmatpush1.msra.mxu0 0.0
      %1607 = vmatprep.subr.mxu0 0.0
      %1608 = vmatpush1.msra.mxu0 0.0
      %1609 = vmatprep.subr.mxu0 0.0
      %1610 = vmatpush1.msra.mxu0 0.0
      %1611 = vmatprep.subr.mxu0 0.0
      %1612 = vmatpush1.msra.mxu0 0.0
      %1613 = vmatprep.subr.mxu0 0.0
      %1614 = vmatpush1.msra.mxu0 0.0
      %1615 = vmatprep.subr.mxu0 0.0
      %1616 = vmatpush1.msra.mxu0 0.0
      %1617 = vmatprep.subr.mxu0 0.0
      %1618 = vmatpush1.msra.mxu0 0.0
      %1619 = vmatprep.subr.mxu0 0.0
      %1620 = vmatpush1.msra.mxu0 %v1492
      %1621 = vmatprep.subr.mxu0 0.0
      %1622 = vmatpush2.msra.mxu0 0.0
      %1623 = vmatprep.subr.mxu0 0.0
      %1624 = vmatpush2.msra.mxu0 0.0
      %1625 = vmatprep.subr.mxu0 0.0
      %1626 = vmatpush2.msra.mxu0 0.0
      %1627 = vmatprep.subr.mxu0 0.0
      %1628 = vmatpush2.msra.mxu0 0.0
      %1629 = vmatprep.subr.mxu0 0.0
      %1630 = vmatpush2.msra.mxu0 0.0
      %1631 = vmatprep.subr.mxu0 0.0
      %1632 = vmatpush2.msra.mxu0 0.0
      %1633 = vmatprep.subr.mxu0 0.0
      %1634 = vmatpush2.msra.mxu0 0.0
      %1635 = vmatprep.subr.mxu0 0.0
      %1636 = vmatpush2.msra.mxu0 0.0
      %1637 = vmatprep.subr.mxu0 0.0
      %1638 = vmatpush2.msra.mxu0 0.0
      %1639 = vmatprep.subr.mxu0 0.0
      %1640 = vmatpush2.msra.mxu0 0.0
      %1641 = vmatprep.subr.mxu0 0.0
      %1642 = vmatpush2.msra.mxu0 0.0
      %1643 = vmatprep.subr.mxu0 0.0
      %1644 = vmatpush2.msra.mxu0 0.0
      %1645 = vmatprep.subr.mxu0 0.0
      %1646 = vmatpush2.msra.mxu0 0.0
      %1647 = vmatprep.subr.mxu0 0.0
      %1648 = vmatpush2.msra.mxu0 0.0
      %1649 = vmatprep.subr.mxu0 0.0
      %1650 = vmatpush2.msra.mxu0 0.0
      %1651 = vmatprep.subr.mxu0 0.0
      %1652 = vmatpush2.msra.mxu0 0.0
      %1653 = vmatprep.mubr.f32.mxu0 0.0
      %1654 = vmatmul.mubr.f32.gmra.mxu0 %v1494
      %v1655 = vpop.f32.mrf.mxu0
      %v1656 = vadd.f32 0.0, %v1655
      %v1657 = vpop.f32.mrf.mxu0
      %1658 = vmatprep.mubr.f32.mxu0 0.0
      %1659 = vmatmul.mubr.f32.gmra.mxu0 %v1497
      %v1660 = vpop.f32.mrf.mxu0
      %v1661 = vadd.f32 0.0, %v1660
      %v1662 = vpop.f32.mrf.mxu0
      %1663 = vmatprep.mubr.f32.mxu0 0.0
      %1664 = vmatmul.mubr.f32.gmra.mxu0 %v1500
      %v1665 = vpop.f32.mrf.mxu0
      %v1666 = vadd.f32 0.0, %v1665
      %v1667 = vpop.f32.mrf.mxu0
      %1668 = vmatprep.mubr.f32.mxu0 0.0
      %1669 = vmatmul.mubr.f32.gmra.mxu0 %v1503
      %v1670 = vpop.f32.mrf.mxu0
      %v1671 = vadd.f32 0.0, %v1670
      %v1672 = vpop.f32.mrf.mxu0
      %1673 = vmatprep.mubr.f32.mxu0 0.0
      %1674 = vmatmul.mubr.f32.gmra.mxu0 %v1506
      %v1675 = vpop.f32.mrf.mxu0
      %v1676 = vadd.f32 0.0, %v1675
      %v1677 = vpop.f32.mrf.mxu0
      %1678 = vmatprep.mubr.f32.mxu0 0.0
      %1679 = vmatmul.mubr.f32.gmra.mxu0 %v1509
      %v1680 = vpop.f32.mrf.mxu0
      %v1681 = vadd.f32 0.0, %v1680
      %v1682 = vpop.f32.mrf.mxu0
      %1683 = vmatprep.mubr.f32.mxu0 0.0
      %1684 = vmatmul.mubr.f32.gmra.mxu0 %v1512
      %v1685 = vpop.f32.mrf.mxu0
      %v1686 = vadd.f32 0.0, %v1685
      %v1687 = vpop.f32.mrf.mxu0
      %1688 = vmatprep.mubr.f32.mxu0 0.0
      %1689 = vmatmul.mubr.f32.gmra.mxu0 %v1515
      %v1690 = vpop.f32.mrf.mxu0
      %v1691 = vadd.f32 0.0, %v1690
      %v1692 = vpop.f32.mrf.mxu0
      %1693 = vmatprep.mubr.f32.mxu0 0.0
      %1694 = vmatmul.mubr.f32.gmra.mxu0 %v1518
      %v1695 = vpop.f32.mrf.mxu0
      %v1696 = vadd.f32 0.0, %v1695
      %v1697 = vpop.f32.mrf.mxu0
      %1698 = vmatprep.mubr.f32.mxu0 0.0
      %1699 = vmatmul.mubr.f32.gmra.mxu0 %v1521
      %v1700 = vpop.f32.mrf.mxu0
      %v1701 = vadd.f32 0.0, %v1700
      %v1702 = vpop.f32.mrf.mxu0
      %1703 = vmatprep.mubr.f32.mxu0 0.0
      %1704 = vmatmul.mubr.f32.gmra.mxu0 %v1524
      %v1705 = vpop.f32.mrf.mxu0
      %v1706 = vadd.f32 0.0, %v1705
      %v1707 = vpop.f32.mrf.mxu0
      %1708 = vmatprep.mubr.f32.mxu0 0.0
      %1709 = vmatmul.mubr.f32.gmra.mxu0 %v1527
      %v1710 = vpop.f32.mrf.mxu0
      %v1711 = vadd.f32 0.0, %v1710
      %v1712 = vpop.f32.mrf.mxu0
      %1713 = vmatprep.mubr.f32.mxu0 0.0
      %1714 = vmatmul.mubr.f32.gmra.mxu0 %v1530
      %v1715 = vpop.f32.mrf.mxu0
      %v1716 = vadd.f32 0.0, %v1715
      %v1717 = vpop.f32.mrf.mxu0
      %1718 = vmatprep.mubr.f32.mxu0 0.0
      %1719 = vmatmul.mubr.f32.gmra.mxu0 %v1533
      %v1720 = vpop.f32.mrf.mxu0
      %v1721 = vadd.f32 0.0, %v1720
      %v1722 = vpop.f32.mrf.mxu0
      %1723 = vmatprep.mubr.f32.mxu0 0.0
      %1724 = vmatmul.mubr.f32.gmra.mxu0 %v1536
      %v1725 = vpop.f32.mrf.mxu0
      %v1726 = vadd.f32 0.0, %v1725
      %v1727 = vpop.f32.mrf.mxu0
      %1728 = vmatprep.mubr.f32.mxu0 0.0
      %1729 = vmatmul.mubr.f32.gmra.mxu0 %v1539
      %v1730 = vpop.f32.mrf.mxu0
      %v1731 = vadd.f32 0.0, %v1730
      %v1732 = vpop.f32.mrf.mxu0
      %1733 = vmatprep.mubr.f32.mxu0 0.0
      %1734 = vmatmul.mubr.f32.gmra.mxu0 %v1542
      %v1735 = vpop.f32.mrf.mxu0
      %v1736 = vadd.f32 0.0, %v1735
      %v1737 = vpop.f32.mrf.mxu0
      %1738 = vmatprep.mubr.f32.mxu0 0.0
      %1739 = vmatmul.mubr.f32.gmra.mxu0 %v1545
      %v1740 = vpop.f32.mrf.mxu0
      %v1741 = vadd.f32 0.0, %v1740
      %v1742 = vpop.f32.mrf.mxu0
      %1743 = vmatprep.mubr.f32.mxu0 0.0
      %1744 = vmatmul.mubr.f32.gmra.mxu0 %v1548
      %v1745 = vpop.f32.mrf.mxu0
      %v1746 = vadd.f32 0.0, %v1745
      %v1747 = vpop.f32.mrf.mxu0
      %1748 = vmatprep.mubr.f32.mxu0 0.0
      %1749 = vmatmul.mubr.f32.gmra.mxu0 %v1551
      %v1750 = vpop.f32.mrf.mxu0
      %v1751 = vadd.f32 0.0, %v1750
      %v1752 = vpop.f32.mrf.mxu0
      %1753 = vmatprep.mubr.f32.mxu0 0.0
      %1754 = vmatmul.mubr.f32.gmra.mxu0 %v1554
      %v1755 = vpop.f32.mrf.mxu0
      %v1756 = vadd.f32 0.0, %v1755
      %v1757 = vpop.f32.mrf.mxu0
      %1758 = vmatprep.mubr.f32.mxu0 0.0
      %1759 = vmatmul.mubr.f32.gmra.mxu0 %v1557
      %v1760 = vpop.f32.mrf.mxu0
      %v1761 = vadd.f32 0.0, %v1760
      %v1762 = vpop.f32.mrf.mxu0
      %1763 = vmatprep.mubr.f32.mxu0 0.0
      %1764 = vmatmul.mubr.f32.gmra.mxu0 %v1560
      %v1765 = vpop.f32.mrf.mxu0
      %v1766 = vadd.f32 0.0, %v1765
      %v1767 = vpop.f32.mrf.mxu0
      %1768 = vmatprep.mubr.f32.mxu0 0.0
      %1769 = vmatmul.mubr.f32.gmra.mxu0 %v1563
      %v1770 = vpop.f32.mrf.mxu0
      %v1771 = vadd.f32 0.0, %v1770
      %v1772 = vpop.f32.mrf.mxu0
      %1773 = vmatprep.mubr.f32.mxu0 0.0
      %1774 = vmatmul.mubr.f32.gmra.mxu0 %v1566
      %v1775 = vpop.f32.mrf.mxu0
      %v1776 = vadd.f32 0.0, %v1775
      %v1777 = vpop.f32.mrf.mxu0
      %1778 = vmatprep.mubr.f32.mxu0 0.0
      %1779 = vmatmul.mubr.f32.gmra.mxu0 %v1569
      %v1780 = vpop.f32.mrf.mxu0
      %v1781 = vadd.f32 0.0, %v1780
      %v1782 = vpop.f32.mrf.mxu0
      %1783 = vmatprep.mubr.f32.mxu0 0.0
      %1784 = vmatmul.mubr.f32.gmra.mxu0 %v1572
      %v1785 = vpop.f32.mrf.mxu0
      %v1786 = vadd.f32 0.0, %v1785
      %v1787 = vpop.f32.mrf.mxu0
      %1788 = vmatprep.mubr.f32.mxu0 0.0
      %1789 = vmatmul.mubr.f32.gmra.mxu0 %v1575
      %v1790 = vpop.f32.mrf.mxu0
      %v1791 = vadd.f32 0.0, %v1790
      %v1792 = vpop.f32.mrf.mxu0
      %1793 = vmatprep.mubr.f32.mxu0 0.0
      %1794 = vmatmul.mubr.f32.gmra.mxu0 %v1578
      %v1795 = vpop.f32.mrf.mxu0
      %v1796 = vadd.f32 0.0, %v1795
      %v1797 = vpop.f32.mrf.mxu0
      %1798 = vmatprep.mubr.f32.mxu0 0.0
      %1799 = vmatmul.mubr.f32.gmra.mxu0 %v1581
      %v1800 = vpop.f32.mrf.mxu0
      %v1801 = vadd.f32 0.0, %v1800
      %v1802 = vpop.f32.mrf.mxu0
      %1803 = vmatprep.mubr.f32.mxu0 0.0
      %1804 = vmatmul.mubr.f32.gmra.mxu0 %v1584
      %v1805 = vpop.f32.mrf.mxu0
      %v1806 = vadd.f32 0.0, %v1805
      %v1807 = vpop.f32.mrf.mxu0
      %1808 = vmatprep.mubr.f32.mxu0 0.0
      %1809 = vmatmul.mubr.f32.gmra.mxu0 %v1587
      %v1810 = vpop.f32.mrf.mxu0
      %v1811 = vadd.f32 0.0, %v1810
      %v1812 = vpop.f32.mrf.mxu0
      %1813 = vdwg.mxu0
      %v1814 = vld [vmem:[#allocation2] sm:$0xff]
      %v1815 = vld [vmem:[#allocation2 + $0x8] sm:$0xff]
      %v1816 = vld [vmem:[#allocation2 + $0x10] sm:$0xff]
      %v1817 = vld [vmem:[#allocation2 + $0x18] sm:$0xff]
      %v1818 = vld [vmem:[#allocation2 + $0x20] sm:$0xff]
      %v1819 = vld [vmem:[#allocation2 + $0x28] sm:$0xff]
      %v1820 = vld [vmem:[#allocation2 + $0x30] sm:$0xff]
      %v1821 = vld [vmem:[#allocation2 + $0x38] sm:$0xff]
      %v1822 = vld [vmem:[#allocation2 + $0x40] sm:$0xff]
      %v1823 = vld [vmem:[#allocation2 + $0x48] sm:$0xff]
      %v1824 = vld [vmem:[#allocation2 + $0x50] sm:$0xff]
      %v1825 = vld [vmem:[#allocation2 + $0x58] sm:$0xff]
      %v1826 = vld [vmem:[#allocation2 + $0x60] sm:$0xff]
      %v1827 = vld [vmem:[#allocation2 + $0x68] sm:$0xff]
      %v1828 = vld [vmem:[#allocation2 + $0x70] sm:$0xff]
      %v1829 = vld [vmem:[#allocation2 + $0x78] sm:$0xff]
      %v1830 = vld [vmem:[#allocation2 + $0x80] sm:$0xff]
      %v1831 = vld [vmem:[#allocation2 + $0x88] sm:$0xff]
      %v1832 = vld [vmem:[#allocation2 + $0x90] sm:$0xff]
      %v1833 = vld [vmem:[#allocation2 + $0x98] sm:$0xff]
      %v1834 = vld [vmem:[#allocation2 + $0xa0] sm:$0xff]
      %v1835 = vld [vmem:[#allocation2 + $0xa8] sm:$0xff]
      %v1836 = vld [vmem:[#allocation2 + $0xb0] sm:$0xff]
      %v1837 = vld [vmem:[#allocation2 + $0xb8] sm:$0xff]
      %v1838 = vld [vmem:[#allocation2 + $0xc0] sm:$0xff]
      %v1839 = vld [vmem:[#allocation2 + $0xc8] sm:$0xff]
      %v1840 = vld [vmem:[#allocation2 + $0xd0] sm:$0xff]
      %v1841 = vld [vmem:[#allocation2 + $0xd8] sm:$0xff]
      %v1842 = vld [vmem:[#allocation2 + $0xe0] sm:$0xff]
      %v1843 = vld [vmem:[#allocation2 + $0xe8] sm:$0xff]
      %v1844 = vld [vmem:[#allocation2 + $0xf0] sm:$0xff]
      %v1845 = vld [vmem:[#allocation2 + $0xf8] sm:$0xff]
      %v1846 = vadd.f32 %v1814, %v1656
      %v1847 = vadd.f32 %v1815, %v1661
      %v1848 = vadd.f32 %v1816, %v1666
      %v1849 = vadd.f32 %v1817, %v1671
      %v1850 = vadd.f32 %v1818, %v1676
      %v1851 = vadd.f32 %v1819, %v1681
      %v1852 = vadd.f32 %v1820, %v1686
      %v1853 = vadd.f32 %v1821, %v1691
      %v1854 = vadd.f32 %v1822, %v1696
      %v1855 = vadd.f32 %v1823, %v1701
      %v1856 = vadd.f32 %v1824, %v1706
      %v1857 = vadd.f32 %v1825, %v1711
      %v1858 = vadd.f32 %v1826, %v1716
      %v1859 = vadd.f32 %v1827, %v1721
      %v1860 = vadd.f32 %v1828, %v1726
      %v1861 = vadd.f32 %v1829, %v1731
      %v1862 = vadd.f32 %v1830, %v1736
      %v1863 = vadd.f32 %v1831, %v1741
      %v1864 = vadd.f32 %v1832, %v1746
      %v1865 = vadd.f32 %v1833, %v1751
      %v1866 = vadd.f32 %v1834, %v1756
      %v1867 = vadd.f32 %v1835, %v1761
      %v1868 = vadd.f32 %v1836, %v1766
      %v1869 = vadd.f32 %v1837, %v1771
      %v1870 = vadd.f32 %v1838, %v1776
      %v1871 = vadd.f32 %v1839, %v1781
      %v1872 = vadd.f32 %v1840, %v1786
      %v1873 = vadd.f32 %v1841, %v1791
      %v1874 = vadd.f32 %v1842, %v1796
      %v1875 = vadd.f32 %v1843, %v1801
      %v1876 = vadd.f32 %v1844, %v1806
      %v1877 = vadd.f32 %v1845, %v1811
      %1878 = vst [vmem:[#allocation2] sm:$0xff] %v1846
      %1879 = vst [vmem:[#allocation2 + $0x8] sm:$0xff] %v1847
      %1880 = vst [vmem:[#allocation2 + $0x10] sm:$0xff] %v1848
      %1881 = vst [vmem:[#allocation2 + $0x18] sm:$0xff] %v1849
      %1882 = vst [vmem:[#allocation2 + $0x20] sm:$0xff] %v1850
      %1883 = vst [vmem:[#allocation2 + $0x28] sm:$0xff] %v1851
      %1884 = vst [vmem:[#allocation2 + $0x30] sm:$0xff] %v1852
      %1885 = vst [vmem:[#allocation2 + $0x38] sm:$0xff] %v1853
      %1886 = vst [vmem:[#allocation2 + $0x40] sm:$0xff] %v1854
      %1887 = vst [vmem:[#allocation2 + $0x48] sm:$0xff] %v1855
      %1888 = vst [vmem:[#allocation2 + $0x50] sm:$0xff] %v1856
      %1889 = vst [vmem:[#allocation2 + $0x58] sm:$0xff] %v1857
      %1890 = vst [vmem:[#allocation2 + $0x60] sm:$0xff] %v1858
      %1891 = vst [vmem:[#allocation2 + $0x68] sm:$0xff] %v1859
      %1892 = vst [vmem:[#allocation2 + $0x70] sm:$0xff] %v1860
      %1893 = vst [vmem:[#allocation2 + $0x78] sm:$0xff] %v1861
      %1894 = vst [vmem:[#allocation2 + $0x80] sm:$0xff] %v1862
      %1895 = vst [vmem:[#allocation2 + $0x88] sm:$0xff] %v1863
      %1896 = vst [vmem:[#allocation2 + $0x90] sm:$0xff] %v1864
      %1897 = vst [vmem:[#allocation2 + $0x98] sm:$0xff] %v1865
      %1898 = vst [vmem:[#allocation2 + $0xa0] sm:$0xff] %v1866
      %1899 = vst [vmem:[#allocation2 + $0xa8] sm:$0xff] %v1867
      %1900 = vst [vmem:[#allocation2 + $0xb0] sm:$0xff] %v1868
      %1901 = vst [vmem:[#allocation2 + $0xb8] sm:$0xff] %v1869
      %1902 = vst [vmem:[#allocation2 + $0xc0] sm:$0xff] %v1870
      %1903 = vst [vmem:[#allocation2 + $0xc8] sm:$0xff] %v1871
      %1904 = vst [vmem:[#allocation2 + $0xd0] sm:$0xff] %v1872
      %1905 = vst [vmem:[#allocation2 + $0xd8] sm:$0xff] %v1873
      %1906 = vst [vmem:[#allocation2 + $0xe0] sm:$0xff] %v1874
      %1907 = vst [vmem:[#allocation2 + $0xe8] sm:$0xff] %v1875
      %1908 = vst [vmem:[#allocation2 + $0xf0] sm:$0xff] %v1876
      %1909 = vst [vmem:[#allocation2 + $0xf8] sm:$0xff] %v1877
      %v1910 = vld [vmem:[%s1458 + $0x1] sm:$0xff]
      %v1911 = vld [vmem:[%s1458 + $0x9] sm:$0xff]
      %v1912 = vld [vmem:[%s1458 + $0x19] sm:$0xff]
      %v1913 = vld [vmem:[%s1458 + $0x21] sm:$0xff]
      %v1914 = vld [vmem:[%s1458 + $0x31] sm:$0xff]
      %v1915 = vld [vmem:[%s1458 + $0x39] sm:$0xff]
      %v1916 = vld [vmem:[%s1458 + $0x49] sm:$0xff]
      %v1917 = vld [vmem:[%s1458 + $0x51] sm:$0xff]
      %v1918 = vld [vmem:[%s1458 + $0x61] sm:$0xff]
      %v1919 = vld [vmem:[%s1458 + $0x69] sm:$0xff]
      %v1920 = vld [vmem:[%s1458 + $0x79] sm:$0xff]
      %v1921 = vld [vmem:[%s1458 + $0x81] sm:$0xff]
      %v1922 = vld [vmem:[%s1458 + $0x91] sm:$0xff]
      %v1923 = vld [vmem:[%s1458 + $0x99] sm:$0xff]
      %v1924 = vld [vmem:[%s1458 + $0xa9] sm:$0xff]
      %v1925 = vld [vmem:[%s1458 + $0xb1] sm:$0xff]
      %v1926 = vld [vmem:[%s1458 + $0xc1] sm:$0xff]
      %v1927 = vld [vmem:[%s1458 + $0xc9] sm:$0xff]
      %v1928 = vld [vmem:[%s1458 + $0xd9] sm:$0xff]
      %v1929 = vld [vmem:[%s1458 + $0xe1] sm:$0xff]
      %v1930 = vld [vmem:[%s1458 + $0xf1] sm:$0xff]
      %v1931 = vld [vmem:[%s1458 + $0xf9] sm:$0xff]
      %v1932 = vld [vmem:[%s1458 + $0x109] sm:$0xff]
      %v1933 = vld [vmem:[%s1458 + $0x111] sm:$0xff]
      %v1934 = vld [vmem:[%s1458 + $0x121] sm:$0xff]
      %v1935 = vld [vmem:[%s1458 + $0x129] sm:$0xff]
      %v1936 = vld [vmem:[%s1458 + $0x139] sm:$0xff]
      %v1937 = vld [vmem:[%s1458 + $0x141] sm:$0xff]
      %v1938 = vld [vmem:[%s1458 + $0x151] sm:$0xff]
      %v1939 = vld [vmem:[%s1458 + $0x159] sm:$0xff]
      %v1940 = vld [vmem:[%s1458 + $0x169] sm:$0xff]
      %v1941 = vld [vmem:[%s1458 + $0x171] sm:$0xff]
      %s1942 = scalar_lea.vmem %s1, 32
      %v1943 = vld [vmem:[%s1942] sm:$0xff]
      %v1945 = vsel %vm202, %v1910, 0
      %v1948 = vsel %vm202, %v1911, 0
      %v1951 = vsel %vm202, %v1912, 0
      %v1954 = vsel %vm202, %v1913, 0
      %v1957 = vsel %vm202, %v1914, 0
      %v1960 = vsel %vm202, %v1915, 0
      %v1963 = vsel %vm202, %v1916, 0
      %v1966 = vsel %vm202, %v1917, 0
      %v1969 = vsel %vm202, %v1918, 0
      %v1972 = vsel %vm202, %v1919, 0
      %v1975 = vsel %vm202, %v1920, 0
      %v1978 = vsel %vm202, %v1921, 0
      %v1981 = vsel %vm202, %v1922, 0
      %v1984 = vsel %vm202, %v1923, 0
      %v1987 = vsel %vm202, %v1924, 0
      %v1990 = vsel %vm202, %v1925, 0
      %v1993 = vsel %vm202, %v1926, 0
      %v1996 = vsel %vm202, %v1927, 0
      %v1999 = vsel %vm202, %v1928, 0
      %v2002 = vsel %vm202, %v1929, 0
      %v2005 = vsel %vm202, %v1930, 0
      %v2008 = vsel %vm202, %v1931, 0
      %v2011 = vsel %vm202, %v1932, 0
      %v2014 = vsel %vm202, %v1933, 0
      %v2017 = vsel %vm202, %v1934, 0
      %v2020 = vsel %vm202, %v1935, 0
      %v2023 = vsel %vm202, %v1936, 0
      %v2026 = vsel %vm202, %v1937, 0
      %v2029 = vsel %vm202, %v1938, 0
      %v2032 = vsel %vm202, %v1939, 0
      %v2035 = vsel %vm202, %v1940, 0
      %v2038 = vsel %vm202, %v1941, 0
      %2040 = vmatprep.subr.mxu0 0.0
      %2041 = vmatpush1.msra.mxu0 0.0
      %2042 = vmatprep.subr.mxu0 0.0
      %2043 = vmatpush1.msra.mxu0 0.0
      %2044 = vmatprep.subr.mxu0 0.0
      %2045 = vmatpush1.msra.mxu0 0.0
      %2046 = vmatprep.subr.mxu0 0.0
      %2047 = vmatpush1.msra.mxu0 0.0
      %2048 = vmatprep.subr.mxu0 0.0
      %2049 = vmatpush1.msra.mxu0 0.0
      %2050 = vmatprep.subr.mxu0 0.0
      %2051 = vmatpush1.msra.mxu0 0.0
      %2052 = vmatprep.subr.mxu0 0.0
      %2053 = vmatpush1.msra.mxu0 0.0
      %2054 = vmatprep.subr.mxu0 0.0
      %2055 = vmatpush1.msra.mxu0 0.0
      %2056 = vmatprep.subr.mxu0 0.0
      %2057 = vmatpush1.msra.mxu0 0.0
      %2058 = vmatprep.subr.mxu0 0.0
      %2059 = vmatpush1.msra.mxu0 0.0
      %2060 = vmatprep.subr.mxu0 0.0
      %2061 = vmatpush1.msra.mxu0 0.0
      %2062 = vmatprep.subr.mxu0 0.0
      %2063 = vmatpush1.msra.mxu0 0.0
      %2064 = vmatprep.subr.mxu0 0.0
      %2065 = vmatpush1.msra.mxu0 0.0
      %2066 = vmatprep.subr.mxu0 0.0
      %2067 = vmatpush1.msra.mxu0 0.0
      %2068 = vmatprep.subr.mxu0 0.0
      %2069 = vmatpush1.msra.mxu0 0.0
      %2070 = vmatprep.subr.mxu0 0.0
      %2071 = vmatpush1.msra.mxu0 %v1943
      %2072 = vmatprep.subr.mxu0 0.0
      %2073 = vmatpush2.msra.mxu0 0.0
      %2074 = vmatprep.subr.mxu0 0.0
      %2075 = vmatpush2.msra.mxu0 0.0
      %2076 = vmatprep.subr.mxu0 0.0
      %2077 = vmatpush2.msra.mxu0 0.0
      %2078 = vmatprep.subr.mxu0 0.0
      %2079 = vmatpush2.msra.mxu0 0.0
      %2080 = vmatprep.subr.mxu0 0.0
      %2081 = vmatpush2.msra.mxu0 0.0
      %2082 = vmatprep.subr.mxu0 0.0
      %2083 = vmatpush2.msra.mxu0 0.0
      %2084 = vmatprep.subr.mxu0 0.0
      %2085 = vmatpush2.msra.mxu0 0.0
      %2086 = vmatprep.subr.mxu0 0.0
      %2087 = vmatpush2.msra.mxu0 0.0
      %2088 = vmatprep.subr.mxu0 0.0
      %2089 = vmatpush2.msra.mxu0 0.0
      %2090 = vmatprep.subr.mxu0 0.0
      %2091 = vmatpush2.msra.mxu0 0.0
      %2092 = vmatprep.subr.mxu0 0.0
      %2093 = vmatpush2.msra.mxu0 0.0
      %2094 = vmatprep.subr.mxu0 0.0
      %2095 = vmatpush2.msra.mxu0 0.0
      %2096 = vmatprep.subr.mxu0 0.0
      %2097 = vmatpush2.msra.mxu0 0.0
      %2098 = vmatprep.subr.mxu0 0.0
      %2099 = vmatpush2.msra.mxu0 0.0
      %2100 = vmatprep.subr.mxu0 0.0
      %2101 = vmatpush2.msra.mxu0 0.0
      %2102 = vmatprep.subr.mxu0 0.0
      %2103 = vmatpush2.msra.mxu0 0.0
      %2104 = vmatprep.mubr.f32.mxu0 0.0
      %2105 = vmatmul.mubr.f32.gmra.mxu0 %v1945
      %v2106 = vpop.f32.mrf.mxu0
      %v2107 = vadd.f32 0.0, %v2106
      %v2108 = vpop.f32.mrf.mxu0
      %2109 = vmatprep.mubr.f32.mxu0 0.0
      %2110 = vmatmul.mubr.f32.gmra.mxu0 %v1948
      %v2111 = vpop.f32.mrf.mxu0
      %v2112 = vadd.f32 0.0, %v2111
      %v2113 = vpop.f32.mrf.mxu0
      %2114 = vmatprep.mubr.f32.mxu0 0.0
      %2115 = vmatmul.mubr.f32.gmra.mxu0 %v1951
      %v2116 = vpop.f32.mrf.mxu0
      %v2117 = vadd.f32 0.0, %v2116
      %v2118 = vpop.f32.mrf.mxu0
      %2119 = vmatprep.mubr.f32.mxu0 0.0
      %2120 = vmatmul.mubr.f32.gmra.mxu0 %v1954
      %v2121 = vpop.f32.mrf.mxu0
      %v2122 = vadd.f32 0.0, %v2121
      %v2123 = vpop.f32.mrf.mxu0
      %2124 = vmatprep.mubr.f32.mxu0 0.0
      %2125 = vmatmul.mubr.f32.gmra.mxu0 %v1957
      %v2126 = vpop.f32.mrf.mxu0
      %v2127 = vadd.f32 0.0, %v2126
      %v2128 = vpop.f32.mrf.mxu0
      %2129 = vmatprep.mubr.f32.mxu0 0.0
      %2130 = vmatmul.mubr.f32.gmra.mxu0 %v1960
      %v2131 = vpop.f32.mrf.mxu0
      %v2132 = vadd.f32 0.0, %v2131
      %v2133 = vpop.f32.mrf.mxu0
      %2134 = vmatprep.mubr.f32.mxu0 0.0
      %2135 = vmatmul.mubr.f32.gmra.mxu0 %v1963
      %v2136 = vpop.f32.mrf.mxu0
      %v2137 = vadd.f32 0.0, %v2136
      %v2138 = vpop.f32.mrf.mxu0
      %2139 = vmatprep.mubr.f32.mxu0 0.0
      %2140 = vmatmul.mubr.f32.gmra.mxu0 %v1966
      %v2141 = vpop.f32.mrf.mxu0
      %v2142 = vadd.f32 0.0, %v2141
      %v2143 = vpop.f32.mrf.mxu0
      %2144 = vmatprep.mubr.f32.mxu0 0.0
      %2145 = vmatmul.mubr.f32.gmra.mxu0 %v1969
      %v2146 = vpop.f32.mrf.mxu0
      %v2147 = vadd.f32 0.0, %v2146
      %v2148 = vpop.f32.mrf.mxu0
      %2149 = vmatprep.mubr.f32.mxu0 0.0
      %2150 = vmatmul.mubr.f32.gmra.mxu0 %v1972
      %v2151 = vpop.f32.mrf.mxu0
      %v2152 = vadd.f32 0.0, %v2151
      %v2153 = vpop.f32.mrf.mxu0
      %2154 = vmatprep.mubr.f32.mxu0 0.0
      %2155 = vmatmul.mubr.f32.gmra.mxu0 %v1975
      %v2156 = vpop.f32.mrf.mxu0
      %v2157 = vadd.f32 0.0, %v2156
      %v2158 = vpop.f32.mrf.mxu0
      %2159 = vmatprep.mubr.f32.mxu0 0.0
      %2160 = vmatmul.mubr.f32.gmra.mxu0 %v1978
      %v2161 = vpop.f32.mrf.mxu0
      %v2162 = vadd.f32 0.0, %v2161
      %v2163 = vpop.f32.mrf.mxu0
      %2164 = vmatprep.mubr.f32.mxu0 0.0
      %2165 = vmatmul.mubr.f32.gmra.mxu0 %v1981
      %v2166 = vpop.f32.mrf.mxu0
      %v2167 = vadd.f32 0.0, %v2166
      %v2168 = vpop.f32.mrf.mxu0
      %2169 = vmatprep.mubr.f32.mxu0 0.0
      %2170 = vmatmul.mubr.f32.gmra.mxu0 %v1984
      %v2171 = vpop.f32.mrf.mxu0
      %v2172 = vadd.f32 0.0, %v2171
      %v2173 = vpop.f32.mrf.mxu0
      %2174 = vmatprep.mubr.f32.mxu0 0.0
      %2175 = vmatmul.mubr.f32.gmra.mxu0 %v1987
      %v2176 = vpop.f32.mrf.mxu0
      %v2177 = vadd.f32 0.0, %v2176
      %v2178 = vpop.f32.mrf.mxu0
      %2179 = vmatprep.mubr.f32.mxu0 0.0
      %2180 = vmatmul.mubr.f32.gmra.mxu0 %v1990
      %v2181 = vpop.f32.mrf.mxu0
      %v2182 = vadd.f32 0.0, %v2181
      %v2183 = vpop.f32.mrf.mxu0
      %2184 = vmatprep.mubr.f32.mxu0 0.0
      %2185 = vmatmul.mubr.f32.gmra.mxu0 %v1993
      %v2186 = vpop.f32.mrf.mxu0
      %v2187 = vadd.f32 0.0, %v2186
      %v2188 = vpop.f32.mrf.mxu0
      %2189 = vmatprep.mubr.f32.mxu0 0.0
      %2190 = vmatmul.mubr.f32.gmra.mxu0 %v1996
      %v2191 = vpop.f32.mrf.mxu0
      %v2192 = vadd.f32 0.0, %v2191
      %v2193 = vpop.f32.mrf.mxu0
      %2194 = vmatprep.mubr.f32.mxu0 0.0
      %2195 = vmatmul.mubr.f32.gmra.mxu0 %v1999
      %v2196 = vpop.f32.mrf.mxu0
      %v2197 = vadd.f32 0.0, %v2196
      %v2198 = vpop.f32.mrf.mxu0
      %2199 = vmatprep.mubr.f32.mxu0 0.0
      %2200 = vmatmul.mubr.f32.gmra.mxu0 %v2002
      %v2201 = vpop.f32.mrf.mxu0
      %v2202 = vadd.f32 0.0, %v2201
      %v2203 = vpop.f32.mrf.mxu0
      %2204 = vmatprep.mubr.f32.mxu0 0.0
      %2205 = vmatmul.mubr.f32.gmra.mxu0 %v2005
      %v2206 = vpop.f32.mrf.mxu0
      %v2207 = vadd.f32 0.0, %v2206
      %v2208 = vpop.f32.mrf.mxu0
      %2209 = vmatprep.mubr.f32.mxu0 0.0
      %2210 = vmatmul.mubr.f32.gmra.mxu0 %v2008
      %v2211 = vpop.f32.mrf.mxu0
      %v2212 = vadd.f32 0.0, %v2211
      %v2213 = vpop.f32.mrf.mxu0
      %2214 = vmatprep.mubr.f32.mxu0 0.0
      %2215 = vmatmul.mubr.f32.gmra.mxu0 %v2011
      %v2216 = vpop.f32.mrf.mxu0
      %v2217 = vadd.f32 0.0, %v2216
      %v2218 = vpop.f32.mrf.mxu0
      %2219 = vmatprep.mubr.f32.mxu0 0.0
      %2220 = vmatmul.mubr.f32.gmra.mxu0 %v2014
      %v2221 = vpop.f32.mrf.mxu0
      %v2222 = vadd.f32 0.0, %v2221
      %v2223 = vpop.f32.mrf.mxu0
      %2224 = vmatprep.mubr.f32.mxu0 0.0
      %2225 = vmatmul.mubr.f32.gmra.mxu0 %v2017
      %v2226 = vpop.f32.mrf.mxu0
      %v2227 = vadd.f32 0.0, %v2226
      %v2228 = vpop.f32.mrf.mxu0
      %2229 = vmatprep.mubr.f32.mxu0 0.0
      %2230 = vmatmul.mubr.f32.gmra.mxu0 %v2020
      %v2231 = vpop.f32.mrf.mxu0
      %v2232 = vadd.f32 0.0, %v2231
      %v2233 = vpop.f32.mrf.mxu0
      %2234 = vmatprep.mubr.f32.mxu0 0.0
      %2235 = vmatmul.mubr.f32.gmra.mxu0 %v2023
      %v2236 = vpop.f32.mrf.mxu0
      %v2237 = vadd.f32 0.0, %v2236
      %v2238 = vpop.f32.mrf.mxu0
      %2239 = vmatprep.mubr.f32.mxu0 0.0
      %2240 = vmatmul.mubr.f32.gmra.mxu0 %v2026
      %v2241 = vpop.f32.mrf.mxu0
      %v2242 = vadd.f32 0.0, %v2241
      %v2243 = vpop.f32.mrf.mxu0
      %2244 = vmatprep.mubr.f32.mxu0 0.0
      %2245 = vmatmul.mubr.f32.gmra.mxu0 %v2029
      %v2246 = vpop.f32.mrf.mxu0
      %v2247 = vadd.f32 0.0, %v2246
      %v2248 = vpop.f32.mrf.mxu0
      %2249 = vmatprep.mubr.f32.mxu0 0.0
      %2250 = vmatmul.mubr.f32.gmra.mxu0 %v2032
      %v2251 = vpop.f32.mrf.mxu0
      %v2252 = vadd.f32 0.0, %v2251
      %v2253 = vpop.f32.mrf.mxu0
      %2254 = vmatprep.mubr.f32.mxu0 0.0
      %2255 = vmatmul.mubr.f32.gmra.mxu0 %v2035
      %v2256 = vpop.f32.mrf.mxu0
      %v2257 = vadd.f32 0.0, %v2256
      %v2258 = vpop.f32.mrf.mxu0
      %2259 = vmatprep.mubr.f32.mxu0 0.0
      %2260 = vmatmul.mubr.f32.gmra.mxu0 %v2038
      %v2261 = vpop.f32.mrf.mxu0
      %v2262 = vadd.f32 0.0, %v2261
      %v2263 = vpop.f32.mrf.mxu0
      %2264 = vdwg.mxu0
      %v2265 = vld [vmem:[#allocation2] sm:$0xff]
      %v2266 = vld [vmem:[#allocation2 + $0x8] sm:$0xff]
      %v2267 = vld [vmem:[#allocation2 + $0x10] sm:$0xff]
      %v2268 = vld [vmem:[#allocation2 + $0x18] sm:$0xff]
      %v2269 = vld [vmem:[#allocation2 + $0x20] sm:$0xff]
      %v2270 = vld [vmem:[#allocation2 + $0x28] sm:$0xff]
      %v2271 = vld [vmem:[#allocation2 + $0x30] sm:$0xff]
      %v2272 = vld [vmem:[#allocation2 + $0x38] sm:$0xff]
      %v2273 = vld [vmem:[#allocation2 + $0x40] sm:$0xff]
      %v2274 = vld [vmem:[#allocation2 + $0x48] sm:$0xff]
      %v2275 = vld [vmem:[#allocation2 + $0x50] sm:$0xff]
      %v2276 = vld [vmem:[#allocation2 + $0x58] sm:$0xff]
      %v2277 = vld [vmem:[#allocation2 + $0x60] sm:$0xff]
      %v2278 = vld [vmem:[#allocation2 + $0x68] sm:$0xff]
      %v2279 = vld [vmem:[#allocation2 + $0x70] sm:$0xff]
      %v2280 = vld [vmem:[#allocation2 + $0x78] sm:$0xff]
      %v2281 = vld [vmem:[#allocation2 + $0x80] sm:$0xff]
      %v2282 = vld [vmem:[#allocation2 + $0x88] sm:$0xff]
      %v2283 = vld [vmem:[#allocation2 + $0x90] sm:$0xff]
      %v2284 = vld [vmem:[#allocation2 + $0x98] sm:$0xff]
      %v2285 = vld [vmem:[#allocation2 + $0xa0] sm:$0xff]
      %v2286 = vld [vmem:[#allocation2 + $0xa8] sm:$0xff]
      %v2287 = vld [vmem:[#allocation2 + $0xb0] sm:$0xff]
      %v2288 = vld [vmem:[#allocation2 + $0xb8] sm:$0xff]
      %v2289 = vld [vmem:[#allocation2 + $0xc0] sm:$0xff]
      %v2290 = vld [vmem:[#allocation2 + $0xc8] sm:$0xff]
      %v2291 = vld [vmem:[#allocation2 + $0xd0] sm:$0xff]
      %v2292 = vld [vmem:[#allocation2 + $0xd8] sm:$0xff]
      %v2293 = vld [vmem:[#allocation2 + $0xe0] sm:$0xff]
      %v2294 = vld [vmem:[#allocation2 + $0xe8] sm:$0xff]
      %v2295 = vld [vmem:[#allocation2 + $0xf0] sm:$0xff]
      %v2296 = vld [vmem:[#allocation2 + $0xf8] sm:$0xff]
      %v2297 = vadd.f32 %v2265, %v2107
      %v2298 = vadd.f32 %v2266, %v2112
      %v2299 = vadd.f32 %v2267, %v2117
      %v2300 = vadd.f32 %v2268, %v2122
      %v2301 = vadd.f32 %v2269, %v2127
      %v2302 = vadd.f32 %v2270, %v2132
      %v2303 = vadd.f32 %v2271, %v2137
      %v2304 = vadd.f32 %v2272, %v2142
      %v2305 = vadd.f32 %v2273, %v2147
      %v2306 = vadd.f32 %v2274, %v2152
      %v2307 = vadd.f32 %v2275, %v2157
      %v2308 = vadd.f32 %v2276, %v2162
      %v2309 = vadd.f32 %v2277, %v2167
      %v2310 = vadd.f32 %v2278, %v2172
      %v2311 = vadd.f32 %v2279, %v2177
      %v2312 = vadd.f32 %v2280, %v2182
      %v2313 = vadd.f32 %v2281, %v2187
      %v2314 = vadd.f32 %v2282, %v2192
      %v2315 = vadd.f32 %v2283, %v2197
      %v2316 = vadd.f32 %v2284, %v2202
      %v2317 = vadd.f32 %v2285, %v2207
      %v2318 = vadd.f32 %v2286, %v2212
      %v2319 = vadd.f32 %v2287, %v2217
      %v2320 = vadd.f32 %v2288, %v2222
      %v2321 = vadd.f32 %v2289, %v2227
      %v2322 = vadd.f32 %v2290, %v2232
      %v2323 = vadd.f32 %v2291, %v2237
      %v2324 = vadd.f32 %v2292, %v2242
      %v2325 = vadd.f32 %v2293, %v2247
      %v2326 = vadd.f32 %v2294, %v2252
      %v2327 = vadd.f32 %v2295, %v2257
      %v2328 = vadd.f32 %v2296, %v2262
      %2329 = vst [vmem:[#allocation2] sm:$0xff] %v2297
      %2330 = vst [vmem:[#allocation2 + $0x8] sm:$0xff] %v2298
      %2331 = vst [vmem:[#allocation2 + $0x10] sm:$0xff] %v2299
      %2332 = vst [vmem:[#allocation2 + $0x18] sm:$0xff] %v2300
      %2333 = vst [vmem:[#allocation2 + $0x20] sm:$0xff] %v2301
      %2334 = vst [vmem:[#allocation2 + $0x28] sm:$0xff] %v2302
      %2335 = vst [vmem:[#allocation2 + $0x30] sm:$0xff] %v2303
      %2336 = vst [vmem:[#allocation2 + $0x38] sm:$0xff] %v2304
      %2337 = vst [vmem:[#allocation2 + $0x40] sm:$0xff] %v2305
      %2338 = vst [vmem:[#allocation2 + $0x48] sm:$0xff] %v2306
      %2339 = vst [vmem:[#allocation2 + $0x50] sm:$0xff] %v2307
      %2340 = vst [vmem:[#allocation2 + $0x58] sm:$0xff] %v2308
      %2341 = vst [vmem:[#allocation2 + $0x60] sm:$0xff] %v2309
      %2342 = vst [vmem:[#allocation2 + $0x68] sm:$0xff] %v2310
      %2343 = vst [vmem:[#allocation2 + $0x70] sm:$0xff] %v2311
      %2344 = vst [vmem:[#allocation2 + $0x78] sm:$0xff] %v2312
      %2345 = vst [vmem:[#allocation2 + $0x80] sm:$0xff] %v2313
      %2346 = vst [vmem:[#allocation2 + $0x88] sm:$0xff] %v2314
      %2347 = vst [vmem:[#allocation2 + $0x90] sm:$0xff] %v2315
      %2348 = vst [vmem:[#allocation2 + $0x98] sm:$0xff] %v2316
      %2349 = vst [vmem:[#allocation2 + $0xa0] sm:$0xff] %v2317
      %2350 = vst [vmem:[#allocation2 + $0xa8] sm:$0xff] %v2318
      %2351 = vst [vmem:[#allocation2 + $0xb0] sm:$0xff] %v2319
      %2352 = vst [vmem:[#allocation2 + $0xb8] sm:$0xff] %v2320
      %2353 = vst [vmem:[#allocation2 + $0xc0] sm:$0xff] %v2321
      %2354 = vst [vmem:[#allocation2 + $0xc8] sm:$0xff] %v2322
      %2355 = vst [vmem:[#allocation2 + $0xd0] sm:$0xff] %v2323
      %2356 = vst [vmem:[#allocation2 + $0xd8] sm:$0xff] %v2324
      %2357 = vst [vmem:[#allocation2 + $0xe0] sm:$0xff] %v2325
      %2358 = vst [vmem:[#allocation2 + $0xe8] sm:$0xff] %v2326
      %2359 = vst [vmem:[#allocation2 + $0xf0] sm:$0xff] %v2327
      %2360 = vst [vmem:[#allocation2 + $0xf8] sm:$0xff] %v2328
      %v2361 = vld [vmem:[%s1458 + $0x2] sm:$0xff]
      %v2362 = vld [vmem:[%s1458 + $0xa] sm:$0xff]
      %v2363 = vld [vmem:[%s1458 + $0x1a] sm:$0xff]
      %v2364 = vld [vmem:[%s1458 + $0x22] sm:$0xff]
      %v2365 = vld [vmem:[%s1458 + $0x32] sm:$0xff]
      %v2366 = vld [vmem:[%s1458 + $0x3a] sm:$0xff]
      %v2367 = vld [vmem:[%s1458 + $0x4a] sm:$0xff]
      %v2368 = vld [vmem:[%s1458 + $0x52] sm:$0xff]
      %v2369 = vld [vmem:[%s1458 + $0x62] sm:$0xff]
      %v2370 = vld [vmem:[%s1458 + $0x6a] sm:$0xff]
      %v2371 = vld [vmem:[%s1458 + $0x7a] sm:$0xff]
      %v2372 = vld [vmem:[%s1458 + $0x82] sm:$0xff]
      %v2373 = vld [vmem:[%s1458 + $0x92] sm:$0xff]
      %v2374 = vld [vmem:[%s1458 + $0x9a] sm:$0xff]
      %v2375 = vld [vmem:[%s1458 + $0xaa] sm:$0xff]
      %v2376 = vld [vmem:[%s1458 + $0xb2] sm:$0xff]
      %v2377 = vld [vmem:[%s1458 + $0xc2] sm:$0xff]
      %v2378 = vld [vmem:[%s1458 + $0xca] sm:$0xff]
      %v2379 = vld [vmem:[%s1458 + $0xda] sm:$0xff]
      %v2380 = vld [vmem:[%s1458 + $0xe2] sm:$0xff]
      %v2381 = vld [vmem:[%s1458 + $0xf2] sm:$0xff]
      %v2382 = vld [vmem:[%s1458 + $0xfa] sm:$0xff]
      %v2383 = vld [vmem:[%s1458 + $0x10a] sm:$0xff]
      %v2384 = vld [vmem:[%s1458 + $0x112] sm:$0xff]
      %v2385 = vld [vmem:[%s1458 + $0x122] sm:$0xff]
      %v2386 = vld [vmem:[%s1458 + $0x12a] sm:$0xff]
      %v2387 = vld [vmem:[%s1458 + $0x13a] sm:$0xff]
      %v2388 = vld [vmem:[%s1458 + $0x142] sm:$0xff]
      %v2389 = vld [vmem:[%s1458 + $0x152] sm:$0xff]
      %v2390 = vld [vmem:[%s1458 + $0x15a] sm:$0xff]
      %v2391 = vld [vmem:[%s1458 + $0x16a] sm:$0xff]
      %v2392 = vld [vmem:[%s1458 + $0x172] sm:$0xff]
      %s2393 = scalar_lea.vmem %s1, 40
      %v2394 = vld [vmem:[%s2393] sm:$0xff]
      %v2396 = vsel %vm202, %v2361, 0
      %v2399 = vsel %vm202, %v2362, 0
      %v2402 = vsel %vm202, %v2363, 0
      %v2405 = vsel %vm202, %v2364, 0
      %v2408 = vsel %vm202, %v2365, 0
      %v2411 = vsel %vm202, %v2366, 0
      %v2414 = vsel %vm202, %v2367, 0
      %v2417 = vsel %vm202, %v2368, 0
      %v2420 = vsel %vm202, %v2369, 0
      %v2423 = vsel %vm202, %v2370, 0
      %v2426 = vsel %vm202, %v2371, 0
      %v2429 = vsel %vm202, %v2372, 0
      %v2432 = vsel %vm202, %v2373, 0
      %v2435 = vsel %vm202, %v2374, 0
      %v2438 = vsel %vm202, %v2375, 0
      %v2441 = vsel %vm202, %v2376, 0
      %v2444 = vsel %vm202, %v2377, 0
      %v2447 = vsel %vm202, %v2378, 0
      %v2450 = vsel %vm202, %v2379, 0
      %v2453 = vsel %vm202, %v2380, 0
      %v2456 = vsel %vm202, %v2381, 0
      %v2459 = vsel %vm202, %v2382, 0
      %v2462 = vsel %vm202, %v2383, 0
      %v2465 = vsel %vm202, %v2384, 0
      %v2468 = vsel %vm202, %v2385, 0
      %v2471 = vsel %vm202, %v2386, 0
      %v2474 = vsel %vm202, %v2387, 0
      %v2477 = vsel %vm202, %v2388, 0
      %v2480 = vsel %vm202, %v2389, 0
      %v2483 = vsel %vm202, %v2390, 0
      %v2486 = vsel %vm202, %v2391, 0
      %v2489 = vsel %vm202, %v2392, 0
      %2491 = vmatprep.subr.mxu0 0.0
      %2492 = vmatpush1.msra.mxu0 0.0
      %2493 = vmatprep.subr.mxu0 0.0
      %2494 = vmatpush1.msra.mxu0 0.0
      %2495 = vmatprep.subr.mxu0 0.0
      %2496 = vmatpush1.msra.mxu0 0.0
      %2497 = vmatprep.subr.mxu0 0.0
      %2498 = vmatpush1.msra.mxu0 0.0
      %2499 = vmatprep.subr.mxu0 0.0
      %2500 = vmatpush1.msra.mxu0 0.0
      %2501 = vmatprep.subr.mxu0 0.0
      %2502 = vmatpush1.msra.mxu0 0.0
      %2503 = vmatprep.subr.mxu0 0.0
      %2504 = vmatpush1.msra.mxu0 0.0
      %2505 = vmatprep.subr.mxu0 0.0
      %2506 = vmatpush1.msra.mxu0 0.0
      %2507 = vmatprep.subr.mxu0 0.0
      %2508 = vmatpush1.msra.mxu0 0.0
      %2509 = vmatprep.subr.mxu0 0.0
      %2510 = vmatpush1.msra.mxu0 0.0
      %2511 = vmatprep.subr.mxu0 0.0
      %2512 = vmatpush1.msra.mxu0 0.0
      %2513 = vmatprep.subr.mxu0 0.0
      %2514 = vmatpush1.msra.mxu0 0.0
      %2515 = vmatprep.subr.mxu0 0.0
      %2516 = vmatpush1.msra.mxu0 0.0
      %2517 = vmatprep.subr.mxu0 0.0
      %2518 = vmatpush1.msra.mxu0 0.0
      %2519 = vmatprep.subr.mxu0 0.0
      %2520 = vmatpush1.msra.mxu0 0.0
      %2521 = vmatprep.subr.mxu0 0.0
      %2522 = vmatpush1.msra.mxu0 %v2394
      %2523 = vmatprep.subr.mxu0 0.0
      %2524 = vmatpush2.msra.mxu0 0.0
      %2525 = vmatprep.subr.mxu0 0.0
      %2526 = vmatpush2.msra.mxu0 0.0
      %2527 = vmatprep.subr.mxu0 0.0
      %2528 = vmatpush2.msra.mxu0 0.0
      %2529 = vmatprep.subr.mxu0 0.0
      %2530 = vmatpush2.msra.mxu0 0.0
      %2531 = vmatprep.subr.mxu0 0.0
      %2532 = vmatpush2.msra.mxu0 0.0
      %2533 = vmatprep.subr.mxu0 0.0
      %2534 = vmatpush2.msra.mxu0 0.0
      %2535 = vmatprep.subr.mxu0 0.0
      %2536 = vmatpush2.msra.mxu0 0.0
      %2537 = vmatprep.subr.mxu0 0.0
      %2538 = vmatpush2.msra.mxu0 0.0
      %2539 = vmatprep.subr.mxu0 0.0
      %2540 = vmatpush2.msra.mxu0 0.0
      %2541 = vmatprep.subr.mxu0 0.0
      %2542 = vmatpush2.msra.mxu0 0.0
      %2543 = vmatprep.subr.mxu0 0.0
      %2544 = vmatpush2.msra.mxu0 0.0
      %2545 = vmatprep.subr.mxu0 0.0
      %2546 = vmatpush2.msra.mxu0 0.0
      %2547 = vmatprep.subr.mxu0 0.0
      %2548 = vmatpush2.msra.mxu0 0.0
      %2549 = vmatprep.subr.mxu0 0.0
      %2550 = vmatpush2.msra.mxu0 0.0
      %2551 = vmatprep.subr.mxu0 0.0
      %2552 = vmatpush2.msra.mxu0 0.0
      %2553 = vmatprep.subr.mxu0 0.0
      %2554 = vmatpush2.msra.mxu0 0.0
      %2555 = vmatprep.mubr.f32.mxu0 0.0
      %2556 = vmatmul.mubr.f32.gmra.mxu0 %v2396
      %v2557 = vpop.f32.mrf.mxu0
      %v2558 = vadd.f32 0.0, %v2557
      %v2559 = vpop.f32.mrf.mxu0
      %2560 = vmatprep.mubr.f32.mxu0 0.0
      %2561 = vmatmul.mubr.f32.gmra.mxu0 %v2399
      %v2562 = vpop.f32.mrf.mxu0
      %v2563 = vadd.f32 0.0, %v2562
      %v2564 = vpop.f32.mrf.mxu0
      %2565 = vmatprep.mubr.f32.mxu0 0.0
      %2566 = vmatmul.mubr.f32.gmra.mxu0 %v2402
      %v2567 = vpop.f32.mrf.mxu0
      %v2568 = vadd.f32 0.0, %v2567
      %v2569 = vpop.f32.mrf.mxu0
      %2570 = vmatprep.mubr.f32.mxu0 0.0
      %2571 = vmatmul.mubr.f32.gmra.mxu0 %v2405
      %v2572 = vpop.f32.mrf.mxu0
      %v2573 = vadd.f32 0.0, %v2572
      %v2574 = vpop.f32.mrf.mxu0
      %2575 = vmatprep.mubr.f32.mxu0 0.0
      %2576 = vmatmul.mubr.f32.gmra.mxu0 %v2408
      %v2577 = vpop.f32.mrf.mxu0
      %v2578 = vadd.f32 0.0, %v2577
      %v2579 = vpop.f32.mrf.mxu0
      %2580 = vmatprep.mubr.f32.mxu0 0.0
      %2581 = vmatmul.mubr.f32.gmra.mxu0 %v2411
      %v2582 = vpop.f32.mrf.mxu0
      %v2583 = vadd.f32 0.0, %v2582
      %v2584 = vpop.f32.mrf.mxu0
      %2585 = vmatprep.mubr.f32.mxu0 0.0
      %2586 = vmatmul.mubr.f32.gmra.mxu0 %v2414
      %v2587 = vpop.f32.mrf.mxu0
      %v2588 = vadd.f32 0.0, %v2587
      %v2589 = vpop.f32.mrf.mxu0
      %2590 = vmatprep.mubr.f32.mxu0 0.0
      %2591 = vmatmul.mubr.f32.gmra.mxu0 %v2417
      %v2592 = vpop.f32.mrf.mxu0
      %v2593 = vadd.f32 0.0, %v2592
      %v2594 = vpop.f32.mrf.mxu0
      %2595 = vmatprep.mubr.f32.mxu0 0.0
      %2596 = vmatmul.mubr.f32.gmra.mxu0 %v2420
      %v2597 = vpop.f32.mrf.mxu0
      %v2598 = vadd.f32 0.0, %v2597
      %v2599 = vpop.f32.mrf.mxu0
      %2600 = vmatprep.mubr.f32.mxu0 0.0
      %2601 = vmatmul.mubr.f32.gmra.mxu0 %v2423
      %v2602 = vpop.f32.mrf.mxu0
      %v2603 = vadd.f32 0.0, %v2602
      %v2604 = vpop.f32.mrf.mxu0
      %2605 = vmatprep.mubr.f32.mxu0 0.0
      %2606 = vmatmul.mubr.f32.gmra.mxu0 %v2426
      %v2607 = vpop.f32.mrf.mxu0
      %v2608 = vadd.f32 0.0, %v2607
      %v2609 = vpop.f32.mrf.mxu0
      %2610 = vmatprep.mubr.f32.mxu0 0.0
      %2611 = vmatmul.mubr.f32.gmra.mxu0 %v2429
      %v2612 = vpop.f32.mrf.mxu0
      %v2613 = vadd.f32 0.0, %v2612
      %v2614 = vpop.f32.mrf.mxu0
      %2615 = vmatprep.mubr.f32.mxu0 0.0
      %2616 = vmatmul.mubr.f32.gmra.mxu0 %v2432
      %v2617 = vpop.f32.mrf.mxu0
      %v2618 = vadd.f32 0.0, %v2617
      %v2619 = vpop.f32.mrf.mxu0
      %2620 = vmatprep.mubr.f32.mxu0 0.0
      %2621 = vmatmul.mubr.f32.gmra.mxu0 %v2435
      %v2622 = vpop.f32.mrf.mxu0
      %v2623 = vadd.f32 0.0, %v2622
      %v2624 = vpop.f32.mrf.mxu0
      %2625 = vmatprep.mubr.f32.mxu0 0.0
      %2626 = vmatmul.mubr.f32.gmra.mxu0 %v2438
      %v2627 = vpop.f32.mrf.mxu0
      %v2628 = vadd.f32 0.0, %v2627
      %v2629 = vpop.f32.mrf.mxu0
      %2630 = vmatprep.mubr.f32.mxu0 0.0
      %2631 = vmatmul.mubr.f32.gmra.mxu0 %v2441
      %v2632 = vpop.f32.mrf.mxu0
      %v2633 = vadd.f32 0.0, %v2632
      %v2634 = vpop.f32.mrf.mxu0
      %2635 = vmatprep.mubr.f32.mxu0 0.0
      %2636 = vmatmul.mubr.f32.gmra.mxu0 %v2444
      %v2637 = vpop.f32.mrf.mxu0
      %v2638 = vadd.f32 0.0, %v2637
      %v2639 = vpop.f32.mrf.mxu0
      %2640 = vmatprep.mubr.f32.mxu0 0.0
      %2641 = vmatmul.mubr.f32.gmra.mxu0 %v2447
      %v2642 = vpop.f32.mrf.mxu0
      %v2643 = vadd.f32 0.0, %v2642
      %v2644 = vpop.f32.mrf.mxu0
      %2645 = vmatprep.mubr.f32.mxu0 0.0
      %2646 = vmatmul.mubr.f32.gmra.mxu0 %v2450
      %v2647 = vpop.f32.mrf.mxu0
      %v2648 = vadd.f32 0.0, %v2647
      %v2649 = vpop.f32.mrf.mxu0
      %2650 = vmatprep.mubr.f32.mxu0 0.0
      %2651 = vmatmul.mubr.f32.gmra.mxu0 %v2453
      %v2652 = vpop.f32.mrf.mxu0
      %v2653 = vadd.f32 0.0, %v2652
      %v2654 = vpop.f32.mrf.mxu0
      %2655 = vmatprep.mubr.f32.mxu0 0.0
      %2656 = vmatmul.mubr.f32.gmra.mxu0 %v2456
      %v2657 = vpop.f32.mrf.mxu0
      %v2658 = vadd.f32 0.0, %v2657
      %v2659 = vpop.f32.mrf.mxu0
      %2660 = vmatprep.mubr.f32.mxu0 0.0
      %2661 = vmatmul.mubr.f32.gmra.mxu0 %v2459
      %v2662 = vpop.f32.mrf.mxu0
      %v2663 = vadd.f32 0.0, %v2662
      %v2664 = vpop.f32.mrf.mxu0
      %2665 = vmatprep.mubr.f32.mxu0 0.0
      %2666 = vmatmul.mubr.f32.gmra.mxu0 %v2462
      %v2667 = vpop.f32.mrf.mxu0
      %v2668 = vadd.f32 0.0, %v2667
      %v2669 = vpop.f32.mrf.mxu0
      %2670 = vmatprep.mubr.f32.mxu0 0.0
      %2671 = vmatmul.mubr.f32.gmra.mxu0 %v2465
      %v2672 = vpop.f32.mrf.mxu0
      %v2673 = vadd.f32 0.0, %v2672
      %v2674 = vpop.f32.mrf.mxu0
      %2675 = vmatprep.mubr.f32.mxu0 0.0
      %2676 = vmatmul.mubr.f32.gmra.mxu0 %v2468
      %v2677 = vpop.f32.mrf.mxu0
      %v2678 = vadd.f32 0.0, %v2677
      %v2679 = vpop.f32.mrf.mxu0
      %2680 = vmatprep.mubr.f32.mxu0 0.0
      %2681 = vmatmul.mubr.f32.gmra.mxu0 %v2471
      %v2682 = vpop.f32.mrf.mxu0
      %v2683 = vadd.f32 0.0, %v2682
      %v2684 = vpop.f32.mrf.mxu0
      %2685 = vmatprep.mubr.f32.mxu0 0.0
      %2686 = vmatmul.mubr.f32.gmra.mxu0 %v2474
      %v2687 = vpop.f32.mrf.mxu0
      %v2688 = vadd.f32 0.0, %v2687
      %v2689 = vpop.f32.mrf.mxu0
      %2690 = vmatprep.mubr.f32.mxu0 0.0
      %2691 = vmatmul.mubr.f32.gmra.mxu0 %v2477
      %v2692 = vpop.f32.mrf.mxu0
      %v2693 = vadd.f32 0.0, %v2692
      %v2694 = vpop.f32.mrf.mxu0
      %2695 = vmatprep.mubr.f32.mxu0 0.0
      %2696 = vmatmul.mubr.f32.gmra.mxu0 %v2480
      %v2697 = vpop.f32.mrf.mxu0
      %v2698 = vadd.f32 0.0, %v2697
      %v2699 = vpop.f32.mrf.mxu0
      %2700 = vmatprep.mubr.f32.mxu0 0.0
      %2701 = vmatmul.mubr.f32.gmra.mxu0 %v2483
      %v2702 = vpop.f32.mrf.mxu0
      %v2703 = vadd.f32 0.0, %v2702
      %v2704 = vpop.f32.mrf.mxu0
      %2705 = vmatprep.mubr.f32.mxu0 0.0
      %2706 = vmatmul.mubr.f32.gmra.mxu0 %v2486
      %v2707 = vpop.f32.mrf.mxu0
      %v2708 = vadd.f32 0.0, %v2707
      %v2709 = vpop.f32.mrf.mxu0
      %2710 = vmatprep.mubr.f32.mxu0 0.0
      %2711 = vmatmul.mubr.f32.gmra.mxu0 %v2489
      %v2712 = vpop.f32.mrf.mxu0
      %v2713 = vadd.f32 0.0, %v2712
      %v2714 = vpop.f32.mrf.mxu0
      %2715 = vdwg.mxu0
      %v2716 = vld [vmem:[#allocation2] sm:$0xff]
      %v2717 = vld [vmem:[#allocation2 + $0x8] sm:$0xff]
      %v2718 = vld [vmem:[#allocation2 + $0x10] sm:$0xff]
      %v2719 = vld [vmem:[#allocation2 + $0x18] sm:$0xff]
      %v2720 = vld [vmem:[#allocation2 + $0x20] sm:$0xff]
      %v2721 = vld [vmem:[#allocation2 + $0x28] sm:$0xff]
      %v2722 = vld [vmem:[#allocation2 + $0x30] sm:$0xff]
      %v2723 = vld [vmem:[#allocation2 + $0x38] sm:$0xff]
      %v2724 = vld [vmem:[#allocation2 + $0x40] sm:$0xff]
      %v2725 = vld [vmem:[#allocation2 + $0x48] sm:$0xff]
      %v2726 = vld [vmem:[#allocation2 + $0x50] sm:$0xff]
      %v2727 = vld [vmem:[#allocation2 + $0x58] sm:$0xff]
      %v2728 = vld [vmem:[#allocation2 + $0x60] sm:$0xff]
      %v2729 = vld [vmem:[#allocation2 + $0x68] sm:$0xff]
      %v2730 = vld [vmem:[#allocation2 + $0x70] sm:$0xff]
      %v2731 = vld [vmem:[#allocation2 + $0x78] sm:$0xff]
      %v2732 = vld [vmem:[#allocation2 + $0x80] sm:$0xff]
      %v2733 = vld [vmem:[#allocation2 + $0x88] sm:$0xff]
      %v2734 = vld [vmem:[#allocation2 + $0x90] sm:$0xff]
      %v2735 = vld [vmem:[#allocation2 + $0x98] sm:$0xff]
      %v2736 = vld [vmem:[#allocation2 + $0xa0] sm:$0xff]
      %v2737 = vld [vmem:[#allocation2 + $0xa8] sm:$0xff]
      %v2738 = vld [vmem:[#allocation2 + $0xb0] sm:$0xff]
      %v2739 = vld [vmem:[#allocation2 + $0xb8] sm:$0xff]
      %v2740 = vld [vmem:[#allocation2 + $0xc0] sm:$0xff]
      %v2741 = vld [vmem:[#allocation2 + $0xc8] sm:$0xff]
      %v2742 = vld [vmem:[#allocation2 + $0xd0] sm:$0xff]
      %v2743 = vld [vmem:[#allocation2 + $0xd8] sm:$0xff]
      %v2744 = vld [vmem:[#allocation2 + $0xe0] sm:$0xff]
      %v2745 = vld [vmem:[#allocation2 + $0xe8] sm:$0xff]
      %v2746 = vld [vmem:[#allocation2 + $0xf0] sm:$0xff]
      %v2747 = vld [vmem:[#allocation2 + $0xf8] sm:$0xff]
      %v2748 = vadd.f32 %v2716, %v2558
      %v2749 = vadd.f32 %v2717, %v2563
      %v2750 = vadd.f32 %v2718, %v2568
      %v2751 = vadd.f32 %v2719, %v2573
      %v2752 = vadd.f32 %v2720, %v2578
      %v2753 = vadd.f32 %v2721, %v2583
      %v2754 = vadd.f32 %v2722, %v2588
      %v2755 = vadd.f32 %v2723, %v2593
      %v2756 = vadd.f32 %v2724, %v2598
      %v2757 = vadd.f32 %v2725, %v2603
      %v2758 = vadd.f32 %v2726, %v2608
      %v2759 = vadd.f32 %v2727, %v2613
      %v2760 = vadd.f32 %v2728, %v2618
      %v2761 = vadd.f32 %v2729, %v2623
      %v2762 = vadd.f32 %v2730, %v2628
      %v2763 = vadd.f32 %v2731, %v2633
      %v2764 = vadd.f32 %v2732, %v2638
      %v2765 = vadd.f32 %v2733, %v2643
      %v2766 = vadd.f32 %v2734, %v2648
      %v2767 = vadd.f32 %v2735, %v2653
      %v2768 = vadd.f32 %v2736, %v2658
      %v2769 = vadd.f32 %v2737, %v2663
      %v2770 = vadd.f32 %v2738, %v2668
      %v2771 = vadd.f32 %v2739, %v2673
      %v2772 = vadd.f32 %v2740, %v2678
      %v2773 = vadd.f32 %v2741, %v2683
      %v2774 = vadd.f32 %v2742, %v2688
      %v2775 = vadd.f32 %v2743, %v2693
      %v2776 = vadd.f32 %v2744, %v2698
      %v2777 = vadd.f32 %v2745, %v2703
      %v2778 = vadd.f32 %v2746, %v2708
      %v2779 = vadd.f32 %v2747, %v2713
      %2780 = vst [vmem:[#allocation2] sm:$0xff] %v2748
      %2781 = vst [vmem:[#allocation2 + $0x8] sm:$0xff] %v2749
      %2782 = vst [vmem:[#allocation2 + $0x10] sm:$0xff] %v2750
      %2783 = vst [vmem:[#allocation2 + $0x18] sm:$0xff] %v2751
      %2784 = vst [vmem:[#allocation2 + $0x20] sm:$0xff] %v2752
      %2785 = vst [vmem:[#allocation2 + $0x28] sm:$0xff] %v2753
      %2786 = vst [vmem:[#allocation2 + $0x30] sm:$0xff] %v2754
      %2787 = vst [vmem:[#allocation2 + $0x38] sm:$0xff] %v2755
      %2788 = vst [vmem:[#allocation2 + $0x40] sm:$0xff] %v2756
      %2789 = vst [vmem:[#allocation2 + $0x48] sm:$0xff] %v2757
      %2790 = vst [vmem:[#allocation2 + $0x50] sm:$0xff] %v2758
      %2791 = vst [vmem:[#allocation2 + $0x58] sm:$0xff] %v2759
      %2792 = vst [vmem:[#allocation2 + $0x60] sm:$0xff] %v2760
      %2793 = vst [vmem:[#allocation2 + $0x68] sm:$0xff] %v2761
      %2794 = vst [vmem:[#allocation2 + $0x70] sm:$0xff] %v2762
      %2795 = vst [vmem:[#allocation2 + $0x78] sm:$0xff] %v2763
      %2796 = vst [vmem:[#allocation2 + $0x80] sm:$0xff] %v2764
      %2797 = vst [vmem:[#allocation2 + $0x88] sm:$0xff] %v2765
      %2798 = vst [vmem:[#allocation2 + $0x90] sm:$0xff] %v2766
      %2799 = vst [vmem:[#allocation2 + $0x98] sm:$0xff] %v2767
      %2800 = vst [vmem:[#allocation2 + $0xa0] sm:$0xff] %v2768
      %2801 = vst [vmem:[#allocation2 + $0xa8] sm:$0xff] %v2769
      %2802 = vst [vmem:[#allocation2 + $0xb0] sm:$0xff] %v2770
      %2803 = vst [vmem:[#allocation2 + $0xb8] sm:$0xff] %v2771
      %2804 = vst [vmem:[#allocation2 + $0xc0] sm:$0xff] %v2772
      %2805 = vst [vmem:[#allocation2 + $0xc8] sm:$0xff] %v2773
      %2806 = vst [vmem:[#allocation2 + $0xd0] sm:$0xff] %v2774
      %2807 = vst [vmem:[#allocation2 + $0xd8] sm:$0xff] %v2775
      %2808 = vst [vmem:[#allocation2 + $0xe0] sm:$0xff] %v2776
      %2809 = vst [vmem:[#allocation2 + $0xe8] sm:$0xff] %v2777
      %2810 = vst [vmem:[#allocation2 + $0xf0] sm:$0xff] %v2778
      %2811 = vst [vmem:[#allocation2 + $0xf8] sm:$0xff] %v2779
      %s2812 = scalar_lea.vmem %s164, 48
      %v2813 = vld [vmem:[%s2812] sm:$0xff]
      %v2814 = vld [vmem:[%s2812 + $0x8] sm:$0xff]
      %v2815 = vld [vmem:[%s2812 + $0x18] sm:$0xff]
      %v2816 = vld [vmem:[%s2812 + $0x20] sm:$0xff]
      %v2817 = vld [vmem:[%s2812 + $0x30] sm:$0xff]
      %v2818 = vld [vmem:[%s2812 + $0x38] sm:$0xff]
      %v2819 = vld [vmem:[%s2812 + $0x48] sm:$0xff]
      %v2820 = vld [vmem:[%s2812 + $0x50] sm:$0xff]
      %v2821 = vld [vmem:[%s2812 + $0x60] sm:$0xff]
      %v2822 = vld [vmem:[%s2812 + $0x68] sm:$0xff]
      %v2823 = vld [vmem:[%s2812 + $0x78] sm:$0xff]
      %v2824 = vld [vmem:[%s2812 + $0x80] sm:$0xff]
      %v2825 = vld [vmem:[%s2812 + $0x90] sm:$0xff]
      %v2826 = vld [vmem:[%s2812 + $0x98] sm:$0xff]
      %v2827 = vld [vmem:[%s2812 + $0xa8] sm:$0xff]
      %v2828 = vld [vmem:[%s2812 + $0xb0] sm:$0xff]
      %v2829 = vld [vmem:[%s2812 + $0xc0] sm:$0xff]
      %v2830 = vld [vmem:[%s2812 + $0xc8] sm:$0xff]
      %v2831 = vld [vmem:[%s2812 + $0xd8] sm:$0xff]
      %v2832 = vld [vmem:[%s2812 + $0xe0] sm:$0xff]
      %v2833 = vld [vmem:[%s2812 + $0xf0] sm:$0xff]
      %v2834 = vld [vmem:[%s2812 + $0xf8] sm:$0xff]
      %v2835 = vld [vmem:[%s2812 + $0x108] sm:$0xff]
      %v2836 = vld [vmem:[%s2812 + $0x110] sm:$0xff]
      %v2837 = vld [vmem:[%s2812 + $0x120] sm:$0xff]
      %v2838 = vld [vmem:[%s2812 + $0x128] sm:$0xff]
      %v2839 = vld [vmem:[%s2812 + $0x138] sm:$0xff]
      %v2840 = vld [vmem:[%s2812 + $0x140] sm:$0xff]
      %v2841 = vld [vmem:[%s2812 + $0x150] sm:$0xff]
      %v2842 = vld [vmem:[%s2812 + $0x158] sm:$0xff]
      %v2843 = vld [vmem:[%s2812 + $0x168] sm:$0xff]
      %v2844 = vld [vmem:[%s2812 + $0x170] sm:$0xff]
      %s2845 = scalar_lea.vmem %s1, 48
      %v2846 = vld [vmem:[%s2845] sm:$0xff]
      %v2848 = vsel %vm202, %v2813, 0
      %v2851 = vsel %vm202, %v2814, 0
      %v2854 = vsel %vm202, %v2815, 0
      %v2857 = vsel %vm202, %v2816, 0
      %v2860 = vsel %vm202, %v2817, 0
      %v2863 = vsel %vm202, %v2818, 0
      %v2866 = vsel %vm202, %v2819, 0
      %v2869 = vsel %vm202, %v2820, 0
      %v2872 = vsel %vm202, %v2821, 0
      %v2875 = vsel %vm202, %v2822, 0
      %v2878 = vsel %vm202, %v2823, 0
      %v2881 = vsel %vm202, %v2824, 0
      %v2884 = vsel %vm202, %v2825, 0
      %v2887 = vsel %vm202, %v2826, 0
      %v2890 = vsel %vm202, %v2827, 0
      %v2893 = vsel %vm202, %v2828, 0
      %v2896 = vsel %vm202, %v2829, 0
      %v2899 = vsel %vm202, %v2830, 0
      %v2902 = vsel %vm202, %v2831, 0
      %v2905 = vsel %vm202, %v2832, 0
      %v2908 = vsel %vm202, %v2833, 0
      %v2911 = vsel %vm202, %v2834, 0
      %v2914 = vsel %vm202, %v2835, 0
      %v2917 = vsel %vm202, %v2836, 0
      %v2920 = vsel %vm202, %v2837, 0
      %v2923 = vsel %vm202, %v2838, 0
      %v2926 = vsel %vm202, %v2839, 0
      %v2929 = vsel %vm202, %v2840, 0
      %v2932 = vsel %vm202, %v2841, 0
      %v2935 = vsel %vm202, %v2842, 0
      %v2938 = vsel %vm202, %v2843, 0
      %v2941 = vsel %vm202, %v2844, 0
      %2943 = vmatprep.subr.mxu0 0.0
      %2944 = vmatpush1.msra.mxu0 0.0
      %2945 = vmatprep.subr.mxu0 0.0
      %2946 = vmatpush1.msra.mxu0 0.0
      %2947 = vmatprep.subr.mxu0 0.0
      %2948 = vmatpush1.msra.mxu0 0.0
      %2949 = vmatprep.subr.mxu0 0.0
      %2950 = vmatpush1.msra.mxu0 0.0
      %2951 = vmatprep.subr.mxu0 0.0
      %2952 = vmatpush1.msra.mxu0 0.0
      %2953 = vmatprep.subr.mxu0 0.0
      %2954 = vmatpush1.msra.mxu0 0.0
      %2955 = vmatprep.subr.mxu0 0.0
      %2956 = vmatpush1.msra.mxu0 0.0
      %2957 = vmatprep.subr.mxu0 0.0
      %2958 = vmatpush1.msra.mxu0 0.0
      %2959 = vmatprep.subr.mxu0 0.0
      %2960 = vmatpush1.msra.mxu0 0.0
      %2961 = vmatprep.subr.mxu0 0.0
      %2962 = vmatpush1.msra.mxu0 0.0
      %2963 = vmatprep.subr.mxu0 0.0
      %2964 = vmatpush1.msra.mxu0 0.0
      %2965 = vmatprep.subr.mxu0 0.0
      %2966 = vmatpush1.msra.mxu0 0.0
      %2967 = vmatprep.subr.mxu0 0.0
      %2968 = vmatpush1.msra.mxu0 0.0
      %2969 = vmatprep.subr.mxu0 0.0
      %2970 = vmatpush1.msra.mxu0 0.0
      %2971 = vmatprep.subr.mxu0 0.0
      %2972 = vmatpush1.msra.mxu0 0.0
      %2973 = vmatprep.subr.mxu0 0.0
      %2974 = vmatpush1.msra.mxu0 %v2846
      %2975 = vmatprep.subr.mxu0 0.0
      %2976 = vmatpush2.msra.mxu0 0.0
      %2977 = vmatprep.subr.mxu0 0.0
      %2978 = vmatpush2.msra.mxu0 0.0
      %2979 = vmatprep.subr.mxu0 0.0
      %2980 = vmatpush2.msra.mxu0 0.0
      %2981 = vmatprep.subr.mxu0 0.0
      %2982 = vmatpush2.msra.mxu0 0.0
      %2983 = vmatprep.subr.mxu0 0.0
      %2984 = vmatpush2.msra.mxu0 0.0
      %2985 = vmatprep.subr.mxu0 0.0
      %2986 = vmatpush2.msra.mxu0 0.0
      %2987 = vmatprep.subr.mxu0 0.0
      %2988 = vmatpush2.msra.mxu0 0.0
      %2989 = vmatprep.subr.mxu0 0.0
      %2990 = vmatpush2.msra.mxu0 0.0
      %2991 = vmatprep.subr.mxu0 0.0
      %2992 = vmatpush2.msra.mxu0 0.0
      %2993 = vmatprep.subr.mxu0 0.0
      %2994 = vmatpush2.msra.mxu0 0.0
      %2995 = vmatprep.subr.mxu0 0.0
      %2996 = vmatpush2.msra.mxu0 0.0
      %2997 = vmatprep.subr.mxu0 0.0
      %2998 = vmatpush2.msra.mxu0 0.0
      %2999 = vmatprep.subr.mxu0 0.0
      %3000 = vmatpush2.msra.mxu0 0.0
      %3001 = vmatprep.subr.mxu0 0.0
      %3002 = vmatpush2.msra.mxu0 0.0
      %3003 = vmatprep.subr.mxu0 0.0
      %3004 = vmatpush2.msra.mxu0 0.0
      %3005 = vmatprep.subr.mxu0 0.0
      %3006 = vmatpush2.msra.mxu0 0.0
      %3007 = vmatprep.mubr.f32.mxu0 0.0
      %3008 = vmatmul.mubr.f32.gmra.mxu0 %v2848
      %v3009 = vpop.f32.mrf.mxu0
      %v3010 = vadd.f32 0.0, %v3009
      %v3011 = vpop.f32.mrf.mxu0
      %3012 = vmatprep.mubr.f32.mxu0 0.0
      %3013 = vmatmul.mubr.f32.gmra.mxu0 %v2851
      %v3014 = vpop.f32.mrf.mxu0
      %v3015 = vadd.f32 0.0, %v3014
      %v3016 = vpop.f32.mrf.mxu0
      %3017 = vmatprep.mubr.f32.mxu0 0.0
      %3018 = vmatmul.mubr.f32.gmra.mxu0 %v2854
      %v3019 = vpop.f32.mrf.mxu0
      %v3020 = vadd.f32 0.0, %v3019
      %v3021 = vpop.f32.mrf.mxu0
      %3022 = vmatprep.mubr.f32.mxu0 0.0
      %3023 = vmatmul.mubr.f32.gmra.mxu0 %v2857
      %v3024 = vpop.f32.mrf.mxu0
      %v3025 = vadd.f32 0.0, %v3024
      %v3026 = vpop.f32.mrf.mxu0
      %3027 = vmatprep.mubr.f32.mxu0 0.0
      %3028 = vmatmul.mubr.f32.gmra.mxu0 %v2860
      %v3029 = vpop.f32.mrf.mxu0
      %v3030 = vadd.f32 0.0, %v3029
      %v3031 = vpop.f32.mrf.mxu0
      %3032 = vmatprep.mubr.f32.mxu0 0.0
      %3033 = vmatmul.mubr.f32.gmra.mxu0 %v2863
      %v3034 = vpop.f32.mrf.mxu0
      %v3035 = vadd.f32 0.0, %v3034
      %v3036 = vpop.f32.mrf.mxu0
      %3037 = vmatprep.mubr.f32.mxu0 0.0
      %3038 = vmatmul.mubr.f32.gmra.mxu0 %v2866
      %v3039 = vpop.f32.mrf.mxu0
      %v3040 = vadd.f32 0.0, %v3039
      %v3041 = vpop.f32.mrf.mxu0
      %3042 = vmatprep.mubr.f32.mxu0 0.0
      %3043 = vmatmul.mubr.f32.gmra.mxu0 %v2869
      %v3044 = vpop.f32.mrf.mxu0
      %v3045 = vadd.f32 0.0, %v3044
      %v3046 = vpop.f32.mrf.mxu0
      %3047 = vmatprep.mubr.f32.mxu0 0.0
      %3048 = vmatmul.mubr.f32.gmra.mxu0 %v2872
      %v3049 = vpop.f32.mrf.mxu0
      %v3050 = vadd.f32 0.0, %v3049
      %v3051 = vpop.f32.mrf.mxu0
      %3052 = vmatprep.mubr.f32.mxu0 0.0
      %3053 = vmatmul.mubr.f32.gmra.mxu0 %v2875
      %v3054 = vpop.f32.mrf.mxu0
      %v3055 = vadd.f32 0.0, %v3054
      %v3056 = vpop.f32.mrf.mxu0
      %3057 = vmatprep.mubr.f32.mxu0 0.0
      %3058 = vmatmul.mubr.f32.gmra.mxu0 %v2878
      %v3059 = vpop.f32.mrf.mxu0
      %v3060 = vadd.f32 0.0, %v3059
      %v3061 = vpop.f32.mrf.mxu0
      %3062 = vmatprep.mubr.f32.mxu0 0.0
      %3063 = vmatmul.mubr.f32.gmra.mxu0 %v2881
      %v3064 = vpop.f32.mrf.mxu0
      %v3065 = vadd.f32 0.0, %v3064
      %v3066 = vpop.f32.mrf.mxu0
      %3067 = vmatprep.mubr.f32.mxu0 0.0
      %3068 = vmatmul.mubr.f32.gmra.mxu0 %v2884
      %v3069 = vpop.f32.mrf.mxu0
      %v3070 = vadd.f32 0.0, %v3069
      %v3071 = vpop.f32.mrf.mxu0
      %3072 = vmatprep.mubr.f32.mxu0 0.0
      %3073 = vmatmul.mubr.f32.gmra.mxu0 %v2887
      %v3074 = vpop.f32.mrf.mxu0
      %v3075 = vadd.f32 0.0, %v3074
      %v3076 = vpop.f32.mrf.mxu0
      %3077 = vmatprep.mubr.f32.mxu0 0.0
      %3078 = vmatmul.mubr.f32.gmra.mxu0 %v2890
      %v3079 = vpop.f32.mrf.mxu0
      %v3080 = vadd.f32 0.0, %v3079
      %v3081 = vpop.f32.mrf.mxu0
      %3082 = vmatprep.mubr.f32.mxu0 0.0
      %3083 = vmatmul.mubr.f32.gmra.mxu0 %v2893
      %v3084 = vpop.f32.mrf.mxu0
      %v3085 = vadd.f32 0.0, %v3084
      %v3086 = vpop.f32.mrf.mxu0
      %3087 = vmatprep.mubr.f32.mxu0 0.0
      %3088 = vmatmul.mubr.f32.gmra.mxu0 %v2896
      %v3089 = vpop.f32.mrf.mxu0
      %v3090 = vadd.f32 0.0, %v3089
      %v3091 = vpop.f32.mrf.mxu0
      %3092 = vmatprep.mubr.f32.mxu0 0.0
      %3093 = vmatmul.mubr.f32.gmra.mxu0 %v2899
      %v3094 = vpop.f32.mrf.mxu0
      %v3095 = vadd.f32 0.0, %v3094
      %v3096 = vpop.f32.mrf.mxu0
      %3097 = vmatprep.mubr.f32.mxu0 0.0
      %3098 = vmatmul.mubr.f32.gmra.mxu0 %v2902
      %v3099 = vpop.f32.mrf.mxu0
      %v3100 = vadd.f32 0.0, %v3099
      %v3101 = vpop.f32.mrf.mxu0
      %3102 = vmatprep.mubr.f32.mxu0 0.0
      %3103 = vmatmul.mubr.f32.gmra.mxu0 %v2905
      %v3104 = vpop.f32.mrf.mxu0
      %v3105 = vadd.f32 0.0, %v3104
      %v3106 = vpop.f32.mrf.mxu0
      %3107 = vmatprep.mubr.f32.mxu0 0.0
      %3108 = vmatmul.mubr.f32.gmra.mxu0 %v2908
      %v3109 = vpop.f32.mrf.mxu0
      %v3110 = vadd.f32 0.0, %v3109
      %v3111 = vpop.f32.mrf.mxu0
      %3112 = vmatprep.mubr.f32.mxu0 0.0
      %3113 = vmatmul.mubr.f32.gmra.mxu0 %v2911
      %v3114 = vpop.f32.mrf.mxu0
      %v3115 = vadd.f32 0.0, %v3114
      %v3116 = vpop.f32.mrf.mxu0
      %3117 = vmatprep.mubr.f32.mxu0 0.0
      %3118 = vmatmul.mubr.f32.gmra.mxu0 %v2914
      %v3119 = vpop.f32.mrf.mxu0
      %v3120 = vadd.f32 0.0, %v3119
      %v3121 = vpop.f32.mrf.mxu0
      %3122 = vmatprep.mubr.f32.mxu0 0.0
      %3123 = vmatmul.mubr.f32.gmra.mxu0 %v2917
      %v3124 = vpop.f32.mrf.mxu0
      %v3125 = vadd.f32 0.0, %v3124
      %v3126 = vpop.f32.mrf.mxu0
      %3127 = vmatprep.mubr.f32.mxu0 0.0
      %3128 = vmatmul.mubr.f32.gmra.mxu0 %v2920
      %v3129 = vpop.f32.mrf.mxu0
      %v3130 = vadd.f32 0.0, %v3129
      %v3131 = vpop.f32.mrf.mxu0
      %3132 = vmatprep.mubr.f32.mxu0 0.0
      %3133 = vmatmul.mubr.f32.gmra.mxu0 %v2923
      %v3134 = vpop.f32.mrf.mxu0
      %v3135 = vadd.f32 0.0, %v3134
      %v3136 = vpop.f32.mrf.mxu0
      %3137 = vmatprep.mubr.f32.mxu0 0.0
      %3138 = vmatmul.mubr.f32.gmra.mxu0 %v2926
      %v3139 = vpop.f32.mrf.mxu0
      %v3140 = vadd.f32 0.0, %v3139
      %v3141 = vpop.f32.mrf.mxu0
      %3142 = vmatprep.mubr.f32.mxu0 0.0
      %3143 = vmatmul.mubr.f32.gmra.mxu0 %v2929
      %v3144 = vpop.f32.mrf.mxu0
      %v3145 = vadd.f32 0.0, %v3144
      %v3146 = vpop.f32.mrf.mxu0
      %3147 = vmatprep.mubr.f32.mxu0 0.0
      %3148 = vmatmul.mubr.f32.gmra.mxu0 %v2932
      %v3149 = vpop.f32.mrf.mxu0
      %v3150 = vadd.f32 0.0, %v3149
      %v3151 = vpop.f32.mrf.mxu0
      %3152 = vmatprep.mubr.f32.mxu0 0.0
      %3153 = vmatmul.mubr.f32.gmra.mxu0 %v2935
      %v3154 = vpop.f32.mrf.mxu0
      %v3155 = vadd.f32 0.0, %v3154
      %v3156 = vpop.f32.mrf.mxu0
      %3157 = vmatprep.mubr.f32.mxu0 0.0
      %3158 = vmatmul.mubr.f32.gmra.mxu0 %v2938
      %v3159 = vpop.f32.mrf.mxu0
      %v3160 = vadd.f32 0.0, %v3159
      %v3161 = vpop.f32.mrf.mxu0
      %3162 = vmatprep.mubr.f32.mxu0 0.0
      %3163 = vmatmul.mubr.f32.gmra.mxu0 %v2941
      %v3164 = vpop.f32.mrf.mxu0
      %v3165 = vadd.f32 0.0, %v3164
      %v3166 = vpop.f32.mrf.mxu0
      %3167 = vdwg.mxu0
      %v3168 = vld [vmem:[#allocation2] sm:$0xff]
      %v3169 = vld [vmem:[#allocation2 + $0x8] sm:$0xff]
      %v3170 = vld [vmem:[#allocation2 + $0x10] sm:$0xff]
      %v3171 = vld [vmem:[#allocation2 + $0x18] sm:$0xff]
      %v3172 = vld [vmem:[#allocation2 + $0x20] sm:$0xff]
      %v3173 = vld [vmem:[#allocation2 + $0x28] sm:$0xff]
      %v3174 = vld [vmem:[#allocation2 + $0x30] sm:$0xff]
      %v3175 = vld [vmem:[#allocation2 + $0x38] sm:$0xff]
      %v3176 = vld [vmem:[#allocation2 + $0x40] sm:$0xff]
      %v3177 = vld [vmem:[#allocation2 + $0x48] sm:$0xff]
      %v3178 = vld [vmem:[#allocation2 + $0x50] sm:$0xff]
      %v3179 = vld [vmem:[#allocation2 + $0x58] sm:$0xff]
      %v3180 = vld [vmem:[#allocation2 + $0x60] sm:$0xff]
      %v3181 = vld [vmem:[#allocation2 + $0x68] sm:$0xff]
      %v3182 = vld [vmem:[#allocation2 + $0x70] sm:$0xff]
      %v3183 = vld [vmem:[#allocation2 + $0x78] sm:$0xff]
      %v3184 = vld [vmem:[#allocation2 + $0x80] sm:$0xff]
      %v3185 = vld [vmem:[#allocation2 + $0x88] sm:$0xff]
      %v3186 = vld [vmem:[#allocation2 + $0x90] sm:$0xff]
      %v3187 = vld [vmem:[#allocation2 + $0x98] sm:$0xff]
      %v3188 = vld [vmem:[#allocation2 + $0xa0] sm:$0xff]
      %v3189 = vld [vmem:[#allocation2 + $0xa8] sm:$0xff]
      %v3190 = vld [vmem:[#allocation2 + $0xb0] sm:$0xff]
      %v3191 = vld [vmem:[#allocation2 + $0xb8] sm:$0xff]
      %v3192 = vld [vmem:[#allocation2 + $0xc0] sm:$0xff]
      %v3193 = vld [vmem:[#allocation2 + $0xc8] sm:$0xff]
      %v3194 = vld [vmem:[#allocation2 + $0xd0] sm:$0xff]
      %v3195 = vld [vmem:[#allocation2 + $0xd8] sm:$0xff]
      %v3196 = vld [vmem:[#allocation2 + $0xe0] sm:$0xff]
      %v3197 = vld [vmem:[#allocation2 + $0xe8] sm:$0xff]
      %v3198 = vld [vmem:[#allocation2 + $0xf0] sm:$0xff]
      %v3199 = vld [vmem:[#allocation2 + $0xf8] sm:$0xff]
      %v3200 = vadd.f32 %v3168, %v3010
      %v3201 = vadd.f32 %v3169, %v3015
      %v3202 = vadd.f32 %v3170, %v3020
      %v3203 = vadd.f32 %v3171, %v3025
      %v3204 = vadd.f32 %v3172, %v3030
      %v3205 = vadd.f32 %v3173, %v3035
      %v3206 = vadd.f32 %v3174, %v3040
      %v3207 = vadd.f32 %v3175, %v3045
      %v3208 = vadd.f32 %v3176, %v3050
      %v3209 = vadd.f32 %v3177, %v3055
      %v3210 = vadd.f32 %v3178, %v3060
      %v3211 = vadd.f32 %v3179, %v3065
      %v3212 = vadd.f32 %v3180, %v3070
      %v3213 = vadd.f32 %v3181, %v3075
      %v3214 = vadd.f32 %v3182, %v3080
      %v3215 = vadd.f32 %v3183, %v3085
      %v3216 = vadd.f32 %v3184, %v3090
      %v3217 = vadd.f32 %v3185, %v3095
      %v3218 = vadd.f32 %v3186, %v3100
      %v3219 = vadd.f32 %v3187, %v3105
      %v3220 = vadd.f32 %v3188, %v3110
      %v3221 = vadd.f32 %v3189, %v3115
      %v3222 = vadd.f32 %v3190, %v3120
      %v3223 = vadd.f32 %v3191, %v3125
      %v3224 = vadd.f32 %v3192, %v3130
      %v3225 = vadd.f32 %v3193, %v3135
      %v3226 = vadd.f32 %v3194, %v3140
      %v3227 = vadd.f32 %v3195, %v3145
      %v3228 = vadd.f32 %v3196, %v3150
      %v3229 = vadd.f32 %v3197, %v3155
      %v3230 = vadd.f32 %v3198, %v3160
      %v3231 = vadd.f32 %v3199, %v3165
      %3232 = vst [vmem:[#allocation2] sm:$0xff] %v3200
      %3233 = vst [vmem:[#allocation2 + $0x8] sm:$0xff] %v3201
      %3234 = vst [vmem:[#allocation2 + $0x10] sm:$0xff] %v3202
      %3235 = vst [vmem:[#allocation2 + $0x18] sm:$0xff] %v3203
      %3236 = vst [vmem:[#allocation2 + $0x20] sm:$0xff] %v3204
      %3237 = vst [vmem:[#allocation2 + $0x28] sm:$0xff] %v3205
      %3238 = vst [vmem:[#allocation2 + $0x30] sm:$0xff] %v3206
      %3239 = vst [vmem:[#allocation2 + $0x38] sm:$0xff] %v3207
      %3240 = vst [vmem:[#allocation2 + $0x40] sm:$0xff] %v3208
      %3241 = vst [vmem:[#allocation2 + $0x48] sm:$0xff] %v3209
      %3242 = vst [vmem:[#allocation2 + $0x50] sm:$0xff] %v3210
      %3243 = vst [vmem:[#allocation2 + $0x58] sm:$0xff] %v3211
      %3244 = vst [vmem:[#allocation2 + $0x60] sm:$0xff] %v3212
      %3245 = vst [vmem:[#allocation2 + $0x68] sm:$0xff] %v3213
      %3246 = vst [vmem:[#allocation2 + $0x70] sm:$0xff] %v3214
      %3247 = vst [vmem:[#allocation2 + $0x78] sm:$0xff] %v3215
      %3248 = vst [vmem:[#allocation2 + $0x80] sm:$0xff] %v3216
      %3249 = vst [vmem:[#allocation2 + $0x88] sm:$0xff] %v3217
      %3250 = vst [vmem:[#allocation2 + $0x90] sm:$0xff] %v3218
      %3251 = vst [vmem:[#allocation2 + $0x98] sm:$0xff] %v3219
      %3252 = vst [vmem:[#allocation2 + $0xa0] sm:$0xff] %v3220
      %3253 = vst [vmem:[#allocation2 + $0xa8] sm:$0xff] %v3221
      %3254 = vst [vmem:[#allocation2 + $0xb0] sm:$0xff] %v3222
      %3255 = vst [vmem:[#allocation2 + $0xb8] sm:$0xff] %v3223
      %3256 = vst [vmem:[#allocation2 + $0xc0] sm:$0xff] %v3224
      %3257 = vst [vmem:[#allocation2 + $0xc8] sm:$0xff] %v3225
      %3258 = vst [vmem:[#allocation2 + $0xd0] sm:$0xff] %v3226
      %3259 = vst [vmem:[#allocation2 + $0xd8] sm:$0xff] %v3227
      %3260 = vst [vmem:[#allocation2 + $0xe0] sm:$0xff] %v3228
      %3261 = vst [vmem:[#allocation2 + $0xe8] sm:$0xff] %v3229
      %3262 = vst [vmem:[#allocation2 + $0xf0] sm:$0xff] %v3230
      %3263 = vst [vmem:[#allocation2 + $0xf8] sm:$0xff] %v3231
      %v3264 = vld [vmem:[%s2812 + $0x1] sm:$0xff]
      %v3265 = vld [vmem:[%s2812 + $0x9] sm:$0xff]
      %v3266 = vld [vmem:[%s2812 + $0x19] sm:$0xff]
      %v3267 = vld [vmem:[%s2812 + $0x21] sm:$0xff]
      %v3268 = vld [vmem:[%s2812 + $0x31] sm:$0xff]
      %v3269 = vld [vmem:[%s2812 + $0x39] sm:$0xff]
      %v3270 = vld [vmem:[%s2812 + $0x49] sm:$0xff]
      %v3271 = vld [vmem:[%s2812 + $0x51] sm:$0xff]
      %v3272 = vld [vmem:[%s2812 + $0x61] sm:$0xff]
      %v3273 = vld [vmem:[%s2812 + $0x69] sm:$0xff]
      %v3274 = vld [vmem:[%s2812 + $0x79] sm:$0xff]
      %v3275 = vld [vmem:[%s2812 + $0x81] sm:$0xff]
      %v3276 = vld [vmem:[%s2812 + $0x91] sm:$0xff]
      %v3277 = vld [vmem:[%s2812 + $0x99] sm:$0xff]
      %v3278 = vld [vmem:[%s2812 + $0xa9] sm:$0xff]
      %v3279 = vld [vmem:[%s2812 + $0xb1] sm:$0xff]
      %v3280 = vld [vmem:[%s2812 + $0xc1] sm:$0xff]
      %v3281 = vld [vmem:[%s2812 + $0xc9] sm:$0xff]
      %v3282 = vld [vmem:[%s2812 + $0xd9] sm:$0xff]
      %v3283 = vld [vmem:[%s2812 + $0xe1] sm:$0xff]
      %v3284 = vld [vmem:[%s2812 + $0xf1] sm:$0xff]
      %v3285 = vld [vmem:[%s2812 + $0xf9] sm:$0xff]
      %v3286 = vld [vmem:[%s2812 + $0x109] sm:$0xff]
      %v3287 = vld [vmem:[%s2812 + $0x111] sm:$0xff]
      %v3288 = vld [vmem:[%s2812 + $0x121] sm:$0xff]
      %v3289 = vld [vmem:[%s2812 + $0x129] sm:$0xff]
      %v3290 = vld [vmem:[%s2812 + $0x139] sm:$0xff]
      %v3291 = vld [vmem:[%s2812 + $0x141] sm:$0xff]
      %v3292 = vld [vmem:[%s2812 + $0x151] sm:$0xff]
      %v3293 = vld [vmem:[%s2812 + $0x159] sm:$0xff]
      %v3294 = vld [vmem:[%s2812 + $0x169] sm:$0xff]
      %v3295 = vld [vmem:[%s2812 + $0x171] sm:$0xff]
      %s3296 = scalar_lea.vmem %s1, 56
      %v3297 = vld [vmem:[%s3296] sm:$0xff]
      %v3299 = vsel %vm202, %v3264, 0
      %v3302 = vsel %vm202, %v3265, 0
      %v3305 = vsel %vm202, %v3266, 0
      %v3308 = vsel %vm202, %v3267, 0
      %v3311 = vsel %vm202, %v3268, 0
      %v3314 = vsel %vm202, %v3269, 0
      %v3317 = vsel %vm202, %v3270, 0
      %v3320 = vsel %vm202, %v3271, 0
      %v3323 = vsel %vm202, %v3272, 0
      %v3326 = vsel %vm202, %v3273, 0
      %v3329 = vsel %vm202, %v3274, 0
      %v3332 = vsel %vm202, %v3275, 0
      %v3335 = vsel %vm202, %v3276, 0
      %v3338 = vsel %vm202, %v3277, 0
      %v3341 = vsel %vm202, %v3278, 0
      %v3344 = vsel %vm202, %v3279, 0
      %v3347 = vsel %vm202, %v3280, 0
      %v3350 = vsel %vm202, %v3281, 0
      %v3353 = vsel %vm202, %v3282, 0
      %v3356 = vsel %vm202, %v3283, 0
      %v3359 = vsel %vm202, %v3284, 0
      %v3362 = vsel %vm202, %v3285, 0
      %v3365 = vsel %vm202, %v3286, 0
      %v3368 = vsel %vm202, %v3287, 0
      %v3371 = vsel %vm202, %v3288, 0
      %v3374 = vsel %vm202, %v3289, 0
      %v3377 = vsel %vm202, %v3290, 0
      %v3380 = vsel %vm202, %v3291, 0
      %v3383 = vsel %vm202, %v3292, 0
      %v3386 = vsel %vm202, %v3293, 0
      %v3389 = vsel %vm202, %v3294, 0
      %v3392 = vsel %vm202, %v3295, 0
      %3394 = vmatprep.subr.mxu0 0.0
      %3395 = vmatpush1.msra.mxu0 0.0
      %3396 = vmatprep.subr.mxu0 0.0
      %3397 = vmatpush1.msra.mxu0 0.0
      %3398 = vmatprep.subr.mxu0 0.0
      %3399 = vmatpush1.msra.mxu0 0.0
      %3400 = vmatprep.subr.mxu0 0.0
      %3401 = vmatpush1.msra.mxu0 0.0
      %3402 = vmatprep.subr.mxu0 0.0
      %3403 = vmatpush1.msra.mxu0 0.0
      %3404 = vmatprep.subr.mxu0 0.0
      %3405 = vmatpush1.msra.mxu0 0.0
      %3406 = vmatprep.subr.mxu0 0.0
      %3407 = vmatpush1.msra.mxu0 0.0
      %3408 = vmatprep.subr.mxu0 0.0
      %3409 = vmatpush1.msra.mxu0 0.0
      %3410 = vmatprep.subr.mxu0 0.0
      %3411 = vmatpush1.msra.mxu0 0.0
      %3412 = vmatprep.subr.mxu0 0.0
      %3413 = vmatpush1.msra.mxu0 0.0
      %3414 = vmatprep.subr.mxu0 0.0
      %3415 = vmatpush1.msra.mxu0 0.0
      %3416 = vmatprep.subr.mxu0 0.0
      %3417 = vmatpush1.msra.mxu0 0.0
      %3418 = vmatprep.subr.mxu0 0.0
      %3419 = vmatpush1.msra.mxu0 0.0
      %3420 = vmatprep.subr.mxu0 0.0
      %3421 = vmatpush1.msra.mxu0 0.0
      %3422 = vmatprep.subr.mxu0 0.0
      %3423 = vmatpush1.msra.mxu0 0.0
      %3424 = vmatprep.subr.mxu0 0.0
      %3425 = vmatpush1.msra.mxu0 %v3297
      %3426 = vmatprep.subr.mxu0 0.0
      %3427 = vmatpush2.msra.mxu0 0.0
      %3428 = vmatprep.subr.mxu0 0.0
      %3429 = vmatpush2.msra.mxu0 0.0
      %3430 = vmatprep.subr.mxu0 0.0
      %3431 = vmatpush2.msra.mxu0 0.0
      %3432 = vmatprep.subr.mxu0 0.0
      %3433 = vmatpush2.msra.mxu0 0.0
      %3434 = vmatprep.subr.mxu0 0.0
      %3435 = vmatpush2.msra.mxu0 0.0
      %3436 = vmatprep.subr.mxu0 0.0
      %3437 = vmatpush2.msra.mxu0 0.0
      %3438 = vmatprep.subr.mxu0 0.0
      %3439 = vmatpush2.msra.mxu0 0.0
      %3440 = vmatprep.subr.mxu0 0.0
      %3441 = vmatpush2.msra.mxu0 0.0
      %3442 = vmatprep.subr.mxu0 0.0
      %3443 = vmatpush2.msra.mxu0 0.0
      %3444 = vmatprep.subr.mxu0 0.0
      %3445 = vmatpush2.msra.mxu0 0.0
      %3446 = vmatprep.subr.mxu0 0.0
      %3447 = vmatpush2.msra.mxu0 0.0
      %3448 = vmatprep.subr.mxu0 0.0
      %3449 = vmatpush2.msra.mxu0 0.0
      %3450 = vmatprep.subr.mxu0 0.0
      %3451 = vmatpush2.msra.mxu0 0.0
      %3452 = vmatprep.subr.mxu0 0.0
      %3453 = vmatpush2.msra.mxu0 0.0
      %3454 = vmatprep.subr.mxu0 0.0
      %3455 = vmatpush2.msra.mxu0 0.0
      %3456 = vmatprep.subr.mxu0 0.0
      %3457 = vmatpush2.msra.mxu0 0.0
      %3458 = vmatprep.mubr.f32.mxu0 0.0
      %3459 = vmatmul.mubr.f32.gmra.mxu0 %v3299
      %v3460 = vpop.f32.mrf.mxu0
      %v3461 = vadd.f32 0.0, %v3460
      %v3462 = vpop.f32.mrf.mxu0
      %3463 = vmatprep.mubr.f32.mxu0 0.0
      %3464 = vmatmul.mubr.f32.gmra.mxu0 %v3302
      %v3465 = vpop.f32.mrf.mxu0
      %v3466 = vadd.f32 0.0, %v3465
      %v3467 = vpop.f32.mrf.mxu0
      %3468 = vmatprep.mubr.f32.mxu0 0.0
      %3469 = vmatmul.mubr.f32.gmra.mxu0 %v3305
      %v3470 = vpop.f32.mrf.mxu0
      %v3471 = vadd.f32 0.0, %v3470
      %v3472 = vpop.f32.mrf.mxu0
      %3473 = vmatprep.mubr.f32.mxu0 0.0
      %3474 = vmatmul.mubr.f32.gmra.mxu0 %v3308
      %v3475 = vpop.f32.mrf.mxu0
      %v3476 = vadd.f32 0.0, %v3475
      %v3477 = vpop.f32.mrf.mxu0
      %3478 = vmatprep.mubr.f32.mxu0 0.0
      %3479 = vmatmul.mubr.f32.gmra.mxu0 %v3311
      %v3480 = vpop.f32.mrf.mxu0
      %v3481 = vadd.f32 0.0, %v3480
      %v3482 = vpop.f32.mrf.mxu0
      %3483 = vmatprep.mubr.f32.mxu0 0.0
      %3484 = vmatmul.mubr.f32.gmra.mxu0 %v3314
      %v3485 = vpop.f32.mrf.mxu0
      %v3486 = vadd.f32 0.0, %v3485
      %v3487 = vpop.f32.mrf.mxu0
      %3488 = vmatprep.mubr.f32.mxu0 0.0
      %3489 = vmatmul.mubr.f32.gmra.mxu0 %v3317
      %v3490 = vpop.f32.mrf.mxu0
      %v3491 = vadd.f32 0.0, %v3490
      %v3492 = vpop.f32.mrf.mxu0
      %3493 = vmatprep.mubr.f32.mxu0 0.0
      %3494 = vmatmul.mubr.f32.gmra.mxu0 %v3320
      %v3495 = vpop.f32.mrf.mxu0
      %v3496 = vadd.f32 0.0, %v3495
      %v3497 = vpop.f32.mrf.mxu0
      %3498 = vmatprep.mubr.f32.mxu0 0.0
      %3499 = vmatmul.mubr.f32.gmra.mxu0 %v3323
      %v3500 = vpop.f32.mrf.mxu0
      %v3501 = vadd.f32 0.0, %v3500
      %v3502 = vpop.f32.mrf.mxu0
      %3503 = vmatprep.mubr.f32.mxu0 0.0
      %3504 = vmatmul.mubr.f32.gmra.mxu0 %v3326
      %v3505 = vpop.f32.mrf.mxu0
      %v3506 = vadd.f32 0.0, %v3505
      %v3507 = vpop.f32.mrf.mxu0
      %3508 = vmatprep.mubr.f32.mxu0 0.0
      %3509 = vmatmul.mubr.f32.gmra.mxu0 %v3329
      %v3510 = vpop.f32.mrf.mxu0
      %v3511 = vadd.f32 0.0, %v3510
      %v3512 = vpop.f32.mrf.mxu0
      %3513 = vmatprep.mubr.f32.mxu0 0.0
      %3514 = vmatmul.mubr.f32.gmra.mxu0 %v3332
      %v3515 = vpop.f32.mrf.mxu0
      %v3516 = vadd.f32 0.0, %v3515
      %v3517 = vpop.f32.mrf.mxu0
      %3518 = vmatprep.mubr.f32.mxu0 0.0
      %3519 = vmatmul.mubr.f32.gmra.mxu0 %v3335
      %v3520 = vpop.f32.mrf.mxu0
      %v3521 = vadd.f32 0.0, %v3520
      %v3522 = vpop.f32.mrf.mxu0
      %3523 = vmatprep.mubr.f32.mxu0 0.0
      %3524 = vmatmul.mubr.f32.gmra.mxu0 %v3338
      %v3525 = vpop.f32.mrf.mxu0
      %v3526 = vadd.f32 0.0, %v3525
      %v3527 = vpop.f32.mrf.mxu0
      %3528 = vmatprep.mubr.f32.mxu0 0.0
      %3529 = vmatmul.mubr.f32.gmra.mxu0 %v3341
      %v3530 = vpop.f32.mrf.mxu0
      %v3531 = vadd.f32 0.0, %v3530
      %v3532 = vpop.f32.mrf.mxu0
      %3533 = vmatprep.mubr.f32.mxu0 0.0
      %3534 = vmatmul.mubr.f32.gmra.mxu0 %v3344
      %v3535 = vpop.f32.mrf.mxu0
      %v3536 = vadd.f32 0.0, %v3535
      %v3537 = vpop.f32.mrf.mxu0
      %3538 = vmatprep.mubr.f32.mxu0 0.0
      %3539 = vmatmul.mubr.f32.gmra.mxu0 %v3347
      %v3540 = vpop.f32.mrf.mxu0
      %v3541 = vadd.f32 0.0, %v3540
      %v3542 = vpop.f32.mrf.mxu0
      %3543 = vmatprep.mubr.f32.mxu0 0.0
      %3544 = vmatmul.mubr.f32.gmra.mxu0 %v3350
      %v3545 = vpop.f32.mrf.mxu0
      %v3546 = vadd.f32 0.0, %v3545
      %v3547 = vpop.f32.mrf.mxu0
      %3548 = vmatprep.mubr.f32.mxu0 0.0
      %3549 = vmatmul.mubr.f32.gmra.mxu0 %v3353
      %v3550 = vpop.f32.mrf.mxu0
      %v3551 = vadd.f32 0.0, %v3550
      %v3552 = vpop.f32.mrf.mxu0
      %3553 = vmatprep.mubr.f32.mxu0 0.0
      %3554 = vmatmul.mubr.f32.gmra.mxu0 %v3356
      %v3555 = vpop.f32.mrf.mxu0
      %v3556 = vadd.f32 0.0, %v3555
      %v3557 = vpop.f32.mrf.mxu0
      %3558 = vmatprep.mubr.f32.mxu0 0.0
      %3559 = vmatmul.mubr.f32.gmra.mxu0 %v3359
      %v3560 = vpop.f32.mrf.mxu0
      %v3561 = vadd.f32 0.0, %v3560
      %v3562 = vpop.f32.mrf.mxu0
      %3563 = vmatprep.mubr.f32.mxu0 0.0
      %3564 = vmatmul.mubr.f32.gmra.mxu0 %v3362
      %v3565 = vpop.f32.mrf.mxu0
      %v3566 = vadd.f32 0.0, %v3565
      %v3567 = vpop.f32.mrf.mxu0
      %3568 = vmatprep.mubr.f32.mxu0 0.0
      %3569 = vmatmul.mubr.f32.gmra.mxu0 %v3365
      %v3570 = vpop.f32.mrf.mxu0
      %v3571 = vadd.f32 0.0, %v3570
      %v3572 = vpop.f32.mrf.mxu0
      %3573 = vmatprep.mubr.f32.mxu0 0.0
      %3574 = vmatmul.mubr.f32.gmra.mxu0 %v3368
      %v3575 = vpop.f32.mrf.mxu0
      %v3576 = vadd.f32 0.0, %v3575
      %v3577 = vpop.f32.mrf.mxu0
      %3578 = vmatprep.mubr.f32.mxu0 0.0
      %3579 = vmatmul.mubr.f32.gmra.mxu0 %v3371
      %v3580 = vpop.f32.mrf.mxu0
      %v3581 = vadd.f32 0.0, %v3580
      %v3582 = vpop.f32.mrf.mxu0
      %3583 = vmatprep.mubr.f32.mxu0 0.0
      %3584 = vmatmul.mubr.f32.gmra.mxu0 %v3374
      %v3585 = vpop.f32.mrf.mxu0
      %v3586 = vadd.f32 0.0, %v3585
      %v3587 = vpop.f32.mrf.mxu0
      %3588 = vmatprep.mubr.f32.mxu0 0.0
      %3589 = vmatmul.mubr.f32.gmra.mxu0 %v3377
      %v3590 = vpop.f32.mrf.mxu0
      %v3591 = vadd.f32 0.0, %v3590
      %v3592 = vpop.f32.mrf.mxu0
      %3593 = vmatprep.mubr.f32.mxu0 0.0
      %3594 = vmatmul.mubr.f32.gmra.mxu0 %v3380
      %v3595 = vpop.f32.mrf.mxu0
      %v3596 = vadd.f32 0.0, %v3595
      %v3597 = vpop.f32.mrf.mxu0
      %3598 = vmatprep.mubr.f32.mxu0 0.0
      %3599 = vmatmul.mubr.f32.gmra.mxu0 %v3383
      %v3600 = vpop.f32.mrf.mxu0
      %v3601 = vadd.f32 0.0, %v3600
      %v3602 = vpop.f32.mrf.mxu0
      %3603 = vmatprep.mubr.f32.mxu0 0.0
      %3604 = vmatmul.mubr.f32.gmra.mxu0 %v3386
      %v3605 = vpop.f32.mrf.mxu0
      %v3606 = vadd.f32 0.0, %v3605
      %v3607 = vpop.f32.mrf.mxu0
      %3608 = vmatprep.mubr.f32.mxu0 0.0
      %3609 = vmatmul.mubr.f32.gmra.mxu0 %v3389
      %v3610 = vpop.f32.mrf.mxu0
      %v3611 = vadd.f32 0.0, %v3610
      %v3612 = vpop.f32.mrf.mxu0
      %3613 = vmatprep.mubr.f32.mxu0 0.0
      %3614 = vmatmul.mubr.f32.gmra.mxu0 %v3392
      %v3615 = vpop.f32.mrf.mxu0
      %v3616 = vadd.f32 0.0, %v3615
      %v3617 = vpop.f32.mrf.mxu0
      %3618 = vdwg.mxu0
      %v3619 = vld [vmem:[#allocation2] sm:$0xff]
      %v3620 = vld [vmem:[#allocation2 + $0x8] sm:$0xff]
      %v3621 = vld [vmem:[#allocation2 + $0x10] sm:$0xff]
      %v3622 = vld [vmem:[#allocation2 + $0x18] sm:$0xff]
      %v3623 = vld [vmem:[#allocation2 + $0x20] sm:$0xff]
      %v3624 = vld [vmem:[#allocation2 + $0x28] sm:$0xff]
      %v3625 = vld [vmem:[#allocation2 + $0x30] sm:$0xff]
      %v3626 = vld [vmem:[#allocation2 + $0x38] sm:$0xff]
      %v3627 = vld [vmem:[#allocation2 + $0x40] sm:$0xff]
      %v3628 = vld [vmem:[#allocation2 + $0x48] sm:$0xff]
      %v3629 = vld [vmem:[#allocation2 + $0x50] sm:$0xff]
      %v3630 = vld [vmem:[#allocation2 + $0x58] sm:$0xff]
      %v3631 = vld [vmem:[#allocation2 + $0x60] sm:$0xff]
      %v3632 = vld [vmem:[#allocation2 + $0x68] sm:$0xff]
      %v3633 = vld [vmem:[#allocation2 + $0x70] sm:$0xff]
      %v3634 = vld [vmem:[#allocation2 + $0x78] sm:$0xff]
      %v3635 = vld [vmem:[#allocation2 + $0x80] sm:$0xff]
      %v3636 = vld [vmem:[#allocation2 + $0x88] sm:$0xff]
      %v3637 = vld [vmem:[#allocation2 + $0x90] sm:$0xff]
      %v3638 = vld [vmem:[#allocation2 + $0x98] sm:$0xff]
      %v3639 = vld [vmem:[#allocation2 + $0xa0] sm:$0xff]
      %v3640 = vld [vmem:[#allocation2 + $0xa8] sm:$0xff]
      %v3641 = vld [vmem:[#allocation2 + $0xb0] sm:$0xff]
      %v3642 = vld [vmem:[#allocation2 + $0xb8] sm:$0xff]
      %v3643 = vld [vmem:[#allocation2 + $0xc0] sm:$0xff]
      %v3644 = vld [vmem:[#allocation2 + $0xc8] sm:$0xff]
      %v3645 = vld [vmem:[#allocation2 + $0xd0] sm:$0xff]
      %v3646 = vld [vmem:[#allocation2 + $0xd8] sm:$0xff]
      %v3647 = vld [vmem:[#allocation2 + $0xe0] sm:$0xff]
      %v3648 = vld [vmem:[#allocation2 + $0xe8] sm:$0xff]
      %v3649 = vld [vmem:[#allocation2 + $0xf0] sm:$0xff]
      %v3650 = vld [vmem:[#allocation2 + $0xf8] sm:$0xff]
      %v3651 = vadd.f32 %v3619, %v3461
      %v3652 = vadd.f32 %v3620, %v3466
      %v3653 = vadd.f32 %v3621, %v3471
      %v3654 = vadd.f32 %v3622, %v3476
      %v3655 = vadd.f32 %v3623, %v3481
      %v3656 = vadd.f32 %v3624, %v3486
      %v3657 = vadd.f32 %v3625, %v3491
      %v3658 = vadd.f32 %v3626, %v3496
      %v3659 = vadd.f32 %v3627, %v3501
      %v3660 = vadd.f32 %v3628, %v3506
      %v3661 = vadd.f32 %v3629, %v3511
      %v3662 = vadd.f32 %v3630, %v3516
      %v3663 = vadd.f32 %v3631, %v3521
      %v3664 = vadd.f32 %v3632, %v3526
      %v3665 = vadd.f32 %v3633, %v3531
      %v3666 = vadd.f32 %v3634, %v3536
      %v3667 = vadd.f32 %v3635, %v3541
      %v3668 = vadd.f32 %v3636, %v3546
      %v3669 = vadd.f32 %v3637, %v3551
      %v3670 = vadd.f32 %v3638, %v3556
      %v3671 = vadd.f32 %v3639, %v3561
      %v3672 = vadd.f32 %v3640, %v3566
      %v3673 = vadd.f32 %v3641, %v3571
      %v3674 = vadd.f32 %v3642, %v3576
      %v3675 = vadd.f32 %v3643, %v3581
      %v3676 = vadd.f32 %v3644, %v3586
      %v3677 = vadd.f32 %v3645, %v3591
      %v3678 = vadd.f32 %v3646, %v3596
      %v3679 = vadd.f32 %v3647, %v3601
      %v3680 = vadd.f32 %v3648, %v3606
      %v3681 = vadd.f32 %v3649, %v3611
      %v3682 = vadd.f32 %v3650, %v3616
      %3683 = vst [vmem:[#allocation2] sm:$0xff] %v3651
      %3684 = vst [vmem:[#allocation2 + $0x8] sm:$0xff] %v3652
      %3685 = vst [vmem:[#allocation2 + $0x10] sm:$0xff] %v3653
      %3686 = vst [vmem:[#allocation2 + $0x18] sm:$0xff] %v3654
      %3687 = vst [vmem:[#allocation2 + $0x20] sm:$0xff] %v3655
      %3688 = vst [vmem:[#allocation2 + $0x28] sm:$0xff] %v3656
      %3689 = vst [vmem:[#allocation2 + $0x30] sm:$0xff] %v3657
      %3690 = vst [vmem:[#allocation2 + $0x38] sm:$0xff] %v3658
      %3691 = vst [vmem:[#allocation2 + $0x40] sm:$0xff] %v3659
      %3692 = vst [vmem:[#allocation2 + $0x48] sm:$0xff] %v3660
      %3693 = vst [vmem:[#allocation2 + $0x50] sm:$0xff] %v3661
      %3694 = vst [vmem:[#allocation2 + $0x58] sm:$0xff] %v3662
      %3695 = vst [vmem:[#allocation2 + $0x60] sm:$0xff] %v3663
      %3696 = vst [vmem:[#allocation2 + $0x68] sm:$0xff] %v3664
      %3697 = vst [vmem:[#allocation2 + $0x70] sm:$0xff] %v3665
      %3698 = vst [vmem:[#allocation2 + $0x78] sm:$0xff] %v3666
      %3699 = vst [vmem:[#allocation2 + $0x80] sm:$0xff] %v3667
      %3700 = vst [vmem:[#allocation2 + $0x88] sm:$0xff] %v3668
      %3701 = vst [vmem:[#allocation2 + $0x90] sm:$0xff] %v3669
      %3702 = vst [vmem:[#allocation2 + $0x98] sm:$0xff] %v3670
      %3703 = vst [vmem:[#allocation2 + $0xa0] sm:$0xff] %v3671
      %3704 = vst [vmem:[#allocation2 + $0xa8] sm:$0xff] %v3672
      %3705 = vst [vmem:[#allocation2 + $0xb0] sm:$0xff] %v3673
      %3706 = vst [vmem:[#allocation2 + $0xb8] sm:$0xff] %v3674
      %3707 = vst [vmem:[#allocation2 + $0xc0] sm:$0xff] %v3675
      %3708 = vst [vmem:[#allocation2 + $0xc8] sm:$0xff] %v3676
      %3709 = vst [vmem:[#allocation2 + $0xd0] sm:$0xff] %v3677
      %3710 = vst [vmem:[#allocation2 + $0xd8] sm:$0xff] %v3678
      %3711 = vst [vmem:[#allocation2 + $0xe0] sm:$0xff] %v3679
      %3712 = vst [vmem:[#allocation2 + $0xe8] sm:$0xff] %v3680
      %3713 = vst [vmem:[#allocation2 + $0xf0] sm:$0xff] %v3681
      %3714 = vst [vmem:[#allocation2 + $0xf8] sm:$0xff] %v3682
      %v3715 = vld [vmem:[%s2812 + $0x2] sm:$0xff]
      %v3716 = vld [vmem:[%s2812 + $0xa] sm:$0xff]
      %v3717 = vld [vmem:[%s2812 + $0x1a] sm:$0xff]
      %v3718 = vld [vmem:[%s2812 + $0x22] sm:$0xff]
      %v3719 = vld [vmem:[%s2812 + $0x32] sm:$0xff]
      %v3720 = vld [vmem:[%s2812 + $0x3a] sm:$0xff]
      %v3721 = vld [vmem:[%s2812 + $0x4a] sm:$0xff]
      %v3722 = vld [vmem:[%s2812 + $0x52] sm:$0xff]
      %v3723 = vld [vmem:[%s2812 + $0x62] sm:$0xff]
      %v3724 = vld [vmem:[%s2812 + $0x6a] sm:$0xff]
      %v3725 = vld [vmem:[%s2812 + $0x7a] sm:$0xff]
      %v3726 = vld [vmem:[%s2812 + $0x82] sm:$0xff]
      %v3727 = vld [vmem:[%s2812 + $0x92] sm:$0xff]
      %v3728 = vld [vmem:[%s2812 + $0x9a] sm:$0xff]
      %v3729 = vld [vmem:[%s2812 + $0xaa] sm:$0xff]
      %v3730 = vld [vmem:[%s2812 + $0xb2] sm:$0xff]
      %v3731 = vld [vmem:[%s2812 + $0xc2] sm:$0xff]
      %v3732 = vld [vmem:[%s2812 + $0xca] sm:$0xff]
      %v3733 = vld [vmem:[%s2812 + $0xda] sm:$0xff]
      %v3734 = vld [vmem:[%s2812 + $0xe2] sm:$0xff]
      %v3735 = vld [vmem:[%s2812 + $0xf2] sm:$0xff]
      %v3736 = vld [vmem:[%s2812 + $0xfa] sm:$0xff]
      %v3737 = vld [vmem:[%s2812 + $0x10a] sm:$0xff]
      %v3738 = vld [vmem:[%s2812 + $0x112] sm:$0xff]
      %v3739 = vld [vmem:[%s2812 + $0x122] sm:$0xff]
      %v3740 = vld [vmem:[%s2812 + $0x12a] sm:$0xff]
      %v3741 = vld [vmem:[%s2812 + $0x13a] sm:$0xff]
      %v3742 = vld [vmem:[%s2812 + $0x142] sm:$0xff]
      %v3743 = vld [vmem:[%s2812 + $0x152] sm:$0xff]
      %v3744 = vld [vmem:[%s2812 + $0x15a] sm:$0xff]
      %v3745 = vld [vmem:[%s2812 + $0x16a] sm:$0xff]
      %v3746 = vld [vmem:[%s2812 + $0x172] sm:$0xff]
      %s3747 = scalar_lea.vmem %s1, 64
      %v3748 = vld [vmem:[%s3747] sm:$0xff]
      %v3750 = vsel %vm202, %v3715, 0
      %v3753 = vsel %vm202, %v3716, 0
      %v3756 = vsel %vm202, %v3717, 0
      %v3759 = vsel %vm202, %v3718, 0
      %v3762 = vsel %vm202, %v3719, 0
      %v3765 = vsel %vm202, %v3720, 0
      %v3768 = vsel %vm202, %v3721, 0
      %v3771 = vsel %vm202, %v3722, 0
      %v3774 = vsel %vm202, %v3723, 0
      %v3777 = vsel %vm202, %v3724, 0
      %v3780 = vsel %vm202, %v3725, 0
      %v3783 = vsel %vm202, %v3726, 0
      %v3786 = vsel %vm202, %v3727, 0
      %v3789 = vsel %vm202, %v3728, 0
      %v3792 = vsel %vm202, %v3729, 0
      %v3795 = vsel %vm202, %v3730, 0
      %v3798 = vsel %vm202, %v3731, 0
      %v3801 = vsel %vm202, %v3732, 0
      %v3804 = vsel %vm202, %v3733, 0
      %v3807 = vsel %vm202, %v3734, 0
      %v3810 = vsel %vm202, %v3735, 0
      %v3813 = vsel %vm202, %v3736, 0
      %v3816 = vsel %vm202, %v3737, 0
      %v3819 = vsel %vm202, %v3738, 0
      %v3822 = vsel %vm202, %v3739, 0
      %v3825 = vsel %vm202, %v3740, 0
      %v3828 = vsel %vm202, %v3741, 0
      %v3831 = vsel %vm202, %v3742, 0
      %v3834 = vsel %vm202, %v3743, 0
      %v3837 = vsel %vm202, %v3744, 0
      %v3840 = vsel %vm202, %v3745, 0
      %v3843 = vsel %vm202, %v3746, 0
      %3845 = vmatprep.subr.mxu0 0.0
      %3846 = vmatpush1.msra.mxu0 0.0
      %3847 = vmatprep.subr.mxu0 0.0
      %3848 = vmatpush1.msra.mxu0 0.0
      %3849 = vmatprep.subr.mxu0 0.0
      %3850 = vmatpush1.msra.mxu0 0.0
      %3851 = vmatprep.subr.mxu0 0.0
      %3852 = vmatpush1.msra.mxu0 0.0
      %3853 = vmatprep.subr.mxu0 0.0
      %3854 = vmatpush1.msra.mxu0 0.0
      %3855 = vmatprep.subr.mxu0 0.0
      %3856 = vmatpush1.msra.mxu0 0.0
      %3857 = vmatprep.subr.mxu0 0.0
      %3858 = vmatpush1.msra.mxu0 0.0
      %3859 = vmatprep.subr.mxu0 0.0
      %3860 = vmatpush1.msra.mxu0 0.0
      %3861 = vmatprep.subr.mxu0 0.0
      %3862 = vmatpush1.msra.mxu0 0.0
      %3863 = vmatprep.subr.mxu0 0.0
      %3864 = vmatpush1.msra.mxu0 0.0
      %3865 = vmatprep.subr.mxu0 0.0
      %3866 = vmatpush1.msra.mxu0 0.0
      %3867 = vmatprep.subr.mxu0 0.0
      %3868 = vmatpush1.msra.mxu0 0.0
      %3869 = vmatprep.subr.mxu0 0.0
      %3870 = vmatpush1.msra.mxu0 0.0
      %3871 = vmatprep.subr.mxu0 0.0
      %3872 = vmatpush1.msra.mxu0 0.0
      %3873 = vmatprep.subr.mxu0 0.0
      %3874 = vmatpush1.msra.mxu0 0.0
      %3875 = vmatprep.subr.mxu0 0.0
      %3876 = vmatpush1.msra.mxu0 %v3748
      %3877 = vmatprep.subr.mxu0 0.0
      %3878 = vmatpush2.msra.mxu0 0.0
      %3879 = vmatprep.subr.mxu0 0.0
      %3880 = vmatpush2.msra.mxu0 0.0
      %3881 = vmatprep.subr.mxu0 0.0
      %3882 = vmatpush2.msra.mxu0 0.0
      %3883 = vmatprep.subr.mxu0 0.0
      %3884 = vmatpush2.msra.mxu0 0.0
      %3885 = vmatprep.subr.mxu0 0.0
      %3886 = vmatpush2.msra.mxu0 0.0
      %3887 = vmatprep.subr.mxu0 0.0
      %3888 = vmatpush2.msra.mxu0 0.0
      %3889 = vmatprep.subr.mxu0 0.0
      %3890 = vmatpush2.msra.mxu0 0.0
      %3891 = vmatprep.subr.mxu0 0.0
      %3892 = vmatpush2.msra.mxu0 0.0
      %3893 = vmatprep.subr.mxu0 0.0
      %3894 = vmatpush2.msra.mxu0 0.0
      %3895 = vmatprep.subr.mxu0 0.0
      %3896 = vmatpush2.msra.mxu0 0.0
      %3897 = vmatprep.subr.mxu0 0.0
      %3898 = vmatpush2.msra.mxu0 0.0
      %3899 = vmatprep.subr.mxu0 0.0
      %3900 = vmatpush2.msra.mxu0 0.0
      %3901 = vmatprep.subr.mxu0 0.0
      %3902 = vmatpush2.msra.mxu0 0.0
      %3903 = vmatprep.subr.mxu0 0.0
      %3904 = vmatpush2.msra.mxu0 0.0
      %3905 = vmatprep.subr.mxu0 0.0
      %3906 = vmatpush2.msra.mxu0 0.0
      %3907 = vmatprep.subr.mxu0 0.0
      %3908 = vmatpush2.msra.mxu0 0.0
      %3909 = vmatprep.mubr.f32.mxu0 0.0
      %3910 = vmatmul.mubr.f32.gmra.mxu0 %v3750
      %v3911 = vpop.f32.mrf.mxu0
      %v3912 = vadd.f32 0.0, %v3911
      %v3913 = vpop.f32.mrf.mxu0
      %3914 = vmatprep.mubr.f32.mxu0 0.0
      %3915 = vmatmul.mubr.f32.gmra.mxu0 %v3753
      %v3916 = vpop.f32.mrf.mxu0
      %v3917 = vadd.f32 0.0, %v3916
      %v3918 = vpop.f32.mrf.mxu0
      %3919 = vmatprep.mubr.f32.mxu0 0.0
      %3920 = vmatmul.mubr.f32.gmra.mxu0 %v3756
      %v3921 = vpop.f32.mrf.mxu0
      %v3922 = vadd.f32 0.0, %v3921
      %v3923 = vpop.f32.mrf.mxu0
      %3924 = vmatprep.mubr.f32.mxu0 0.0
      %3925 = vmatmul.mubr.f32.gmra.mxu0 %v3759
      %v3926 = vpop.f32.mrf.mxu0
      %v3927 = vadd.f32 0.0, %v3926
      %v3928 = vpop.f32.mrf.mxu0
      %3929 = vmatprep.mubr.f32.mxu0 0.0
      %3930 = vmatmul.mubr.f32.gmra.mxu0 %v3762
      %v3931 = vpop.f32.mrf.mxu0
      %v3932 = vadd.f32 0.0, %v3931
      %v3933 = vpop.f32.mrf.mxu0
      %3934 = vmatprep.mubr.f32.mxu0 0.0
      %3935 = vmatmul.mubr.f32.gmra.mxu0 %v3765
      %v3936 = vpop.f32.mrf.mxu0
      %v3937 = vadd.f32 0.0, %v3936
      %v3938 = vpop.f32.mrf.mxu0
      %3939 = vmatprep.mubr.f32.mxu0 0.0
      %3940 = vmatmul.mubr.f32.gmra.mxu0 %v3768
      %v3941 = vpop.f32.mrf.mxu0
      %v3942 = vadd.f32 0.0, %v3941
      %v3943 = vpop.f32.mrf.mxu0
      %3944 = vmatprep.mubr.f32.mxu0 0.0
      %3945 = vmatmul.mubr.f32.gmra.mxu0 %v3771
      %v3946 = vpop.f32.mrf.mxu0
      %v3947 = vadd.f32 0.0, %v3946
      %v3948 = vpop.f32.mrf.mxu0
      %3949 = vmatprep.mubr.f32.mxu0 0.0
      %3950 = vmatmul.mubr.f32.gmra.mxu0 %v3774
      %v3951 = vpop.f32.mrf.mxu0
      %v3952 = vadd.f32 0.0, %v3951
      %v3953 = vpop.f32.mrf.mxu0
      %3954 = vmatprep.mubr.f32.mxu0 0.0
      %3955 = vmatmul.mubr.f32.gmra.mxu0 %v3777
      %v3956 = vpop.f32.mrf.mxu0
      %v3957 = vadd.f32 0.0, %v3956
      %v3958 = vpop.f32.mrf.mxu0
      %3959 = vmatprep.mubr.f32.mxu0 0.0
      %3960 = vmatmul.mubr.f32.gmra.mxu0 %v3780
      %v3961 = vpop.f32.mrf.mxu0
      %v3962 = vadd.f32 0.0, %v3961
      %v3963 = vpop.f32.mrf.mxu0
      %3964 = vmatprep.mubr.f32.mxu0 0.0
      %3965 = vmatmul.mubr.f32.gmra.mxu0 %v3783
      %v3966 = vpop.f32.mrf.mxu0
      %v3967 = vadd.f32 0.0, %v3966
      %v3968 = vpop.f32.mrf.mxu0
      %3969 = vmatprep.mubr.f32.mxu0 0.0
      %3970 = vmatmul.mubr.f32.gmra.mxu0 %v3786
      %v3971 = vpop.f32.mrf.mxu0
      %v3972 = vadd.f32 0.0, %v3971
      %v3973 = vpop.f32.mrf.mxu0
      %3974 = vmatprep.mubr.f32.mxu0 0.0
      %3975 = vmatmul.mubr.f32.gmra.mxu0 %v3789
      %v3976 = vpop.f32.mrf.mxu0
      %v3977 = vadd.f32 0.0, %v3976
      %v3978 = vpop.f32.mrf.mxu0
      %3979 = vmatprep.mubr.f32.mxu0 0.0
      %3980 = vmatmul.mubr.f32.gmra.mxu0 %v3792
      %v3981 = vpop.f32.mrf.mxu0
      %v3982 = vadd.f32 0.0, %v3981
      %v3983 = vpop.f32.mrf.mxu0
      %3984 = vmatprep.mubr.f32.mxu0 0.0
      %3985 = vmatmul.mubr.f32.gmra.mxu0 %v3795
      %v3986 = vpop.f32.mrf.mxu0
      %v3987 = vadd.f32 0.0, %v3986
      %v3988 = vpop.f32.mrf.mxu0
      %3989 = vmatprep.mubr.f32.mxu0 0.0
      %3990 = vmatmul.mubr.f32.gmra.mxu0 %v3798
      %v3991 = vpop.f32.mrf.mxu0
      %v3992 = vadd.f32 0.0, %v3991
      %v3993 = vpop.f32.mrf.mxu0
      %3994 = vmatprep.mubr.f32.mxu0 0.0
      %3995 = vmatmul.mubr.f32.gmra.mxu0 %v3801
      %v3996 = vpop.f32.mrf.mxu0
      %v3997 = vadd.f32 0.0, %v3996
      %v3998 = vpop.f32.mrf.mxu0
      %3999 = vmatprep.mubr.f32.mxu0 0.0
      %4000 = vmatmul.mubr.f32.gmra.mxu0 %v3804
      %v4001 = vpop.f32.mrf.mxu0
      %v4002 = vadd.f32 0.0, %v4001
      %v4003 = vpop.f32.mrf.mxu0
      %4004 = vmatprep.mubr.f32.mxu0 0.0
      %4005 = vmatmul.mubr.f32.gmra.mxu0 %v3807
      %v4006 = vpop.f32.mrf.mxu0
      %v4007 = vadd.f32 0.0, %v4006
      %v4008 = vpop.f32.mrf.mxu0
      %4009 = vmatprep.mubr.f32.mxu0 0.0
      %4010 = vmatmul.mubr.f32.gmra.mxu0 %v3810
      %v4011 = vpop.f32.mrf.mxu0
      %v4012 = vadd.f32 0.0, %v4011
      %v4013 = vpop.f32.mrf.mxu0
      %4014 = vmatprep.mubr.f32.mxu0 0.0
      %4015 = vmatmul.mubr.f32.gmra.mxu0 %v3813
      %v4016 = vpop.f32.mrf.mxu0
      %v4017 = vadd.f32 0.0, %v4016
      %v4018 = vpop.f32.mrf.mxu0
      %4019 = vmatprep.mubr.f32.mxu0 0.0
      %4020 = vmatmul.mubr.f32.gmra.mxu0 %v3816
      %v4021 = vpop.f32.mrf.mxu0
      %v4022 = vadd.f32 0.0, %v4021
      %v4023 = vpop.f32.mrf.mxu0
      %4024 = vmatprep.mubr.f32.mxu0 0.0
      %4025 = vmatmul.mubr.f32.gmra.mxu0 %v3819
      %v4026 = vpop.f32.mrf.mxu0
      %v4027 = vadd.f32 0.0, %v4026
      %v4028 = vpop.f32.mrf.mxu0
      %4029 = vmatprep.mubr.f32.mxu0 0.0
      %4030 = vmatmul.mubr.f32.gmra.mxu0 %v3822
      %v4031 = vpop.f32.mrf.mxu0
      %v4032 = vadd.f32 0.0, %v4031
      %v4033 = vpop.f32.mrf.mxu0
      %4034 = vmatprep.mubr.f32.mxu0 0.0
      %4035 = vmatmul.mubr.f32.gmra.mxu0 %v3825
      %v4036 = vpop.f32.mrf.mxu0
      %v4037 = vadd.f32 0.0, %v4036
      %v4038 = vpop.f32.mrf.mxu0
      %4039 = vmatprep.mubr.f32.mxu0 0.0
      %4040 = vmatmul.mubr.f32.gmra.mxu0 %v3828
      %v4041 = vpop.f32.mrf.mxu0
      %v4042 = vadd.f32 0.0, %v4041
      %v4043 = vpop.f32.mrf.mxu0
      %4044 = vmatprep.mubr.f32.mxu0 0.0
      %4045 = vmatmul.mubr.f32.gmra.mxu0 %v3831
      %v4046 = vpop.f32.mrf.mxu0
      %v4047 = vadd.f32 0.0, %v4046
      %v4048 = vpop.f32.mrf.mxu0
      %4049 = vmatprep.mubr.f32.mxu0 0.0
      %4050 = vmatmul.mubr.f32.gmra.mxu0 %v3834
      %v4051 = vpop.f32.mrf.mxu0
      %v4052 = vadd.f32 0.0, %v4051
      %v4053 = vpop.f32.mrf.mxu0
      %4054 = vmatprep.mubr.f32.mxu0 0.0
      %4055 = vmatmul.mubr.f32.gmra.mxu0 %v3837
      %v4056 = vpop.f32.mrf.mxu0
      %v4057 = vadd.f32 0.0, %v4056
      %v4058 = vpop.f32.mrf.mxu0
      %4059 = vmatprep.mubr.f32.mxu0 0.0
      %4060 = vmatmul.mubr.f32.gmra.mxu0 %v3840
      %v4061 = vpop.f32.mrf.mxu0
      %v4062 = vadd.f32 0.0, %v4061
      %v4063 = vpop.f32.mrf.mxu0
      %4064 = vmatprep.mubr.f32.mxu0 0.0
      %4065 = vmatmul.mubr.f32.gmra.mxu0 %v3843
      %v4066 = vpop.f32.mrf.mxu0
      %v4067 = vadd.f32 0.0, %v4066
      %v4068 = vpop.f32.mrf.mxu0
      %4069 = vdwg.mxu0
      %v4070 = vld [vmem:[#allocation2] sm:$0xff]
      %v4071 = vld [vmem:[#allocation2 + $0x8] sm:$0xff]
      %v4072 = vld [vmem:[#allocation2 + $0x10] sm:$0xff]
      %v4073 = vld [vmem:[#allocation2 + $0x18] sm:$0xff]
      %v4074 = vld [vmem:[#allocation2 + $0x20] sm:$0xff]
      %v4075 = vld [vmem:[#allocation2 + $0x28] sm:$0xff]
      %v4076 = vld [vmem:[#allocation2 + $0x30] sm:$0xff]
      %v4077 = vld [vmem:[#allocation2 + $0x38] sm:$0xff]
      %v4078 = vld [vmem:[#allocation2 + $0x40] sm:$0xff]
      %v4079 = vld [vmem:[#allocation2 + $0x48] sm:$0xff]
      %v4080 = vld [vmem:[#allocation2 + $0x50] sm:$0xff]
      %v4081 = vld [vmem:[#allocation2 + $0x58] sm:$0xff]
      %v4082 = vld [vmem:[#allocation2 + $0x60] sm:$0xff]
      %v4083 = vld [vmem:[#allocation2 + $0x68] sm:$0xff]
      %v4084 = vld [vmem:[#allocation2 + $0x70] sm:$0xff]
      %v4085 = vld [vmem:[#allocation2 + $0x78] sm:$0xff]
      %v4086 = vld [vmem:[#allocation2 + $0x80] sm:$0xff]
      %v4087 = vld [vmem:[#allocation2 + $0x88] sm:$0xff]
      %v4088 = vld [vmem:[#allocation2 + $0x90] sm:$0xff]
      %v4089 = vld [vmem:[#allocation2 + $0x98] sm:$0xff]
      %v4090 = vld [vmem:[#allocation2 + $0xa0] sm:$0xff]
      %v4091 = vld [vmem:[#allocation2 + $0xa8] sm:$0xff]
      %v4092 = vld [vmem:[#allocation2 + $0xb0] sm:$0xff]
      %v4093 = vld [vmem:[#allocation2 + $0xb8] sm:$0xff]
      %v4094 = vld [vmem:[#allocation2 + $0xc0] sm:$0xff]
      %v4095 = vld [vmem:[#allocation2 + $0xc8] sm:$0xff]
      %v4096 = vld [vmem:[#allocation2 + $0xd0] sm:$0xff]
      %v4097 = vld [vmem:[#allocation2 + $0xd8] sm:$0xff]
      %v4098 = vld [vmem:[#allocation2 + $0xe0] sm:$0xff]
      %v4099 = vld [vmem:[#allocation2 + $0xe8] sm:$0xff]
      %v4100 = vld [vmem:[#allocation2 + $0xf0] sm:$0xff]
      %v4101 = vld [vmem:[#allocation2 + $0xf8] sm:$0xff]
      %v4102 = vadd.f32 %v4070, %v3912
      %v4103 = vadd.f32 %v4071, %v3917
      %v4104 = vadd.f32 %v4072, %v3922
      %v4105 = vadd.f32 %v4073, %v3927
      %v4106 = vadd.f32 %v4074, %v3932
      %v4107 = vadd.f32 %v4075, %v3937
      %v4108 = vadd.f32 %v4076, %v3942
      %v4109 = vadd.f32 %v4077, %v3947
      %v4110 = vadd.f32 %v4078, %v3952
      %v4111 = vadd.f32 %v4079, %v3957
      %v4112 = vadd.f32 %v4080, %v3962
      %v4113 = vadd.f32 %v4081, %v3967
      %v4114 = vadd.f32 %v4082, %v3972
      %v4115 = vadd.f32 %v4083, %v3977
      %v4116 = vadd.f32 %v4084, %v3982
      %v4117 = vadd.f32 %v4085, %v3987
      %v4118 = vadd.f32 %v4086, %v3992
      %v4119 = vadd.f32 %v4087, %v3997
      %v4120 = vadd.f32 %v4088, %v4002
      %v4121 = vadd.f32 %v4089, %v4007
      %v4122 = vadd.f32 %v4090, %v4012
      %v4123 = vadd.f32 %v4091, %v4017
      %v4124 = vadd.f32 %v4092, %v4022
      %v4125 = vadd.f32 %v4093, %v4027
      %v4126 = vadd.f32 %v4094, %v4032
      %v4127 = vadd.f32 %v4095, %v4037
      %v4128 = vadd.f32 %v4096, %v4042
      %v4129 = vadd.f32 %v4097, %v4047
      %v4130 = vadd.f32 %v4098, %v4052
      %v4131 = vadd.f32 %v4099, %v4057
      %v4132 = vadd.f32 %v4100, %v4062
      %v4133 = vadd.f32 %v4101, %v4067
      %4134 = vst [vmem:[#allocation2] sm:$0xff] %v4102
      %4135 = vst [vmem:[#allocation2 + $0x8] sm:$0xff] %v4103
      %4136 = vst [vmem:[#allocation2 + $0x10] sm:$0xff] %v4104
      %4137 = vst [vmem:[#allocation2 + $0x18] sm:$0xff] %v4105
      %4138 = vst [vmem:[#allocation2 + $0x20] sm:$0xff] %v4106
      %4139 = vst [vmem:[#allocation2 + $0x28] sm:$0xff] %v4107
      %4140 = vst [vmem:[#allocation2 + $0x30] sm:$0xff] %v4108
      %4141 = vst [vmem:[#allocation2 + $0x38] sm:$0xff] %v4109
      %4142 = vst [vmem:[#allocation2 + $0x40] sm:$0xff] %v4110
      %4143 = vst [vmem:[#allocation2 + $0x48] sm:$0xff] %v4111
      %4144 = vst [vmem:[#allocation2 + $0x50] sm:$0xff] %v4112
      %4145 = vst [vmem:[#allocation2 + $0x58] sm:$0xff] %v4113
      %4146 = vst [vmem:[#allocation2 + $0x60] sm:$0xff] %v4114
      %4147 = vst [vmem:[#allocation2 + $0x68] sm:$0xff] %v4115
      %4148 = vst [vmem:[#allocation2 + $0x70] sm:$0xff] %v4116
      %4149 = vst [vmem:[#allocation2 + $0x78] sm:$0xff] %v4117
      %4150 = vst [vmem:[#allocation2 + $0x80] sm:$0xff] %v4118
      %4151 = vst [vmem:[#allocation2 + $0x88] sm:$0xff] %v4119
      %4152 = vst [vmem:[#allocation2 + $0x90] sm:$0xff] %v4120
      %4153 = vst [vmem:[#allocation2 + $0x98] sm:$0xff] %v4121
      %4154 = vst [vmem:[#allocation2 + $0xa0] sm:$0xff] %v4122
      %4155 = vst [vmem:[#allocation2 + $0xa8] sm:$0xff] %v4123
      %4156 = vst [vmem:[#allocation2 + $0xb0] sm:$0xff] %v4124
      %4157 = vst [vmem:[#allocation2 + $0xb8] sm:$0xff] %v4125
      %4158 = vst [vmem:[#allocation2 + $0xc0] sm:$0xff] %v4126
      %4159 = vst [vmem:[#allocation2 + $0xc8] sm:$0xff] %v4127
      %4160 = vst [vmem:[#allocation2 + $0xd0] sm:$0xff] %v4128
      %4161 = vst [vmem:[#allocation2 + $0xd8] sm:$0xff] %v4129
      %4162 = vst [vmem:[#allocation2 + $0xe0] sm:$0xff] %v4130
      %4163 = vst [vmem:[#allocation2 + $0xe8] sm:$0xff] %v4131
      %4164 = vst [vmem:[#allocation2 + $0xf0] sm:$0xff] %v4132
      %4165 = vst [vmem:[#allocation2 + $0xf8] sm:$0xff] %v4133
      %v4166 = vld [vmem:[#allocation2] sm:$0xff]
      %v4167 = vld [vmem:[#allocation2 + $0x8] sm:$0xff]
      %v4168 = vld [vmem:[#allocation2 + $0x10] sm:$0xff]
      %v4169 = vld [vmem:[#allocation2 + $0x18] sm:$0xff]
      %v4170 = vld [vmem:[#allocation2 + $0x20] sm:$0xff]
      %v4171 = vld [vmem:[#allocation2 + $0x28] sm:$0xff]
      %v4172 = vld [vmem:[#allocation2 + $0x30] sm:$0xff]
      %v4173 = vld [vmem:[#allocation2 + $0x38] sm:$0xff]
      %v4174 = vld [vmem:[#allocation2 + $0x40] sm:$0xff]
      %v4175 = vld [vmem:[#allocation2 + $0x48] sm:$0xff]
      %v4176 = vld [vmem:[#allocation2 + $0x50] sm:$0xff]
      %v4177 = vld [vmem:[#allocation2 + $0x58] sm:$0xff]
      %v4178 = vld [vmem:[#allocation2 + $0x60] sm:$0xff]
      %v4179 = vld [vmem:[#allocation2 + $0x68] sm:$0xff]
      %v4180 = vld [vmem:[#allocation2 + $0x70] sm:$0xff]
      %v4181 = vld [vmem:[#allocation2 + $0x78] sm:$0xff]
      %v4182 = vld [vmem:[#allocation2 + $0x80] sm:$0xff]
      %v4183 = vld [vmem:[#allocation2 + $0x88] sm:$0xff]
      %v4184 = vld [vmem:[#allocation2 + $0x90] sm:$0xff]
      %v4185 = vld [vmem:[#allocation2 + $0x98] sm:$0xff]
      %v4186 = vld [vmem:[#allocation2 + $0xa0] sm:$0xff]
      %v4187 = vld [vmem:[#allocation2 + $0xa8] sm:$0xff]
      %v4188 = vld [vmem:[#allocation2 + $0xb0] sm:$0xff]
      %v4189 = vld [vmem:[#allocation2 + $0xb8] sm:$0xff]
      %v4190 = vld [vmem:[#allocation2 + $0xc0] sm:$0xff]
      %v4191 = vld [vmem:[#allocation2 + $0xc8] sm:$0xff]
      %v4192 = vld [vmem:[#allocation2 + $0xd0] sm:$0xff]
      %v4193 = vld [vmem:[#allocation2 + $0xd8] sm:$0xff]
      %v4194 = vld [vmem:[#allocation2 + $0xe0] sm:$0xff]
      %v4195 = vld [vmem:[#allocation2 + $0xe8] sm:$0xff]
      %v4196 = vld [vmem:[#allocation2 + $0xf0] sm:$0xff]
      %v4197 = vld [vmem:[#allocation2 + $0xf8] sm:$0xff]
      %v4198 = vld [vmem:[%s2] sm:$0x1]
      %v4200 = vlaneseq
      %v4201 = vshrl.u32 %v4200, 7
      %v4202 = vsub.s32 0, %v4201
      %v4203 = vrot.slane %v4198, %v4202
      %v4205 = vadd.f32 %v4166, %v4203
      %v4206 = vadd.f32 %v4167, %v4203
      %v4207 = vadd.f32 %v4168, %v4203
      %v4208 = vadd.f32 %v4169, %v4203
      %v4209 = vadd.f32 %v4170, %v4203
      %v4210 = vadd.f32 %v4171, %v4203
      %v4211 = vadd.f32 %v4172, %v4203
      %v4212 = vadd.f32 %v4173, %v4203
      %v4213 = vadd.f32 %v4174, %v4203
      %v4214 = vadd.f32 %v4175, %v4203
      %v4215 = vadd.f32 %v4176, %v4203
      %v4216 = vadd.f32 %v4177, %v4203
      %v4217 = vadd.f32 %v4178, %v4203
      %v4218 = vadd.f32 %v4179, %v4203
      %v4219 = vadd.f32 %v4180, %v4203
      %v4220 = vadd.f32 %v4181, %v4203
      %v4221 = vadd.f32 %v4182, %v4203
      %v4222 = vadd.f32 %v4183, %v4203
      %v4223 = vadd.f32 %v4184, %v4203
      %v4224 = vadd.f32 %v4185, %v4203
      %v4225 = vadd.f32 %v4186, %v4203
      %v4226 = vadd.f32 %v4187, %v4203
      %v4227 = vadd.f32 %v4188, %v4203
      %v4228 = vadd.f32 %v4189, %v4203
      %v4229 = vadd.f32 %v4190, %v4203
      %v4230 = vadd.f32 %v4191, %v4203
      %v4231 = vadd.f32 %v4192, %v4203
      %v4232 = vadd.f32 %v4193, %v4203
      %v4233 = vadd.f32 %v4194, %v4203
      %v4234 = vadd.f32 %v4195, %v4203
      %v4235 = vadd.f32 %v4196, %v4203
      %v4236 = vadd.f32 %v4197, %v4203
      %v4237 = vadd.f32 %v4205, %v4206
      %v4238 = vadd.f32 %v4237, %v4207
      %v4239 = vadd.f32 %v4238, %v4208
      %v4240 = vadd.f32 %v4239, %v4209
      %v4241 = vadd.f32 %v4240, %v4210
      %v4242 = vadd.f32 %v4241, %v4211
      %v4243 = vadd.f32 %v4242, %v4212
      %v4244 = vadd.f32 %v4243, %v4213
      %v4245 = vadd.f32 %v4244, %v4214
      %v4246 = vadd.f32 %v4245, %v4215
      %v4247 = vadd.f32 %v4246, %v4216
      %v4248 = vadd.f32 %v4247, %v4217
      %v4249 = vadd.f32 %v4248, %v4218
      %v4250 = vadd.f32 %v4249, %v4219
      %v4251 = vadd.f32 %v4250, %v4220
      %v4252 = vadd.f32 %v4251, %v4221
      %v4253 = vadd.f32 %v4252, %v4222
      %v4254 = vadd.f32 %v4253, %v4223
      %v4255 = vadd.f32 %v4254, %v4224
      %v4256 = vadd.f32 %v4255, %v4225
      %v4257 = vadd.f32 %v4256, %v4226
      %v4258 = vadd.f32 %v4257, %v4227
      %v4259 = vadd.f32 %v4258, %v4228
      %v4260 = vadd.f32 %v4259, %v4229
      %v4261 = vadd.f32 %v4260, %v4230
      %v4262 = vadd.f32 %v4261, %v4231
      %v4263 = vadd.f32 %v4262, %v4232
      %v4264 = vadd.f32 %v4263, %v4233
      %v4265 = vadd.f32 %v4264, %v4234
      %v4266 = vadd.f32 %v4265, %v4235
      %v4267 = vadd.f32 %v4266, %v4236
      %v4268 = vrot.slane %v4267, 4
      %v4269 = vadd.f32 %v4267, %v4268
      %v4270 = vrot.slane %v4269, 2
      %v4271 = vadd.f32 %v4269, %v4270
      %v4272 = vrot.slane %v4271, 1
      %v4273 = vadd.f32 %v4271, %v4272
      %v4274 = vmul.f32 %v4205, %v4205
      %v4275 = vmul.f32 %v4206, %v4206
      %v4276 = vmul.f32 %v4207, %v4207
      %v4277 = vmul.f32 %v4208, %v4208
      %v4278 = vmul.f32 %v4209, %v4209
      %v4279 = vmul.f32 %v4210, %v4210
      %v4280 = vmul.f32 %v4211, %v4211
      %v4281 = vmul.f32 %v4212, %v4212
      %v4282 = vmul.f32 %v4213, %v4213
      %v4283 = vmul.f32 %v4214, %v4214
      %v4284 = vmul.f32 %v4215, %v4215
      %v4285 = vmul.f32 %v4216, %v4216
      %v4286 = vmul.f32 %v4217, %v4217
      %v4287 = vmul.f32 %v4218, %v4218
      %v4288 = vmul.f32 %v4219, %v4219
      %v4289 = vmul.f32 %v4220, %v4220
      %v4290 = vmul.f32 %v4221, %v4221
      %v4291 = vmul.f32 %v4222, %v4222
      %v4292 = vmul.f32 %v4223, %v4223
      %v4293 = vmul.f32 %v4224, %v4224
      %v4294 = vmul.f32 %v4225, %v4225
      %v4295 = vmul.f32 %v4226, %v4226
      %v4296 = vmul.f32 %v4227, %v4227
      %v4297 = vmul.f32 %v4228, %v4228
      %v4298 = vmul.f32 %v4229, %v4229
      %v4299 = vmul.f32 %v4230, %v4230
      %v4300 = vmul.f32 %v4231, %v4231
      %v4301 = vmul.f32 %v4232, %v4232
      %v4302 = vmul.f32 %v4233, %v4233
      %v4303 = vmul.f32 %v4234, %v4234
      %v4304 = vmul.f32 %v4235, %v4235
      %v4305 = vmul.f32 %v4236, %v4236
      %v4306 = vadd.f32 %v4274, %v4275
      %v4307 = vadd.f32 %v4306, %v4276
      %v4308 = vadd.f32 %v4307, %v4277
      %v4309 = vadd.f32 %v4308, %v4278
      %v4310 = vadd.f32 %v4309, %v4279
      %v4311 = vadd.f32 %v4310, %v4280
      %v4312 = vadd.f32 %v4311, %v4281
      %v4313 = vadd.f32 %v4312, %v4282
      %v4314 = vadd.f32 %v4313, %v4283
      %v4315 = vadd.f32 %v4314, %v4284
      %v4316 = vadd.f32 %v4315, %v4285
      %v4317 = vadd.f32 %v4316, %v4286
      %v4318 = vadd.f32 %v4317, %v4287
      %v4319 = vadd.f32 %v4318, %v4288
      %v4320 = vadd.f32 %v4319, %v4289
      %v4321 = vadd.f32 %v4320, %v4290
      %v4322 = vadd.f32 %v4321, %v4291
      %v4323 = vadd.f32 %v4322, %v4292
      %v4324 = vadd.f32 %v4323, %v4293
      %v4325 = vadd.f32 %v4324, %v4294
      %v4326 = vadd.f32 %v4325, %v4295
      %v4327 = vadd.f32 %v4326, %v4296
      %v4328 = vadd.f32 %v4327, %v4297
      %v4329 = vadd.f32 %v4328, %v4298
      %v4330 = vadd.f32 %v4329, %v4299
      %v4331 = vadd.f32 %v4330, %v4300
      %v4332 = vadd.f32 %v4331, %v4301
      %v4333 = vadd.f32 %v4332, %v4302
      %v4334 = vadd.f32 %v4333, %v4303
      %v4335 = vadd.f32 %v4334, %v4304
      %v4336 = vadd.f32 %v4335, %v4305
      %v4337 = vrot.slane %v4336, 4
      %v4338 = vadd.f32 %v4336, %v4337
      %v4339 = vrot.slane %v4338, 2
      %v4340 = vadd.f32 %v4338, %v4339
      %v4341 = vrot.slane %v4340, 1
      %v4342 = vadd.f32 %v4340, %v4341
      %v4343 = vlaneseq
      %v4344 = vshrl.u32 %v4343, 7
      %vm4345 = vcmp.eq.s32.totalorder %v4344, 0
      %vm4346 = vcmp.eq.s32.totalorder %v4344, 1
      %v4347 = vsel %vm4346, %v4342, 0.0
      %v4348 = vsel %vm4345, %v4273, %v4347
      %4349 = vst [vmem:[%s168] sm:$0xff] %v4348
      %p4350 = scmp.lt.s32.totalorder %s14, 1
      %s4351 = scalar_select %p4350, %s14, 1
      %s4352 = smul.addr %s4351, 8
      %s4353 = scalar_lea.vmem %s3, %s4352
      // Predicated region
      $region33: #{conv_module_forward.2} parent=31 // pred_check
        %p4354 = pneg %p100
      $region34: #{conv_module_forward.2} parent=31 // pred_check_branch
        %4356 = sbr.rel (%p4354) target = $region36
      $region35: #{conv_module_forward.2} parent=31 // pred_region
        _
      $region36: #{conv_module_forward.2} parent=31 // pred_fallthru
        _
    $region32: #{conv_module_forward.2} parent=5 // pred_fallthru
      _
    %p4357 = scmp.le.s32.totalorder 2, %s9
    // Predicated region
    $region37: #{conv_module_forward.2} parent=5 // pred_check
      %p4358 = pneg %p4357
    $region38: #{conv_module_forward.2} parent=5 // pred_check_branch
      %4360 = sbr.rel (%p4358) target = $region40
    $region39: #{conv_module_forward.2} parent=5 // pred_region
      %s4361 = ssub.s32 %s9, 2
      // Predicated region
      $region41: #{conv_module_forward.2} parent=39 // pred_check
        %p4362 = pneg %p106
      $region42: #{conv_module_forward.2} parent=39 // pred_check_branch
        %4364 = sbr.rel (%p4362) target = $region44
      $region43: #{conv_module_forward.2} parent=39 // pred_region
        %p4365 = scmp.lt.s32.totalorder %s15, 1
        %s4366 = scalar_select %p4365, %s15, 1
        %s4367 = smul.addr %s4366, 8
        %s4368 = scalar_lea.vmem %s3, %s4367
      $region44: #{conv_module_forward.2} parent=39 // pred_fallthru
        _
    $region40: #{conv_module_forward.2} parent=5 // pred_fallthru
      _
  $region6: #{conv_module_forward.2} parent=0 // loop_footer
    %s13 = sadd.s32 1, %s9
  $region7: #{conv_module_forward.2} parent=0 // loop_footer_branch
    %8 = sbr.rel target = $region3
  $region8: #{conv_module_forward.2} parent=0 // loop_exit
    _

</llo_original>
